<compile_context>
chip_gen: v6e
topology: v6e:2x2x1
jax: 0.10.0
libtpu: 0.0.40
codegen_flags: <defaults>
</compile_context>

<pallas_src>
import functools
import math

import jax
import jax.numpy as jnp
from jax import lax
from jax.experimental import pallas as pl
from jax.experimental.pallas import tpu as pltpu


def _ceil_mult(x, m):
    return ((x + m - 1) // m) * m


# ----------------------------------------------------------------------------
# Pallas GEMM kernel:  o = [skip + out_scale *] act(a @ b + bias)
# ----------------------------------------------------------------------------

def _make_gemm_kernel(act, out_scale, has_skip):
    def kernel(*refs):
        if has_skip:
            a_ref, b_ref, bias_ref, skip_ref, o_ref = refs
        else:
            a_ref, b_ref, bias_ref, o_ref = refs
        # bf16 x bf16 -> f32 accumulate on the MXU; epilogue stays f32.
        y = jnp.dot(a_ref[...], b_ref[...], preferred_element_type=jnp.float32)
        y = y + bias_ref[...]
        if act == "leaky_relu":
            y = jnp.where(y >= 0.0, y, 0.2 * y)
        if has_skip:
            y = skip_ref[...] + out_scale * y
        o_ref[...] = y.astype(o_ref.dtype)
    return kernel


def gemm_bias_act(a, b, bias, *, act=None, skip=None, out_scale=1.0):
    """(M,K) @ (K,N) + bias, fused activation / residual.  bf16 in, f32 out."""
    M, K = a.shape
    Nout = b.shape[1]
    Np = _ceil_mult(Nout, 128)          # lane-dense output columns

    TM_target = 512                     # amortizes ~0.35us/step grid overhead
    Mp = _ceil_mult(M, 8)
    if Mp <= TM_target:
        TM = Mp                         # single M tile, no M padding copies
    else:
        TM = TM_target
        Mp = _ceil_mult(M, TM)

    a_p = a.astype(jnp.bfloat16)
    if Mp != M:
        a_p = jnp.pad(a_p, ((0, Mp - M), (0, 0)))
    b_p = jnp.pad(b.astype(jnp.bfloat16), ((0, 0), (0, Np - Nout)))
    bias_p = jnp.pad(bias.reshape(1, Nout).astype(jnp.float32),
                     ((0, 0), (0, Np - Nout)))

    in_specs = [
        pl.BlockSpec((TM, K), lambda i: (i, 0)),   # A tile (K full-extent, no pad)
        pl.BlockSpec((K, Np), lambda i: (0, 0)),   # B resident across the grid
        pl.BlockSpec((1, Np), lambda i: (0, 0)),   # bias resident
    ]
    args = [a_p, b_p, bias_p]
    if skip is not None:
        skip_p = jnp.pad(skip.astype(jnp.float32),
                         ((0, Mp - M), (0, Np - Nout)))
        in_specs.append(pl.BlockSpec((TM, Np), lambda i: (i, 0)))
        args.append(skip_p)

    out = pl.pallas_call(
        _make_gemm_kernel(act, out_scale, skip is not None),
        out_shape=jax.ShapeDtypeStruct((Mp, Np), jnp.float32),
        grid=(Mp // TM,),
        in_specs=in_specs,
        out_specs=pl.BlockSpec((TM, Np), lambda i: (i, 0)),
        compiler_params=pltpu.CompilerParams(
            dimension_semantics=("parallel",),        # megacore-splittable
            vmem_limit_bytes=48 * 1024 * 1024),       # safe on v5e/v6e/v7x
    )(*args)
    return out[:M, :Nout]


# ----------------------------------------------------------------------------
# Conv3d(k=3, pad=1, stride s) in NDHWC via channel-concat patches + Pallas GEMM
# ----------------------------------------------------------------------------

def conv3d(x, w, b, *, stride=1, act=None, skip=None, out_scale=1.0):
    """x:(N,D,H,W,Cin)  w:(Cout,Cin,3,3,3) (torch layout)  b:(Cout,).

    Optional fused residual: output = skip + out_scale * conv(x)."""
    N, D, H, W, C = x.shape
    Cout = w.shape[0]
    Do = (D - 1) // stride + 1
    Ho = (H - 1) // stride + 1
    Wo = (W - 1) // stride + 1

    xb = x.astype(jnp.bfloat16)                            # halve patch HBM bytes
    xp = jnp.pad(xb, ((0, 0), (1, 1), (1, 1), (1, 1), (0, 0)))
    taps = []
    for kd in range(3):
        for kh in range(3):
            for kw in range(3):
                taps.append(
                    xp[:,
                       kd:kd + stride * (Do - 1) + 1:stride,
                       kh:kh + stride * (Ho - 1) + 1:stride,
                       kw:kw + stride * (Wo - 1) + 1:stride,
                       :])
    # Channel-axis concat in NDHWC -> reshape below is a view (no transposes).
    # TODO(synk): next step is a tap-accumulating Pallas grid that reads the
    # padded input directly (no materialized patches tensor at all).
    patches = jnp.concatenate(taps, axis=-1)               # (N,Do,Ho,Wo,27*C)
    a = patches.reshape(N * Do * Ho * Wo, 27 * C)
    wmat = jnp.transpose(w, (2, 3, 4, 1, 0)).reshape(27 * C, Cout)
    skip2 = None if skip is None else skip.reshape(N * Do * Ho * Wo, Cout)

    out = gemm_bias_act(a, wmat, b, act=act, skip=skip2, out_scale=out_scale)
    return out.reshape(N, Do, Ho, Wo, Cout)


# ----------------------------------------------------------------------------
# AdaIN + LeakyReLU (Pallas, gridded over batch, parallel)
# ----------------------------------------------------------------------------

def _adain_kernel(x_ref, g_ref, beta_ref, o_ref, *, eps):
    x = x_ref[...].astype(jnp.float32)                       # (S, C)
    mu = jnp.mean(x, axis=0, keepdims=True)                  # (1, C)
    var = jnp.mean((x - mu) * (x - mu), axis=0, keepdims=True)
    xn = (x - mu) * lax.rsqrt(var + eps)
    y = g_ref[...] * xn + beta_ref[...]
    o_ref[...] = jnp.where(y >= 0.0, y, 0.2 * y)


def adain_act(x, gamma, beta, eps=1e-5):
    """x:(N,D,H,W,C)  gamma,beta:(N,C) -> instance-norm + affine + LeakyReLU."""
    N, D, H, W, C = x.shape
    S = D * H * W
    x2 = x.reshape(N, S, C)                                  # view (NDHWC kept)
    g2 = gamma.reshape(N, 1, C).astype(jnp.float32)
    b2 = beta.reshape(N, 1, C).astype(jnp.float32)
    # TODO(synk): at production spatial sizes, block S with a two-pass stats
    # pipeline instead of one full per-sample spatial block in VMEM.
    out = pl.pallas_call(
        functools.partial(_adain_kernel, eps=eps),
        out_shape=jax.ShapeDtypeStruct((N, S, C), jnp.float32),
        grid=(N,),
        in_specs=[pl.BlockSpec((None, S, C), lambda n: (n, 0, 0)),
                  pl.BlockSpec((None, 1, C), lambda n: (n, 0, 0)),
                  pl.BlockSpec((None, 1, C), lambda n: (n, 0, 0))],
        out_specs=pl.BlockSpec((None, S, C), lambda n: (n, 0, 0)),
        compiler_params=pltpu.CompilerParams(
            dimension_semantics=("parallel",)),
    )(x2, g2, b2)
    return out.reshape(N, D, H, W, C)


# ----------------------------------------------------------------------------
# 2x trilinear upsample (align_corners=False): static slice-and-lerp, no gather
# ----------------------------------------------------------------------------

def _upsample_axis_2x(x, axis):
    s = x.shape[axis]
    lo = lax.slice_in_dim(x, 0, 1, axis=axis)
    hi = lax.slice_in_dim(x, s - 1, s, axis=axis)
    xe = jnp.concatenate([lo, x, hi], axis=axis)           # replicate pad
    xm1 = lax.slice_in_dim(xe, 0, s, axis=axis)            # x[i-1]
    x0 = lax.slice_in_dim(xe, 1, s + 1, axis=axis)         # x[i]
    xp1 = lax.slice_in_dim(xe, 2, s + 2, axis=axis)        # x[i+1]
    even = 0.25 * xm1 + 0.75 * x0                          # out[2i]
    odd = 0.75 * x0 + 0.25 * xp1                           # out[2i+1]
    y = jnp.stack([even, odd], axis=axis + 1)
    shape = list(x.shape)
    shape[axis] = 2 * s
    return y.reshape(shape)


def upsample_trilinear_2x(x):
    # Fixed 2x, align_corners=False == per-axis constant (0.25, 0.75) lerp of
    # two static shifted slices; fuses to cheap VPU work in XLA (no jnp.take).
    for ax in (1, 2, 3):                                    # D, H, W of NDHWC
        x = _upsample_axis_2x(x, ax)
    return x


# ----------------------------------------------------------------------------
# Parameter init (deterministic, PyTorch-default-style uniform init)
# ----------------------------------------------------------------------------

def _conv_params(key, cin, cout):
    k1, k2 = jax.random.split(key)
    bound = 1.0 / math.sqrt(cin * 27)
    w = jax.random.uniform(k1, (cout, cin, 3, 3, 3), jnp.float32, -bound, bound)
    b = jax.random.uniform(k2, (cout,), jnp.float32, -bound, bound)
    return w, b


def _linear_params(key, din, dout):
    k1, k2 = jax.random.split(key)
    bound = 1.0 / math.sqrt(din)
    w = jax.random.uniform(k1, (din, dout), jnp.float32, -bound, bound)
    b = jax.random.uniform(k2, (dout,), jnp.float32, -bound, bound)
    return w, b


def make_params(key, nf, style_dim):
    keys = iter(jax.random.split(key, 32))
    p = {}
    p["init"] = _conv_params(next(keys), 1, nf)
    p["down0"] = _conv_params(next(keys), nf, 2 * nf)
    p["down1"] = _conv_params(next(keys), 2 * nf, 4 * nf)
    for i in range(3):
        p[f"res{i}_1"] = _conv_params(next(keys), 4 * nf, 4 * nf)
        p[f"res{i}_2"] = _conv_params(next(keys), 4 * nf, 4 * nf)
    dec_ch = [(4 * nf, 2 * nf), (2 * nf, nf), (nf, nf // 2)]
    for i, (cin, cout) in enumerate(dec_ch):
        p[f"ada{i}_conv"] = _conv_params(next(keys), cin, cout)
        p[f"ada{i}_fc"] = _linear_params(next(keys), style_dim, 2 * cout)
    p["final"] = _conv_params(next(keys), nf // 2, 1)
    return p


# ----------------------------------------------------------------------------
# ApperanceModelStyle forward
# ----------------------------------------------------------------------------

def apperance_model_style_forward(params, x, style):
    # Boundary: NCDHW (PyTorch) -> NDHWC internal layout (single tiny transpose).
    x_org = jnp.transpose(x, (0, 2, 3, 4, 1)).astype(jnp.float32)

    # init_layer
    h = conv3d(x_org, *params["init"], stride=1, act=None)

    # content_encoder: 2x ConvBlockDown (stride-2 conv + LeakyReLU)
    h = conv3d(h, *params["down0"], stride=2, act="leaky_relu")
    h = conv3d(h, *params["down1"], stride=2, act="leaky_relu")

    # content_encoder: 3x ResBlock; the residual add is fused into conv2's GEMM
    for i in range(3):
        r = conv3d(h, *params[f"res{i}_1"], stride=1, act="leaky_relu")
        h = conv3d(r, *params[f"res{i}_2"], stride=1, act=None,
                   skip=h, out_scale=1.0)

    # style_decoder: [ConvAdaIn, Up2x, ConvAdaIn, Up2x, ConvAdaIn]
    for i, do_up in ((0, True), (1, True), (2, False)):
        h = conv3d(h, *params[f"ada{i}_conv"], stride=1, act=None)
        fw, fb = params[f"ada{i}_fc"]
        gb = style.astype(jnp.float32) @ fw + fb            # tiny FC: plain XLA
        cout = gb.shape[1] // 2
        h = adain_act(h, gb[:, :cout], gb[:, cout:])
        if do_up:
            h = upsample_trilinear_2x(h)

    # final_layer with fused residual:  out = x_org + 0.1 * conv(h)
    out = conv3d(h, *params["final"], stride=1, act=None,
                 skip=x_org, out_scale=0.1)
    return jnp.transpose(out, (0, 4, 1, 2, 3))              # back to NCDHW


# ----------------------------------------------------------------------------
# Main
# ----------------------------------------------------------------------------

if __name__ == "__main__":
    nf = 4
    style_dim = 8
    batch, D = 2, 8

    key = jax.random.PRNGKey(0)
    kx, ks, kp = jax.random.split(key, 3)
    x = jax.random.normal(kx, (batch, 1, D, D, D), jnp.float32)
    style = jax.random.normal(ks, (batch, style_dim), jnp.float32)
    params = make_params(kp, nf, style_dim)

    fwd = jax.jit(apperance_model_style_forward)
    out = fwd(params, x, style)
    out = jax.block_until_ready(out)

    assert out.shape == x.shape, out.shape
    assert bool(jnp.all(jnp.isfinite(out)))
    print("KERNEL_OK")
</pallas_src>

<mosaic_0001>
module attributes {stable_mosaic.version = 11 : i64} {
  func.func @kernel(%arg0: i32, %arg1: memref<512x27xbf16, #tpu.memory_space<vmem>>, %arg2: memref<27x128xbf16, #tpu.memory_space<vmem>>, %arg3: memref<1x128xf32, #tpu.memory_space<vmem>>, %arg4: memref<512x128xf32, #tpu.memory_space<vmem>>) attributes {dimension_semantics = [#tpu.dimension_semantics<parallel>], iteration_bounds = array<i64: 2>, scalar_prefetch = 0 : i64, scratch_operands = 0 : i64, tpu.core_type = #tpu.core_type<tc>, window_params = [{transform_indices = @transform_0, window_bounds = array<i64: 512, 27>}, {pipeline_mode = #tpu.pipeline_mode<synchronous>, transform_indices = @transform_1, window_bounds = array<i64: 27, 128>}, {pipeline_mode = #tpu.pipeline_mode<synchronous>, transform_indices = @transform_2, window_bounds = array<i64: 1, 128>}, {transform_indices = @transform_3, window_bounds = array<i64: 512, 128>}]} {
    %c0 = arith.constant 0 : index
    %c0_0 = arith.constant 0 : index
    %0 = vector.load %arg1[%c0, %c0_0] : memref<512x27xbf16, #tpu.memory_space<vmem>>, vector<512x27xbf16>
    %c0_1 = arith.constant 0 : index
    %c0_2 = arith.constant 0 : index
    %1 = vector.load %arg2[%c0_1, %c0_2] : memref<27x128xbf16, #tpu.memory_space<vmem>>, vector<27x128xbf16>
    %cst = arith.constant dense<0.000000e+00> : vector<512x128xf32>
    %2 = tpu.matmul %0, %1, %cst {dimension_numbers = #tpu.dot_dimension_numbers<[1], [0], [0], [1], [0, 0, 1, 1], [], []>} : vector<512x27xbf16>, vector<27x128xbf16>, vector<512x128xf32> -> vector<512x128xf32>
    %c0_3 = arith.constant 0 : index
    %c0_4 = arith.constant 0 : index
    %3 = vector.load %arg3[%c0_3, %c0_4] : memref<1x128xf32, #tpu.memory_space<vmem>>, vector<1x128xf32>
    %4 = vector.broadcast %3 : vector<1x128xf32> to vector<512x128xf32>
    %5 = arith.addf %2, %4 : vector<512x128xf32>
    %c0_5 = arith.constant 0 : index
    %c0_6 = arith.constant 0 : index
    %6 = vector.load %arg4[%c0_5, %c0_6] : memref<512x128xf32, #tpu.memory_space<vmem>>, vector<512x128xf32>
    tpu.vector_store %arg4[%c0_5, %c0_6], %5 {strides = array<i32>} : memref<512x128xf32, #tpu.memory_space<vmem>>, vector<512x128xf32>,
    return
  }
  func.func @transform_0(%arg0: i32) -> (i32, i32) {
    %c0_i32 = arith.constant 0 : i32
    %c0_i32_0 = arith.constant 0 : i32
    return %arg0, %c0_i32 : i32, i32
  }
  func.func @transform_1(%arg0: i32) -> (i32, i32) {
    %c0_i32 = arith.constant 0 : i32
    %c0_i32_0 = arith.constant 0 : i32
    %c0_i32_1 = arith.constant 0 : i32
    return %c0_i32, %c0_i32_0 : i32, i32
  }
  func.func @transform_2(%arg0: i32) -> (i32, i32) {
    %c0_i32 = arith.constant 0 : i32
    %c0_i32_0 = arith.constant 0 : i32
    %c0_i32_1 = arith.constant 0 : i32
    return %c0_i32, %c0_i32_0 : i32, i32
  }
  func.func @transform_3(%arg0: i32) -> (i32, i32) {
    %c0_i32 = arith.constant 0 : i32
    %c0_i32_0 = arith.constant 0 : i32
    return %arg0, %c0_i32 : i32, i32
  }
}

module attributes {stable_mosaic.version = 11 : i64} {
  func.func @kernel(%arg0: i32, %arg1: memref<128x108xbf16, #tpu.memory_space<vmem>>, %arg2: memref<108x128xbf16, #tpu.memory_space<vmem>>, %arg3: memref<1x128xf32, #tpu.memory_space<vmem>>, %arg4: memref<128x128xf32, #tpu.memory_space<vmem>>) attributes {dimension_semantics = [#tpu.dimension_semantics<parallel>], iteration_bounds = array<i64: 1>, scalar_prefetch = 0 : i64, scratch_operands = 0 : i64, tpu.core_type = #tpu.core_type<tc>, window_params = [{transform_indices = @transform_0, window_bounds = array<i64: 128, 108>}, {pipeline_mode = #tpu.pipeline_mode<synchronous>, transform_indices = @transform_1, window_bounds = array<i64: 108, 128>}, {pipeline_mode = #tpu.pipeline_mode<synchronous>, transform_indices = @transform_2, window_bounds = array<i64: 1, 128>}, {transform_indices = @transform_3, window_bounds = array<i64: 128, 128>}]} {
    %c0 = arith.constant 0 : index
    %c0_0 = arith.constant 0 : index
    %0 = vector.load %arg1[%c0, %c0_0] : memref<128x108xbf16, #tpu.memory_space<vmem>>, vector<128x108xbf16>
    %c0_1 = arith.constant 0 : index
    %c0_2 = arith.constant 0 : index
    %1 = vector.load %arg2[%c0_1, %c0_2] : memref<108x128xbf16, #tpu.memory_space<vmem>>, vector<108x128xbf16>
    %cst = arith.constant dense<0.000000e+00> : vector<128x128xf32>
    %2 = tpu.matmul %0, %1, %cst {dimension_numbers = #tpu.dot_dimension_numbers<[1], [0], [0], [1], [0, 0, 1, 1], [], []>} : vector<128x108xbf16>, vector<108x128xbf16>, vector<128x128xf32> -> vector<128x128xf32>
    %c0_3 = arith.constant 0 : index
    %c0_4 = arith.constant 0 : index
    %3 = vector.load %arg3[%c0_3, %c0_4] : memref<1x128xf32, #tpu.memory_space<vmem>>, vector<1x128xf32>
    %4 = vector.broadcast %3 : vector<1x128xf32> to vector<128x128xf32>
    %5 = arith.addf %2, %4 : vector<128x128xf32>
    %cst_5 = arith.constant 0.000000e+00 : f32
    %6 = vector.broadcast %cst_5 : f32 to vector<128x128xf32>
    %7 = arith.cmpf oge, %5, %6 : vector<128x128xf32>
    %cst_6 = arith.constant 2.000000e-01 : f32
    %8 = vector.broadcast %cst_6 : f32 to vector<128x128xf32>
    %9 = arith.mulf %8, %5 : vector<128x128xf32>
    %10 = arith.select %7, %5, %9 : vector<128x128xi1>, vector<128x128xf32>
    %c0_7 = arith.constant 0 : index
    %c0_8 = arith.constant 0 : index
    %11 = vector.load %arg4[%c0_7, %c0_8] : memref<128x128xf32, #tpu.memory_space<vmem>>, vector<128x128xf32>
    tpu.vector_store %arg4[%c0_7, %c0_8], %10 {strides = array<i32>} : memref<128x128xf32, #tpu.memory_space<vmem>>, vector<128x128xf32>,
    return
  }
  func.func @transform_0(%arg0: i32) -> (i32, i32) {
    %c0_i32 = arith.constant 0 : i32
    %c0_i32_0 = arith.constant 0 : i32
    return %arg0, %c0_i32 : i32, i32
  }
  func.func @transform_1(%arg0: i32) -> (i32, i32) {
    %c0_i32 = arith.constant 0 : i32
    %c0_i32_0 = arith.constant 0 : i32
    %c0_i32_1 = arith.constant 0 : i32
    return %c0_i32, %c0_i32_0 : i32, i32
  }
  func.func @transform_2(%arg0: i32) -> (i32, i32) {
    %c0_i32 = arith.constant 0 : i32
    %c0_i32_0 = arith.constant 0 : i32
    %c0_i32_1 = arith.constant 0 : i32
    return %c0_i32, %c0_i32_0 : i32, i32
  }
  func.func @transform_3(%arg0: i32) -> (i32, i32) {
    %c0_i32 = arith.constant 0 : i32
    %c0_i32_0 = arith.constant 0 : i32
    return %arg0, %c0_i32 : i32, i32
  }
}

module attributes {stable_mosaic.version = 11 : i64} {
  func.func @kernel(%arg0: i32, %arg1: memref<16x216xbf16, #tpu.memory_space<vmem>>, %arg2: memref<216x128xbf16, #tpu.memory_space<vmem>>, %arg3: memref<1x128xf32, #tpu.memory_space<vmem>>, %arg4: memref<16x128xf32, #tpu.memory_space<vmem>>) attributes {dimension_semantics = [#tpu.dimension_semantics<parallel>], iteration_bounds = array<i64: 1>, scalar_prefetch = 0 : i64, scratch_operands = 0 : i64, tpu.core_type = #tpu.core_type<tc>, window_params = [{transform_indices = @transform_0, window_bounds = array<i64: 16, 216>}, {pipeline_mode = #tpu.pipeline_mode<synchronous>, transform_indices = @transform_1, window_bounds = array<i64: 216, 128>}, {pipeline_mode = #tpu.pipeline_mode<synchronous>, transform_indices = @transform_2, window_bounds = array<i64: 1, 128>}, {transform_indices = @transform_3, window_bounds = array<i64: 16, 128>}]} {
    %c0 = arith.constant 0 : index
    %c0_0 = arith.constant 0 : index
    %0 = vector.load %arg1[%c0, %c0_0] : memref<16x216xbf16, #tpu.memory_space<vmem>>, vector<16x216xbf16>
    %c0_1 = arith.constant 0 : index
    %c0_2 = arith.constant 0 : index
    %1 = vector.load %arg2[%c0_1, %c0_2] : memref<216x128xbf16, #tpu.memory_space<vmem>>, vector<216x128xbf16>
    %cst = arith.constant dense<0.000000e+00> : vector<16x128xf32>
    %2 = tpu.matmul %0, %1, %cst {dimension_numbers = #tpu.dot_dimension_numbers<[1], [0], [0], [1], [0, 0, 1, 1], [], []>} : vector<16x216xbf16>, vector<216x128xbf16>, vector<16x128xf32> -> vector<16x128xf32>
    %c0_3 = arith.constant 0 : index
    %c0_4 = arith.constant 0 : index
    %3 = vector.load %arg3[%c0_3, %c0_4] : memref<1x128xf32, #tpu.memory_space<vmem>>, vector<1x128xf32>
    %4 = vector.broadcast %3 : vector<1x128xf32> to vector<16x128xf32>
    %5 = arith.addf %2, %4 : vector<16x128xf32>
    %cst_5 = arith.constant 0.000000e+00 : f32
    %6 = vector.broadcast %cst_5 : f32 to vector<16x128xf32>
    %7 = arith.cmpf oge, %5, %6 : vector<16x128xf32>
    %cst_6 = arith.constant 2.000000e-01 : f32
    %8 = vector.broadcast %cst_6 : f32 to vector<16x128xf32>
    %9 = arith.mulf %8, %5 : vector<16x128xf32>
    %10 = arith.select %7, %5, %9 : vector<16x128xi1>, vector<16x128xf32>
    %c0_7 = arith.constant 0 : index
    %c0_8 = arith.constant 0 : index
    %11 = vector.load %arg4[%c0_7, %c0_8] : memref<16x128xf32, #tpu.memory_space<vmem>>, vector<16x128xf32>
    tpu.vector_store %arg4[%c0_7, %c0_8], %10 {strides = array<i32>} : memref<16x128xf32, #tpu.memory_space<vmem>>, vector<16x128xf32>,
    return
  }
  func.func @transform_0(%arg0: i32) -> (i32, i32) {
    %c0_i32 = arith.constant 0 : i32
    %c0_i32_0 = arith.constant 0 : i32
    return %arg0, %c0_i32 : i32, i32
  }
  func.func @transform_1(%arg0: i32) -> (i32, i32) {
    %c0_i32 = arith.constant 0 : i32
    %c0_i32_0 = arith.constant 0 : i32
    %c0_i32_1 = arith.constant 0 : i32
    return %c0_i32, %c0_i32_0 : i32, i32
  }
  func.func @transform_2(%arg0: i32) -> (i32, i32) {
    %c0_i32 = arith.constant 0 : i32
    %c0_i32_0 = arith.constant 0 : i32
    %c0_i32_1 = arith.constant 0 : i32
    return %c0_i32, %c0_i32_0 : i32, i32
  }
  func.func @transform_3(%arg0: i32) -> (i32, i32) {
    %c0_i32 = arith.constant 0 : i32
    %c0_i32_0 = arith.constant 0 : i32
    return %arg0, %c0_i32 : i32, i32
  }
}

module attributes {stable_mosaic.version = 11 : i64} {
  func.func @kernel(%arg0: i32, %arg1: memref<16x432xbf16, #tpu.memory_space<vmem>>, %arg2: memref<432x128xbf16, #tpu.memory_space<vmem>>, %arg3: memref<1x128xf32, #tpu.memory_space<vmem>>, %arg4: memref<16x128xf32, #tpu.memory_space<vmem>>, %arg5: memref<16x128xf32, #tpu.memory_space<vmem>>) attributes {dimension_semantics = [#tpu.dimension_semantics<parallel>], iteration_bounds = array<i64: 1>, scalar_prefetch = 0 : i64, scratch_operands = 0 : i64, tpu.core_type = #tpu.core_type<tc>, window_params = [{transform_indices = @transform_0, window_bounds = array<i64: 16, 432>}, {pipeline_mode = #tpu.pipeline_mode<synchronous>, transform_indices = @transform_1, window_bounds = array<i64: 432, 128>}, {pipeline_mode = #tpu.pipeline_mode<synchronous>, transform_indices = @transform_2, window_bounds = array<i64: 1, 128>}, {transform_indices = @transform_3, window_bounds = array<i64: 16, 128>}, {transform_indices = @transform_4, window_bounds = array<i64: 16, 128>}]} {
    %c0 = arith.constant 0 : index
    %c0_0 = arith.constant 0 : index
    %0 = vector.load %arg1[%c0, %c0_0] : memref<16x432xbf16, #tpu.memory_space<vmem>>, vector<16x432xbf16>
    %c0_1 = arith.constant 0 : index
    %c0_2 = arith.constant 0 : index
    %1 = vector.load %arg2[%c0_1, %c0_2] : memref<432x128xbf16, #tpu.memory_space<vmem>>, vector<432x128xbf16>
    %cst = arith.constant dense<0.000000e+00> : vector<16x128xf32>
    %2 = tpu.matmul %0, %1, %cst {dimension_numbers = #tpu.dot_dimension_numbers<[1], [0], [0], [1], [0, 0, 1, 1], [], []>} : vector<16x432xbf16>, vector<432x128xbf16>, vector<16x128xf32> -> vector<16x128xf32>
    %c0_3 = arith.constant 0 : index
    %c0_4 = arith.constant 0 : index
    %3 = vector.load %arg3[%c0_3, %c0_4] : memref<1x128xf32, #tpu.memory_space<vmem>>, vector<1x128xf32>
    %4 = vector.broadcast %3 : vector<1x128xf32> to vector<16x128xf32>
    %5 = arith.addf %2, %4 : vector<16x128xf32>
    %c0_5 = arith.constant 0 : index
    %c0_6 = arith.constant 0 : index
    %6 = vector.load %arg4[%c0_5, %c0_6] : memref<16x128xf32, #tpu.memory_space<vmem>>, vector<16x128xf32>
    %cst_7 = arith.constant 1.000000e+00 : f32
    %7 = vector.broadcast %cst_7 : f32 to vector<16x128xf32>
    %8 = arith.mulf %7, %5 : vector<16x128xf32>
    %9 = arith.addf %6, %8 : vector<16x128xf32>
    %c0_8 = arith.constant 0 : index
    %c0_9 = arith.constant 0 : index
    %10 = vector.load %arg5[%c0_8, %c0_9] : memref<16x128xf32, #tpu.memory_space<vmem>>, vector<16x128xf32>
    tpu.vector_store %arg5[%c0_8, %c0_9], %9 {strides = array<i32>} : memref<16x128xf32, #tpu.memory_space<vmem>>, vector<16x128xf32>,
    return
  }
  func.func @transform_0(%arg0: i32) -> (i32, i32) {
    %c0_i32 = arith.constant 0 : i32
    %c0_i32_0 = arith.constant 0 : i32
    return %arg0, %c0_i32 : i32, i32
  }
  func.func @transform_1(%arg0: i32) -> (i32, i32) {
    %c0_i32 = arith.constant 0 : i32
    %c0_i32_0 = arith.constant 0 : i32
    %c0_i32_1 = arith.constant 0 : i32
    return %c0_i32, %c0_i32_0 : i32, i32
  }
  func.func @transform_2(%arg0: i32) -> (i32, i32) {
    %c0_i32 = arith.constant 0 : i32
    %c0_i32_0 = arith.constant 0 : i32
    %c0_i32_1 = arith.constant 0 : i32
    return %c0_i32, %c0_i32_0 : i32, i32
  }
  func.func @transform_3(%arg0: i32) -> (i32, i32) {
    %c0_i32 = arith.constant 0 : i32
    %c0_i32_0 = arith.constant 0 : i32
    return %arg0, %c0_i32 : i32, i32
  }
  func.func @transform_4(%arg0: i32) -> (i32, i32) {
    %c0_i32 = arith.constant 0 : i32
    %c0_i32_0 = arith.constant 0 : i32
    return %arg0, %c0_i32 : i32, i32
  }
}

module attributes {stable_mosaic.version = 11 : i64} {
  func.func @kernel(%arg0: i32, %arg1: memref<16x432xbf16, #tpu.memory_space<vmem>>, %arg2: memref<432x128xbf16, #tpu.memory_space<vmem>>, %arg3: memref<1x128xf32, #tpu.memory_space<vmem>>, %arg4: memref<16x128xf32, #tpu.memory_space<vmem>>) attributes {dimension_semantics = [#tpu.dimension_semantics<parallel>], iteration_bounds = array<i64: 1>, scalar_prefetch = 0 : i64, scratch_operands = 0 : i64, tpu.core_type = #tpu.core_type<tc>, window_params = [{transform_indices = @transform_0, window_bounds = array<i64: 16, 432>}, {pipeline_mode = #tpu.pipeline_mode<synchronous>, transform_indices = @transform_1, window_bounds = array<i64: 432, 128>}, {pipeline_mode = #tpu.pipeline_mode<synchronous>, transform_indices = @transform_2, window_bounds = array<i64: 1, 128>}, {transform_indices = @transform_3, window_bounds = array<i64: 16, 128>}]} {
    %c0 = arith.constant 0 : index
    %c0_0 = arith.constant 0 : index
    %0 = vector.load %arg1[%c0, %c0_0] : memref<16x432xbf16, #tpu.memory_space<vmem>>, vector<16x432xbf16>
    %c0_1 = arith.constant 0 : index
    %c0_2 = arith.constant 0 : index
    %1 = vector.load %arg2[%c0_1, %c0_2] : memref<432x128xbf16, #tpu.memory_space<vmem>>, vector<432x128xbf16>
    %cst = arith.constant dense<0.000000e+00> : vector<16x128xf32>
    %2 = tpu.matmul %0, %1, %cst {dimension_numbers = #tpu.dot_dimension_numbers<[1], [0], [0], [1], [0, 0, 1, 1], [], []>} : vector<16x432xbf16>, vector<432x128xbf16>, vector<16x128xf32> -> vector<16x128xf32>
    %c0_3 = arith.constant 0 : index
    %c0_4 = arith.constant 0 : index
    %3 = vector.load %arg3[%c0_3, %c0_4] : memref<1x128xf32, #tpu.memory_space<vmem>>, vector<1x128xf32>
    %4 = vector.broadcast %3 : vector<1x128xf32> to vector<16x128xf32>
    %5 = arith.addf %2, %4 : vector<16x128xf32>
    %cst_5 = arith.constant 0.000000e+00 : f32
    %6 = vector.broadcast %cst_5 : f32 to vector<16x128xf32>
    %7 = arith.cmpf oge, %5, %6 : vector<16x128xf32>
    %cst_6 = arith.constant 2.000000e-01 : f32
    %8 = vector.broadcast %cst_6 : f32 to vector<16x128xf32>
    %9 = arith.mulf %8, %5 : vector<16x128xf32>
    %10 = arith.select %7, %5, %9 : vector<16x128xi1>, vector<16x128xf32>
    %c0_7 = arith.constant 0 : index
    %c0_8 = arith.constant 0 : index
    %11 = vector.load %arg4[%c0_7, %c0_8] : memref<16x128xf32, #tpu.memory_space<vmem>>, vector<16x128xf32>
    tpu.vector_store %arg4[%c0_7, %c0_8], %10 {strides = array<i32>} : memref<16x128xf32, #tpu.memory_space<vmem>>, vector<16x128xf32>,
    return
  }
  func.func @transform_0(%arg0: i32) -> (i32, i32) {
    %c0_i32 = arith.constant 0 : i32
    %c0_i32_0 = arith.constant 0 : i32
    return %arg0, %c0_i32 : i32, i32
  }
  func.func @transform_1(%arg0: i32) -> (i32, i32) {
    %c0_i32 = arith.constant 0 : i32
    %c0_i32_0 = arith.constant 0 : i32
    %c0_i32_1 = arith.constant 0 : i32
    return %c0_i32, %c0_i32_0 : i32, i32
  }
  func.func @transform_2(%arg0: i32) -> (i32, i32) {
    %c0_i32 = arith.constant 0 : i32
    %c0_i32_0 = arith.constant 0 : i32
    %c0_i32_1 = arith.constant 0 : i32
    return %c0_i32, %c0_i32_0 : i32, i32
  }
  func.func @transform_3(%arg0: i32) -> (i32, i32) {
    %c0_i32 = arith.constant 0 : i32
    %c0_i32_0 = arith.constant 0 : i32
    return %arg0, %c0_i32 : i32, i32
  }
}

module attributes {stable_mosaic.version = 11 : i64} {
  func.func @kernel(%arg0: i32, %arg1: memref<16x432xbf16, #tpu.memory_space<vmem>>, %arg2: memref<432x128xbf16, #tpu.memory_space<vmem>>, %arg3: memref<1x128xf32, #tpu.memory_space<vmem>>, %arg4: memref<16x128xf32, #tpu.memory_space<vmem>>) attributes {dimension_semantics = [#tpu.dimension_semantics<parallel>], iteration_bounds = array<i64: 1>, scalar_prefetch = 0 : i64, scratch_operands = 0 : i64, tpu.core_type = #tpu.core_type<tc>, window_params = [{transform_indices = @transform_0, window_bounds = array<i64: 16, 432>}, {pipeline_mode = #tpu.pipeline_mode<synchronous>, transform_indices = @transform_1, window_bounds = array<i64: 432, 128>}, {pipeline_mode = #tpu.pipeline_mode<synchronous>, transform_indices = @transform_2, window_bounds = array<i64: 1, 128>}, {transform_indices = @transform_3, window_bounds = array<i64: 16, 128>}]} {
    %c0 = arith.constant 0 : index
    %c0_0 = arith.constant 0 : index
    %0 = vector.load %arg1[%c0, %c0_0] : memref<16x432xbf16, #tpu.memory_space<vmem>>, vector<16x432xbf16>
    %c0_1 = arith.constant 0 : index
    %c0_2 = arith.constant 0 : index
    %1 = vector.load %arg2[%c0_1, %c0_2] : memref<432x128xbf16, #tpu.memory_space<vmem>>, vector<432x128xbf16>
    %cst = arith.constant dense<0.000000e+00> : vector<16x128xf32>
    %2 = tpu.matmul %0, %1, %cst {dimension_numbers = #tpu.dot_dimension_numbers<[1], [0], [0], [1], [0, 0, 1, 1], [], []>} : vector<16x432xbf16>, vector<432x128xbf16>, vector<16x128xf32> -> vector<16x128xf32>
    %c0_3 = arith.constant 0 : index
    %c0_4 = arith.constant 0 : index
    %3 = vector.load %arg3[%c0_3, %c0_4] : memref<1x128xf32, #tpu.memory_space<vmem>>, vector<1x128xf32>
    %4 = vector.broadcast %3 : vector<1x128xf32> to vector<16x128xf32>
    %5 = arith.addf %2, %4 : vector<16x128xf32>
    %c0_5 = arith.constant 0 : index
    %c0_6 = arith.constant 0 : index
    %6 = vector.load %arg4[%c0_5, %c0_6] : memref<16x128xf32, #tpu.memory_space<vmem>>, vector<16x128xf32>
    tpu.vector_store %arg4[%c0_5, %c0_6], %5 {strides = array<i32>} : memref<16x128xf32, #tpu.memory_space<vmem>>, vector<16x128xf32>,
    return
  }
  func.func @transform_0(%arg0: i32) -> (i32, i32) {
    %c0_i32 = arith.constant 0 : i32
    %c0_i32_0 = arith.constant 0 : i32
    return %arg0, %c0_i32 : i32, i32
  }
  func.func @transform_1(%arg0: i32) -> (i32, i32) {
    %c0_i32 = arith.constant 0 : i32
    %c0_i32_0 = arith.constant 0 : i32
    %c0_i32_1 = arith.constant 0 : i32
    return %c0_i32, %c0_i32_0 : i32, i32
  }
  func.func @transform_2(%arg0: i32) -> (i32, i32) {
    %c0_i32 = arith.constant 0 : i32
    %c0_i32_0 = arith.constant 0 : i32
    %c0_i32_1 = arith.constant 0 : i32
    return %c0_i32, %c0_i32_0 : i32, i32
  }
  func.func @transform_3(%arg0: i32) -> (i32, i32) {
    %c0_i32 = arith.constant 0 : i32
    %c0_i32_0 = arith.constant 0 : i32
    return %arg0, %c0_i32 : i32, i32
  }
}

module attributes {stable_mosaic.version = 11 : i64} {
  func.func @_adain_kernel(%arg0: i32, %arg1: memref<1x8x8xf32, #tpu.memory_space<vmem>>, %arg2: memref<1x1x8xf32, #tpu.memory_space<vmem>>, %arg3: memref<1x1x8xf32, #tpu.memory_space<vmem>>, %arg4: memref<1x8x8xf32, #tpu.memory_space<vmem>>) attributes {dimension_semantics = [#tpu.dimension_semantics<parallel>], iteration_bounds = array<i64: 2>, scalar_prefetch = 0 : i64, scratch_operands = 0 : i64, tpu.core_type = #tpu.core_type<tc>, window_params = [{transform_indices = @transform_0, window_bounds = array<i64: 1, 8, 8>}, {transform_indices = @transform_1, window_bounds = array<i64: 1, 1, 8>}, {transform_indices = @transform_2, window_bounds = array<i64: 1, 1, 8>}, {transform_indices = @transform_3, window_bounds = array<i64: 1, 8, 8>}]} {
    %c0 = arith.constant 0 : index
    %c0_0 = arith.constant 0 : index
    %c0_1 = arith.constant 0 : index
    %0 = vector.load %arg1[%c0, %c0_0, %c0_1] : memref<1x8x8xf32, #tpu.memory_space<vmem>>, vector<1x8x8xf32>
    %1 = vector.shape_cast %0 : vector<1x8x8xf32> to vector<8x8xf32>
    %cst = arith.constant dense<0.000000e+00> : vector<8xf32>
    %2 = vector.multi_reduction <add>, %1, %cst [0] : vector<8x8xf32> to vector<8xf32>
    %3 = vector.shape_cast %2 : vector<8xf32> to vector<1x8xf32>
    %cst_2 = arith.constant 8.000000e+00 : f32
    %4 = vector.broadcast %cst_2 : f32 to vector<1x8xf32>
    %5 = arith.divf %3, %4 : vector<1x8xf32>
    %6 = vector.broadcast %5 : vector<1x8xf32> to vector<8x8xf32>
    %7 = arith.subf %1, %6 : vector<8x8xf32>
    %8 = vector.broadcast %5 : vector<1x8xf32> to vector<8x8xf32>
    %9 = arith.subf %1, %8 : vector<8x8xf32>
    %10 = arith.mulf %7, %9 : vector<8x8xf32>
    %cst_3 = arith.constant dense<0.000000e+00> : vector<8xf32>
    %11 = vector.multi_reduction <add>, %10, %cst_3 [0] : vector<8x8xf32> to vector<8xf32>
    %12 = vector.shape_cast %11 : vector<8xf32> to vector<1x8xf32>
    %cst_4 = arith.constant 8.000000e+00 : f32
    %13 = vector.broadcast %cst_4 : f32 to vector<1x8xf32>
    %14 = arith.divf %12, %13 : vector<1x8xf32>
    %15 = vector.broadcast %5 : vector<1x8xf32> to vector<8x8xf32>
    %16 = arith.subf %1, %15 : vector<8x8xf32>
    %cst_5 = arith.constant 9.99999974E-6 : f32
    %17 = vector.broadcast %cst_5 : f32 to vector<1x8xf32>
    %18 = arith.addf %14, %17 : vector<1x8xf32>
    %19 = math.rsqrt %18 : vector<1x8xf32>
    %20 = vector.broadcast %19 : vector<1x8xf32> to vector<8x8xf32>
    %21 = arith.mulf %16, %20 : vector<8x8xf32>
    %c0_6 = arith.constant 0 : index
    %c0_7 = arith.constant 0 : index
    %c0_8 = arith.constant 0 : index
    %22 = vector.load %arg2[%c0_6, %c0_7, %c0_8] : memref<1x1x8xf32, #tpu.memory_space<vmem>>, vector<1x1x8xf32>
    %23 = vector.shape_cast %22 : vector<1x1x8xf32> to vector<1x8xf32>
    %24 = vector.broadcast %23 : vector<1x8xf32> to vector<8x8xf32>
    %25 = arith.mulf %24, %21 : vector<8x8xf32>
    %c0_9 = arith.constant 0 : index
    %c0_10 = arith.constant 0 : index
    %c0_11 = arith.constant 0 : index
    %26 = vector.load %arg3[%c0_9, %c0_10, %c0_11] : memref<1x1x8xf32, #tpu.memory_space<vmem>>, vector<1x1x8xf32>
    %27 = vector.shape_cast %26 : vector<1x1x8xf32> to vector<1x8xf32>
    %28 = vector.broadcast %27 : vector<1x8xf32> to vector<8x8xf32>
    %29 = arith.addf %25, %28 : vector<8x8xf32>
    %cst_12 = arith.constant 0.000000e+00 : f32
    %30 = vector.broadcast %cst_12 : f32 to vector<8x8xf32>
    %31 = arith.cmpf oge, %29, %30 : vector<8x8xf32>
    %cst_13 = arith.constant 2.000000e-01 : f32
    %32 = vector.broadcast %cst_13 : f32 to vector<8x8xf32>
    %33 = arith.mulf %32, %29 : vector<8x8xf32>
    %34 = arith.select %31, %29, %33 : vector<8x8xi1>, vector<8x8xf32>
    %c0_14 = arith.constant 0 : index
    %c0_15 = arith.constant 0 : index
    %c0_16 = arith.constant 0 : index
    %35 = vector.load %arg4[%c0_14, %c0_15, %c0_16] : memref<1x8x8xf32, #tpu.memory_space<vmem>>, vector<1x8x8xf32>
    %36 = vector.shape_cast %35 : vector<1x8x8xf32> to vector<8x8xf32>
    %37 = vector.shape_cast %34 : vector<8x8xf32> to vector<1x8x8xf32>
    tpu.vector_store %arg4[%c0_14, %c0_15, %c0_16], %37 {strides = array<i32>} : memref<1x8x8xf32, #tpu.memory_space<vmem>>, vector<1x8x8xf32>,
    return
  }
  func.func @transform_0(%arg0: i32) -> (i32, i32, i32) {
    %c0_i32 = arith.constant 0 : i32
    %c0_i32_0 = arith.constant 0 : i32
    %c0_i32_1 = arith.constant 0 : i32
    return %arg0, %c0_i32, %c0_i32_0 : i32, i32, i32
  }
  func.func @transform_1(%arg0: i32) -> (i32, i32, i32) {
    %c0_i32 = arith.constant 0 : i32
    %c0_i32_0 = arith.constant 0 : i32
    %c0_i32_1 = arith.constant 0 : i32
    return %arg0, %c0_i32, %c0_i32_0 : i32, i32, i32
  }
  func.func @transform_2(%arg0: i32) -> (i32, i32, i32) {
    %c0_i32 = arith.constant 0 : i32
    %c0_i32_0 = arith.constant 0 : i32
    %c0_i32_1 = arith.constant 0 : i32
    return %arg0, %c0_i32, %c0_i32_0 : i32, i32, i32
  }
  func.func @transform_3(%arg0: i32) -> (i32, i32, i32) {
    %c0_i32 = arith.constant 0 : i32
    %c0_i32_0 = arith.constant 0 : i32
    %c0_i32_1 = arith.constant 0 : i32
    return %arg0, %c0_i32, %c0_i32_0 : i32, i32, i32
  }
}

module attributes {stable_mosaic.version = 11 : i64} {
  func.func @kernel(%arg0: i32, %arg1: memref<128x216xbf16, #tpu.memory_space<vmem>>, %arg2: memref<216x128xbf16, #tpu.memory_space<vmem>>, %arg3: memref<1x128xf32, #tpu.memory_space<vmem>>, %arg4: memref<128x128xf32, #tpu.memory_space<vmem>>) attributes {dimension_semantics = [#tpu.dimension_semantics<parallel>], iteration_bounds = array<i64: 1>, scalar_prefetch = 0 : i64, scratch_operands = 0 : i64, tpu.core_type = #tpu.core_type<tc>, window_params = [{transform_indices = @transform_0, window_bounds = array<i64: 128, 216>}, {pipeline_mode = #tpu.pipeline_mode<synchronous>, transform_indices = @transform_1, window_bounds = array<i64: 216, 128>}, {pipeline_mode = #tpu.pipeline_mode<synchronous>, transform_indices = @transform_2, window_bounds = array<i64: 1, 128>}, {transform_indices = @transform_3, window_bounds = array<i64: 128, 128>}]} {
    %c0 = arith.constant 0 : index
    %c0_0 = arith.constant 0 : index
    %0 = vector.load %arg1[%c0, %c0_0] : memref<128x216xbf16, #tpu.memory_space<vmem>>, vector<128x216xbf16>
    %c0_1 = arith.constant 0 : index
    %c0_2 = arith.constant 0 : index
    %1 = vector.load %arg2[%c0_1, %c0_2] : memref<216x128xbf16, #tpu.memory_space<vmem>>, vector<216x128xbf16>
    %cst = arith.constant dense<0.000000e+00> : vector<128x128xf32>
    %2 = tpu.matmul %0, %1, %cst {dimension_numbers = #tpu.dot_dimension_numbers<[1], [0], [0], [1], [0, 0, 1, 1], [], []>} : vector<128x216xbf16>, vector<216x128xbf16>, vector<128x128xf32> -> vector<128x128xf32>
    %c0_3 = arith.constant 0 : index
    %c0_4 = arith.constant 0 : index
    %3 = vector.load %arg3[%c0_3, %c0_4] : memref<1x128xf32, #tpu.memory_space<vmem>>, vector<1x128xf32>
    %4 = vector.broadcast %3 : vector<1x128xf32> to vector<128x128xf32>
    %5 = arith.addf %2, %4 : vector<128x128xf32>
    %c0_5 = arith.constant 0 : index
    %c0_6 = arith.constant 0 : index
    %6 = vector.load %arg4[%c0_5, %c0_6] : memref<128x128xf32, #tpu.memory_space<vmem>>, vector<128x128xf32>
    tpu.vector_store %arg4[%c0_5, %c0_6], %5 {strides = array<i32>} : memref<128x128xf32, #tpu.memory_space<vmem>>, vector<128x128xf32>,
    return
  }
  func.func @transform_0(%arg0: i32) -> (i32, i32) {
    %c0_i32 = arith.constant 0 : i32
    %c0_i32_0 = arith.constant 0 : i32
    return %arg0, %c0_i32 : i32, i32
  }
  func.func @transform_1(%arg0: i32) -> (i32, i32) {
    %c0_i32 = arith.constant 0 : i32
    %c0_i32_0 = arith.constant 0 : i32
    %c0_i32_1 = arith.constant 0 : i32
    return %c0_i32, %c0_i32_0 : i32, i32
  }
  func.func @transform_2(%arg0: i32) -> (i32, i32) {
    %c0_i32 = arith.constant 0 : i32
    %c0_i32_0 = arith.constant 0 : i32
    %c0_i32_1 = arith.constant 0 : i32
    return %c0_i32, %c0_i32_0 : i32, i32
  }
  func.func @transform_3(%arg0: i32) -> (i32, i32) {
    %c0_i32 = arith.constant 0 : i32
    %c0_i32_0 = arith.constant 0 : i32
    return %arg0, %c0_i32 : i32, i32
  }
}

module attributes {stable_mosaic.version = 11 : i64} {
  func.func @_adain_kernel(%arg0: i32, %arg1: memref<1x64x4xf32, #tpu.memory_space<vmem>>, %arg2: memref<1x1x4xf32, #tpu.memory_space<vmem>>, %arg3: memref<1x1x4xf32, #tpu.memory_space<vmem>>, %arg4: memref<1x64x4xf32, #tpu.memory_space<vmem>>) attributes {dimension_semantics = [#tpu.dimension_semantics<parallel>], iteration_bounds = array<i64: 2>, scalar_prefetch = 0 : i64, scratch_operands = 0 : i64, tpu.core_type = #tpu.core_type<tc>, window_params = [{transform_indices = @transform_0, window_bounds = array<i64: 1, 64, 4>}, {transform_indices = @transform_1, window_bounds = array<i64: 1, 1, 4>}, {transform_indices = @transform_2, window_bounds = array<i64: 1, 1, 4>}, {transform_indices = @transform_3, window_bounds = array<i64: 1, 64, 4>}]} {
    %c0 = arith.constant 0 : index
    %c0_0 = arith.constant 0 : index
    %c0_1 = arith.constant 0 : index
    %0 = vector.load %arg1[%c0, %c0_0, %c0_1] : memref<1x64x4xf32, #tpu.memory_space<vmem>>, vector<1x64x4xf32>
    %1 = vector.shape_cast %0 : vector<1x64x4xf32> to vector<64x4xf32>
    %cst = arith.constant dense<0.000000e+00> : vector<4xf32>
    %2 = vector.multi_reduction <add>, %1, %cst [0] : vector<64x4xf32> to vector<4xf32>
    %3 = vector.shape_cast %2 : vector<4xf32> to vector<1x4xf32>
    %cst_2 = arith.constant 6.400000e+01 : f32
    %4 = vector.broadcast %cst_2 : f32 to vector<1x4xf32>
    %5 = arith.divf %3, %4 : vector<1x4xf32>
    %6 = vector.broadcast %5 : vector<1x4xf32> to vector<64x4xf32>
    %7 = arith.subf %1, %6 : vector<64x4xf32>
    %8 = vector.broadcast %5 : vector<1x4xf32> to vector<64x4xf32>
    %9 = arith.subf %1, %8 : vector<64x4xf32>
    %10 = arith.mulf %7, %9 : vector<64x4xf32>
    %cst_3 = arith.constant dense<0.000000e+00> : vector<4xf32>
    %11 = vector.multi_reduction <add>, %10, %cst_3 [0] : vector<64x4xf32> to vector<4xf32>
    %12 = vector.shape_cast %11 : vector<4xf32> to vector<1x4xf32>
    %cst_4 = arith.constant 6.400000e+01 : f32
    %13 = vector.broadcast %cst_4 : f32 to vector<1x4xf32>
    %14 = arith.divf %12, %13 : vector<1x4xf32>
    %15 = vector.broadcast %5 : vector<1x4xf32> to vector<64x4xf32>
    %16 = arith.subf %1, %15 : vector<64x4xf32>
    %cst_5 = arith.constant 9.99999974E-6 : f32
    %17 = vector.broadcast %cst_5 : f32 to vector<1x4xf32>
    %18 = arith.addf %14, %17 : vector<1x4xf32>
    %19 = math.rsqrt %18 : vector<1x4xf32>
    %20 = vector.broadcast %19 : vector<1x4xf32> to vector<64x4xf32>
    %21 = arith.mulf %16, %20 : vector<64x4xf32>
    %c0_6 = arith.constant 0 : index
    %c0_7 = arith.constant 0 : index
    %c0_8 = arith.constant 0 : index
    %22 = vector.load %arg2[%c0_6, %c0_7, %c0_8] : memref<1x1x4xf32, #tpu.memory_space<vmem>>, vector<1x1x4xf32>
    %23 = vector.shape_cast %22 : vector<1x1x4xf32> to vector<1x4xf32>
    %24 = vector.broadcast %23 : vector<1x4xf32> to vector<64x4xf32>
    %25 = arith.mulf %24, %21 : vector<64x4xf32>
    %c0_9 = arith.constant 0 : index
    %c0_10 = arith.constant 0 : index
    %c0_11 = arith.constant 0 : index
    %26 = vector.load %arg3[%c0_9, %c0_10, %c0_11] : memref<1x1x4xf32, #tpu.memory_space<vmem>>, vector<1x1x4xf32>
    %27 = vector.shape_cast %26 : vector<1x1x4xf32> to vector<1x4xf32>
    %28 = vector.broadcast %27 : vector<1x4xf32> to vector<64x4xf32>
    %29 = arith.addf %25, %28 : vector<64x4xf32>
    %cst_12 = arith.constant 0.000000e+00 : f32
    %30 = vector.broadcast %cst_12 : f32 to vector<64x4xf32>
    %31 = arith.cmpf oge, %29, %30 : vector<64x4xf32>
    %cst_13 = arith.constant 2.000000e-01 : f32
    %32 = vector.broadcast %cst_13 : f32 to vector<64x4xf32>
    %33 = arith.mulf %32, %29 : vector<64x4xf32>
    %34 = arith.select %31, %29, %33 : vector<64x4xi1>, vector<64x4xf32>
    %c0_14 = arith.constant 0 : index
    %c0_15 = arith.constant 0 : index
    %c0_16 = arith.constant 0 : index
    %35 = vector.load %arg4[%c0_14, %c0_15, %c0_16] : memref<1x64x4xf32, #tpu.memory_space<vmem>>, vector<1x64x4xf32>
    %36 = vector.shape_cast %35 : vector<1x64x4xf32> to vector<64x4xf32>
    %37 = vector.shape_cast %34 : vector<64x4xf32> to vector<1x64x4xf32>
    tpu.vector_store %arg4[%c0_14, %c0_15, %c0_16], %37 {strides = array<i32>} : memref<1x64x4xf32, #tpu.memory_space<vmem>>, vector<1x64x4xf32>,
    return
  }
  func.func @transform_0(%arg0: i32) -> (i32, i32, i32) {
    %c0_i32 = arith.constant 0 : i32
    %c0_i32_0 = arith.constant 0 : i32
    %c0_i32_1 = arith.constant 0 : i32
    return %arg0, %c0_i32, %c0_i32_0 : i32, i32, i32
  }
  func.func @transform_1(%arg0: i32) -> (i32, i32, i32) {
    %c0_i32 = arith.constant 0 : i32
    %c0_i32_0 = arith.constant 0 : i32
    %c0_i32_1 = arith.constant 0 : i32
    return %arg0, %c0_i32, %c0_i32_0 : i32, i32, i32
  }
  func.func @transform_2(%arg0: i32) -> (i32, i32, i32) {
    %c0_i32 = arith.constant 0 : i32
    %c0_i32_0 = arith.constant 0 : i32
    %c0_i32_1 = arith.constant 0 : i32
    return %arg0, %c0_i32, %c0_i32_0 : i32, i32, i32
  }
  func.func @transform_3(%arg0: i32) -> (i32, i32, i32) {
    %c0_i32 = arith.constant 0 : i32
    %c0_i32_0 = arith.constant 0 : i32
    %c0_i32_1 = arith.constant 0 : i32
    return %arg0, %c0_i32, %c0_i32_0 : i32, i32, i32
  }
}

module attributes {stable_mosaic.version = 11 : i64} {
  func.func @kernel(%arg0: i32, %arg1: memref<512x108xbf16, #tpu.memory_space<vmem>>, %arg2: memref<108x128xbf16, #tpu.memory_space<vmem>>, %arg3: memref<1x128xf32, #tpu.memory_space<vmem>>, %arg4: memref<512x128xf32, #tpu.memory_space<vmem>>) attributes {dimension_semantics = [#tpu.dimension_semantics<parallel>], iteration_bounds = array<i64: 2>, scalar_prefetch = 0 : i64, scratch_operands = 0 : i64, tpu.core_type = #tpu.core_type<tc>, window_params = [{transform_indices = @transform_0, window_bounds = array<i64: 512, 108>}, {pipeline_mode = #tpu.pipeline_mode<synchronous>, transform_indices = @transform_1, window_bounds = array<i64: 108, 128>}, {pipeline_mode = #tpu.pipeline_mode<synchronous>, transform_indices = @transform_2, window_bounds = array<i64: 1, 128>}, {transform_indices = @transform_3, window_bounds = array<i64: 512, 128>}]} {
    %c0 = arith.constant 0 : index
    %c0_0 = arith.constant 0 : index
    %0 = vector.load %arg1[%c0, %c0_0] : memref<512x108xbf16, #tpu.memory_space<vmem>>, vector<512x108xbf16>
    %c0_1 = arith.constant 0 : index
    %c0_2 = arith.constant 0 : index
    %1 = vector.load %arg2[%c0_1, %c0_2] : memref<108x128xbf16, #tpu.memory_space<vmem>>, vector<108x128xbf16>
    %cst = arith.constant dense<0.000000e+00> : vector<512x128xf32>
    %2 = tpu.matmul %0, %1, %cst {dimension_numbers = #tpu.dot_dimension_numbers<[1], [0], [0], [1], [0, 0, 1, 1], [], []>} : vector<512x108xbf16>, vector<108x128xbf16>, vector<512x128xf32> -> vector<512x128xf32>
    %c0_3 = arith.constant 0 : index
    %c0_4 = arith.constant 0 : index
    %3 = vector.load %arg3[%c0_3, %c0_4] : memref<1x128xf32, #tpu.memory_space<vmem>>, vector<1x128xf32>
    %4 = vector.broadcast %3 : vector<1x128xf32> to vector<512x128xf32>
    %5 = arith.addf %2, %4 : vector<512x128xf32>
    %c0_5 = arith.constant 0 : index
    %c0_6 = arith.constant 0 : index
    %6 = vector.load %arg4[%c0_5, %c0_6] : memref<512x128xf32, #tpu.memory_space<vmem>>, vector<512x128xf32>
    tpu.vector_store %arg4[%c0_5, %c0_6], %5 {strides = array<i32>} : memref<512x128xf32, #tpu.memory_space<vmem>>, vector<512x128xf32>,
    return
  }
  func.func @transform_0(%arg0: i32) -> (i32, i32) {
    %c0_i32 = arith.constant 0 : i32
    %c0_i32_0 = arith.constant 0 : i32
    return %arg0, %c0_i32 : i32, i32
  }
  func.func @transform_1(%arg0: i32) -> (i32, i32) {
    %c0_i32 = arith.constant 0 : i32
    %c0_i32_0 = arith.constant 0 : i32
    %c0_i32_1 = arith.constant 0 : i32
    return %c0_i32, %c0_i32_0 : i32, i32
  }
  func.func @transform_2(%arg0: i32) -> (i32, i32) {
    %c0_i32 = arith.constant 0 : i32
    %c0_i32_0 = arith.constant 0 : i32
    %c0_i32_1 = arith.constant 0 : i32
    return %c0_i32, %c0_i32_0 : i32, i32
  }
  func.func @transform_3(%arg0: i32) -> (i32, i32) {
    %c0_i32 = arith.constant 0 : i32
    %c0_i32_0 = arith.constant 0 : i32
    return %arg0, %c0_i32 : i32, i32
  }
}

module attributes {stable_mosaic.version = 11 : i64} {
  func.func @_adain_kernel(%arg0: i32, %arg1: memref<1x512x2xf32, #tpu.memory_space<vmem>>, %arg2: memref<1x1x2xf32, #tpu.memory_space<vmem>>, %arg3: memref<1x1x2xf32, #tpu.memory_space<vmem>>, %arg4: memref<1x512x2xf32, #tpu.memory_space<vmem>>) attributes {dimension_semantics = [#tpu.dimension_semantics<parallel>], iteration_bounds = array<i64: 2>, scalar_prefetch = 0 : i64, scratch_operands = 0 : i64, tpu.core_type = #tpu.core_type<tc>, window_params = [{transform_indices = @transform_0, window_bounds = array<i64: 1, 512, 2>}, {transform_indices = @transform_1, window_bounds = array<i64: 1, 1, 2>}, {transform_indices = @transform_2, window_bounds = array<i64: 1, 1, 2>}, {transform_indices = @transform_3, window_bounds = array<i64: 1, 512, 2>}]} {
    %c0 = arith.constant 0 : index
    %c0_0 = arith.constant 0 : index
    %c0_1 = arith.constant 0 : index
    %0 = vector.load %arg1[%c0, %c0_0, %c0_1] : memref<1x512x2xf32, #tpu.memory_space<vmem>>, vector<1x512x2xf32>
    %1 = vector.shape_cast %0 : vector<1x512x2xf32> to vector<512x2xf32>
    %cst = arith.constant dense<0.000000e+00> : vector<2xf32>
    %2 = vector.multi_reduction <add>, %1, %cst [0] : vector<512x2xf32> to vector<2xf32>
    %3 = vector.shape_cast %2 : vector<2xf32> to vector<1x2xf32>
    %cst_2 = arith.constant 5.120000e+02 : f32
    %4 = vector.broadcast %cst_2 : f32 to vector<1x2xf32>
    %5 = arith.divf %3, %4 : vector<1x2xf32>
    %6 = vector.broadcast %5 : vector<1x2xf32> to vector<512x2xf32>
    %7 = arith.subf %1, %6 : vector<512x2xf32>
    %8 = vector.broadcast %5 : vector<1x2xf32> to vector<512x2xf32>
    %9 = arith.subf %1, %8 : vector<512x2xf32>
    %10 = arith.mulf %7, %9 : vector<512x2xf32>
    %cst_3 = arith.constant dense<0.000000e+00> : vector<2xf32>
    %11 = vector.multi_reduction <add>, %10, %cst_3 [0] : vector<512x2xf32> to vector<2xf32>
    %12 = vector.shape_cast %11 : vector<2xf32> to vector<1x2xf32>
    %cst_4 = arith.constant 5.120000e+02 : f32
    %13 = vector.broadcast %cst_4 : f32 to vector<1x2xf32>
    %14 = arith.divf %12, %13 : vector<1x2xf32>
    %15 = vector.broadcast %5 : vector<1x2xf32> to vector<512x2xf32>
    %16 = arith.subf %1, %15 : vector<512x2xf32>
    %cst_5 = arith.constant 9.99999974E-6 : f32
    %17 = vector.broadcast %cst_5 : f32 to vector<1x2xf32>
    %18 = arith.addf %14, %17 : vector<1x2xf32>
    %19 = math.rsqrt %18 : vector<1x2xf32>
    %20 = vector.broadcast %19 : vector<1x2xf32> to vector<512x2xf32>
    %21 = arith.mulf %16, %20 : vector<512x2xf32>
    %c0_6 = arith.constant 0 : index
    %c0_7 = arith.constant 0 : index
    %c0_8 = arith.constant 0 : index
    %22 = vector.load %arg2[%c0_6, %c0_7, %c0_8] : memref<1x1x2xf32, #tpu.memory_space<vmem>>, vector<1x1x2xf32>
    %23 = vector.shape_cast %22 : vector<1x1x2xf32> to vector<1x2xf32>
    %24 = vector.broadcast %23 : vector<1x2xf32> to vector<512x2xf32>
    %25 = arith.mulf %24, %21 : vector<512x2xf32>
    %c0_9 = arith.constant 0 : index
    %c0_10 = arith.constant 0 : index
    %c0_11 = arith.constant 0 : index
    %26 = vector.load %arg3[%c0_9, %c0_10, %c0_11] : memref<1x1x2xf32, #tpu.memory_space<vmem>>, vector<1x1x2xf32>
    %27 = vector.shape_cast %26 : vector<1x1x2xf32> to vector<1x2xf32>
    %28 = vector.broadcast %27 : vector<1x2xf32> to vector<512x2xf32>
    %29 = arith.addf %25, %28 : vector<512x2xf32>
    %cst_12 = arith.constant 0.000000e+00 : f32
    %30 = vector.broadcast %cst_12 : f32 to vector<512x2xf32>
    %31 = arith.cmpf oge, %29, %30 : vector<512x2xf32>
    %cst_13 = arith.constant 2.000000e-01 : f32
    %32 = vector.broadcast %cst_13 : f32 to vector<512x2xf32>
    %33 = arith.mulf %32, %29 : vector<512x2xf32>
    %34 = arith.select %31, %29, %33 : vector<512x2xi1>, vector<512x2xf32>
    %c0_14 = arith.constant 0 : index
    %c0_15 = arith.constant 0 : index
    %c0_16 = arith.constant 0 : index
    %35 = vector.load %arg4[%c0_14, %c0_15, %c0_16] : memref<1x512x2xf32, #tpu.memory_space<vmem>>, vector<1x512x2xf32>
    %36 = vector.shape_cast %35 : vector<1x512x2xf32> to vector<512x2xf32>
    %37 = vector.shape_cast %34 : vector<512x2xf32> to vector<1x512x2xf32>
    tpu.vector_store %arg4[%c0_14, %c0_15, %c0_16], %37 {strides = array<i32>} : memref<1x512x2xf32, #tpu.memory_space<vmem>>, vector<1x512x2xf32>,
    return
  }
  func.func @transform_0(%arg0: i32) -> (i32, i32, i32) {
    %c0_i32 = arith.constant 0 : i32
    %c0_i32_0 = arith.constant 0 : i32
    %c0_i32_1 = arith.constant 0 : i32
    return %arg0, %c0_i32, %c0_i32_0 : i32, i32, i32
  }
  func.func @transform_1(%arg0: i32) -> (i32, i32, i32) {
    %c0_i32 = arith.constant 0 : i32
    %c0_i32_0 = arith.constant 0 : i32
    %c0_i32_1 = arith.constant 0 : i32
    return %arg0, %c0_i32, %c0_i32_0 : i32, i32, i32
  }
  func.func @transform_2(%arg0: i32) -> (i32, i32, i32) {
    %c0_i32 = arith.constant 0 : i32
    %c0_i32_0 = arith.constant 0 : i32
    %c0_i32_1 = arith.constant 0 : i32
    return %arg0, %c0_i32, %c0_i32_0 : i32, i32, i32
  }
  func.func @transform_3(%arg0: i32) -> (i32, i32, i32) {
    %c0_i32 = arith.constant 0 : i32
    %c0_i32_0 = arith.constant 0 : i32
    %c0_i32_1 = arith.constant 0 : i32
    return %arg0, %c0_i32, %c0_i32_0 : i32, i32, i32
  }
}

module attributes {stable_mosaic.version = 11 : i64} {
  func.func @kernel(%arg0: i32, %arg1: memref<512x54xbf16, #tpu.memory_space<vmem>>, %arg2: memref<54x128xbf16, #tpu.memory_space<vmem>>, %arg3: memref<1x128xf32, #tpu.memory_space<vmem>>, %arg4: memref<512x128xf32, #tpu.memory_space<vmem>>, %arg5: memref<512x128xf32, #tpu.memory_space<vmem>>) attributes {dimension_semantics = [#tpu.dimension_semantics<parallel>], iteration_bounds = array<i64: 2>, scalar_prefetch = 0 : i64, scratch_operands = 0 : i64, tpu.core_type = #tpu.core_type<tc>, window_params = [{transform_indices = @transform_0, window_bounds = array<i64: 512, 54>}, {pipeline_mode = #tpu.pipeline_mode<synchronous>, transform_indices = @transform_1, window_bounds = array<i64: 54, 128>}, {pipeline_mode = #tpu.pipeline_mode<synchronous>, transform_indices = @transform_2, window_bounds = array<i64: 1, 128>}, {transform_indices = @transform_3, window_bounds = array<i64: 512, 128>}, {transform_indices = @transform_4, window_bounds = array<i64: 512, 128>}]} {
    %c0 = arith.constant 0 : index
    %c0_0 = arith.constant 0 : index
    %0 = vector.load %arg1[%c0, %c0_0] : memref<512x54xbf16, #tpu.memory_space<vmem>>, vector<512x54xbf16>
    %c0_1 = arith.constant 0 : index
    %c0_2 = arith.constant 0 : index
    %1 = vector.load %arg2[%c0_1, %c0_2] : memref<54x128xbf16, #tpu.memory_space<vmem>>, vector<54x128xbf16>
    %cst = arith.constant dense<0.000000e+00> : vector<512x128xf32>
    %2 = tpu.matmul %0, %1, %cst {dimension_numbers = #tpu.dot_dimension_numbers<[1], [0], [0], [1], [0, 0, 1, 1], [], []>} : vector<512x54xbf16>, vector<54x128xbf16>, vector<512x128xf32> -> vector<512x128xf32>
    %c0_3 = arith.constant 0 : index
    %c0_4 = arith.constant 0 : index
    %3 = vector.load %arg3[%c0_3, %c0_4] : memref<1x128xf32, #tpu.memory_space<vmem>>, vector<1x128xf32>
    %4 = vector.broadcast %3 : vector<1x128xf32> to vector<512x128xf32>
    %5 = arith.addf %2, %4 : vector<512x128xf32>
    %c0_5 = arith.constant 0 : index
    %c0_6 = arith.constant 0 : index
    %6 = vector.load %arg4[%c0_5, %c0_6] : memref<512x128xf32, #tpu.memory_space<vmem>>, vector<512x128xf32>
    %cst_7 = arith.constant 1.000000e-01 : f32
    %7 = vector.broadcast %cst_7 : f32 to vector<512x128xf32>
    %8 = arith.mulf %7, %5 : vector<512x128xf32>
    %9 = arith.addf %6, %8 : vector<512x128xf32>
    %c0_8 = arith.constant 0 : index
    %c0_9 = arith.constant 0 : index
    %10 = vector.load %arg5[%c0_8, %c0_9] : memref<512x128xf32, #tpu.memory_space<vmem>>, vector<512x128xf32>
    tpu.vector_store %arg5[%c0_8, %c0_9], %9 {strides = array<i32>} : memref<512x128xf32, #tpu.memory_space<vmem>>, vector<512x128xf32>,
    return
  }
  func.func @transform_0(%arg0: i32) -> (i32, i32) {
    %c0_i32 = arith.constant 0 : i32
    %c0_i32_0 = arith.constant 0 : i32
    return %arg0, %c0_i32 : i32, i32
  }
  func.func @transform_1(%arg0: i32) -> (i32, i32) {
    %c0_i32 = arith.constant 0 : i32
    %c0_i32_0 = arith.constant 0 : i32
    %c0_i32_1 = arith.constant 0 : i32
    return %c0_i32, %c0_i32_0 : i32, i32
  }
  func.func @transform_2(%arg0: i32) -> (i32, i32) {
    %c0_i32 = arith.constant 0 : i32
    %c0_i32_0 = arith.constant 0 : i32
    %c0_i32_1 = arith.constant 0 : i32
    return %c0_i32, %c0_i32_0 : i32, i32
  }
  func.func @transform_3(%arg0: i32) -> (i32, i32) {
    %c0_i32 = arith.constant 0 : i32
    %c0_i32_0 = arith.constant 0 : i32
    return %arg0, %c0_i32 : i32, i32
  }
  func.func @transform_4(%arg0: i32) -> (i32, i32) {
    %c0_i32 = arith.constant 0 : i32
    %c0_i32_0 = arith.constant 0 : i32
    return %arg0, %c0_i32 : i32, i32
  }
}

</mosaic_0001>

<llo_original>
// kernel: apperance_model_style_forward.16
$region0: #{apperance_model_style_forward.16}
  #allocation0 [shape = 'u32[]', space=smem, size = 0x4, offset = 0x4, fixed_abs, tag = 'smem constant byte address 0x4 - core index']
  #allocation1 [shape = 'u32[144,128]{1,0:T(1,128)}', space=vmem, size = 0x12000, scoped, tag = 'internal scratch']
  %s0 = inlined_call_operand.vmem [shape: bf16[1024,27], index: 0, kind: input, shape index: {}]
  %s1 = inlined_call_operand.vmem [shape: bf16[27,128], index: 1, kind: input, shape index: {}]
  %s2 = inlined_call_operand.vmem [shape: f32[1,128], index: 2, kind: input, shape index: {}]
  %s3 = inlined_call_operand.vmem [shape: f32[1024,128], index: 3, kind: output, shape index: {}]
  %s4 = sld [smem:[#allocation0]]
  $region45: #{apperance_model_style_forward.16} parent=0
    _
  %s6 = ssub.s32 1, %s4
  %s7 = scalar_select 0, %s6, %s4
  loop: start=0, step=1, limit=4
  $region2: #{apperance_model_style_forward.16} parent=0 // loop_pre_header
    _
  $region3: #{apperance_model_style_forward.16} parent=0 // loop_header
    %s9 = sphi 0, %s13
    %p10 = scmp.ge.s32.totalorder %s9, 4
    %s19 = sphi 0, %s21
    %s22 = sphi 0, %s19
    %s23 = sphi 0, %s22
    %s39 = sphi 0, %s23
    %s43 = sphi 0, %s43
    %s45 = sphi 0, %s43
    %s46 = sphi 0, %s45
    %s60 = sphi 0, %s46
    %s64 = sphi 0, %s64
    %s66 = sphi 0, %s64
    %s67 = sphi 0, %s66
    %s81 = sphi 0, %s67
    %s87 = sphi 0, %s89
    %s90 = sphi 0, %s87
    %s91 = sphi 0, %s90
    %s107 = sphi 0, %s91
  $region4: #{apperance_model_style_forward.16} parent=0 // loop_header_branch
    %12 = sbr.rel (%p10) target = $region8
  $region5: #{apperance_model_style_forward.16} parent=0 // loop_body
    %s14 = ssub.s32 %s9, 1
    %s15 = ssub.s32 %s9, 2
    %s16 = sadd.s32 %s9, 1
    %s17 = ssub.s32 %s9, %s16
    %p18 = scmp.eq.s32.totalorder %s17, 0
    %s20 = sadd.s32 %s19, 1
    %s21 = scalar_select %p18, %s19, %s20
    %p24 = pneg %p18
    %p25 = scmp.eq.s32.totalorder %s9, 1
    %p26 = por %p24, %p25
    %p27 = scmp.ne.s32.totalorder %s19, %s22
    %p28 = scmp.eq.s32.totalorder %s9, 0
    %p29 = por %p27, %p28
    %p30 = scmp.ne.s32.totalorder %s19, %s22
    %p31 = scmp.eq.s32.totalorder %s14, 1
    %p32 = por %p30, %p31
    %p33 = scmp.ne.s32.totalorder %s22, %s23
    %p34 = scmp.eq.s32.totalorder %s14, 0
    %p35 = por %p33, %p34
    %p36 = scmp.ne.s32.totalorder %s22, %s23
    %p37 = scmp.eq.s32.totalorder %s15, 1
    %p38 = por %p36, %p37
    %p40 = scmp.ne.s32.totalorder %s23, %s39
    %p41 = scmp.eq.s32.totalorder %s15, 0
    %p42 = por %p40, %p41
    %s44 = sadd.s32 %s43, 1
    %p47 = scmp.eq.s32.totalorder %s9, 1
    %p48 = scmp.ne.s32.totalorder %s43, %s45
    %p49 = scmp.eq.s32.totalorder %s9, 0
    %p50 = por %p48, %p49
    %p51 = scmp.ne.s32.totalorder %s43, %s45
    %p52 = scmp.eq.s32.totalorder %s14, 1
    %p53 = por %p51, %p52
    %p54 = scmp.ne.s32.totalorder %s45, %s46
    %p55 = scmp.eq.s32.totalorder %s14, 0
    %p56 = por %p54, %p55
    %p57 = scmp.ne.s32.totalorder %s45, %s46
    %p58 = scmp.eq.s32.totalorder %s15, 1
    %p59 = por %p57, %p58
    %p61 = scmp.ne.s32.totalorder %s46, %s60
    %p62 = scmp.eq.s32.totalorder %s15, 0
    %p63 = por %p61, %p62
    %s65 = sadd.s32 %s64, 1
    %p68 = scmp.eq.s32.totalorder %s9, 1
    %p69 = scmp.ne.s32.totalorder %s64, %s66
    %p70 = scmp.eq.s32.totalorder %s9, 0
    %p71 = por %p69, %p70
    %p72 = scmp.ne.s32.totalorder %s64, %s66
    %p73 = scmp.eq.s32.totalorder %s14, 1
    %p74 = por %p72, %p73
    %p75 = scmp.ne.s32.totalorder %s66, %s67
    %p76 = scmp.eq.s32.totalorder %s14, 0
    %p77 = por %p75, %p76
    %p78 = scmp.ne.s32.totalorder %s66, %s67
    %p79 = scmp.eq.s32.totalorder %s15, 1
    %p80 = por %p78, %p79
    %p82 = scmp.ne.s32.totalorder %s67, %s81
    %p83 = scmp.eq.s32.totalorder %s15, 0
    %p84 = por %p82, %p83
    %s85 = ssub.s32 %s9, %s16
    %p86 = scmp.eq.s32.totalorder %s85, 0
    %s88 = sadd.s32 %s87, 1
    %s89 = scalar_select %p86, %s87, %s88
    %p92 = pneg %p86
    %p93 = scmp.eq.s32.totalorder %s9, 1
    %p94 = por %p92, %p93
    %p95 = scmp.ne.s32.totalorder %s87, %s90
    %p96 = scmp.eq.s32.totalorder %s9, 0
    %p97 = por %p95, %p96
    %p98 = scmp.ne.s32.totalorder %s87, %s90
    %p99 = scmp.eq.s32.totalorder %s14, 1
    %p100 = por %p98, %p99
    %p101 = scmp.ne.s32.totalorder %s90, %s91
    %p102 = scmp.eq.s32.totalorder %s14, 0
    %p103 = por %p101, %p102
    %p104 = scmp.ne.s32.totalorder %s90, %s91
    %p105 = scmp.eq.s32.totalorder %s15, 1
    %p106 = por %p104, %p105
    %p108 = scmp.ne.s32.totalorder %s91, %s107
    %p109 = scmp.eq.s32.totalorder %s15, 0
    %p110 = por %p108, %p109
    %p111 = scmp.le.s32.totalorder 1, %s9
    %p112 = scmp.lt.s32.totalorder %s9, 3
    %p113 = pnand %p111, %p112
    %p114 = pneg %p113
    // Predicated region
    $region9: #{apperance_model_style_forward.16} parent=5 // pred_check
      _
    $region10: #{apperance_model_style_forward.16} parent=5 // pred_check_branch
      %116 = sbr.rel (%p113) target = $region12
    $region11: #{apperance_model_style_forward.16} parent=5 // pred_region
      %s117 = ssub.s32 %s9, 1
      // Predicated region
      $region13: #{apperance_model_style_forward.16} parent=11 // pred_check
        %p118 = pneg %p56
      $region14: #{apperance_model_style_forward.16} parent=11 // pred_check_branch
        %120 = sbr.rel (%p118) target = $region16
      $region15: #{apperance_model_style_forward.16} parent=11 // pred_region
        _
      $region16: #{apperance_model_style_forward.16} parent=11 // pred_fallthru
        _
      // Predicated region
      $region17: #{apperance_model_style_forward.16} parent=11 // pred_check
        %p121 = pneg %p77
      $region18: #{apperance_model_style_forward.16} parent=11 // pred_check_branch
        %123 = sbr.rel (%p121) target = $region20
      $region19: #{apperance_model_style_forward.16} parent=11 // pred_region
        _
      $region20: #{apperance_model_style_forward.16} parent=11 // pred_fallthru
        _
    $region12: #{apperance_model_style_forward.16} parent=5 // pred_fallthru
      _
    %p124 = scmp.lt.s32.totalorder %s9, 2
    // Predicated region
    $region21: #{apperance_model_style_forward.16} parent=5 // pred_check
      %p125 = pneg %p124
    $region22: #{apperance_model_style_forward.16} parent=5 // pred_check_branch
      %127 = sbr.rel (%p125) target = $region24
    $region23: #{apperance_model_style_forward.16} parent=5 // pred_region
      // Predicated region
      $region25: #{apperance_model_style_forward.16} parent=23 // pred_check
        %p128 = pneg %p29
      $region26: #{apperance_model_style_forward.16} parent=23 // pred_check_branch
        %130 = sbr.rel (%p128) target = $region28
      $region27: #{apperance_model_style_forward.16} parent=23 // pred_region
        %s131 = smul.u32 64, %s9
        %p132 = scmp.lt.s32.totalorder %s131, 127
        %s133 = scalar_select %p132, %s131, 127
        %s134 = smul.addr %s133, 4
        %s135 = scalar_lea.vmem %s0, %s134
        %s136 = smul.u32 64, %s9
      $region28: #{apperance_model_style_forward.16} parent=23 // pred_fallthru
        _
    $region24: #{apperance_model_style_forward.16} parent=5 // pred_fallthru
      _
    %p137 = scmp.le.s32.totalorder 1, %s9
    %p138 = scmp.lt.s32.totalorder %s9, 3
    %p139 = pnand %p137, %p138
    %p140 = pneg %p139
    // Predicated region
    $region29: #{apperance_model_style_forward.16} parent=5 // pred_check
      _
    $region30: #{apperance_model_style_forward.16} parent=5 // pred_check_branch
      %142 = sbr.rel (%p139) target = $region32
    $region31: #{apperance_model_style_forward.16} parent=5 // pred_region
      %s143 = ssub.s32 %s9, 1
      %s144 = smul.u32 64, %s14
      %p145 = scmp.lt.s32.totalorder %s144, 127
      %s146 = scalar_select %p145, %s144, 127
      %s147 = smul.addr %s146, 4
      %s148 = scalar_lea.vmem %s0, %s147
      %p149 = pneg %p35
      %p150 = pneg %p32
      %p151 = pneg %p56
      %p152 = pneg %p53
      %p153 = pneg %p77
      %p154 = pneg %p74
      %p155 = pneg %p103
      %p156 = pneg %p100
      %s157 = smul.u32 64, %s14
      %p158 = scmp.lt.s32.totalorder %s157, 127
      %s159 = scalar_select %p158, %s157, 127
      %s160 = smul.addr %s159, 8
      %s161 = scalar_lea.vmem %s3, %s160
      %s162 = smul.u32 64, %s14
      %p163 = scmp.lt.s32.totalorder %s162, 127
      %s164 = scalar_select %p163, %s162, 127
      %s165 = smul.addr %s164, 4
      %s166 = scalar_lea.vmem %s0, %s165
      %s167 = smul.u32 64, %s14
      %s168 = smul.u32 64, %s14
      %p169 = scmp.lt.s32.totalorder %s168, 127
      %s170 = scalar_select %p169, %s168, 127
      %s171 = smul.addr %s170, 8
      %s172 = scalar_lea.vmem %s3, %s171
      %s173 = smul.u32 64, %s14
      %v175 = vld [vmem:[%s166] sm:$0xf]
      %v176 = vld [vmem:[%s166 + $0x4] sm:$0xf]
      %v177 = vld [vmem:[%s166 + $0x8] sm:$0xf]
      %v178 = vld [vmem:[%s166 + $0xc] sm:$0xf]
      %v179 = vld [vmem:[%s166 + $0x10] sm:$0xf]
      %v180 = vld [vmem:[%s166 + $0x14] sm:$0xf]
      %v181 = vld [vmem:[%s166 + $0x18] sm:$0xf]
      %v182 = vld [vmem:[%s166 + $0x1c] sm:$0xf]
      %v183 = vld [vmem:[%s166 + $0x20] sm:$0xf]
      %v184 = vld [vmem:[%s166 + $0x24] sm:$0xf]
      %v185 = vld [vmem:[%s166 + $0x28] sm:$0xf]
      %v186 = vld [vmem:[%s166 + $0x2c] sm:$0xf]
      %v187 = vld [vmem:[%s166 + $0x30] sm:$0xf]
      %v188 = vld [vmem:[%s166 + $0x34] sm:$0xf]
      %v189 = vld [vmem:[%s166 + $0x38] sm:$0xf]
      %v190 = vld [vmem:[%s166 + $0x3c] sm:$0xf]
      %v191 = vld [vmem:[%s166 + $0x40] sm:$0xf]
      %v192 = vld [vmem:[%s166 + $0x44] sm:$0xf]
      %v193 = vld [vmem:[%s166 + $0x48] sm:$0xf]
      %v194 = vld [vmem:[%s166 + $0x4c] sm:$0xf]
      %v195 = vld [vmem:[%s166 + $0x50] sm:$0xf]
      %v196 = vld [vmem:[%s166 + $0x54] sm:$0xf]
      %v197 = vld [vmem:[%s166 + $0x58] sm:$0xf]
      %v198 = vld [vmem:[%s166 + $0x5c] sm:$0xf]
      %v199 = vld [vmem:[%s166 + $0x60] sm:$0xf]
      %v200 = vld [vmem:[%s166 + $0x64] sm:$0xf]
      %v201 = vld [vmem:[%s166 + $0x68] sm:$0xf]
      %v202 = vld [vmem:[%s166 + $0x6c] sm:$0xf]
      %v203 = vld [vmem:[%s166 + $0x70] sm:$0xf]
      %v204 = vld [vmem:[%s166 + $0x74] sm:$0xf]
      %v205 = vld [vmem:[%s166 + $0x78] sm:$0xf]
      %v206 = vld [vmem:[%s166 + $0x7c] sm:$0xf]
      %v207 = vld [vmem:[%s166 + $0x80] sm:$0xf]
      %v208 = vld [vmem:[%s166 + $0x84] sm:$0xf]
      %v209 = vld [vmem:[%s166 + $0x88] sm:$0xf]
      %v210 = vld [vmem:[%s166 + $0x8c] sm:$0xf]
      %v211 = vld [vmem:[%s166 + $0x90] sm:$0xf]
      %v212 = vld [vmem:[%s166 + $0x94] sm:$0xf]
      %v213 = vld [vmem:[%s166 + $0x98] sm:$0xf]
      %v214 = vld [vmem:[%s166 + $0x9c] sm:$0xf]
      %v215 = vld [vmem:[%s166 + $0xa0] sm:$0xf]
      %v216 = vld [vmem:[%s166 + $0xa4] sm:$0xf]
      %v217 = vld [vmem:[%s166 + $0xa8] sm:$0xf]
      %v218 = vld [vmem:[%s166 + $0xac] sm:$0xf]
      %v219 = vld [vmem:[%s166 + $0xb0] sm:$0xf]
      %v220 = vld [vmem:[%s166 + $0xb4] sm:$0xf]
      %v221 = vld [vmem:[%s166 + $0xb8] sm:$0xf]
      %v222 = vld [vmem:[%s166 + $0xbc] sm:$0xf]
      %v223 = vld [vmem:[%s166 + $0xc0] sm:$0xf]
      %v224 = vld [vmem:[%s166 + $0xc4] sm:$0xf]
      %v225 = vld [vmem:[%s166 + $0xc8] sm:$0xf]
      %v226 = vld [vmem:[%s166 + $0xcc] sm:$0xf]
      %v227 = vld [vmem:[%s166 + $0xd0] sm:$0xf]
      %v228 = vld [vmem:[%s166 + $0xd4] sm:$0xf]
      %v229 = vld [vmem:[%s166 + $0xd8] sm:$0xf]
      %v230 = vld [vmem:[%s166 + $0xdc] sm:$0xf]
      %v231 = vld [vmem:[%s166 + $0xe0] sm:$0xf]
      %v232 = vld [vmem:[%s166 + $0xe4] sm:$0xf]
      %v233 = vld [vmem:[%s166 + $0xe8] sm:$0xf]
      %v234 = vld [vmem:[%s166 + $0xec] sm:$0xf]
      %v235 = vld [vmem:[%s166 + $0xf0] sm:$0xf]
      %v236 = vld [vmem:[%s166 + $0xf4] sm:$0xf]
      %v237 = vld [vmem:[%s166 + $0xf8] sm:$0xf]
      %v238 = vld [vmem:[%s166 + $0xfc] sm:$0xf]
      %v239 = vld [vmem:[%s1] sm:$0xf]
      %v240 = vld [vmem:[%s1 + $0x4] sm:$0xf]
      %v241 = vld [vmem:[%s1 + $0x8] sm:$0xf]
      %v242 = vld [vmem:[%s1 + $0xc] sm:$0x3]
      %v243 = vld [vmem:[%s2] sm:$0x1]
      %v245 = vlaneseq
      %v246 = vshrl.u32 %v245, 7
      %v247 = vsub.s32 0, %v246
      %v248 = vrot.slane %v243, %v247
      %v314 = vunpack.c.l.b16 %v175
      %v315 = vunpack.c.l.b16 %v176
      %v316 = vunpack.c.l.b16 %v177
      %v317 = vunpack.c.l.b16 %v178
      %v318 = vunpack.c.l.b16 %v179
      %v319 = vunpack.c.l.b16 %v180
      %v320 = vunpack.c.l.b16 %v181
      %v321 = vunpack.c.l.b16 %v182
      %v322 = vunpack.c.l.b16 %v183
      %v323 = vunpack.c.l.b16 %v184
      %v324 = vunpack.c.l.b16 %v185
      %v325 = vunpack.c.l.b16 %v186
      %v326 = vunpack.c.l.b16 %v187
      %v327 = vunpack.c.l.b16 %v188
      %v328 = vunpack.c.l.b16 %v189
      %v329 = vunpack.c.l.b16 %v190
      %v330 = vunpack.c.l.b16 %v191
      %v331 = vunpack.c.l.b16 %v192
      %v332 = vunpack.c.l.b16 %v193
      %v333 = vunpack.c.l.b16 %v194
      %v334 = vunpack.c.l.b16 %v195
      %v335 = vunpack.c.l.b16 %v196
      %v336 = vunpack.c.l.b16 %v197
      %v337 = vunpack.c.l.b16 %v198
      %v338 = vunpack.c.l.b16 %v199
      %v339 = vunpack.c.l.b16 %v200
      %v340 = vunpack.c.l.b16 %v201
      %v341 = vunpack.c.l.b16 %v202
      %v342 = vunpack.c.l.b16 %v203
      %v343 = vunpack.c.l.b16 %v204
      %v344 = vunpack.c.l.b16 %v205
      %v345 = vunpack.c.l.b16 %v206
      %v346 = vunpack.c.l.b16 %v207
      %v347 = vunpack.c.l.b16 %v208
      %v348 = vunpack.c.l.b16 %v209
      %v349 = vunpack.c.l.b16 %v210
      %v350 = vunpack.c.l.b16 %v211
      %v351 = vunpack.c.l.b16 %v212
      %v352 = vunpack.c.l.b16 %v213
      %v353 = vunpack.c.l.b16 %v214
      %v354 = vunpack.c.l.b16 %v215
      %v355 = vunpack.c.l.b16 %v216
      %v356 = vunpack.c.l.b16 %v217
      %v357 = vunpack.c.l.b16 %v218
      %v358 = vunpack.c.l.b16 %v219
      %v359 = vunpack.c.l.b16 %v220
      %v360 = vunpack.c.l.b16 %v221
      %v361 = vunpack.c.l.b16 %v222
      %v362 = vunpack.c.l.b16 %v223
      %v363 = vunpack.c.l.b16 %v224
      %v364 = vunpack.c.l.b16 %v225
      %v365 = vunpack.c.l.b16 %v226
      %v366 = vunpack.c.l.b16 %v227
      %v367 = vunpack.c.l.b16 %v228
      %v368 = vunpack.c.l.b16 %v229
      %v369 = vunpack.c.l.b16 %v230
      %v370 = vunpack.c.l.b16 %v231
      %v371 = vunpack.c.l.b16 %v232
      %v372 = vunpack.c.l.b16 %v233
      %v373 = vunpack.c.l.b16 %v234
      %v374 = vunpack.c.l.b16 %v235
      %v375 = vunpack.c.l.b16 %v236
      %v376 = vunpack.c.l.b16 %v237
      %v377 = vunpack.c.l.b16 %v238
      %v378 = vpack.c.b16 %v315, %v314
      %v379 = vpack.c.b16 %v317, %v316
      %v380 = vpack.c.b16 %v319, %v318
      %v381 = vpack.c.b16 %v321, %v320
      %v382 = vpack.c.b16 %v323, %v322
      %v383 = vpack.c.b16 %v325, %v324
      %v384 = vpack.c.b16 %v327, %v326
      %v385 = vpack.c.b16 %v329, %v328
      %v386 = vpack.c.b16 %v331, %v330
      %v387 = vpack.c.b16 %v333, %v332
      %v388 = vpack.c.b16 %v335, %v334
      %v389 = vpack.c.b16 %v337, %v336
      %v390 = vpack.c.b16 %v339, %v338
      %v391 = vpack.c.b16 %v341, %v340
      %v392 = vpack.c.b16 %v343, %v342
      %v393 = vpack.c.b16 %v345, %v344
      %v394 = vpack.c.b16 %v347, %v346
      %v395 = vpack.c.b16 %v349, %v348
      %v396 = vpack.c.b16 %v351, %v350
      %v397 = vpack.c.b16 %v353, %v352
      %v398 = vpack.c.b16 %v355, %v354
      %v399 = vpack.c.b16 %v357, %v356
      %v400 = vpack.c.b16 %v359, %v358
      %v401 = vpack.c.b16 %v361, %v360
      %v402 = vpack.c.b16 %v363, %v362
      %v403 = vpack.c.b16 %v365, %v364
      %v404 = vpack.c.b16 %v367, %v366
      %v405 = vpack.c.b16 %v369, %v368
      %v406 = vpack.c.b16 %v371, %v370
      %v407 = vpack.c.b16 %v373, %v372
      %v408 = vpack.c.b16 %v375, %v374
      %v409 = vpack.c.b16 %v377, %v376
      %v414 = vunpack.c.l.b16 %v239
      %v415 = vunpack.c.l.b16 %v240
      %v416 = vunpack.c.l.b16 %v241
      %v417 = vunpack.c.l.b16 %v242
      %v418 = vpack.c.b16 %v415, %v414
      %v419 = vpack.c.b16 %v417, %v416
      %vm421 = vcmask 220160
      %v423 = vsel %vm421, %v378, 0
      %v426 = vsel %vm421, %v379, 0
      %v429 = vsel %vm421, %v380, 0
      %v432 = vsel %vm421, %v381, 0
      %v435 = vsel %vm421, %v382, 0
      %v438 = vsel %vm421, %v383, 0
      %v441 = vsel %vm421, %v384, 0
      %v444 = vsel %vm421, %v385, 0
      %v447 = vsel %vm421, %v386, 0
      %v450 = vsel %vm421, %v387, 0
      %v453 = vsel %vm421, %v388, 0
      %v456 = vsel %vm421, %v389, 0
      %v459 = vsel %vm421, %v390, 0
      %v462 = vsel %vm421, %v391, 0
      %v465 = vsel %vm421, %v392, 0
      %v468 = vsel %vm421, %v393, 0
      %v471 = vsel %vm421, %v394, 0
      %v474 = vsel %vm421, %v395, 0
      %v477 = vsel %vm421, %v396, 0
      %v480 = vsel %vm421, %v397, 0
      %v483 = vsel %vm421, %v398, 0
      %v486 = vsel %vm421, %v399, 0
      %v489 = vsel %vm421, %v400, 0
      %v492 = vsel %vm421, %v401, 0
      %v495 = vsel %vm421, %v402, 0
      %v498 = vsel %vm421, %v403, 0
      %v501 = vsel %vm421, %v404, 0
      %v504 = vsel %vm421, %v405, 0
      %v507 = vsel %vm421, %v406, 0
      %v510 = vsel %vm421, %v407, 0
      %v513 = vsel %vm421, %v408, 0
      %v516 = vsel %vm421, %v409, 0
      %vm518 = vcmask 1044480
      %vm519 = vcmask 1045504
      %v520 = vsel %vm518, 4294967295, 65535
      %v521 = vsel %vm519, %v520, 0
      %v523 = vand.u32 %v419, %v521
      %525 = vmatprep.subr.bf16.mxu0 0
      %526 = vmatpush1.bf16.msra.mxu0 0
      %527 = vmatprep.subr.bf16.mxu0 0
      %528 = vmatpush1.bf16.msra.mxu0 0
      %529 = vmatprep.subr.bf16.mxu0 0
      %530 = vmatpush1.bf16.msra.mxu0 0
      %531 = vmatprep.subr.bf16.mxu0 0
      %532 = vmatpush1.bf16.msra.mxu0 0
      %533 = vmatprep.subr.bf16.mxu0 0
      %534 = vmatpush1.bf16.msra.mxu0 0
      %535 = vmatprep.subr.bf16.mxu0 0
      %536 = vmatpush1.bf16.msra.mxu0 0
      %537 = vmatprep.subr.bf16.mxu0 0
      %538 = vmatpush1.bf16.msra.mxu0 %v523
      %539 = vmatprep.subr.bf16.mxu0 0
      %540 = vmatpush1.bf16.msra.mxu0 %v418
      %541 = vmatprep.subr.bf16.mxu0 0
      %542 = vmatpush2.bf16.msra.mxu0 0
      %543 = vmatprep.subr.bf16.mxu0 0
      %544 = vmatpush2.bf16.msra.mxu0 0
      %545 = vmatprep.subr.bf16.mxu0 0
      %546 = vmatpush2.bf16.msra.mxu0 0
      %547 = vmatprep.subr.bf16.mxu0 0
      %548 = vmatpush2.bf16.msra.mxu0 0
      %549 = vmatprep.subr.bf16.mxu0 0
      %550 = vmatpush2.bf16.msra.mxu0 0
      %551 = vmatprep.subr.bf16.mxu0 0
      %552 = vmatpush2.bf16.msra.mxu0 0
      %553 = vmatprep.subr.bf16.mxu0 0
      %554 = vmatpush2.bf16.msra.mxu0 0
      %555 = vmatprep.subr.bf16.mxu0 0
      %556 = vmatpush2.bf16.msra.mxu0 0
      %557 = vmatprep.mubr.bf16.mxu0 0
      %558 = vmatmul.mubr.bf16.gmra.mxu0 %v423
      %v559 = vpop.f32.mrf.mxu0
      %v560 = vadd.f32 %v248, %v559
      %v561 = vpop.f32.mrf.mxu0
      %v562 = vpop.f32.mrf.mxu0
      %v563 = vadd.f32 %v248, %v562
      %v564 = vpop.f32.mrf.mxu0
      %565 = vmatprep.mubr.bf16.mxu0 0
      %566 = vmatmul.mubr.bf16.gmra.mxu0 %v426
      %v567 = vpop.f32.mrf.mxu0
      %v568 = vadd.f32 %v248, %v567
      %v569 = vpop.f32.mrf.mxu0
      %v570 = vpop.f32.mrf.mxu0
      %v571 = vadd.f32 %v248, %v570
      %v572 = vpop.f32.mrf.mxu0
      %573 = vmatprep.mubr.bf16.mxu0 0
      %574 = vmatmul.mubr.bf16.gmra.mxu0 %v429
      %v575 = vpop.f32.mrf.mxu0
      %v576 = vadd.f32 %v248, %v575
      %v577 = vpop.f32.mrf.mxu0
      %v578 = vpop.f32.mrf.mxu0
      %v579 = vadd.f32 %v248, %v578
      %v580 = vpop.f32.mrf.mxu0
      %581 = vmatprep.mubr.bf16.mxu0 0
      %582 = vmatmul.mubr.bf16.gmra.mxu0 %v432
      %v583 = vpop.f32.mrf.mxu0
      %v584 = vadd.f32 %v248, %v583
      %v585 = vpop.f32.mrf.mxu0
      %v586 = vpop.f32.mrf.mxu0
      %v587 = vadd.f32 %v248, %v586
      %v588 = vpop.f32.mrf.mxu0
      %589 = vmatprep.mubr.bf16.mxu0 0
      %590 = vmatmul.mubr.bf16.gmra.mxu0 %v435
      %v591 = vpop.f32.mrf.mxu0
      %v592 = vadd.f32 %v248, %v591
      %v593 = vpop.f32.mrf.mxu0
      %v594 = vpop.f32.mrf.mxu0
      %v595 = vadd.f32 %v248, %v594
      %v596 = vpop.f32.mrf.mxu0
      %597 = vmatprep.mubr.bf16.mxu0 0
      %598 = vmatmul.mubr.bf16.gmra.mxu0 %v438
      %v599 = vpop.f32.mrf.mxu0
      %v600 = vadd.f32 %v248, %v599
      %v601 = vpop.f32.mrf.mxu0
      %v602 = vpop.f32.mrf.mxu0
      %v603 = vadd.f32 %v248, %v602
      %v604 = vpop.f32.mrf.mxu0
      %605 = vmatprep.mubr.bf16.mxu0 0
      %606 = vmatmul.mubr.bf16.gmra.mxu0 %v441
      %v607 = vpop.f32.mrf.mxu0
      %v608 = vadd.f32 %v248, %v607
      %v609 = vpop.f32.mrf.mxu0
      %v610 = vpop.f32.mrf.mxu0
      %v611 = vadd.f32 %v248, %v610
      %v612 = vpop.f32.mrf.mxu0
      %613 = vmatprep.mubr.bf16.mxu0 0
      %614 = vmatmul.mubr.bf16.gmra.mxu0 %v444
      %v615 = vpop.f32.mrf.mxu0
      %v616 = vadd.f32 %v248, %v615
      %v617 = vpop.f32.mrf.mxu0
      %v618 = vpop.f32.mrf.mxu0
      %v619 = vadd.f32 %v248, %v618
      %v620 = vpop.f32.mrf.mxu0
      %621 = vmatprep.mubr.bf16.mxu0 0
      %622 = vmatmul.mubr.bf16.gmra.mxu0 %v447
      %v623 = vpop.f32.mrf.mxu0
      %v624 = vadd.f32 %v248, %v623
      %v625 = vpop.f32.mrf.mxu0
      %v626 = vpop.f32.mrf.mxu0
      %v627 = vadd.f32 %v248, %v626
      %v628 = vpop.f32.mrf.mxu0
      %629 = vmatprep.mubr.bf16.mxu0 0
      %630 = vmatmul.mubr.bf16.gmra.mxu0 %v450
      %v631 = vpop.f32.mrf.mxu0
      %v632 = vadd.f32 %v248, %v631
      %v633 = vpop.f32.mrf.mxu0
      %v634 = vpop.f32.mrf.mxu0
      %v635 = vadd.f32 %v248, %v634
      %v636 = vpop.f32.mrf.mxu0
      %637 = vmatprep.mubr.bf16.mxu0 0
      %638 = vmatmul.mubr.bf16.gmra.mxu0 %v453
      %v639 = vpop.f32.mrf.mxu0
      %v640 = vadd.f32 %v248, %v639
      %v641 = vpop.f32.mrf.mxu0
      %v642 = vpop.f32.mrf.mxu0
      %v643 = vadd.f32 %v248, %v642
      %v644 = vpop.f32.mrf.mxu0
      %645 = vmatprep.mubr.bf16.mxu0 0
      %646 = vmatmul.mubr.bf16.gmra.mxu0 %v456
      %v647 = vpop.f32.mrf.mxu0
      %v648 = vadd.f32 %v248, %v647
      %v649 = vpop.f32.mrf.mxu0
      %v650 = vpop.f32.mrf.mxu0
      %v651 = vadd.f32 %v248, %v650
      %v652 = vpop.f32.mrf.mxu0
      %653 = vmatprep.mubr.bf16.mxu0 0
      %654 = vmatmul.mubr.bf16.gmra.mxu0 %v459
      %v655 = vpop.f32.mrf.mxu0
      %v656 = vadd.f32 %v248, %v655
      %v657 = vpop.f32.mrf.mxu0
      %v658 = vpop.f32.mrf.mxu0
      %v659 = vadd.f32 %v248, %v658
      %v660 = vpop.f32.mrf.mxu0
      %661 = vmatprep.mubr.bf16.mxu0 0
      %662 = vmatmul.mubr.bf16.gmra.mxu0 %v462
      %v663 = vpop.f32.mrf.mxu0
      %v664 = vadd.f32 %v248, %v663
      %v665 = vpop.f32.mrf.mxu0
      %v666 = vpop.f32.mrf.mxu0
      %v667 = vadd.f32 %v248, %v666
      %v668 = vpop.f32.mrf.mxu0
      %669 = vmatprep.mubr.bf16.mxu0 0
      %670 = vmatmul.mubr.bf16.gmra.mxu0 %v465
      %v671 = vpop.f32.mrf.mxu0
      %v672 = vadd.f32 %v248, %v671
      %v673 = vpop.f32.mrf.mxu0
      %v674 = vpop.f32.mrf.mxu0
      %v675 = vadd.f32 %v248, %v674
      %v676 = vpop.f32.mrf.mxu0
      %677 = vmatprep.mubr.bf16.mxu0 0
      %678 = vmatmul.mubr.bf16.gmra.mxu0 %v468
      %v679 = vpop.f32.mrf.mxu0
      %v680 = vadd.f32 %v248, %v679
      %v681 = vpop.f32.mrf.mxu0
      %v682 = vpop.f32.mrf.mxu0
      %v683 = vadd.f32 %v248, %v682
      %v684 = vpop.f32.mrf.mxu0
      %685 = vmatprep.mubr.bf16.mxu0 0
      %686 = vmatmul.mubr.bf16.gmra.mxu0 %v471
      %v687 = vpop.f32.mrf.mxu0
      %v688 = vadd.f32 %v248, %v687
      %v689 = vpop.f32.mrf.mxu0
      %v690 = vpop.f32.mrf.mxu0
      %v691 = vadd.f32 %v248, %v690
      %v692 = vpop.f32.mrf.mxu0
      %693 = vmatprep.mubr.bf16.mxu0 0
      %694 = vmatmul.mubr.bf16.gmra.mxu0 %v474
      %v695 = vpop.f32.mrf.mxu0
      %v696 = vadd.f32 %v248, %v695
      %v697 = vpop.f32.mrf.mxu0
      %v698 = vpop.f32.mrf.mxu0
      %v699 = vadd.f32 %v248, %v698
      %v700 = vpop.f32.mrf.mxu0
      %701 = vmatprep.mubr.bf16.mxu0 0
      %702 = vmatmul.mubr.bf16.gmra.mxu0 %v477
      %v703 = vpop.f32.mrf.mxu0
      %v704 = vadd.f32 %v248, %v703
      %v705 = vpop.f32.mrf.mxu0
      %v706 = vpop.f32.mrf.mxu0
      %v707 = vadd.f32 %v248, %v706
      %v708 = vpop.f32.mrf.mxu0
      %709 = vmatprep.mubr.bf16.mxu0 0
      %710 = vmatmul.mubr.bf16.gmra.mxu0 %v480
      %v711 = vpop.f32.mrf.mxu0
      %v712 = vadd.f32 %v248, %v711
      %v713 = vpop.f32.mrf.mxu0
      %v714 = vpop.f32.mrf.mxu0
      %v715 = vadd.f32 %v248, %v714
      %v716 = vpop.f32.mrf.mxu0
      %717 = vmatprep.mubr.bf16.mxu0 0
      %718 = vmatmul.mubr.bf16.gmra.mxu0 %v483
      %v719 = vpop.f32.mrf.mxu0
      %v720 = vadd.f32 %v248, %v719
      %v721 = vpop.f32.mrf.mxu0
      %v722 = vpop.f32.mrf.mxu0
      %v723 = vadd.f32 %v248, %v722
      %v724 = vpop.f32.mrf.mxu0
      %725 = vmatprep.mubr.bf16.mxu0 0
      %726 = vmatmul.mubr.bf16.gmra.mxu0 %v486
      %v727 = vpop.f32.mrf.mxu0
      %v728 = vadd.f32 %v248, %v727
      %v729 = vpop.f32.mrf.mxu0
      %v730 = vpop.f32.mrf.mxu0
      %v731 = vadd.f32 %v248, %v730
      %v732 = vpop.f32.mrf.mxu0
      %733 = vmatprep.mubr.bf16.mxu0 0
      %734 = vmatmul.mubr.bf16.gmra.mxu0 %v489
      %v735 = vpop.f32.mrf.mxu0
      %v736 = vadd.f32 %v248, %v735
      %v737 = vpop.f32.mrf.mxu0
      %v738 = vpop.f32.mrf.mxu0
      %v739 = vadd.f32 %v248, %v738
      %v740 = vpop.f32.mrf.mxu0
      %741 = vmatprep.mubr.bf16.mxu0 0
      %742 = vmatmul.mubr.bf16.gmra.mxu0 %v492
      %v743 = vpop.f32.mrf.mxu0
      %v744 = vadd.f32 %v248, %v743
      %v745 = vpop.f32.mrf.mxu0
      %v746 = vpop.f32.mrf.mxu0
      %v747 = vadd.f32 %v248, %v746
      %v748 = vpop.f32.mrf.mxu0
      %749 = vmatprep.mubr.bf16.mxu0 0
      %750 = vmatmul.mubr.bf16.gmra.mxu0 %v495
      %v751 = vpop.f32.mrf.mxu0
      %v752 = vadd.f32 %v248, %v751
      %v753 = vpop.f32.mrf.mxu0
      %v754 = vpop.f32.mrf.mxu0
      %v755 = vadd.f32 %v248, %v754
      %v756 = vpop.f32.mrf.mxu0
      %757 = vmatprep.mubr.bf16.mxu0 0
      %758 = vmatmul.mubr.bf16.gmra.mxu0 %v498
      %v759 = vpop.f32.mrf.mxu0
      %v760 = vadd.f32 %v248, %v759
      %v761 = vpop.f32.mrf.mxu0
      %v762 = vpop.f32.mrf.mxu0
      %v763 = vadd.f32 %v248, %v762
      %v764 = vpop.f32.mrf.mxu0
      %765 = vmatprep.mubr.bf16.mxu0 0
      %766 = vmatmul.mubr.bf16.gmra.mxu0 %v501
      %v767 = vpop.f32.mrf.mxu0
      %v768 = vadd.f32 %v248, %v767
      %v769 = vpop.f32.mrf.mxu0
      %v770 = vpop.f32.mrf.mxu0
      %v771 = vadd.f32 %v248, %v770
      %v772 = vpop.f32.mrf.mxu0
      %773 = vmatprep.mubr.bf16.mxu0 0
      %774 = vmatmul.mubr.bf16.gmra.mxu0 %v504
      %v775 = vpop.f32.mrf.mxu0
      %v776 = vadd.f32 %v248, %v775
      %v777 = vpop.f32.mrf.mxu0
      %v778 = vpop.f32.mrf.mxu0
      %v779 = vadd.f32 %v248, %v778
      %v780 = vpop.f32.mrf.mxu0
      %781 = vmatprep.mubr.bf16.mxu0 0
      %782 = vmatmul.mubr.bf16.gmra.mxu0 %v507
      %v783 = vpop.f32.mrf.mxu0
      %v784 = vadd.f32 %v248, %v783
      %v785 = vpop.f32.mrf.mxu0
      %v786 = vpop.f32.mrf.mxu0
      %v787 = vadd.f32 %v248, %v786
      %v788 = vpop.f32.mrf.mxu0
      %789 = vmatprep.mubr.bf16.mxu0 0
      %790 = vmatmul.mubr.bf16.gmra.mxu0 %v510
      %v791 = vpop.f32.mrf.mxu0
      %v792 = vadd.f32 %v248, %v791
      %v793 = vpop.f32.mrf.mxu0
      %v794 = vpop.f32.mrf.mxu0
      %v795 = vadd.f32 %v248, %v794
      %v796 = vpop.f32.mrf.mxu0
      %797 = vmatprep.mubr.bf16.mxu0 0
      %798 = vmatmul.mubr.bf16.gmra.mxu0 %v513
      %v799 = vpop.f32.mrf.mxu0
      %v800 = vadd.f32 %v248, %v799
      %v801 = vpop.f32.mrf.mxu0
      %v802 = vpop.f32.mrf.mxu0
      %v803 = vadd.f32 %v248, %v802
      %v804 = vpop.f32.mrf.mxu0
      %805 = vmatprep.mubr.bf16.mxu0 0
      %806 = vmatmul.mubr.bf16.gmra.mxu0 %v516
      %v807 = vpop.f32.mrf.mxu0
      %v808 = vadd.f32 %v248, %v807
      %v809 = vpop.f32.mrf.mxu0
      %v810 = vpop.f32.mrf.mxu0
      %v811 = vadd.f32 %v248, %v810
      %v812 = vpop.f32.mrf.mxu0
      %813 = vdwg.mxu0
      %814 = vst [vmem:[%s172] sm:$0xff] %v560
      %815 = vst [vmem:[%s172 + $0x8] sm:$0xff] %v563
      %816 = vst [vmem:[%s172 + $0x10] sm:$0xff] %v568
      %817 = vst [vmem:[%s172 + $0x18] sm:$0xff] %v571
      %818 = vst [vmem:[%s172 + $0x20] sm:$0xff] %v576
      %819 = vst [vmem:[%s172 + $0x28] sm:$0xff] %v579
      %820 = vst [vmem:[%s172 + $0x30] sm:$0xff] %v584
      %821 = vst [vmem:[%s172 + $0x38] sm:$0xff] %v587
      %822 = vst [vmem:[%s172 + $0x40] sm:$0xff] %v592
      %823 = vst [vmem:[%s172 + $0x48] sm:$0xff] %v595
      %824 = vst [vmem:[%s172 + $0x50] sm:$0xff] %v600
      %825 = vst [vmem:[%s172 + $0x58] sm:$0xff] %v603
      %826 = vst [vmem:[%s172 + $0x60] sm:$0xff] %v608
      %827 = vst [vmem:[%s172 + $0x68] sm:$0xff] %v611
      %828 = vst [vmem:[%s172 + $0x70] sm:$0xff] %v616
      %829 = vst [vmem:[%s172 + $0x78] sm:$0xff] %v619
      %830 = vst [vmem:[%s172 + $0x80] sm:$0xff] %v624
      %831 = vst [vmem:[%s172 + $0x88] sm:$0xff] %v627
      %832 = vst [vmem:[%s172 + $0x90] sm:$0xff] %v632
      %833 = vst [vmem:[%s172 + $0x98] sm:$0xff] %v635
      %834 = vst [vmem:[%s172 + $0xa0] sm:$0xff] %v640
      %835 = vst [vmem:[%s172 + $0xa8] sm:$0xff] %v643
      %836 = vst [vmem:[%s172 + $0xb0] sm:$0xff] %v648
      %837 = vst [vmem:[%s172 + $0xb8] sm:$0xff] %v651
      %838 = vst [vmem:[%s172 + $0xc0] sm:$0xff] %v656
      %839 = vst [vmem:[%s172 + $0xc8] sm:$0xff] %v659
      %840 = vst [vmem:[%s172 + $0xd0] sm:$0xff] %v664
      %841 = vst [vmem:[%s172 + $0xd8] sm:$0xff] %v667
      %842 = vst [vmem:[%s172 + $0xe0] sm:$0xff] %v672
      %843 = vst [vmem:[%s172 + $0xe8] sm:$0xff] %v675
      %844 = vst [vmem:[%s172 + $0xf0] sm:$0xff] %v680
      %845 = vst [vmem:[%s172 + $0xf8] sm:$0xff] %v683
      %846 = vst [vmem:[%s172 + $0x100] sm:$0xff] %v688
      %847 = vst [vmem:[%s172 + $0x108] sm:$0xff] %v691
      %848 = vst [vmem:[%s172 + $0x110] sm:$0xff] %v696
      %849 = vst [vmem:[%s172 + $0x118] sm:$0xff] %v699
      %850 = vst [vmem:[%s172 + $0x120] sm:$0xff] %v704
      %851 = vst [vmem:[%s172 + $0x128] sm:$0xff] %v707
      %852 = vst [vmem:[%s172 + $0x130] sm:$0xff] %v712
      %853 = vst [vmem:[%s172 + $0x138] sm:$0xff] %v715
      %854 = vst [vmem:[%s172 + $0x140] sm:$0xff] %v720
      %855 = vst [vmem:[%s172 + $0x148] sm:$0xff] %v723
      %856 = vst [vmem:[%s172 + $0x150] sm:$0xff] %v728
      %857 = vst [vmem:[%s172 + $0x158] sm:$0xff] %v731
      %858 = vst [vmem:[%s172 + $0x160] sm:$0xff] %v736
      %859 = vst [vmem:[%s172 + $0x168] sm:$0xff] %v739
      %860 = vst [vmem:[%s172 + $0x170] sm:$0xff] %v744
      %861 = vst [vmem:[%s172 + $0x178] sm:$0xff] %v747
      %862 = vst [vmem:[%s172 + $0x180] sm:$0xff] %v752
      %863 = vst [vmem:[%s172 + $0x188] sm:$0xff] %v755
      %864 = vst [vmem:[%s172 + $0x190] sm:$0xff] %v760
      %865 = vst [vmem:[%s172 + $0x198] sm:$0xff] %v763
      %866 = vst [vmem:[%s172 + $0x1a0] sm:$0xff] %v768
      %867 = vst [vmem:[%s172 + $0x1a8] sm:$0xff] %v771
      %868 = vst [vmem:[%s172 + $0x1b0] sm:$0xff] %v776
      %869 = vst [vmem:[%s172 + $0x1b8] sm:$0xff] %v779
      %870 = vst [vmem:[%s172 + $0x1c0] sm:$0xff] %v784
      %871 = vst [vmem:[%s172 + $0x1c8] sm:$0xff] %v787
      %872 = vst [vmem:[%s172 + $0x1d0] sm:$0xff] %v792
      %873 = vst [vmem:[%s172 + $0x1d8] sm:$0xff] %v795
      %874 = vst [vmem:[%s172 + $0x1e0] sm:$0xff] %v800
      %875 = vst [vmem:[%s172 + $0x1e8] sm:$0xff] %v803
      %876 = vst [vmem:[%s172 + $0x1f0] sm:$0xff] %v808
      %877 = vst [vmem:[%s172 + $0x1f8] sm:$0xff] %v811
      %s878 = smul.u32 64, %s14
      %p879 = scmp.lt.s32.totalorder %s878, 127
      %s880 = scalar_select %p879, %s878, 127
      %s881 = smul.addr %s880, 8
      %s882 = scalar_lea.vmem %s3, %s881
      // Predicated region
      $region33: #{apperance_model_style_forward.16} parent=31 // pred_check
        %p883 = pneg %p100
      $region34: #{apperance_model_style_forward.16} parent=31 // pred_check_branch
        %885 = sbr.rel (%p883) target = $region36
      $region35: #{apperance_model_style_forward.16} parent=31 // pred_region
        %s886 = smul.u32 64, %s14
      $region36: #{apperance_model_style_forward.16} parent=31 // pred_fallthru
        _
    $region32: #{apperance_model_style_forward.16} parent=5 // pred_fallthru
      _
    %p887 = scmp.le.s32.totalorder 2, %s9
    // Predicated region
    $region37: #{apperance_model_style_forward.16} parent=5 // pred_check
      %p888 = pneg %p887
    $region38: #{apperance_model_style_forward.16} parent=5 // pred_check_branch
      %890 = sbr.rel (%p888) target = $region40
    $region39: #{apperance_model_style_forward.16} parent=5 // pred_region
      %s891 = ssub.s32 %s9, 2
      // Predicated region
      $region41: #{apperance_model_style_forward.16} parent=39 // pred_check
        %p892 = pneg %p106
      $region42: #{apperance_model_style_forward.16} parent=39 // pred_check_branch
        %894 = sbr.rel (%p892) target = $region44
      $region43: #{apperance_model_style_forward.16} parent=39 // pred_region
        %s895 = smul.u32 64, %s15
        %p896 = scmp.lt.s32.totalorder %s895, 127
        %s897 = scalar_select %p896, %s895, 127
        %s898 = smul.addr %s897, 8
        %s899 = scalar_lea.vmem %s3, %s898
      $region44: #{apperance_model_style_forward.16} parent=39 // pred_fallthru
        _
    $region40: #{apperance_model_style_forward.16} parent=5 // pred_fallthru
      _
  $region6: #{apperance_model_style_forward.16} parent=0 // loop_footer
    %s13 = sadd.s32 1, %s9
  $region7: #{apperance_model_style_forward.16} parent=0 // loop_footer_branch
    %8 = sbr.rel target = $region3
  $region8: #{apperance_model_style_forward.16} parent=0 // loop_exit
    _

// kernel: apperance_model_style_forward.17
$region0: #{apperance_model_style_forward.17}
  #allocation0 [shape = 'u32[]', space=smem, size = 0x4, offset = 0x4, fixed_abs, tag = 'smem constant byte address 0x4 - core index']
  #allocation1 [shape = 'u32[144,128]{1,0:T(1,128)}', space=vmem, size = 0x12000, scoped, tag = 'internal scratch']
  %s0 = inlined_call_operand.vmem [shape: bf16[128,108], index: 0, kind: input, shape index: {}]
  %s1 = inlined_call_operand.vmem [shape: bf16[108,128], index: 1, kind: input, shape index: {}]
  %s2 = inlined_call_operand.vmem [shape: f32[1,128], index: 2, kind: input, shape index: {}]
  %s3 = inlined_call_operand.vmem [shape: f32[128,128], index: 3, kind: output, shape index: {}]
  %s4 = sld [smem:[#allocation0]]
  $region22: #{apperance_model_style_forward.17} parent=0
    _
  %s6 = ssub.s32 1, %s4
  %s7 = scalar_select 0, %s6, %s4
  // Predicated region
  $region2: #{apperance_model_style_forward.17} parent=0 // pred_check
    _
  $region3: #{apperance_model_style_forward.17} parent=0 // pred_check_branch
    %9 = sbr.rel (0) target = $region5
  $region4: #{apperance_model_style_forward.17} parent=0 // pred_region
    _
  $region5: #{apperance_model_style_forward.17} parent=0 // pred_fallthru
    _
  // Predicated region
  $region6: #{apperance_model_style_forward.17} parent=0 // pred_check
    _
  $region7: #{apperance_model_style_forward.17} parent=0 // pred_check_branch
    %11 = sbr.rel (0) target = $region9
  $region8: #{apperance_model_style_forward.17} parent=0 // pred_region
    _
  $region9: #{apperance_model_style_forward.17} parent=0 // pred_fallthru
    _
  // Predicated region
  $region10: #{apperance_model_style_forward.17} parent=0 // pred_check
    _
  $region11: #{apperance_model_style_forward.17} parent=0 // pred_check_branch
    %13 = sbr.rel (0) target = $region13
  $region12: #{apperance_model_style_forward.17} parent=0 // pred_region
    _
  $region13: #{apperance_model_style_forward.17} parent=0 // pred_fallthru
    _
  %v15 = vld [vmem:[%s0] sm:$0xf]
  %v16 = vld [vmem:[%s0 + $0x4] sm:$0xf]
  %v17 = vld [vmem:[%s0 + $0x8] sm:$0xf]
  %v18 = vld [vmem:[%s0 + $0xc] sm:$0xf]
  %v19 = vld [vmem:[%s0 + $0x10] sm:$0xf]
  %v20 = vld [vmem:[%s0 + $0x14] sm:$0xf]
  %v21 = vld [vmem:[%s0 + $0x18] sm:$0xf]
  %v22 = vld [vmem:[%s0 + $0x1c] sm:$0xf]
  %v23 = vld [vmem:[%s0 + $0x20] sm:$0xf]
  %v24 = vld [vmem:[%s0 + $0x24] sm:$0xf]
  %v25 = vld [vmem:[%s0 + $0x28] sm:$0xf]
  %v26 = vld [vmem:[%s0 + $0x2c] sm:$0xf]
  %v27 = vld [vmem:[%s0 + $0x30] sm:$0xf]
  %v28 = vld [vmem:[%s0 + $0x34] sm:$0xf]
  %v29 = vld [vmem:[%s0 + $0x38] sm:$0xf]
  %v30 = vld [vmem:[%s0 + $0x3c] sm:$0xf]
  %v31 = vld [vmem:[%s1] sm:$0xf]
  %v32 = vld [vmem:[%s1 + $0x4] sm:$0xf]
  %v33 = vld [vmem:[%s1 + $0x8] sm:$0xf]
  %v34 = vld [vmem:[%s1 + $0xc] sm:$0xf]
  %v35 = vld [vmem:[%s1 + $0x10] sm:$0xf]
  %v36 = vld [vmem:[%s1 + $0x14] sm:$0xf]
  %v37 = vld [vmem:[%s1 + $0x18] sm:$0xf]
  %v38 = vld [vmem:[%s1 + $0x1c] sm:$0xf]
  %v39 = vld [vmem:[%s1 + $0x20] sm:$0xf]
  %v40 = vld [vmem:[%s1 + $0x24] sm:$0xf]
  %v41 = vld [vmem:[%s1 + $0x28] sm:$0xf]
  %v42 = vld [vmem:[%s1 + $0x2c] sm:$0xf]
  %v43 = vld [vmem:[%s1 + $0x30] sm:$0xf]
  %v44 = vld [vmem:[%s1 + $0x34] sm:$0x3]
  %v45 = vld [vmem:[%s2] sm:$0x1]
  %v47 = vlaneseq
  %v48 = vshrl.u32 %v47, 7
  %v49 = vsub.s32 0, %v48
  %v50 = vrot.slane %v45, %v49
  %v68 = vunpack.c.l.b16 %v15
  %v69 = vunpack.c.l.b16 %v16
  %v70 = vunpack.c.l.b16 %v17
  %v71 = vunpack.c.l.b16 %v18
  %v72 = vunpack.c.l.b16 %v19
  %v73 = vunpack.c.l.b16 %v20
  %v74 = vunpack.c.l.b16 %v21
  %v75 = vunpack.c.l.b16 %v22
  %v76 = vunpack.c.l.b16 %v23
  %v77 = vunpack.c.l.b16 %v24
  %v78 = vunpack.c.l.b16 %v25
  %v79 = vunpack.c.l.b16 %v26
  %v80 = vunpack.c.l.b16 %v27
  %v81 = vunpack.c.l.b16 %v28
  %v82 = vunpack.c.l.b16 %v29
  %v83 = vunpack.c.l.b16 %v30
  %v84 = vpack.c.b16 %v69, %v68
  %v85 = vpack.c.b16 %v71, %v70
  %v86 = vpack.c.b16 %v73, %v72
  %v87 = vpack.c.b16 %v75, %v74
  %v88 = vpack.c.b16 %v77, %v76
  %v89 = vpack.c.b16 %v79, %v78
  %v90 = vpack.c.b16 %v81, %v80
  %v91 = vpack.c.b16 %v83, %v82
  %v106 = vunpack.c.l.b16 %v31
  %v107 = vunpack.c.l.b16 %v32
  %v108 = vunpack.c.l.b16 %v33
  %v109 = vunpack.c.l.b16 %v34
  %v110 = vunpack.c.l.b16 %v35
  %v111 = vunpack.c.l.b16 %v36
  %v112 = vunpack.c.l.b16 %v37
  %v113 = vunpack.c.l.b16 %v38
  %v114 = vunpack.c.l.b16 %v39
  %v115 = vunpack.c.l.b16 %v40
  %v116 = vunpack.c.l.b16 %v41
  %v117 = vunpack.c.l.b16 %v42
  %v118 = vunpack.c.l.b16 %v43
  %v119 = vunpack.c.l.b16 %v44
  %v120 = vpack.c.b16 %v107, %v106
  %v121 = vpack.c.b16 %v109, %v108
  %v122 = vpack.c.b16 %v111, %v110
  %v123 = vpack.c.b16 %v113, %v112
  %v124 = vpack.c.b16 %v115, %v114
  %v125 = vpack.c.b16 %v117, %v116
  %v126 = vpack.c.b16 %v119, %v118
  %vm133 = vcmask 883712
  %v135 = vsel %vm133, %v84, 0
  %v138 = vsel %vm133, %v85, 0
  %v141 = vsel %vm133, %v86, 0
  %v144 = vsel %vm133, %v87, 0
  %v147 = vsel %vm133, %v88, 0
  %v150 = vsel %vm133, %v89, 0
  %v153 = vsel %vm133, %v90, 0
  %v156 = vsel %vm133, %v91, 0
  %vm158 = vcmask 1045504
  %v160 = vsel %vm158, %v126, 0
  %162 = vmatprep.subr.bf16.mxu0 0
  %163 = vmatpush1.bf16.msra.mxu0 0
  %164 = vmatprep.subr.bf16.mxu0 0
  %165 = vmatpush1.bf16.msra.mxu0 %v160
  %166 = vmatprep.subr.bf16.mxu0 0
  %167 = vmatpush1.bf16.msra.mxu0 %v125
  %168 = vmatprep.subr.bf16.mxu0 0
  %169 = vmatpush1.bf16.msra.mxu0 %v124
  %170 = vmatprep.subr.bf16.mxu0 0
  %171 = vmatpush1.bf16.msra.mxu0 %v123
  %172 = vmatprep.subr.bf16.mxu0 0
  %173 = vmatpush1.bf16.msra.mxu0 %v122
  %174 = vmatprep.subr.bf16.mxu0 0
  %175 = vmatpush1.bf16.msra.mxu0 %v121
  %176 = vmatprep.subr.bf16.mxu0 0
  %177 = vmatpush1.bf16.msra.mxu0 %v120
  %178 = vmatprep.subr.bf16.mxu0 0
  %179 = vmatpush2.bf16.msra.mxu0 0
  %180 = vmatprep.subr.bf16.mxu0 0
  %181 = vmatpush2.bf16.msra.mxu0 0
  %182 = vmatprep.subr.bf16.mxu0 0
  %183 = vmatpush2.bf16.msra.mxu0 0
  %184 = vmatprep.subr.bf16.mxu0 0
  %185 = vmatpush2.bf16.msra.mxu0 0
  %186 = vmatprep.subr.bf16.mxu0 0
  %187 = vmatpush2.bf16.msra.mxu0 0
  %188 = vmatprep.subr.bf16.mxu0 0
  %189 = vmatpush2.bf16.msra.mxu0 0
  %190 = vmatprep.subr.bf16.mxu0 0
  %191 = vmatpush2.bf16.msra.mxu0 0
  %192 = vmatprep.subr.bf16.mxu0 0
  %193 = vmatpush2.bf16.msra.mxu0 0
  %194 = vmatprep.mubr.bf16.mxu0 0
  %195 = vmatmul.mubr.bf16.gmra.mxu0 %v135
  %v196 = vpop.f32.mrf.mxu0
  %v197 = vadd.f32 %v50, %v196
  %v198 = vpop.f32.mrf.mxu0
  %v199 = vpop.f32.mrf.mxu0
  %v200 = vadd.f32 %v50, %v199
  %v201 = vpop.f32.mrf.mxu0
  %202 = vmatprep.mubr.bf16.mxu0 0
  %203 = vmatmul.mubr.bf16.gmra.mxu0 %v138
  %v204 = vpop.f32.mrf.mxu0
  %v205 = vadd.f32 %v50, %v204
  %v206 = vpop.f32.mrf.mxu0
  %v207 = vpop.f32.mrf.mxu0
  %v208 = vadd.f32 %v50, %v207
  %v209 = vpop.f32.mrf.mxu0
  %210 = vmatprep.mubr.bf16.mxu0 0
  %211 = vmatmul.mubr.bf16.gmra.mxu0 %v141
  %v212 = vpop.f32.mrf.mxu0
  %v213 = vadd.f32 %v50, %v212
  %v214 = vpop.f32.mrf.mxu0
  %v215 = vpop.f32.mrf.mxu0
  %v216 = vadd.f32 %v50, %v215
  %v217 = vpop.f32.mrf.mxu0
  %218 = vmatprep.mubr.bf16.mxu0 0
  %219 = vmatmul.mubr.bf16.gmra.mxu0 %v144
  %v220 = vpop.f32.mrf.mxu0
  %v221 = vadd.f32 %v50, %v220
  %v222 = vpop.f32.mrf.mxu0
  %v223 = vpop.f32.mrf.mxu0
  %v224 = vadd.f32 %v50, %v223
  %v225 = vpop.f32.mrf.mxu0
  %226 = vmatprep.mubr.bf16.mxu0 0
  %227 = vmatmul.mubr.bf16.gmra.mxu0 %v147
  %v228 = vpop.f32.mrf.mxu0
  %v229 = vadd.f32 %v50, %v228
  %v230 = vpop.f32.mrf.mxu0
  %v231 = vpop.f32.mrf.mxu0
  %v232 = vadd.f32 %v50, %v231
  %v233 = vpop.f32.mrf.mxu0
  %234 = vmatprep.mubr.bf16.mxu0 0
  %235 = vmatmul.mubr.bf16.gmra.mxu0 %v150
  %v236 = vpop.f32.mrf.mxu0
  %v237 = vadd.f32 %v50, %v236
  %v238 = vpop.f32.mrf.mxu0
  %v239 = vpop.f32.mrf.mxu0
  %v240 = vadd.f32 %v50, %v239
  %v241 = vpop.f32.mrf.mxu0
  %242 = vmatprep.mubr.bf16.mxu0 0
  %243 = vmatmul.mubr.bf16.gmra.mxu0 %v153
  %v244 = vpop.f32.mrf.mxu0
  %v245 = vadd.f32 %v50, %v244
  %v246 = vpop.f32.mrf.mxu0
  %v247 = vpop.f32.mrf.mxu0
  %v248 = vadd.f32 %v50, %v247
  %v249 = vpop.f32.mrf.mxu0
  %250 = vmatprep.mubr.bf16.mxu0 0
  %251 = vmatmul.mubr.bf16.gmra.mxu0 %v156
  %v252 = vpop.f32.mrf.mxu0
  %v253 = vadd.f32 %v50, %v252
  %v254 = vpop.f32.mrf.mxu0
  %v255 = vpop.f32.mrf.mxu0
  %v256 = vadd.f32 %v50, %v255
  %v257 = vpop.f32.mrf.mxu0
  %258 = vdwg.mxu0
  %vm259 = vcmp.ge.f32.partialorder %v197, 0.0
  %vm260 = vcmp.ge.f32.partialorder %v200, 0.0
  %vm261 = vcmp.ge.f32.partialorder %v205, 0.0
  %vm262 = vcmp.ge.f32.partialorder %v208, 0.0
  %vm263 = vcmp.ge.f32.partialorder %v213, 0.0
  %vm264 = vcmp.ge.f32.partialorder %v216, 0.0
  %vm265 = vcmp.ge.f32.partialorder %v221, 0.0
  %vm266 = vcmp.ge.f32.partialorder %v224, 0.0
  %vm267 = vcmp.ge.f32.partialorder %v229, 0.0
  %vm268 = vcmp.ge.f32.partialorder %v232, 0.0
  %vm269 = vcmp.ge.f32.partialorder %v237, 0.0
  %vm270 = vcmp.ge.f32.partialorder %v240, 0.0
  %vm271 = vcmp.ge.f32.partialorder %v245, 0.0
  %vm272 = vcmp.ge.f32.partialorder %v248, 0.0
  %vm273 = vcmp.ge.f32.partialorder %v253, 0.0
  %vm274 = vcmp.ge.f32.partialorder %v256, 0.0
  %v275 = vmul.f32 %v197, 0.2
  %v276 = vmul.f32 %v200, 0.2
  %v277 = vmul.f32 %v205, 0.2
  %v278 = vmul.f32 %v208, 0.2
  %v279 = vmul.f32 %v213, 0.2
  %v280 = vmul.f32 %v216, 0.2
  %v281 = vmul.f32 %v221, 0.2
  %v282 = vmul.f32 %v224, 0.2
  %v283 = vmul.f32 %v229, 0.2
  %v284 = vmul.f32 %v232, 0.2
  %v285 = vmul.f32 %v237, 0.2
  %v286 = vmul.f32 %v240, 0.2
  %v287 = vmul.f32 %v245, 0.2
  %v288 = vmul.f32 %v248, 0.2
  %v289 = vmul.f32 %v253, 0.2
  %v290 = vmul.f32 %v256, 0.2
  %v291 = vsel %vm259, %v197, %v275
  %v292 = vsel %vm260, %v200, %v276
  %v293 = vsel %vm261, %v205, %v277
  %v294 = vsel %vm262, %v208, %v278
  %v295 = vsel %vm263, %v213, %v279
  %v296 = vsel %vm264, %v216, %v280
  %v297 = vsel %vm265, %v221, %v281
  %v298 = vsel %vm266, %v224, %v282
  %v299 = vsel %vm267, %v229, %v283
  %v300 = vsel %vm268, %v232, %v284
  %v301 = vsel %vm269, %v237, %v285
  %v302 = vsel %vm270, %v240, %v286
  %v303 = vsel %vm271, %v245, %v287
  %v304 = vsel %vm272, %v248, %v288
  %v305 = vsel %vm273, %v253, %v289
  %v306 = vsel %vm274, %v256, %v290
  %307 = vst [vmem:[%s3] sm:$0xff] %v291
  %308 = vst [vmem:[%s3 + $0x8] sm:$0xff] %v292
  %309 = vst [vmem:[%s3 + $0x10] sm:$0xff] %v293
  %310 = vst [vmem:[%s3 + $0x18] sm:$0xff] %v294
  %311 = vst [vmem:[%s3 + $0x20] sm:$0xff] %v295
  %312 = vst [vmem:[%s3 + $0x28] sm:$0xff] %v296
  %313 = vst [vmem:[%s3 + $0x30] sm:$0xff] %v297
  %314 = vst [vmem:[%s3 + $0x38] sm:$0xff] %v298
  %315 = vst [vmem:[%s3 + $0x40] sm:$0xff] %v299
  %316 = vst [vmem:[%s3 + $0x48] sm:$0xff] %v300
  %317 = vst [vmem:[%s3 + $0x50] sm:$0xff] %v301
  %318 = vst [vmem:[%s3 + $0x58] sm:$0xff] %v302
  %319 = vst [vmem:[%s3 + $0x60] sm:$0xff] %v303
  %320 = vst [vmem:[%s3 + $0x68] sm:$0xff] %v304
  %321 = vst [vmem:[%s3 + $0x70] sm:$0xff] %v305
  %322 = vst [vmem:[%s3 + $0x78] sm:$0xff] %v306
  // Predicated region
  $region14: #{apperance_model_style_forward.17} parent=0 // pred_check
    _
  $region15: #{apperance_model_style_forward.17} parent=0 // pred_check_branch
    %324 = sbr.rel (0) target = $region17
  $region16: #{apperance_model_style_forward.17} parent=0 // pred_region
    _
  $region17: #{apperance_model_style_forward.17} parent=0 // pred_fallthru
    _
  // Predicated region
  $region18: #{apperance_model_style_forward.17} parent=0 // pred_check
    _
  $region19: #{apperance_model_style_forward.17} parent=0 // pred_check_branch
    %326 = sbr.rel (0) target = $region21
  $region20: #{apperance_model_style_forward.17} parent=0 // pred_region
    _
  $region21: #{apperance_model_style_forward.17} parent=0 // pred_fallthru
    _

// kernel: apperance_model_style_forward.18
$region0: #{apperance_model_style_forward.18}
  #allocation0 [shape = 'u32[]', space=smem, size = 0x4, offset = 0x4, fixed_abs, tag = 'smem constant byte address 0x4 - core index']
  #allocation1 [shape = 'u32[144,128]{1,0:T(1,128)}', space=vmem, size = 0x12000, scoped, tag = 'internal scratch']
  %s0 = inlined_call_operand.vmem [shape: bf16[16,216], index: 0, kind: input, shape index: {}]
  %s1 = inlined_call_operand.vmem [shape: bf16[216,128], index: 1, kind: input, shape index: {}]
  %s2 = inlined_call_operand.vmem [shape: f32[1,128], index: 2, kind: input, shape index: {}]
  %s3 = inlined_call_operand.vmem [shape: f32[16,128], index: 3, kind: output, shape index: {}]
  %s4 = sld [smem:[#allocation0]]
  $region22: #{apperance_model_style_forward.18} parent=0
    _
  %s6 = ssub.s32 1, %s4
  %s7 = scalar_select 0, %s6, %s4
  // Predicated region
  $region2: #{apperance_model_style_forward.18} parent=0 // pred_check
    _
  $region3: #{apperance_model_style_forward.18} parent=0 // pred_check_branch
    %9 = sbr.rel (0) target = $region5
  $region4: #{apperance_model_style_forward.18} parent=0 // pred_region
    _
  $region5: #{apperance_model_style_forward.18} parent=0 // pred_fallthru
    _
  // Predicated region
  $region6: #{apperance_model_style_forward.18} parent=0 // pred_check
    _
  $region7: #{apperance_model_style_forward.18} parent=0 // pred_check_branch
    %11 = sbr.rel (0) target = $region9
  $region8: #{apperance_model_style_forward.18} parent=0 // pred_region
    _
  $region9: #{apperance_model_style_forward.18} parent=0 // pred_fallthru
    _
  // Predicated region
  $region10: #{apperance_model_style_forward.18} parent=0 // pred_check
    _
  $region11: #{apperance_model_style_forward.18} parent=0 // pred_check_branch
    %13 = sbr.rel (0) target = $region13
  $region12: #{apperance_model_style_forward.18} parent=0 // pred_region
    _
  $region13: #{apperance_model_style_forward.18} parent=0 // pred_fallthru
    _
  %v15 = vld [vmem:[%s0] sm:$0xff]
  %v16 = vld [vmem:[%s0 + $0x8] sm:$0xff]
  %v17 = vld [vmem:[%s1] sm:$0xf]
  %v18 = vld [vmem:[%s1 + $0x4] sm:$0xf]
  %v19 = vld [vmem:[%s1 + $0x8] sm:$0xf]
  %v20 = vld [vmem:[%s1 + $0xc] sm:$0xf]
  %v21 = vld [vmem:[%s1 + $0x10] sm:$0xf]
  %v22 = vld [vmem:[%s1 + $0x14] sm:$0xf]
  %v23 = vld [vmem:[%s1 + $0x18] sm:$0xf]
  %v24 = vld [vmem:[%s1 + $0x1c] sm:$0xf]
  %v25 = vld [vmem:[%s1 + $0x20] sm:$0xf]
  %v26 = vld [vmem:[%s1 + $0x24] sm:$0xf]
  %v27 = vld [vmem:[%s1 + $0x28] sm:$0xf]
  %v28 = vld [vmem:[%s1 + $0x2c] sm:$0xf]
  %v29 = vld [vmem:[%s1 + $0x30] sm:$0xf]
  %v30 = vld [vmem:[%s1 + $0x34] sm:$0xf]
  %v31 = vld [vmem:[%s1 + $0x38] sm:$0xf]
  %v32 = vld [vmem:[%s1 + $0x3c] sm:$0xf]
  %v33 = vld [vmem:[%s1 + $0x40] sm:$0xf]
  %v34 = vld [vmem:[%s1 + $0x44] sm:$0xf]
  %v35 = vld [vmem:[%s1 + $0x48] sm:$0xf]
  %v36 = vld [vmem:[%s1 + $0x4c] sm:$0xf]
  %v37 = vld [vmem:[%s1 + $0x50] sm:$0xf]
  %v38 = vld [vmem:[%s1 + $0x54] sm:$0xf]
  %v39 = vld [vmem:[%s1 + $0x58] sm:$0xf]
  %v40 = vld [vmem:[%s1 + $0x5c] sm:$0xf]
  %v41 = vld [vmem:[%s1 + $0x60] sm:$0xf]
  %v42 = vld [vmem:[%s1 + $0x64] sm:$0xf]
  %v43 = vld [vmem:[%s1 + $0x68] sm:$0xf]
  %v44 = vld [vmem:[%s2] sm:$0x1]
  %v46 = vlaneseq
  %v47 = vshrl.u32 %v46, 7
  %v48 = vsub.s32 0, %v47
  %v49 = vrot.slane %v44, %v48
  %v53 = vunpack.c.l.b16 %v15
  %v54 = vunpack.c.h.b16 %v15
  %v55 = vunpack.c.l.b16 %v16
  %v56 = vunpack.c.h.b16 %v16
  %v57 = vpack.c.b16 %v55, %v53
  %v58 = vpack.c.b16 %v56, %v54
  %v87 = vunpack.c.l.b16 %v17
  %v88 = vunpack.c.l.b16 %v18
  %v89 = vunpack.c.l.b16 %v19
  %v90 = vunpack.c.l.b16 %v20
  %v91 = vunpack.c.l.b16 %v21
  %v92 = vunpack.c.l.b16 %v22
  %v93 = vunpack.c.l.b16 %v23
  %v94 = vunpack.c.l.b16 %v24
  %v95 = vunpack.c.l.b16 %v25
  %v96 = vunpack.c.l.b16 %v26
  %v97 = vunpack.c.l.b16 %v27
  %v98 = vunpack.c.l.b16 %v28
  %v99 = vunpack.c.l.b16 %v29
  %v100 = vunpack.c.l.b16 %v30
  %v101 = vunpack.c.l.b16 %v31
  %v102 = vunpack.c.l.b16 %v32
  %v103 = vunpack.c.l.b16 %v33
  %v104 = vunpack.c.l.b16 %v34
  %v105 = vunpack.c.l.b16 %v35
  %v106 = vunpack.c.l.b16 %v36
  %v107 = vunpack.c.l.b16 %v37
  %v108 = vunpack.c.l.b16 %v38
  %v109 = vunpack.c.l.b16 %v39
  %v110 = vunpack.c.l.b16 %v40
  %v111 = vunpack.c.l.b16 %v41
  %v112 = vunpack.c.l.b16 %v42
  %v113 = vunpack.c.l.b16 %v43
  %v114 = vpack.c.b16 %v88, %v87
  %v115 = vpack.c.b16 %v90, %v89
  %v116 = vpack.c.b16 %v92, %v91
  %v117 = vpack.c.b16 %v94, %v93
  %v118 = vpack.c.b16 %v96, %v95
  %v119 = vpack.c.b16 %v98, %v97
  %v120 = vpack.c.b16 %v100, %v99
  %v121 = vpack.c.b16 %v102, %v101
  %v122 = vpack.c.b16 %v104, %v103
  %v123 = vpack.c.b16 %v106, %v105
  %v124 = vpack.c.b16 %v108, %v107
  %v125 = vpack.c.b16 %v110, %v109
  %v126 = vpack.c.b16 %v112, %v111
  %v127 = vpack.c.b16 %v113, %v113
  %vm141 = vcmask 719872
  %v143 = vsel %vm141, %v58, 0
  %vm145 = vcmask 1043456
  %v147 = vsel %vm145, %v127, 0
  %149 = vmatprep.subr.bf16.mxu0 0
  %150 = vmatpush1.bf16.msra.mxu0 %v121
  %151 = vmatprep.subr.bf16.mxu0 0
  %152 = vmatpush1.bf16.msra.mxu0 %v120
  %153 = vmatprep.subr.bf16.mxu0 0
  %154 = vmatpush1.bf16.msra.mxu0 %v119
  %155 = vmatprep.subr.bf16.mxu0 0
  %156 = vmatpush1.bf16.msra.mxu0 %v118
  %157 = vmatprep.subr.bf16.mxu0 0
  %158 = vmatpush1.bf16.msra.mxu0 %v117
  %159 = vmatprep.subr.bf16.mxu0 0
  %160 = vmatpush1.bf16.msra.mxu0 %v116
  %161 = vmatprep.subr.bf16.mxu0 0
  %162 = vmatpush1.bf16.msra.mxu0 %v115
  %163 = vmatprep.subr.bf16.mxu0 0
  %164 = vmatpush1.bf16.msra.mxu0 %v114
  %165 = vmatprep.subr.bf16.mxu0 0
  %166 = vmatpush2.bf16.msra.mxu0 0
  %167 = vmatprep.subr.bf16.mxu0 0
  %168 = vmatpush2.bf16.msra.mxu0 0
  %169 = vmatprep.subr.bf16.mxu0 0
  %170 = vmatpush2.bf16.msra.mxu0 %v147
  %171 = vmatprep.subr.bf16.mxu0 0
  %172 = vmatpush2.bf16.msra.mxu0 %v126
  %173 = vmatprep.subr.bf16.mxu0 0
  %174 = vmatpush2.bf16.msra.mxu0 %v125
  %175 = vmatprep.subr.bf16.mxu0 0
  %176 = vmatpush2.bf16.msra.mxu0 %v124
  %177 = vmatprep.subr.bf16.mxu0 0
  %178 = vmatpush2.bf16.msra.mxu0 %v123
  %179 = vmatprep.subr.bf16.mxu0 0
  %180 = vmatpush2.bf16.msra.mxu0 %v122
  %181 = vmatprep.mubr.bf16.mxu0 %v143
  %182 = vmatmul.mubr.bf16.gmra.mxu0 %v57
  %v183 = vpop.f32.mrf.mxu0
  %v184 = vadd.f32 %v49, %v183
  %v185 = vpop.f32.mrf.mxu0
  %v186 = vpop.f32.mrf.mxu0
  %v187 = vadd.f32 %v49, %v186
  %v188 = vpop.f32.mrf.mxu0
  %189 = vdwg.mxu0
  %vm190 = vcmp.ge.f32.partialorder %v184, 0.0
  %vm191 = vcmp.ge.f32.partialorder %v187, 0.0
  %v192 = vmul.f32 %v184, 0.2
  %v193 = vmul.f32 %v187, 0.2
  %v194 = vsel %vm190, %v184, %v192
  %v195 = vsel %vm191, %v187, %v193
  %196 = vst [vmem:[%s3] sm:$0xff] %v194
  %197 = vst [vmem:[%s3 + $0x8] sm:$0xff] %v195
  // Predicated region
  $region14: #{apperance_model_style_forward.18} parent=0 // pred_check
    _
  $region15: #{apperance_model_style_forward.18} parent=0 // pred_check_branch
    %199 = sbr.rel (0) target = $region17
  $region16: #{apperance_model_style_forward.18} parent=0 // pred_region
    _
  $region17: #{apperance_model_style_forward.18} parent=0 // pred_fallthru
    _
  // Predicated region
  $region18: #{apperance_model_style_forward.18} parent=0 // pred_check
    _
  $region19: #{apperance_model_style_forward.18} parent=0 // pred_check_branch
    %201 = sbr.rel (0) target = $region21
  $region20: #{apperance_model_style_forward.18} parent=0 // pred_region
    _
  $region21: #{apperance_model_style_forward.18} parent=0 // pred_fallthru
    _

// kernel: apperance_model_style_forward.20
$region0: #{apperance_model_style_forward.20}
  #allocation0 [shape = 'u32[]', space=smem, size = 0x4, offset = 0x4, fixed_abs, tag = 'smem constant byte address 0x4 - core index']
  #allocation1 [shape = 'u32[144,128]{1,0:T(1,128)}', space=vmem, size = 0x12000, scoped, tag = 'internal scratch']
  %s0 = inlined_call_operand.vmem [shape: bf16[16,432], index: 0, kind: input, shape index: {}]
  %s1 = inlined_call_operand.vmem [shape: bf16[432,128], index: 1, kind: input, shape index: {}]
  %s2 = inlined_call_operand.vmem [shape: f32[1,128], index: 2, kind: input, shape index: {}]
  %s3 = inlined_call_operand.vmem [shape: f32[16,128], index: 3, kind: input, shape index: {}]
  %s4 = inlined_call_operand.vmem [shape: f32[16,128], index: 4, kind: output, shape index: {}]
  %s5 = sld [smem:[#allocation0]]
  $region26: #{apperance_model_style_forward.20} parent=0
    _
  %s7 = ssub.s32 1, %s5
  %s8 = scalar_select 0, %s7, %s5
  // Predicated region
  $region2: #{apperance_model_style_forward.20} parent=0 // pred_check
    _
  $region3: #{apperance_model_style_forward.20} parent=0 // pred_check_branch
    %10 = sbr.rel (0) target = $region5
  $region4: #{apperance_model_style_forward.20} parent=0 // pred_region
    _
  $region5: #{apperance_model_style_forward.20} parent=0 // pred_fallthru
    _
  // Predicated region
  $region6: #{apperance_model_style_forward.20} parent=0 // pred_check
    _
  $region7: #{apperance_model_style_forward.20} parent=0 // pred_check_branch
    %12 = sbr.rel (0) target = $region9
  $region8: #{apperance_model_style_forward.20} parent=0 // pred_region
    _
  $region9: #{apperance_model_style_forward.20} parent=0 // pred_fallthru
    _
  // Predicated region
  $region10: #{apperance_model_style_forward.20} parent=0 // pred_check
    _
  $region11: #{apperance_model_style_forward.20} parent=0 // pred_check_branch
    %14 = sbr.rel (0) target = $region13
  $region12: #{apperance_model_style_forward.20} parent=0 // pred_region
    _
  $region13: #{apperance_model_style_forward.20} parent=0 // pred_fallthru
    _
  // Predicated region
  $region14: #{apperance_model_style_forward.20} parent=0 // pred_check
    _
  $region15: #{apperance_model_style_forward.20} parent=0 // pred_check_branch
    %16 = sbr.rel (0) target = $region17
  $region16: #{apperance_model_style_forward.20} parent=0 // pred_region
    _
  $region17: #{apperance_model_style_forward.20} parent=0 // pred_fallthru
    _
  %v18 = vld [vmem:[%s0] sm:$0xff]
  %v19 = vld [vmem:[%s0 + $0x8] sm:$0xff]
  %v20 = vld [vmem:[%s0 + $0x10] sm:$0xff]
  %v21 = vld [vmem:[%s0 + $0x18] sm:$0xff]
  %v22 = vld [vmem:[%s1] sm:$0xf]
  %v23 = vld [vmem:[%s1 + $0x4] sm:$0xf]
  %v24 = vld [vmem:[%s1 + $0x8] sm:$0xf]
  %v25 = vld [vmem:[%s1 + $0xc] sm:$0xf]
  %v26 = vld [vmem:[%s1 + $0x10] sm:$0xf]
  %v27 = vld [vmem:[%s1 + $0x14] sm:$0xf]
  %v28 = vld [vmem:[%s1 + $0x18] sm:$0xf]
  %v29 = vld [vmem:[%s1 + $0x1c] sm:$0xf]
  %v30 = vld [vmem:[%s1 + $0x20] sm:$0xf]
  %v31 = vld [vmem:[%s1 + $0x24] sm:$0xf]
  %v32 = vld [vmem:[%s1 + $0x28] sm:$0xf]
  %v33 = vld [vmem:[%s1 + $0x2c] sm:$0xf]
  %v34 = vld [vmem:[%s1 + $0x30] sm:$0xf]
  %v35 = vld [vmem:[%s1 + $0x34] sm:$0xf]
  %v36 = vld [vmem:[%s1 + $0x38] sm:$0xf]
  %v37 = vld [vmem:[%s1 + $0x3c] sm:$0xf]
  %v38 = vld [vmem:[%s1 + $0x40] sm:$0xf]
  %v39 = vld [vmem:[%s1 + $0x44] sm:$0xf]
  %v40 = vld [vmem:[%s1 + $0x48] sm:$0xf]
  %v41 = vld [vmem:[%s1 + $0x4c] sm:$0xf]
  %v42 = vld [vmem:[%s1 + $0x50] sm:$0xf]
  %v43 = vld [vmem:[%s1 + $0x54] sm:$0xf]
  %v44 = vld [vmem:[%s1 + $0x58] sm:$0xf]
  %v45 = vld [vmem:[%s1 + $0x5c] sm:$0xf]
  %v46 = vld [vmem:[%s1 + $0x60] sm:$0xf]
  %v47 = vld [vmem:[%s1 + $0x64] sm:$0xf]
  %v48 = vld [vmem:[%s1 + $0x68] sm:$0xf]
  %v49 = vld [vmem:[%s1 + $0x6c] sm:$0xf]
  %v50 = vld [vmem:[%s1 + $0x70] sm:$0xf]
  %v51 = vld [vmem:[%s1 + $0x74] sm:$0xf]
  %v52 = vld [vmem:[%s1 + $0x78] sm:$0xf]
  %v53 = vld [vmem:[%s1 + $0x7c] sm:$0xf]
  %v54 = vld [vmem:[%s1 + $0x80] sm:$0xf]
  %v55 = vld [vmem:[%s1 + $0x84] sm:$0xf]
  %v56 = vld [vmem:[%s1 + $0x88] sm:$0xf]
  %v57 = vld [vmem:[%s1 + $0x8c] sm:$0xf]
  %v58 = vld [vmem:[%s1 + $0x90] sm:$0xf]
  %v59 = vld [vmem:[%s1 + $0x94] sm:$0xf]
  %v60 = vld [vmem:[%s1 + $0x98] sm:$0xf]
  %v61 = vld [vmem:[%s1 + $0x9c] sm:$0xf]
  %v62 = vld [vmem:[%s1 + $0xa0] sm:$0xf]
  %v63 = vld [vmem:[%s1 + $0xa4] sm:$0xf]
  %v64 = vld [vmem:[%s1 + $0xa8] sm:$0xf]
  %v65 = vld [vmem:[%s1 + $0xac] sm:$0xf]
  %v66 = vld [vmem:[%s1 + $0xb0] sm:$0xf]
  %v67 = vld [vmem:[%s1 + $0xb4] sm:$0xf]
  %v68 = vld [vmem:[%s1 + $0xb8] sm:$0xf]
  %v69 = vld [vmem:[%s1 + $0xbc] sm:$0xf]
  %v70 = vld [vmem:[%s1 + $0xc0] sm:$0xf]
  %v71 = vld [vmem:[%s1 + $0xc4] sm:$0xf]
  %v72 = vld [vmem:[%s1 + $0xc8] sm:$0xf]
  %v73 = vld [vmem:[%s1 + $0xcc] sm:$0xf]
  %v74 = vld [vmem:[%s1 + $0xd0] sm:$0xf]
  %v75 = vld [vmem:[%s1 + $0xd4] sm:$0xf]
  %v76 = vld [vmem:[%s2] sm:$0x1]
  %v78 = vlaneseq
  %v79 = vshrl.u32 %v78, 7
  %v80 = vsub.s32 0, %v79
  %v81 = vrot.slane %v76, %v80
  %v87 = vunpack.c.l.b16 %v18
  %v88 = vunpack.c.h.b16 %v18
  %v89 = vunpack.c.l.b16 %v19
  %v90 = vunpack.c.h.b16 %v19
  %v91 = vunpack.c.l.b16 %v20
  %v92 = vunpack.c.h.b16 %v20
  %v93 = vunpack.c.l.b16 %v21
  %v94 = vunpack.c.h.b16 %v21
  %v95 = vpack.c.b16 %v91, %v87
  %v96 = vpack.c.b16 %v92, %v88
  %v97 = vpack.c.b16 %v93, %v89
  %v98 = vpack.c.b16 %v94, %v90
  %v156 = vunpack.c.l.b16 %v22
  %v157 = vunpack.c.l.b16 %v23
  %v158 = vunpack.c.l.b16 %v24
  %v159 = vunpack.c.l.b16 %v25
  %v160 = vunpack.c.l.b16 %v26
  %v161 = vunpack.c.l.b16 %v27
  %v162 = vunpack.c.l.b16 %v28
  %v163 = vunpack.c.l.b16 %v29
  %v164 = vunpack.c.l.b16 %v30
  %v165 = vunpack.c.l.b16 %v31
  %v166 = vunpack.c.l.b16 %v32
  %v167 = vunpack.c.l.b16 %v33
  %v168 = vunpack.c.l.b16 %v34
  %v169 = vunpack.c.l.b16 %v35
  %v170 = vunpack.c.l.b16 %v36
  %v171 = vunpack.c.l.b16 %v37
  %v172 = vunpack.c.l.b16 %v38
  %v173 = vunpack.c.l.b16 %v39
  %v174 = vunpack.c.l.b16 %v40
  %v175 = vunpack.c.l.b16 %v41
  %v176 = vunpack.c.l.b16 %v42
  %v177 = vunpack.c.l.b16 %v43
  %v178 = vunpack.c.l.b16 %v44
  %v179 = vunpack.c.l.b16 %v45
  %v180 = vunpack.c.l.b16 %v46
  %v181 = vunpack.c.l.b16 %v47
  %v182 = vunpack.c.l.b16 %v48
  %v183 = vunpack.c.l.b16 %v49
  %v184 = vunpack.c.l.b16 %v50
  %v185 = vunpack.c.l.b16 %v51
  %v186 = vunpack.c.l.b16 %v52
  %v187 = vunpack.c.l.b16 %v53
  %v188 = vunpack.c.l.b16 %v54
  %v189 = vunpack.c.l.b16 %v55
  %v190 = vunpack.c.l.b16 %v56
  %v191 = vunpack.c.l.b16 %v57
  %v192 = vunpack.c.l.b16 %v58
  %v193 = vunpack.c.l.b16 %v59
  %v194 = vunpack.c.l.b16 %v60
  %v195 = vunpack.c.l.b16 %v61
  %v196 = vunpack.c.l.b16 %v62
  %v197 = vunpack.c.l.b16 %v63
  %v198 = vunpack.c.l.b16 %v64
  %v199 = vunpack.c.l.b16 %v65
  %v200 = vunpack.c.l.b16 %v66
  %v201 = vunpack.c.l.b16 %v67
  %v202 = vunpack.c.l.b16 %v68
  %v203 = vunpack.c.l.b16 %v69
  %v204 = vunpack.c.l.b16 %v70
  %v205 = vunpack.c.l.b16 %v71
  %v206 = vunpack.c.l.b16 %v72
  %v207 = vunpack.c.l.b16 %v73
  %v208 = vunpack.c.l.b16 %v74
  %v209 = vunpack.c.l.b16 %v75
  %v210 = vpack.c.b16 %v157, %v156
  %v211 = vpack.c.b16 %v159, %v158
  %v212 = vpack.c.b16 %v161, %v160
  %v213 = vpack.c.b16 %v163, %v162
  %v214 = vpack.c.b16 %v165, %v164
  %v215 = vpack.c.b16 %v167, %v166
  %v216 = vpack.c.b16 %v169, %v168
  %v217 = vpack.c.b16 %v171, %v170
  %v218 = vpack.c.b16 %v173, %v172
  %v219 = vpack.c.b16 %v175, %v174
  %v220 = vpack.c.b16 %v177, %v176
  %v221 = vpack.c.b16 %v179, %v178
  %v222 = vpack.c.b16 %v181, %v180
  %v223 = vpack.c.b16 %v183, %v182
  %v224 = vpack.c.b16 %v185, %v184
  %v225 = vpack.c.b16 %v187, %v186
  %v226 = vpack.c.b16 %v189, %v188
  %v227 = vpack.c.b16 %v191, %v190
  %v228 = vpack.c.b16 %v193, %v192
  %v229 = vpack.c.b16 %v195, %v194
  %v230 = vpack.c.b16 %v197, %v196
  %v231 = vpack.c.b16 %v199, %v198
  %v232 = vpack.c.b16 %v201, %v200
  %v233 = vpack.c.b16 %v203, %v202
  %v234 = vpack.c.b16 %v205, %v204
  %v235 = vpack.c.b16 %v207, %v206
  %v236 = vpack.c.b16 %v209, %v208
  %vm264 = vcmask 392192
  %v266 = vsel %vm264, %v98, 0
  %268 = vmatprep.subr.bf16.mxu0 0
  %269 = vmatpush1.bf16.msra.mxu0 %v217
  %270 = vmatprep.subr.bf16.mxu0 0
  %271 = vmatpush1.bf16.msra.mxu0 %v216
  %272 = vmatprep.subr.bf16.mxu0 0
  %273 = vmatpush1.bf16.msra.mxu0 %v215
  %274 = vmatprep.subr.bf16.mxu0 0
  %275 = vmatpush1.bf16.msra.mxu0 %v214
  %276 = vmatprep.subr.bf16.mxu0 0
  %277 = vmatpush1.bf16.msra.mxu0 %v213
  %278 = vmatprep.subr.bf16.mxu0 0
  %279 = vmatpush1.bf16.msra.mxu0 %v212
  %280 = vmatprep.subr.bf16.mxu0 0
  %281 = vmatpush1.bf16.msra.mxu0 %v211
  %282 = vmatprep.subr.bf16.mxu0 0
  %283 = vmatpush1.bf16.msra.mxu0 %v210
  %284 = vmatprep.subr.bf16.mxu0 0
  %285 = vmatpush2.bf16.msra.mxu0 %v225
  %286 = vmatprep.subr.bf16.mxu0 0
  %287 = vmatpush2.bf16.msra.mxu0 %v224
  %288 = vmatprep.subr.bf16.mxu0 0
  %289 = vmatpush2.bf16.msra.mxu0 %v223
  %290 = vmatprep.subr.bf16.mxu0 0
  %291 = vmatpush2.bf16.msra.mxu0 %v222
  %292 = vmatprep.subr.bf16.mxu0 0
  %293 = vmatpush2.bf16.msra.mxu0 %v221
  %294 = vmatprep.subr.bf16.mxu0 0
  %295 = vmatpush2.bf16.msra.mxu0 %v220
  %296 = vmatprep.subr.bf16.mxu0 0
  %297 = vmatpush2.bf16.msra.mxu0 %v219
  %298 = vmatprep.subr.bf16.mxu0 0
  %299 = vmatpush2.bf16.msra.mxu0 %v218
  %300 = vmatprep.mubr.bf16.mxu0 %v96
  %301 = vmatmul.mubr.bf16.gmra.mxu0 %v95
  %v302 = vpop.f32.mrf.mxu0
  %v303 = vadd.f32 %v81, %v302
  %v304 = vpop.f32.mrf.mxu0
  %v305 = vpop.f32.mrf.mxu0
  %v306 = vadd.f32 %v81, %v305
  %v307 = vpop.f32.mrf.mxu0
  %308 = vdwg.mxu0
  %309 = vmatprep.subr.bf16.mxu0 0
  %310 = vmatpush1.bf16.msra.mxu0 %v233
  %311 = vmatprep.subr.bf16.mxu0 0
  %312 = vmatpush1.bf16.msra.mxu0 %v232
  %313 = vmatprep.subr.bf16.mxu0 0
  %314 = vmatpush1.bf16.msra.mxu0 %v231
  %315 = vmatprep.subr.bf16.mxu0 0
  %316 = vmatpush1.bf16.msra.mxu0 %v230
  %317 = vmatprep.subr.bf16.mxu0 0
  %318 = vmatpush1.bf16.msra.mxu0 %v229
  %319 = vmatprep.subr.bf16.mxu0 0
  %320 = vmatpush1.bf16.msra.mxu0 %v228
  %321 = vmatprep.subr.bf16.mxu0 0
  %322 = vmatpush1.bf16.msra.mxu0 %v227
  %323 = vmatprep.subr.bf16.mxu0 0
  %324 = vmatpush1.bf16.msra.mxu0 %v226
  %325 = vmatprep.subr.bf16.mxu0 0
  %326 = vmatpush2.bf16.msra.mxu0 0
  %327 = vmatprep.subr.bf16.mxu0 0
  %328 = vmatpush2.bf16.msra.mxu0 0
  %329 = vmatprep.subr.bf16.mxu0 0
  %330 = vmatpush2.bf16.msra.mxu0 0
  %331 = vmatprep.subr.bf16.mxu0 0
  %332 = vmatpush2.bf16.msra.mxu0 0
  %333 = vmatprep.subr.bf16.mxu0 0
  %334 = vmatpush2.bf16.msra.mxu0 0
  %335 = vmatprep.subr.bf16.mxu0 0
  %336 = vmatpush2.bf16.msra.mxu0 %v236
  %337 = vmatprep.subr.bf16.mxu0 0
  %338 = vmatpush2.bf16.msra.mxu0 %v235
  %339 = vmatprep.subr.bf16.mxu0 0
  %340 = vmatpush2.bf16.msra.mxu0 %v234
  %341 = vmatprep.mubr.bf16.mxu0 %v266
  %342 = vmatmul.mubr.bf16.gmra.mxu0 %v97
  %v343 = vpop.f32.mrf.mxu0
  %v344 = vadd.f32 %v303, %v343
  %v345 = vpop.f32.mrf.mxu0
  %v346 = vpop.f32.mrf.mxu0
  %v347 = vadd.f32 %v306, %v346
  %v348 = vpop.f32.mrf.mxu0
  %349 = vdwg.mxu0
  %v350 = vld [vmem:[%s3] sm:$0xff]
  %v351 = vld [vmem:[%s3 + $0x8] sm:$0xff]
  %v352 = vadd.f32 %v350, %v344
  %v353 = vadd.f32 %v351, %v347
  %354 = vst [vmem:[%s4] sm:$0xff] %v352
  %355 = vst [vmem:[%s4 + $0x8] sm:$0xff] %v353
  // Predicated region
  $region18: #{apperance_model_style_forward.20} parent=0 // pred_check
    _
  $region19: #{apperance_model_style_forward.20} parent=0 // pred_check_branch
    %357 = sbr.rel (0) target = $region21
  $region20: #{apperance_model_style_forward.20} parent=0 // pred_region
    _
  $region21: #{apperance_model_style_forward.20} parent=0 // pred_fallthru
    _
  // Predicated region
  $region22: #{apperance_model_style_forward.20} parent=0 // pred_check
    _
  $region23: #{apperance_model_style_forward.20} parent=0 // pred_check_branch
    %359 = sbr.rel (0) target = $region25
  $region24: #{apperance_model_style_forward.20} parent=0 // pred_region
    _
  $region25: #{apperance_model_style_forward.20} parent=0 // pred_fallthru
    _

// kernel: apperance_model_style_forward.19
$region0: #{apperance_model_style_forward.19}
  #allocation0 [shape = 'u32[]', space=smem, size = 0x4, offset = 0x4, fixed_abs, tag = 'smem constant byte address 0x4 - core index']
  #allocation1 [shape = 'u32[144,128]{1,0:T(1,128)}', space=vmem, size = 0x12000, scoped, tag = 'internal scratch']
  %s0 = inlined_call_operand.vmem [shape: bf16[16,432], index: 0, kind: input, shape index: {}]
  %s1 = inlined_call_operand.vmem [shape: bf16[432,128], index: 1, kind: input, shape index: {}]
  %s2 = inlined_call_operand.vmem [shape: f32[1,128], index: 2, kind: input, shape index: {}]
  %s3 = inlined_call_operand.vmem [shape: f32[16,128], index: 3, kind: output, shape index: {}]
  %s4 = sld [smem:[#allocation0]]
  $region22: #{apperance_model_style_forward.19} parent=0
    _
  %s6 = ssub.s32 1, %s4
  %s7 = scalar_select 0, %s6, %s4
  // Predicated region
  $region2: #{apperance_model_style_forward.19} parent=0 // pred_check
    _
  $region3: #{apperance_model_style_forward.19} parent=0 // pred_check_branch
    %9 = sbr.rel (0) target = $region5
  $region4: #{apperance_model_style_forward.19} parent=0 // pred_region
    _
  $region5: #{apperance_model_style_forward.19} parent=0 // pred_fallthru
    _
  // Predicated region
  $region6: #{apperance_model_style_forward.19} parent=0 // pred_check
    _
  $region7: #{apperance_model_style_forward.19} parent=0 // pred_check_branch
    %11 = sbr.rel (0) target = $region9
  $region8: #{apperance_model_style_forward.19} parent=0 // pred_region
    _
  $region9: #{apperance_model_style_forward.19} parent=0 // pred_fallthru
    _
  // Predicated region
  $region10: #{apperance_model_style_forward.19} parent=0 // pred_check
    _
  $region11: #{apperance_model_style_forward.19} parent=0 // pred_check_branch
    %13 = sbr.rel (0) target = $region13
  $region12: #{apperance_model_style_forward.19} parent=0 // pred_region
    _
  $region13: #{apperance_model_style_forward.19} parent=0 // pred_fallthru
    _
  %v15 = vld [vmem:[%s0] sm:$0xff]
  %v16 = vld [vmem:[%s0 + $0x8] sm:$0xff]
  %v17 = vld [vmem:[%s0 + $0x10] sm:$0xff]
  %v18 = vld [vmem:[%s0 + $0x18] sm:$0xff]
  %v19 = vld [vmem:[%s1] sm:$0xf]
  %v20 = vld [vmem:[%s1 + $0x4] sm:$0xf]
  %v21 = vld [vmem:[%s1 + $0x8] sm:$0xf]
  %v22 = vld [vmem:[%s1 + $0xc] sm:$0xf]
  %v23 = vld [vmem:[%s1 + $0x10] sm:$0xf]
  %v24 = vld [vmem:[%s1 + $0x14] sm:$0xf]
  %v25 = vld [vmem:[%s1 + $0x18] sm:$0xf]
  %v26 = vld [vmem:[%s1 + $0x1c] sm:$0xf]
  %v27 = vld [vmem:[%s1 + $0x20] sm:$0xf]
  %v28 = vld [vmem:[%s1 + $0x24] sm:$0xf]
  %v29 = vld [vmem:[%s1 + $0x28] sm:$0xf]
  %v30 = vld [vmem:[%s1 + $0x2c] sm:$0xf]
  %v31 = vld [vmem:[%s1 + $0x30] sm:$0xf]
  %v32 = vld [vmem:[%s1 + $0x34] sm:$0xf]
  %v33 = vld [vmem:[%s1 + $0x38] sm:$0xf]
  %v34 = vld [vmem:[%s1 + $0x3c] sm:$0xf]
  %v35 = vld [vmem:[%s1 + $0x40] sm:$0xf]
  %v36 = vld [vmem:[%s1 + $0x44] sm:$0xf]
  %v37 = vld [vmem:[%s1 + $0x48] sm:$0xf]
  %v38 = vld [vmem:[%s1 + $0x4c] sm:$0xf]
  %v39 = vld [vmem:[%s1 + $0x50] sm:$0xf]
  %v40 = vld [vmem:[%s1 + $0x54] sm:$0xf]
  %v41 = vld [vmem:[%s1 + $0x58] sm:$0xf]
  %v42 = vld [vmem:[%s1 + $0x5c] sm:$0xf]
  %v43 = vld [vmem:[%s1 + $0x60] sm:$0xf]
  %v44 = vld [vmem:[%s1 + $0x64] sm:$0xf]
  %v45 = vld [vmem:[%s1 + $0x68] sm:$0xf]
  %v46 = vld [vmem:[%s1 + $0x6c] sm:$0xf]
  %v47 = vld [vmem:[%s1 + $0x70] sm:$0xf]
  %v48 = vld [vmem:[%s1 + $0x74] sm:$0xf]
  %v49 = vld [vmem:[%s1 + $0x78] sm:$0xf]
  %v50 = vld [vmem:[%s1 + $0x7c] sm:$0xf]
  %v51 = vld [vmem:[%s1 + $0x80] sm:$0xf]
  %v52 = vld [vmem:[%s1 + $0x84] sm:$0xf]
  %v53 = vld [vmem:[%s1 + $0x88] sm:$0xf]
  %v54 = vld [vmem:[%s1 + $0x8c] sm:$0xf]
  %v55 = vld [vmem:[%s1 + $0x90] sm:$0xf]
  %v56 = vld [vmem:[%s1 + $0x94] sm:$0xf]
  %v57 = vld [vmem:[%s1 + $0x98] sm:$0xf]
  %v58 = vld [vmem:[%s1 + $0x9c] sm:$0xf]
  %v59 = vld [vmem:[%s1 + $0xa0] sm:$0xf]
  %v60 = vld [vmem:[%s1 + $0xa4] sm:$0xf]
  %v61 = vld [vmem:[%s1 + $0xa8] sm:$0xf]
  %v62 = vld [vmem:[%s1 + $0xac] sm:$0xf]
  %v63 = vld [vmem:[%s1 + $0xb0] sm:$0xf]
  %v64 = vld [vmem:[%s1 + $0xb4] sm:$0xf]
  %v65 = vld [vmem:[%s1 + $0xb8] sm:$0xf]
  %v66 = vld [vmem:[%s1 + $0xbc] sm:$0xf]
  %v67 = vld [vmem:[%s1 + $0xc0] sm:$0xf]
  %v68 = vld [vmem:[%s1 + $0xc4] sm:$0xf]
  %v69 = vld [vmem:[%s1 + $0xc8] sm:$0xf]
  %v70 = vld [vmem:[%s1 + $0xcc] sm:$0xf]
  %v71 = vld [vmem:[%s1 + $0xd0] sm:$0xf]
  %v72 = vld [vmem:[%s1 + $0xd4] sm:$0xf]
  %v73 = vld [vmem:[%s2] sm:$0x1]
  %v75 = vlaneseq
  %v76 = vshrl.u32 %v75, 7
  %v77 = vsub.s32 0, %v76
  %v78 = vrot.slane %v73, %v77
  %v84 = vunpack.c.l.b16 %v15
  %v85 = vunpack.c.h.b16 %v15
  %v86 = vunpack.c.l.b16 %v16
  %v87 = vunpack.c.h.b16 %v16
  %v88 = vunpack.c.l.b16 %v17
  %v89 = vunpack.c.h.b16 %v17
  %v90 = vunpack.c.l.b16 %v18
  %v91 = vunpack.c.h.b16 %v18
  %v92 = vpack.c.b16 %v88, %v84
  %v93 = vpack.c.b16 %v89, %v85
  %v94 = vpack.c.b16 %v90, %v86
  %v95 = vpack.c.b16 %v91, %v87
  %v153 = vunpack.c.l.b16 %v19
  %v154 = vunpack.c.l.b16 %v20
  %v155 = vunpack.c.l.b16 %v21
  %v156 = vunpack.c.l.b16 %v22
  %v157 = vunpack.c.l.b16 %v23
  %v158 = vunpack.c.l.b16 %v24
  %v159 = vunpack.c.l.b16 %v25
  %v160 = vunpack.c.l.b16 %v26
  %v161 = vunpack.c.l.b16 %v27
  %v162 = vunpack.c.l.b16 %v28
  %v163 = vunpack.c.l.b16 %v29
  %v164 = vunpack.c.l.b16 %v30
  %v165 = vunpack.c.l.b16 %v31
  %v166 = vunpack.c.l.b16 %v32
  %v167 = vunpack.c.l.b16 %v33
  %v168 = vunpack.c.l.b16 %v34
  %v169 = vunpack.c.l.b16 %v35
  %v170 = vunpack.c.l.b16 %v36
  %v171 = vunpack.c.l.b16 %v37
  %v172 = vunpack.c.l.b16 %v38
  %v173 = vunpack.c.l.b16 %v39
  %v174 = vunpack.c.l.b16 %v40
  %v175 = vunpack.c.l.b16 %v41
  %v176 = vunpack.c.l.b16 %v42
  %v177 = vunpack.c.l.b16 %v43
  %v178 = vunpack.c.l.b16 %v44
  %v179 = vunpack.c.l.b16 %v45
  %v180 = vunpack.c.l.b16 %v46
  %v181 = vunpack.c.l.b16 %v47
  %v182 = vunpack.c.l.b16 %v48
  %v183 = vunpack.c.l.b16 %v49
  %v184 = vunpack.c.l.b16 %v50
  %v185 = vunpack.c.l.b16 %v51
  %v186 = vunpack.c.l.b16 %v52
  %v187 = vunpack.c.l.b16 %v53
  %v188 = vunpack.c.l.b16 %v54
  %v189 = vunpack.c.l.b16 %v55
  %v190 = vunpack.c.l.b16 %v56
  %v191 = vunpack.c.l.b16 %v57
  %v192 = vunpack.c.l.b16 %v58
  %v193 = vunpack.c.l.b16 %v59
  %v194 = vunpack.c.l.b16 %v60
  %v195 = vunpack.c.l.b16 %v61
  %v196 = vunpack.c.l.b16 %v62
  %v197 = vunpack.c.l.b16 %v63
  %v198 = vunpack.c.l.b16 %v64
  %v199 = vunpack.c.l.b16 %v65
  %v200 = vunpack.c.l.b16 %v66
  %v201 = vunpack.c.l.b16 %v67
  %v202 = vunpack.c.l.b16 %v68
  %v203 = vunpack.c.l.b16 %v69
  %v204 = vunpack.c.l.b16 %v70
  %v205 = vunpack.c.l.b16 %v71
  %v206 = vunpack.c.l.b16 %v72
  %v207 = vpack.c.b16 %v154, %v153
  %v208 = vpack.c.b16 %v156, %v155
  %v209 = vpack.c.b16 %v158, %v157
  %v210 = vpack.c.b16 %v160, %v159
  %v211 = vpack.c.b16 %v162, %v161
  %v212 = vpack.c.b16 %v164, %v163
  %v213 = vpack.c.b16 %v166, %v165
  %v214 = vpack.c.b16 %v168, %v167
  %v215 = vpack.c.b16 %v170, %v169
  %v216 = vpack.c.b16 %v172, %v171
  %v217 = vpack.c.b16 %v174, %v173
  %v218 = vpack.c.b16 %v176, %v175
  %v219 = vpack.c.b16 %v178, %v177
  %v220 = vpack.c.b16 %v180, %v179
  %v221 = vpack.c.b16 %v182, %v181
  %v222 = vpack.c.b16 %v184, %v183
  %v223 = vpack.c.b16 %v186, %v185
  %v224 = vpack.c.b16 %v188, %v187
  %v225 = vpack.c.b16 %v190, %v189
  %v226 = vpack.c.b16 %v192, %v191
  %v227 = vpack.c.b16 %v194, %v193
  %v228 = vpack.c.b16 %v196, %v195
  %v229 = vpack.c.b16 %v198, %v197
  %v230 = vpack.c.b16 %v200, %v199
  %v231 = vpack.c.b16 %v202, %v201
  %v232 = vpack.c.b16 %v204, %v203
  %v233 = vpack.c.b16 %v206, %v205
  %vm261 = vcmask 392192
  %v263 = vsel %vm261, %v95, 0
  %265 = vmatprep.subr.bf16.mxu0 0
  %266 = vmatpush1.bf16.msra.mxu0 %v214
  %267 = vmatprep.subr.bf16.mxu0 0
  %268 = vmatpush1.bf16.msra.mxu0 %v213
  %269 = vmatprep.subr.bf16.mxu0 0
  %270 = vmatpush1.bf16.msra.mxu0 %v212
  %271 = vmatprep.subr.bf16.mxu0 0
  %272 = vmatpush1.bf16.msra.mxu0 %v211
  %273 = vmatprep.subr.bf16.mxu0 0
  %274 = vmatpush1.bf16.msra.mxu0 %v210
  %275 = vmatprep.subr.bf16.mxu0 0
  %276 = vmatpush1.bf16.msra.mxu0 %v209
  %277 = vmatprep.subr.bf16.mxu0 0
  %278 = vmatpush1.bf16.msra.mxu0 %v208
  %279 = vmatprep.subr.bf16.mxu0 0
  %280 = vmatpush1.bf16.msra.mxu0 %v207
  %281 = vmatprep.subr.bf16.mxu0 0
  %282 = vmatpush2.bf16.msra.mxu0 %v222
  %283 = vmatprep.subr.bf16.mxu0 0
  %284 = vmatpush2.bf16.msra.mxu0 %v221
  %285 = vmatprep.subr.bf16.mxu0 0
  %286 = vmatpush2.bf16.msra.mxu0 %v220
  %287 = vmatprep.subr.bf16.mxu0 0
  %288 = vmatpush2.bf16.msra.mxu0 %v219
  %289 = vmatprep.subr.bf16.mxu0 0
  %290 = vmatpush2.bf16.msra.mxu0 %v218
  %291 = vmatprep.subr.bf16.mxu0 0
  %292 = vmatpush2.bf16.msra.mxu0 %v217
  %293 = vmatprep.subr.bf16.mxu0 0
  %294 = vmatpush2.bf16.msra.mxu0 %v216
  %295 = vmatprep.subr.bf16.mxu0 0
  %296 = vmatpush2.bf16.msra.mxu0 %v215
  %297 = vmatprep.mubr.bf16.mxu0 %v93
  %298 = vmatmul.mubr.bf16.gmra.mxu0 %v92
  %v299 = vpop.f32.mrf.mxu0
  %v300 = vadd.f32 %v78, %v299
  %v301 = vpop.f32.mrf.mxu0
  %v302 = vpop.f32.mrf.mxu0
  %v303 = vadd.f32 %v78, %v302
  %v304 = vpop.f32.mrf.mxu0
  %305 = vdwg.mxu0
  %306 = vmatprep.subr.bf16.mxu0 0
  %307 = vmatpush1.bf16.msra.mxu0 %v230
  %308 = vmatprep.subr.bf16.mxu0 0
  %309 = vmatpush1.bf16.msra.mxu0 %v229
  %310 = vmatprep.subr.bf16.mxu0 0
  %311 = vmatpush1.bf16.msra.mxu0 %v228
  %312 = vmatprep.subr.bf16.mxu0 0
  %313 = vmatpush1.bf16.msra.mxu0 %v227
  %314 = vmatprep.subr.bf16.mxu0 0
  %315 = vmatpush1.bf16.msra.mxu0 %v226
  %316 = vmatprep.subr.bf16.mxu0 0
  %317 = vmatpush1.bf16.msra.mxu0 %v225
  %318 = vmatprep.subr.bf16.mxu0 0
  %319 = vmatpush1.bf16.msra.mxu0 %v224
  %320 = vmatprep.subr.bf16.mxu0 0
  %321 = vmatpush1.bf16.msra.mxu0 %v223
  %322 = vmatprep.subr.bf16.mxu0 0
  %323 = vmatpush2.bf16.msra.mxu0 0
  %324 = vmatprep.subr.bf16.mxu0 0
  %325 = vmatpush2.bf16.msra.mxu0 0
  %326 = vmatprep.subr.bf16.mxu0 0
  %327 = vmatpush2.bf16.msra.mxu0 0
  %328 = vmatprep.subr.bf16.mxu0 0
  %329 = vmatpush2.bf16.msra.mxu0 0
  %330 = vmatprep.subr.bf16.mxu0 0
  %331 = vmatpush2.bf16.msra.mxu0 0
  %332 = vmatprep.subr.bf16.mxu0 0
  %333 = vmatpush2.bf16.msra.mxu0 %v233
  %334 = vmatprep.subr.bf16.mxu0 0
  %335 = vmatpush2.bf16.msra.mxu0 %v232
  %336 = vmatprep.subr.bf16.mxu0 0
  %337 = vmatpush2.bf16.msra.mxu0 %v231
  %338 = vmatprep.mubr.bf16.mxu0 %v263
  %339 = vmatmul.mubr.bf16.gmra.mxu0 %v94
  %v340 = vpop.f32.mrf.mxu0
  %v341 = vadd.f32 %v300, %v340
  %v342 = vpop.f32.mrf.mxu0
  %v343 = vpop.f32.mrf.mxu0
  %v344 = vadd.f32 %v303, %v343
  %v345 = vpop.f32.mrf.mxu0
  %346 = vdwg.mxu0
  %vm347 = vcmp.ge.f32.partialorder %v341, 0.0
  %vm348 = vcmp.ge.f32.partialorder %v344, 0.0
  %v349 = vmul.f32 %v341, 0.2
  %v350 = vmul.f32 %v344, 0.2
  %v351 = vsel %vm347, %v341, %v349
  %v352 = vsel %vm348, %v344, %v350
  %353 = vst [vmem:[%s3] sm:$0xff] %v351
  %354 = vst [vmem:[%s3 + $0x8] sm:$0xff] %v352
  // Predicated region
  $region14: #{apperance_model_style_forward.19} parent=0 // pred_check
    _
  $region15: #{apperance_model_style_forward.19} parent=0 // pred_check_branch
    %356 = sbr.rel (0) target = $region17
  $region16: #{apperance_model_style_forward.19} parent=0 // pred_region
    _
  $region17: #{apperance_model_style_forward.19} parent=0 // pred_fallthru
    _
  // Predicated region
  $region18: #{apperance_model_style_forward.19} parent=0 // pred_check
    _
  $region19: #{apperance_model_style_forward.19} parent=0 // pred_check_branch
    %358 = sbr.rel (0) target = $region21
  $region20: #{apperance_model_style_forward.19} parent=0 // pred_region
    _
  $region21: #{apperance_model_style_forward.19} parent=0 // pred_fallthru
    _

// kernel: apperance_model_style_forward.25
$region0: #{apperance_model_style_forward.25}
  #allocation0 [shape = 'u32[]', space=smem, size = 0x4, offset = 0x4, fixed_abs, tag = 'smem constant byte address 0x4 - core index']
  #allocation1 [shape = 'u32[144,128]{1,0:T(1,128)}', space=vmem, size = 0x12000, scoped, tag = 'internal scratch']
  %s0 = inlined_call_operand.vmem [shape: bf16[16,432], index: 0, kind: input, shape index: {}]
  %s1 = inlined_call_operand.vmem [shape: bf16[432,128], index: 1, kind: input, shape index: {}]
  %s2 = inlined_call_operand.vmem [shape: f32[1,128], index: 2, kind: input, shape index: {}]
  %s3 = inlined_call_operand.vmem [shape: f32[16,128], index: 3, kind: output, shape index: {}]
  %s4 = sld [smem:[#allocation0]]
  $region22: #{apperance_model_style_forward.25} parent=0
    _
  %s6 = ssub.s32 1, %s4
  %s7 = scalar_select 0, %s6, %s4
  // Predicated region
  $region2: #{apperance_model_style_forward.25} parent=0 // pred_check
    _
  $region3: #{apperance_model_style_forward.25} parent=0 // pred_check_branch
    %9 = sbr.rel (0) target = $region5
  $region4: #{apperance_model_style_forward.25} parent=0 // pred_region
    _
  $region5: #{apperance_model_style_forward.25} parent=0 // pred_fallthru
    _
  // Predicated region
  $region6: #{apperance_model_style_forward.25} parent=0 // pred_check
    _
  $region7: #{apperance_model_style_forward.25} parent=0 // pred_check_branch
    %11 = sbr.rel (0) target = $region9
  $region8: #{apperance_model_style_forward.25} parent=0 // pred_region
    _
  $region9: #{apperance_model_style_forward.25} parent=0 // pred_fallthru
    _
  // Predicated region
  $region10: #{apperance_model_style_forward.25} parent=0 // pred_check
    _
  $region11: #{apperance_model_style_forward.25} parent=0 // pred_check_branch
    %13 = sbr.rel (0) target = $region13
  $region12: #{apperance_model_style_forward.25} parent=0 // pred_region
    _
  $region13: #{apperance_model_style_forward.25} parent=0 // pred_fallthru
    _
  %v15 = vld [vmem:[%s0] sm:$0xff]
  %v16 = vld [vmem:[%s0 + $0x8] sm:$0xff]
  %v17 = vld [vmem:[%s0 + $0x10] sm:$0xff]
  %v18 = vld [vmem:[%s0 + $0x18] sm:$0xff]
  %v19 = vld [vmem:[%s1] sm:$0xf]
  %v20 = vld [vmem:[%s1 + $0x4] sm:$0xf]
  %v21 = vld [vmem:[%s1 + $0x8] sm:$0xf]
  %v22 = vld [vmem:[%s1 + $0xc] sm:$0xf]
  %v23 = vld [vmem:[%s1 + $0x10] sm:$0xf]
  %v24 = vld [vmem:[%s1 + $0x14] sm:$0xf]
  %v25 = vld [vmem:[%s1 + $0x18] sm:$0xf]
  %v26 = vld [vmem:[%s1 + $0x1c] sm:$0xf]
  %v27 = vld [vmem:[%s1 + $0x20] sm:$0xf]
  %v28 = vld [vmem:[%s1 + $0x24] sm:$0xf]
  %v29 = vld [vmem:[%s1 + $0x28] sm:$0xf]
  %v30 = vld [vmem:[%s1 + $0x2c] sm:$0xf]
  %v31 = vld [vmem:[%s1 + $0x30] sm:$0xf]
  %v32 = vld [vmem:[%s1 + $0x34] sm:$0xf]
  %v33 = vld [vmem:[%s1 + $0x38] sm:$0xf]
  %v34 = vld [vmem:[%s1 + $0x3c] sm:$0xf]
  %v35 = vld [vmem:[%s1 + $0x40] sm:$0xf]
  %v36 = vld [vmem:[%s1 + $0x44] sm:$0xf]
  %v37 = vld [vmem:[%s1 + $0x48] sm:$0xf]
  %v38 = vld [vmem:[%s1 + $0x4c] sm:$0xf]
  %v39 = vld [vmem:[%s1 + $0x50] sm:$0xf]
  %v40 = vld [vmem:[%s1 + $0x54] sm:$0xf]
  %v41 = vld [vmem:[%s1 + $0x58] sm:$0xf]
  %v42 = vld [vmem:[%s1 + $0x5c] sm:$0xf]
  %v43 = vld [vmem:[%s1 + $0x60] sm:$0xf]
  %v44 = vld [vmem:[%s1 + $0x64] sm:$0xf]
  %v45 = vld [vmem:[%s1 + $0x68] sm:$0xf]
  %v46 = vld [vmem:[%s1 + $0x6c] sm:$0xf]
  %v47 = vld [vmem:[%s1 + $0x70] sm:$0xf]
  %v48 = vld [vmem:[%s1 + $0x74] sm:$0xf]
  %v49 = vld [vmem:[%s1 + $0x78] sm:$0xf]
  %v50 = vld [vmem:[%s1 + $0x7c] sm:$0xf]
  %v51 = vld [vmem:[%s1 + $0x80] sm:$0xf]
  %v52 = vld [vmem:[%s1 + $0x84] sm:$0xf]
  %v53 = vld [vmem:[%s1 + $0x88] sm:$0xf]
  %v54 = vld [vmem:[%s1 + $0x8c] sm:$0xf]
  %v55 = vld [vmem:[%s1 + $0x90] sm:$0xf]
  %v56 = vld [vmem:[%s1 + $0x94] sm:$0xf]
  %v57 = vld [vmem:[%s1 + $0x98] sm:$0xf]
  %v58 = vld [vmem:[%s1 + $0x9c] sm:$0xf]
  %v59 = vld [vmem:[%s1 + $0xa0] sm:$0xf]
  %v60 = vld [vmem:[%s1 + $0xa4] sm:$0xf]
  %v61 = vld [vmem:[%s1 + $0xa8] sm:$0xf]
  %v62 = vld [vmem:[%s1 + $0xac] sm:$0xf]
  %v63 = vld [vmem:[%s1 + $0xb0] sm:$0xf]
  %v64 = vld [vmem:[%s1 + $0xb4] sm:$0xf]
  %v65 = vld [vmem:[%s1 + $0xb8] sm:$0xf]
  %v66 = vld [vmem:[%s1 + $0xbc] sm:$0xf]
  %v67 = vld [vmem:[%s1 + $0xc0] sm:$0xf]
  %v68 = vld [vmem:[%s1 + $0xc4] sm:$0xf]
  %v69 = vld [vmem:[%s1 + $0xc8] sm:$0xf]
  %v70 = vld [vmem:[%s1 + $0xcc] sm:$0xf]
  %v71 = vld [vmem:[%s1 + $0xd0] sm:$0xf]
  %v72 = vld [vmem:[%s1 + $0xd4] sm:$0xf]
  %v73 = vld [vmem:[%s2] sm:$0x1]
  %v75 = vlaneseq
  %v76 = vshrl.u32 %v75, 7
  %v77 = vsub.s32 0, %v76
  %v78 = vrot.slane %v73, %v77
  %v84 = vunpack.c.l.b16 %v15
  %v85 = vunpack.c.h.b16 %v15
  %v86 = vunpack.c.l.b16 %v16
  %v87 = vunpack.c.h.b16 %v16
  %v88 = vunpack.c.l.b16 %v17
  %v89 = vunpack.c.h.b16 %v17
  %v90 = vunpack.c.l.b16 %v18
  %v91 = vunpack.c.h.b16 %v18
  %v92 = vpack.c.b16 %v88, %v84
  %v93 = vpack.c.b16 %v89, %v85
  %v94 = vpack.c.b16 %v90, %v86
  %v95 = vpack.c.b16 %v91, %v87
  %v153 = vunpack.c.l.b16 %v19
  %v154 = vunpack.c.l.b16 %v20
  %v155 = vunpack.c.l.b16 %v21
  %v156 = vunpack.c.l.b16 %v22
  %v157 = vunpack.c.l.b16 %v23
  %v158 = vunpack.c.l.b16 %v24
  %v159 = vunpack.c.l.b16 %v25
  %v160 = vunpack.c.l.b16 %v26
  %v161 = vunpack.c.l.b16 %v27
  %v162 = vunpack.c.l.b16 %v28
  %v163 = vunpack.c.l.b16 %v29
  %v164 = vunpack.c.l.b16 %v30
  %v165 = vunpack.c.l.b16 %v31
  %v166 = vunpack.c.l.b16 %v32
  %v167 = vunpack.c.l.b16 %v33
  %v168 = vunpack.c.l.b16 %v34
  %v169 = vunpack.c.l.b16 %v35
  %v170 = vunpack.c.l.b16 %v36
  %v171 = vunpack.c.l.b16 %v37
  %v172 = vunpack.c.l.b16 %v38
  %v173 = vunpack.c.l.b16 %v39
  %v174 = vunpack.c.l.b16 %v40
  %v175 = vunpack.c.l.b16 %v41
  %v176 = vunpack.c.l.b16 %v42
  %v177 = vunpack.c.l.b16 %v43
  %v178 = vunpack.c.l.b16 %v44
  %v179 = vunpack.c.l.b16 %v45
  %v180 = vunpack.c.l.b16 %v46
  %v181 = vunpack.c.l.b16 %v47
  %v182 = vunpack.c.l.b16 %v48
  %v183 = vunpack.c.l.b16 %v49
  %v184 = vunpack.c.l.b16 %v50
  %v185 = vunpack.c.l.b16 %v51
  %v186 = vunpack.c.l.b16 %v52
  %v187 = vunpack.c.l.b16 %v53
  %v188 = vunpack.c.l.b16 %v54
  %v189 = vunpack.c.l.b16 %v55
  %v190 = vunpack.c.l.b16 %v56
  %v191 = vunpack.c.l.b16 %v57
  %v192 = vunpack.c.l.b16 %v58
  %v193 = vunpack.c.l.b16 %v59
  %v194 = vunpack.c.l.b16 %v60
  %v195 = vunpack.c.l.b16 %v61
  %v196 = vunpack.c.l.b16 %v62
  %v197 = vunpack.c.l.b16 %v63
  %v198 = vunpack.c.l.b16 %v64
  %v199 = vunpack.c.l.b16 %v65
  %v200 = vunpack.c.l.b16 %v66
  %v201 = vunpack.c.l.b16 %v67
  %v202 = vunpack.c.l.b16 %v68
  %v203 = vunpack.c.l.b16 %v69
  %v204 = vunpack.c.l.b16 %v70
  %v205 = vunpack.c.l.b16 %v71
  %v206 = vunpack.c.l.b16 %v72
  %v207 = vpack.c.b16 %v154, %v153
  %v208 = vpack.c.b16 %v156, %v155
  %v209 = vpack.c.b16 %v158, %v157
  %v210 = vpack.c.b16 %v160, %v159
  %v211 = vpack.c.b16 %v162, %v161
  %v212 = vpack.c.b16 %v164, %v163
  %v213 = vpack.c.b16 %v166, %v165
  %v214 = vpack.c.b16 %v168, %v167
  %v215 = vpack.c.b16 %v170, %v169
  %v216 = vpack.c.b16 %v172, %v171
  %v217 = vpack.c.b16 %v174, %v173
  %v218 = vpack.c.b16 %v176, %v175
  %v219 = vpack.c.b16 %v178, %v177
  %v220 = vpack.c.b16 %v180, %v179
  %v221 = vpack.c.b16 %v182, %v181
  %v222 = vpack.c.b16 %v184, %v183
  %v223 = vpack.c.b16 %v186, %v185
  %v224 = vpack.c.b16 %v188, %v187
  %v225 = vpack.c.b16 %v190, %v189
  %v226 = vpack.c.b16 %v192, %v191
  %v227 = vpack.c.b16 %v194, %v193
  %v228 = vpack.c.b16 %v196, %v195
  %v229 = vpack.c.b16 %v198, %v197
  %v230 = vpack.c.b16 %v200, %v199
  %v231 = vpack.c.b16 %v202, %v201
  %v232 = vpack.c.b16 %v204, %v203
  %v233 = vpack.c.b16 %v206, %v205
  %vm261 = vcmask 392192
  %v263 = vsel %vm261, %v95, 0
  %265 = vmatprep.subr.bf16.mxu0 0
  %266 = vmatpush1.bf16.msra.mxu0 %v214
  %267 = vmatprep.subr.bf16.mxu0 0
  %268 = vmatpush1.bf16.msra.mxu0 %v213
  %269 = vmatprep.subr.bf16.mxu0 0
  %270 = vmatpush1.bf16.msra.mxu0 %v212
  %271 = vmatprep.subr.bf16.mxu0 0
  %272 = vmatpush1.bf16.msra.mxu0 %v211
  %273 = vmatprep.subr.bf16.mxu0 0
  %274 = vmatpush1.bf16.msra.mxu0 %v210
  %275 = vmatprep.subr.bf16.mxu0 0
  %276 = vmatpush1.bf16.msra.mxu0 %v209
  %277 = vmatprep.subr.bf16.mxu0 0
  %278 = vmatpush1.bf16.msra.mxu0 %v208
  %279 = vmatprep.subr.bf16.mxu0 0
  %280 = vmatpush1.bf16.msra.mxu0 %v207
  %281 = vmatprep.subr.bf16.mxu0 0
  %282 = vmatpush2.bf16.msra.mxu0 %v222
  %283 = vmatprep.subr.bf16.mxu0 0
  %284 = vmatpush2.bf16.msra.mxu0 %v221
  %285 = vmatprep.subr.bf16.mxu0 0
  %286 = vmatpush2.bf16.msra.mxu0 %v220
  %287 = vmatprep.subr.bf16.mxu0 0
  %288 = vmatpush2.bf16.msra.mxu0 %v219
  %289 = vmatprep.subr.bf16.mxu0 0
  %290 = vmatpush2.bf16.msra.mxu0 %v218
  %291 = vmatprep.subr.bf16.mxu0 0
  %292 = vmatpush2.bf16.msra.mxu0 %v217
  %293 = vmatprep.subr.bf16.mxu0 0
  %294 = vmatpush2.bf16.msra.mxu0 %v216
  %295 = vmatprep.subr.bf16.mxu0 0
  %296 = vmatpush2.bf16.msra.mxu0 %v215
  %297 = vmatprep.mubr.bf16.mxu0 %v93
  %298 = vmatmul.mubr.bf16.gmra.mxu0 %v92
  %v299 = vpop.f32.mrf.mxu0
  %v300 = vadd.f32 %v78, %v299
  %v301 = vpop.f32.mrf.mxu0
  %v302 = vpop.f32.mrf.mxu0
  %v303 = vadd.f32 %v78, %v302
  %v304 = vpop.f32.mrf.mxu0
  %305 = vdwg.mxu0
  %306 = vmatprep.subr.bf16.mxu0 0
  %307 = vmatpush1.bf16.msra.mxu0 %v230
  %308 = vmatprep.subr.bf16.mxu0 0
  %309 = vmatpush1.bf16.msra.mxu0 %v229
  %310 = vmatprep.subr.bf16.mxu0 0
  %311 = vmatpush1.bf16.msra.mxu0 %v228
  %312 = vmatprep.subr.bf16.mxu0 0
  %313 = vmatpush1.bf16.msra.mxu0 %v227
  %314 = vmatprep.subr.bf16.mxu0 0
  %315 = vmatpush1.bf16.msra.mxu0 %v226
  %316 = vmatprep.subr.bf16.mxu0 0
  %317 = vmatpush1.bf16.msra.mxu0 %v225
  %318 = vmatprep.subr.bf16.mxu0 0
  %319 = vmatpush1.bf16.msra.mxu0 %v224
  %320 = vmatprep.subr.bf16.mxu0 0
  %321 = vmatpush1.bf16.msra.mxu0 %v223
  %322 = vmatprep.subr.bf16.mxu0 0
  %323 = vmatpush2.bf16.msra.mxu0 0
  %324 = vmatprep.subr.bf16.mxu0 0
  %325 = vmatpush2.bf16.msra.mxu0 0
  %326 = vmatprep.subr.bf16.mxu0 0
  %327 = vmatpush2.bf16.msra.mxu0 0
  %328 = vmatprep.subr.bf16.mxu0 0
  %329 = vmatpush2.bf16.msra.mxu0 0
  %330 = vmatprep.subr.bf16.mxu0 0
  %331 = vmatpush2.bf16.msra.mxu0 0
  %332 = vmatprep.subr.bf16.mxu0 0
  %333 = vmatpush2.bf16.msra.mxu0 %v233
  %334 = vmatprep.subr.bf16.mxu0 0
  %335 = vmatpush2.bf16.msra.mxu0 %v232
  %336 = vmatprep.subr.bf16.mxu0 0
  %337 = vmatpush2.bf16.msra.mxu0 %v231
  %338 = vmatprep.mubr.bf16.mxu0 %v263
  %339 = vmatmul.mubr.bf16.gmra.mxu0 %v94
  %v340 = vpop.f32.mrf.mxu0
  %v341 = vadd.f32 %v300, %v340
  %v342 = vpop.f32.mrf.mxu0
  %v343 = vpop.f32.mrf.mxu0
  %v344 = vadd.f32 %v303, %v343
  %v345 = vpop.f32.mrf.mxu0
  %346 = vdwg.mxu0
  %347 = vst [vmem:[%s3] sm:$0xff] %v341
  %348 = vst [vmem:[%s3 + $0x8] sm:$0xff] %v344
  // Predicated region
  $region14: #{apperance_model_style_forward.25} parent=0 // pred_check
    _
  $region15: #{apperance_model_style_forward.25} parent=0 // pred_check_branch
    %350 = sbr.rel (0) target = $region17
  $region16: #{apperance_model_style_forward.25} parent=0 // pred_region
    _
  $region17: #{apperance_model_style_forward.25} parent=0 // pred_fallthru
    _
  // Predicated region
  $region18: #{apperance_model_style_forward.25} parent=0 // pred_check
    _
  $region19: #{apperance_model_style_forward.25} parent=0 // pred_check_branch
    %352 = sbr.rel (0) target = $region21
  $region20: #{apperance_model_style_forward.25} parent=0 // pred_region
    _
  $region21: #{apperance_model_style_forward.25} parent=0 // pred_fallthru
    _

// kernel: apperance_model_style_forward.26
$region0: #{apperance_model_style_forward.26}
  #allocation0 [shape = 'u32[]', space=smem, size = 0x4, offset = 0x4, fixed_abs, tag = 'smem constant byte address 0x4 - core index']
  #allocation1 [shape = 'u32[144,128]{1,0:T(1,128)}', space=vmem, size = 0x12000, scoped, tag = 'internal scratch']
  %s0 = inlined_call_operand.vmem [shape: f32[2,8,8], index: 0, kind: input, shape index: {}]
  %s1 = inlined_call_operand.vmem [shape: f32[2,1,8], index: 1, kind: input, shape index: {}]
  %s2 = inlined_call_operand.vmem [shape: f32[2,1,8], index: 2, kind: input, shape index: {}]
  %s3 = inlined_call_operand.vmem [shape: f32[2,8,8], index: 3, kind: output, shape index: {}]
  %s4 = sld [smem:[#allocation0]]
  $region45: #{apperance_model_style_forward.26} parent=0
    _
  %s6 = ssub.s32 1, %s4
  %s7 = scalar_select 0, %s6, %s4
  loop: start=0, step=1, limit=4
  $region2: #{apperance_model_style_forward.26} parent=0 // loop_pre_header
    _
  $region3: #{apperance_model_style_forward.26} parent=0 // loop_header
    %s9 = sphi 0, %s13
    %p10 = scmp.ge.s32.totalorder %s9, 4
    %s19 = sphi 0, %s21
    %s22 = sphi 0, %s19
    %s23 = sphi 0, %s22
    %s39 = sphi 0, %s23
    %s45 = sphi 0, %s47
    %s48 = sphi 0, %s45
    %s49 = sphi 0, %s48
    %s65 = sphi 0, %s49
    %s71 = sphi 0, %s73
    %s74 = sphi 0, %s71
    %s75 = sphi 0, %s74
    %s91 = sphi 0, %s75
    %s97 = sphi 0, %s99
    %s100 = sphi 0, %s97
    %s101 = sphi 0, %s100
    %s117 = sphi 0, %s101
  $region4: #{apperance_model_style_forward.26} parent=0 // loop_header_branch
    %12 = sbr.rel (%p10) target = $region8
  $region5: #{apperance_model_style_forward.26} parent=0 // loop_body
    %s14 = ssub.s32 %s9, 1
    %s15 = ssub.s32 %s9, 2
    %s16 = sadd.s32 %s9, 1
    %s17 = ssub.s32 %s9, %s16
    %p18 = scmp.eq.s32.totalorder %s17, 0
    %s20 = sadd.s32 %s19, 1
    %s21 = scalar_select %p18, %s19, %s20
    %p24 = pneg %p18
    %p25 = scmp.eq.s32.totalorder %s9, 1
    %p26 = por %p24, %p25
    %p27 = scmp.ne.s32.totalorder %s19, %s22
    %p28 = scmp.eq.s32.totalorder %s9, 0
    %p29 = por %p27, %p28
    %p30 = scmp.ne.s32.totalorder %s19, %s22
    %p31 = scmp.eq.s32.totalorder %s14, 1
    %p32 = por %p30, %p31
    %p33 = scmp.ne.s32.totalorder %s22, %s23
    %p34 = scmp.eq.s32.totalorder %s14, 0
    %p35 = por %p33, %p34
    %p36 = scmp.ne.s32.totalorder %s22, %s23
    %p37 = scmp.eq.s32.totalorder %s15, 1
    %p38 = por %p36, %p37
    %p40 = scmp.ne.s32.totalorder %s23, %s39
    %p41 = scmp.eq.s32.totalorder %s15, 0
    %p42 = por %p40, %p41
    %s43 = ssub.s32 %s9, %s16
    %p44 = scmp.eq.s32.totalorder %s43, 0
    %s46 = sadd.s32 %s45, 1
    %s47 = scalar_select %p44, %s45, %s46
    %p50 = pneg %p44
    %p51 = scmp.eq.s32.totalorder %s9, 1
    %p52 = por %p50, %p51
    %p53 = scmp.ne.s32.totalorder %s45, %s48
    %p54 = scmp.eq.s32.totalorder %s9, 0
    %p55 = por %p53, %p54
    %p56 = scmp.ne.s32.totalorder %s45, %s48
    %p57 = scmp.eq.s32.totalorder %s14, 1
    %p58 = por %p56, %p57
    %p59 = scmp.ne.s32.totalorder %s48, %s49
    %p60 = scmp.eq.s32.totalorder %s14, 0
    %p61 = por %p59, %p60
    %p62 = scmp.ne.s32.totalorder %s48, %s49
    %p63 = scmp.eq.s32.totalorder %s15, 1
    %p64 = por %p62, %p63
    %p66 = scmp.ne.s32.totalorder %s49, %s65
    %p67 = scmp.eq.s32.totalorder %s15, 0
    %p68 = por %p66, %p67
    %s69 = ssub.s32 %s9, %s16
    %p70 = scmp.eq.s32.totalorder %s69, 0
    %s72 = sadd.s32 %s71, 1
    %s73 = scalar_select %p70, %s71, %s72
    %p76 = pneg %p70
    %p77 = scmp.eq.s32.totalorder %s9, 1
    %p78 = por %p76, %p77
    %p79 = scmp.ne.s32.totalorder %s71, %s74
    %p80 = scmp.eq.s32.totalorder %s9, 0
    %p81 = por %p79, %p80
    %p82 = scmp.ne.s32.totalorder %s71, %s74
    %p83 = scmp.eq.s32.totalorder %s14, 1
    %p84 = por %p82, %p83
    %p85 = scmp.ne.s32.totalorder %s74, %s75
    %p86 = scmp.eq.s32.totalorder %s14, 0
    %p87 = por %p85, %p86
    %p88 = scmp.ne.s32.totalorder %s74, %s75
    %p89 = scmp.eq.s32.totalorder %s15, 1
    %p90 = por %p88, %p89
    %p92 = scmp.ne.s32.totalorder %s75, %s91
    %p93 = scmp.eq.s32.totalorder %s15, 0
    %p94 = por %p92, %p93
    %s95 = ssub.s32 %s9, %s16
    %p96 = scmp.eq.s32.totalorder %s95, 0
    %s98 = sadd.s32 %s97, 1
    %s99 = scalar_select %p96, %s97, %s98
    %p102 = pneg %p96
    %p103 = scmp.eq.s32.totalorder %s9, 1
    %p104 = por %p102, %p103
    %p105 = scmp.ne.s32.totalorder %s97, %s100
    %p106 = scmp.eq.s32.totalorder %s9, 0
    %p107 = por %p105, %p106
    %p108 = scmp.ne.s32.totalorder %s97, %s100
    %p109 = scmp.eq.s32.totalorder %s14, 1
    %p110 = por %p108, %p109
    %p111 = scmp.ne.s32.totalorder %s100, %s101
    %p112 = scmp.eq.s32.totalorder %s14, 0
    %p113 = por %p111, %p112
    %p114 = scmp.ne.s32.totalorder %s100, %s101
    %p115 = scmp.eq.s32.totalorder %s15, 1
    %p116 = por %p114, %p115
    %p118 = scmp.ne.s32.totalorder %s101, %s117
    %p119 = scmp.eq.s32.totalorder %s15, 0
    %p120 = por %p118, %p119
    %p121 = scmp.le.s32.totalorder 1, %s9
    %p122 = scmp.lt.s32.totalorder %s9, 3
    %p123 = pnand %p121, %p122
    %p124 = pneg %p123
    // Predicated region
    $region9: #{apperance_model_style_forward.26} parent=5 // pred_check
      _
    $region10: #{apperance_model_style_forward.26} parent=5 // pred_check_branch
      %126 = sbr.rel (%p123) target = $region12
    $region11: #{apperance_model_style_forward.26} parent=5 // pred_region
      %s127 = ssub.s32 %s9, 1
    $region12: #{apperance_model_style_forward.26} parent=5 // pred_fallthru
      _
    %p128 = scmp.lt.s32.totalorder %s9, 2
    // Predicated region
    $region13: #{apperance_model_style_forward.26} parent=5 // pred_check
      %p129 = pneg %p128
    $region14: #{apperance_model_style_forward.26} parent=5 // pred_check_branch
      %131 = sbr.rel (%p129) target = $region16
    $region15: #{apperance_model_style_forward.26} parent=5 // pred_region
      // Predicated region
      $region17: #{apperance_model_style_forward.26} parent=15 // pred_check
        %p132 = pneg %p29
      $region18: #{apperance_model_style_forward.26} parent=15 // pred_check_branch
        %134 = sbr.rel (%p132) target = $region20
      $region19: #{apperance_model_style_forward.26} parent=15 // pred_region
        %p135 = scmp.lt.s32.totalorder %s9, 1
        %s136 = scalar_select %p135, %s9, 1
        %s137 = smul.addr %s136, 8
        %s138 = scalar_lea.vmem %s0, %s137
      $region20: #{apperance_model_style_forward.26} parent=15 // pred_fallthru
        _
      // Predicated region
      $region21: #{apperance_model_style_forward.26} parent=15 // pred_check
        %p139 = pneg %p55
      $region22: #{apperance_model_style_forward.26} parent=15 // pred_check_branch
        %141 = sbr.rel (%p139) target = $region24
      $region23: #{apperance_model_style_forward.26} parent=15 // pred_region
        %p142 = scmp.lt.s32.totalorder %s9, 1
        %s143 = scalar_select %p142, %s9, 1
        %s144 = scalar_lea.vmem %s1, %s143
      $region24: #{apperance_model_style_forward.26} parent=15 // pred_fallthru
        _
      // Predicated region
      $region25: #{apperance_model_style_forward.26} parent=15 // pred_check
        %p145 = pneg %p81
      $region26: #{apperance_model_style_forward.26} parent=15 // pred_check_branch
        %147 = sbr.rel (%p145) target = $region28
      $region27: #{apperance_model_style_forward.26} parent=15 // pred_region
        %p148 = scmp.lt.s32.totalorder %s9, 1
        %s149 = scalar_select %p148, %s9, 1
        %s150 = scalar_lea.vmem %s2, %s149
      $region28: #{apperance_model_style_forward.26} parent=15 // pred_fallthru
        _
    $region16: #{apperance_model_style_forward.26} parent=5 // pred_fallthru
      _
    %p151 = scmp.le.s32.totalorder 1, %s9
    %p152 = scmp.lt.s32.totalorder %s9, 3
    %p153 = pnand %p151, %p152
    %p154 = pneg %p153
    // Predicated region
    $region29: #{apperance_model_style_forward.26} parent=5 // pred_check
      _
    $region30: #{apperance_model_style_forward.26} parent=5 // pred_check_branch
      %156 = sbr.rel (%p153) target = $region32
    $region31: #{apperance_model_style_forward.26} parent=5 // pred_region
      %s157 = ssub.s32 %s9, 1
      %p158 = scmp.lt.s32.totalorder %s14, 1
      %s159 = scalar_select %p158, %s14, 1
      %s160 = smul.addr %s159, 8
      %s161 = scalar_lea.vmem %s0, %s160
      %p162 = pneg %p35
      %p163 = pneg %p32
      %p164 = scmp.lt.s32.totalorder %s14, 1
      %s165 = scalar_select %p164, %s14, 1
      %s166 = scalar_lea.vmem %s1, %s165
      %p167 = pneg %p61
      %p168 = pneg %p58
      %p169 = scmp.lt.s32.totalorder %s14, 1
      %s170 = scalar_select %p169, %s14, 1
      %s171 = scalar_lea.vmem %s2, %s170
      %p172 = pneg %p87
      %p173 = pneg %p84
      %p174 = pneg %p113
      %p175 = pneg %p110
      %p176 = scmp.lt.s32.totalorder %s14, 1
      %s177 = scalar_select %p176, %s14, 1
      %s178 = smul.addr %s177, 8
      %s179 = scalar_lea.vmem %s3, %s178
      %p180 = scmp.lt.s32.totalorder %s14, 1
      %s181 = scalar_select %p180, %s14, 1
      %s182 = smul.addr %s181, 8
      %s183 = scalar_lea.vmem %s0, %s182
      %p184 = scmp.lt.s32.totalorder %s14, 1
      %s185 = scalar_select %p184, %s14, 1
      %s186 = scalar_lea.vmem %s1, %s185
      %p187 = scmp.lt.s32.totalorder %s14, 1
      %s188 = scalar_select %p187, %s14, 1
      %s189 = scalar_lea.vmem %s2, %s188
      %p190 = scmp.lt.s32.totalorder %s14, 1
      %s191 = scalar_select %p190, %s14, 1
      %s192 = smul.addr %s191, 8
      %s193 = scalar_lea.vmem %s3, %s192
      %v194 = vld [vmem:[%s183] sm:$0xff]
      %vm195 = vcmask 64512
      %v196 = vsel %vm195, %v194, 0.0
      %v197 = vrot.slane %v196, 4
      %v198 = vadd.f32 %v196, %v197
      %v199 = vrot.slane %v198, 2
      %v200 = vadd.f32 %v198, %v199
      %v201 = vrot.slane %v200, 1
      %v202 = vadd.f32 %v200, %v201
      %v203 = vrcp.pop 8.0
      %v204 = vmul.f32 %v202, %v203
      %v205 = vsub.f32 %v194, %v204
      %v206 = vmul.f32 %v205, %v205
      %v207 = vsel %vm195, %v206, 0.0
      %v208 = vrot.slane %v207, 4
      %v209 = vadd.f32 %v207, %v208
      %v210 = vrot.slane %v209, 2
      %v211 = vadd.f32 %v209, %v210
      %v212 = vrot.slane %v211, 1
      %v213 = vadd.f32 %v211, %v212
      %v214 = vmul.f32 %v213, %v203
      %v215 = vadd.f32 %v214, 1e-05
      %v216 = vrsqrt.pop %v215
      %v217 = vmul.f32 %v205, %v216
      %v218 = vld [vmem:[%s186] sm:$0x1]
      %v220 = vlaneseq
      %v221 = vshrl.u32 %v220, 7
      %v222 = vsub.s32 0, %v221
      %v223 = vrot.slane %v218, %v222
      %v225 = vmul.f32 %v223, %v217
      %v226 = vld [vmem:[%s189] sm:$0x1]
      %v228 = vlaneseq
      %v229 = vshrl.u32 %v228, 7
      %v230 = vsub.s32 0, %v229
      %v231 = vrot.slane %v226, %v230
      %v233 = vadd.f32 %v225, %v231
      %vm234 = vcmp.ge.f32.partialorder %v233, 0.0
      %v235 = vmul.f32 %v233, 0.2
      %v236 = vsel %vm234, %v233, %v235
      %237 = vst.msk [vmem:[%s193] sm:$0xff] %vm195, %v236
      %p238 = scmp.lt.s32.totalorder %s14, 1
      %s239 = scalar_select %p238, %s14, 1
      %s240 = smul.addr %s239, 8
      %s241 = scalar_lea.vmem %s3, %s240
      // Predicated region
      $region33: #{apperance_model_style_forward.26} parent=31 // pred_check
        %p242 = pneg %p110
      $region34: #{apperance_model_style_forward.26} parent=31 // pred_check_branch
        %244 = sbr.rel (%p242) target = $region36
      $region35: #{apperance_model_style_forward.26} parent=31 // pred_region
        _
      $region36: #{apperance_model_style_forward.26} parent=31 // pred_fallthru
        _
    $region32: #{apperance_model_style_forward.26} parent=5 // pred_fallthru
      _
    %p245 = scmp.le.s32.totalorder 2, %s9
    // Predicated region
    $region37: #{apperance_model_style_forward.26} parent=5 // pred_check
      %p246 = pneg %p245
    $region38: #{apperance_model_style_forward.26} parent=5 // pred_check_branch
      %248 = sbr.rel (%p246) target = $region40
    $region39: #{apperance_model_style_forward.26} parent=5 // pred_region
      %s249 = ssub.s32 %s9, 2
      // Predicated region
      $region41: #{apperance_model_style_forward.26} parent=39 // pred_check
        %p250 = pneg %p116
      $region42: #{apperance_model_style_forward.26} parent=39 // pred_check_branch
        %252 = sbr.rel (%p250) target = $region44
      $region43: #{apperance_model_style_forward.26} parent=39 // pred_region
        %p253 = scmp.lt.s32.totalorder %s15, 1
        %s254 = scalar_select %p253, %s15, 1
        %s255 = smul.addr %s254, 8
        %s256 = scalar_lea.vmem %s3, %s255
      $region44: #{apperance_model_style_forward.26} parent=39 // pred_fallthru
        _
    $region40: #{apperance_model_style_forward.26} parent=5 // pred_fallthru
      _
  $region6: #{apperance_model_style_forward.26} parent=0 // loop_footer
    %s13 = sadd.s32 1, %s9
  $region7: #{apperance_model_style_forward.26} parent=0 // loop_footer_branch
    %8 = sbr.rel target = $region3
  $region8: #{apperance_model_style_forward.26} parent=0 // loop_exit
    _

// kernel: apperance_model_style_forward.27
$region0: #{apperance_model_style_forward.27}
  #allocation0 [shape = 'u32[]', space=smem, size = 0x4, offset = 0x4, fixed_abs, tag = 'smem constant byte address 0x4 - core index']
  #allocation1 [shape = 'u32[144,128]{1,0:T(1,128)}', space=vmem, size = 0x12000, scoped, tag = 'internal scratch']
  %s0 = inlined_call_operand.vmem [shape: bf16[128,216], index: 0, kind: input, shape index: {}]
  %s1 = inlined_call_operand.vmem [shape: bf16[216,128], index: 1, kind: input, shape index: {}]
  %s2 = inlined_call_operand.vmem [shape: f32[1,128], index: 2, kind: input, shape index: {}]
  %s3 = inlined_call_operand.vmem [shape: f32[128,128], index: 3, kind: output, shape index: {}]
  %s4 = sld [smem:[#allocation0]]
  $region22: #{apperance_model_style_forward.27} parent=0
    _
  %s6 = ssub.s32 1, %s4
  %s7 = scalar_select 0, %s6, %s4
  // Predicated region
  $region2: #{apperance_model_style_forward.27} parent=0 // pred_check
    _
  $region3: #{apperance_model_style_forward.27} parent=0 // pred_check_branch
    %9 = sbr.rel (0) target = $region5
  $region4: #{apperance_model_style_forward.27} parent=0 // pred_region
    _
  $region5: #{apperance_model_style_forward.27} parent=0 // pred_fallthru
    _
  // Predicated region
  $region6: #{apperance_model_style_forward.27} parent=0 // pred_check
    _
  $region7: #{apperance_model_style_forward.27} parent=0 // pred_check_branch
    %11 = sbr.rel (0) target = $region9
  $region8: #{apperance_model_style_forward.27} parent=0 // pred_region
    _
  $region9: #{apperance_model_style_forward.27} parent=0 // pred_fallthru
    _
  // Predicated region
  $region10: #{apperance_model_style_forward.27} parent=0 // pred_check
    _
  $region11: #{apperance_model_style_forward.27} parent=0 // pred_check_branch
    %13 = sbr.rel (0) target = $region13
  $region12: #{apperance_model_style_forward.27} parent=0 // pred_region
    _
  $region13: #{apperance_model_style_forward.27} parent=0 // pred_fallthru
    _
  %v15 = vld [vmem:[%s0] sm:$0xff]
  %v16 = vld [vmem:[%s0 + $0x8] sm:$0xff]
  %v17 = vld [vmem:[%s0 + $0x10] sm:$0xff]
  %v18 = vld [vmem:[%s0 + $0x18] sm:$0xff]
  %v19 = vld [vmem:[%s0 + $0x20] sm:$0xff]
  %v20 = vld [vmem:[%s0 + $0x28] sm:$0xff]
  %v21 = vld [vmem:[%s0 + $0x30] sm:$0xff]
  %v22 = vld [vmem:[%s0 + $0x38] sm:$0xff]
  %v23 = vld [vmem:[%s0 + $0x40] sm:$0xff]
  %v24 = vld [vmem:[%s0 + $0x48] sm:$0xff]
  %v25 = vld [vmem:[%s0 + $0x50] sm:$0xff]
  %v26 = vld [vmem:[%s0 + $0x58] sm:$0xff]
  %v27 = vld [vmem:[%s0 + $0x60] sm:$0xff]
  %v28 = vld [vmem:[%s0 + $0x68] sm:$0xff]
  %v29 = vld [vmem:[%s0 + $0x70] sm:$0xff]
  %v30 = vld [vmem:[%s0 + $0x78] sm:$0xff]
  %v31 = vld [vmem:[%s1] sm:$0xf]
  %v32 = vld [vmem:[%s1 + $0x4] sm:$0xf]
  %v33 = vld [vmem:[%s1 + $0x8] sm:$0xf]
  %v34 = vld [vmem:[%s1 + $0xc] sm:$0xf]
  %v35 = vld [vmem:[%s1 + $0x10] sm:$0xf]
  %v36 = vld [vmem:[%s1 + $0x14] sm:$0xf]
  %v37 = vld [vmem:[%s1 + $0x18] sm:$0xf]
  %v38 = vld [vmem:[%s1 + $0x1c] sm:$0xf]
  %v39 = vld [vmem:[%s1 + $0x20] sm:$0xf]
  %v40 = vld [vmem:[%s1 + $0x24] sm:$0xf]
  %v41 = vld [vmem:[%s1 + $0x28] sm:$0xf]
  %v42 = vld [vmem:[%s1 + $0x2c] sm:$0xf]
  %v43 = vld [vmem:[%s1 + $0x30] sm:$0xf]
  %v44 = vld [vmem:[%s1 + $0x34] sm:$0xf]
  %v45 = vld [vmem:[%s1 + $0x38] sm:$0xf]
  %v46 = vld [vmem:[%s1 + $0x3c] sm:$0xf]
  %v47 = vld [vmem:[%s1 + $0x40] sm:$0xf]
  %v48 = vld [vmem:[%s1 + $0x44] sm:$0xf]
  %v49 = vld [vmem:[%s1 + $0x48] sm:$0xf]
  %v50 = vld [vmem:[%s1 + $0x4c] sm:$0xf]
  %v51 = vld [vmem:[%s1 + $0x50] sm:$0xf]
  %v52 = vld [vmem:[%s1 + $0x54] sm:$0xf]
  %v53 = vld [vmem:[%s1 + $0x58] sm:$0xf]
  %v54 = vld [vmem:[%s1 + $0x5c] sm:$0xf]
  %v55 = vld [vmem:[%s1 + $0x60] sm:$0xf]
  %v56 = vld [vmem:[%s1 + $0x64] sm:$0xf]
  %v57 = vld [vmem:[%s1 + $0x68] sm:$0xf]
  %v58 = vld [vmem:[%s2] sm:$0x1]
  %v60 = vlaneseq
  %v61 = vshrl.u32 %v60, 7
  %v62 = vsub.s32 0, %v61
  %v63 = vrot.slane %v58, %v62
  %v81 = vunpack.c.l.b16 %v15
  %v82 = vunpack.c.h.b16 %v15
  %v83 = vunpack.c.l.b16 %v16
  %v84 = vunpack.c.h.b16 %v16
  %v85 = vunpack.c.l.b16 %v17
  %v86 = vunpack.c.h.b16 %v17
  %v87 = vunpack.c.l.b16 %v18
  %v88 = vunpack.c.h.b16 %v18
  %v89 = vunpack.c.l.b16 %v19
  %v90 = vunpack.c.h.b16 %v19
  %v91 = vunpack.c.l.b16 %v20
  %v92 = vunpack.c.h.b16 %v20
  %v93 = vunpack.c.l.b16 %v21
  %v94 = vunpack.c.h.b16 %v21
  %v95 = vunpack.c.l.b16 %v22
  %v96 = vunpack.c.h.b16 %v22
  %v97 = vunpack.c.l.b16 %v23
  %v98 = vunpack.c.h.b16 %v23
  %v99 = vunpack.c.l.b16 %v24
  %v100 = vunpack.c.h.b16 %v24
  %v101 = vunpack.c.l.b16 %v25
  %v102 = vunpack.c.h.b16 %v25
  %v103 = vunpack.c.l.b16 %v26
  %v104 = vunpack.c.h.b16 %v26
  %v105 = vunpack.c.l.b16 %v27
  %v106 = vunpack.c.h.b16 %v27
  %v107 = vunpack.c.l.b16 %v28
  %v108 = vunpack.c.h.b16 %v28
  %v109 = vunpack.c.l.b16 %v29
  %v110 = vunpack.c.h.b16 %v29
  %v111 = vunpack.c.l.b16 %v30
  %v112 = vunpack.c.h.b16 %v30
  %v113 = vpack.c.b16 %v83, %v81
  %v114 = vpack.c.b16 %v84, %v82
  %v115 = vpack.c.b16 %v87, %v85
  %v116 = vpack.c.b16 %v88, %v86
  %v117 = vpack.c.b16 %v91, %v89
  %v118 = vpack.c.b16 %v92, %v90
  %v119 = vpack.c.b16 %v95, %v93
  %v120 = vpack.c.b16 %v96, %v94
  %v121 = vpack.c.b16 %v99, %v97
  %v122 = vpack.c.b16 %v100, %v98
  %v123 = vpack.c.b16 %v103, %v101
  %v124 = vpack.c.b16 %v104, %v102
  %v125 = vpack.c.b16 %v107, %v105
  %v126 = vpack.c.b16 %v108, %v106
  %v127 = vpack.c.b16 %v111, %v109
  %v128 = vpack.c.b16 %v112, %v110
  %v164 = vunpack.c.l.b16 %v31
  %v165 = vunpack.c.l.b16 %v32
  %v166 = vunpack.c.l.b16 %v33
  %v167 = vunpack.c.l.b16 %v34
  %v168 = vunpack.c.l.b16 %v35
  %v169 = vunpack.c.l.b16 %v36
  %v170 = vunpack.c.l.b16 %v37
  %v171 = vunpack.c.l.b16 %v38
  %v172 = vunpack.c.l.b16 %v39
  %v173 = vunpack.c.l.b16 %v40
  %v174 = vunpack.c.l.b16 %v41
  %v175 = vunpack.c.l.b16 %v42
  %v176 = vunpack.c.l.b16 %v43
  %v177 = vunpack.c.l.b16 %v44
  %v178 = vunpack.c.l.b16 %v45
  %v179 = vunpack.c.l.b16 %v46
  %v180 = vunpack.c.l.b16 %v47
  %v181 = vunpack.c.l.b16 %v48
  %v182 = vunpack.c.l.b16 %v49
  %v183 = vunpack.c.l.b16 %v50
  %v184 = vunpack.c.l.b16 %v51
  %v185 = vunpack.c.l.b16 %v52
  %v186 = vunpack.c.l.b16 %v53
  %v187 = vunpack.c.l.b16 %v54
  %v188 = vunpack.c.l.b16 %v55
  %v189 = vunpack.c.l.b16 %v56
  %v190 = vunpack.c.l.b16 %v57
  %v191 = vpack.c.b16 %v165, %v164
  %v192 = vpack.c.b16 %v167, %v166
  %v193 = vpack.c.b16 %v169, %v168
  %v194 = vpack.c.b16 %v171, %v170
  %v195 = vpack.c.b16 %v173, %v172
  %v196 = vpack.c.b16 %v175, %v174
  %v197 = vpack.c.b16 %v177, %v176
  %v198 = vpack.c.b16 %v179, %v178
  %v199 = vpack.c.b16 %v181, %v180
  %v200 = vpack.c.b16 %v183, %v182
  %v201 = vpack.c.b16 %v185, %v184
  %v202 = vpack.c.b16 %v187, %v186
  %v203 = vpack.c.b16 %v189, %v188
  %v204 = vpack.c.b16 %v190, %v190
  %vm218 = vcmask 719872
  %v220 = vsel %vm218, %v114, 0
  %v223 = vsel %vm218, %v116, 0
  %v226 = vsel %vm218, %v118, 0
  %v229 = vsel %vm218, %v120, 0
  %v232 = vsel %vm218, %v122, 0
  %v235 = vsel %vm218, %v124, 0
  %v238 = vsel %vm218, %v126, 0
  %v241 = vsel %vm218, %v128, 0
  %vm243 = vcmask 1043456
  %v245 = vsel %vm243, %v204, 0
  %247 = vmatprep.subr.bf16.mxu0 0
  %248 = vmatpush1.bf16.msra.mxu0 %v198
  %249 = vmatprep.subr.bf16.mxu0 0
  %250 = vmatpush1.bf16.msra.mxu0 %v197
  %251 = vmatprep.subr.bf16.mxu0 0
  %252 = vmatpush1.bf16.msra.mxu0 %v196
  %253 = vmatprep.subr.bf16.mxu0 0
  %254 = vmatpush1.bf16.msra.mxu0 %v195
  %255 = vmatprep.subr.bf16.mxu0 0
  %256 = vmatpush1.bf16.msra.mxu0 %v194
  %257 = vmatprep.subr.bf16.mxu0 0
  %258 = vmatpush1.bf16.msra.mxu0 %v193
  %259 = vmatprep.subr.bf16.mxu0 0
  %260 = vmatpush1.bf16.msra.mxu0 %v192
  %261 = vmatprep.subr.bf16.mxu0 0
  %262 = vmatpush1.bf16.msra.mxu0 %v191
  %263 = vmatprep.subr.bf16.mxu0 0
  %264 = vmatpush2.bf16.msra.mxu0 0
  %265 = vmatprep.subr.bf16.mxu0 0
  %266 = vmatpush2.bf16.msra.mxu0 0
  %267 = vmatprep.subr.bf16.mxu0 0
  %268 = vmatpush2.bf16.msra.mxu0 %v245
  %269 = vmatprep.subr.bf16.mxu0 0
  %270 = vmatpush2.bf16.msra.mxu0 %v203
  %271 = vmatprep.subr.bf16.mxu0 0
  %272 = vmatpush2.bf16.msra.mxu0 %v202
  %273 = vmatprep.subr.bf16.mxu0 0
  %274 = vmatpush2.bf16.msra.mxu0 %v201
  %275 = vmatprep.subr.bf16.mxu0 0
  %276 = vmatpush2.bf16.msra.mxu0 %v200
  %277 = vmatprep.subr.bf16.mxu0 0
  %278 = vmatpush2.bf16.msra.mxu0 %v199
  %279 = vmatprep.mubr.bf16.mxu0 %v220
  %280 = vmatmul.mubr.bf16.gmra.mxu0 %v113
  %v281 = vpop.f32.mrf.mxu0
  %v282 = vadd.f32 %v63, %v281
  %v283 = vpop.f32.mrf.mxu0
  %v284 = vpop.f32.mrf.mxu0
  %v285 = vadd.f32 %v63, %v284
  %v286 = vpop.f32.mrf.mxu0
  %287 = vmatprep.mubr.bf16.mxu0 %v223
  %288 = vmatmul.mubr.bf16.gmra.mxu0 %v115
  %v289 = vpop.f32.mrf.mxu0
  %v290 = vadd.f32 %v63, %v289
  %v291 = vpop.f32.mrf.mxu0
  %v292 = vpop.f32.mrf.mxu0
  %v293 = vadd.f32 %v63, %v292
  %v294 = vpop.f32.mrf.mxu0
  %295 = vmatprep.mubr.bf16.mxu0 %v226
  %296 = vmatmul.mubr.bf16.gmra.mxu0 %v117
  %v297 = vpop.f32.mrf.mxu0
  %v298 = vadd.f32 %v63, %v297
  %v299 = vpop.f32.mrf.mxu0
  %v300 = vpop.f32.mrf.mxu0
  %v301 = vadd.f32 %v63, %v300
  %v302 = vpop.f32.mrf.mxu0
  %303 = vmatprep.mubr.bf16.mxu0 %v229
  %304 = vmatmul.mubr.bf16.gmra.mxu0 %v119
  %v305 = vpop.f32.mrf.mxu0
  %v306 = vadd.f32 %v63, %v305
  %v307 = vpop.f32.mrf.mxu0
  %v308 = vpop.f32.mrf.mxu0
  %v309 = vadd.f32 %v63, %v308
  %v310 = vpop.f32.mrf.mxu0
  %311 = vmatprep.mubr.bf16.mxu0 %v232
  %312 = vmatmul.mubr.bf16.gmra.mxu0 %v121
  %v313 = vpop.f32.mrf.mxu0
  %v314 = vadd.f32 %v63, %v313
  %v315 = vpop.f32.mrf.mxu0
  %v316 = vpop.f32.mrf.mxu0
  %v317 = vadd.f32 %v63, %v316
  %v318 = vpop.f32.mrf.mxu0
  %319 = vmatprep.mubr.bf16.mxu0 %v235
  %320 = vmatmul.mubr.bf16.gmra.mxu0 %v123
  %v321 = vpop.f32.mrf.mxu0
  %v322 = vadd.f32 %v63, %v321
  %v323 = vpop.f32.mrf.mxu0
  %v324 = vpop.f32.mrf.mxu0
  %v325 = vadd.f32 %v63, %v324
  %v326 = vpop.f32.mrf.mxu0
  %327 = vmatprep.mubr.bf16.mxu0 %v238
  %328 = vmatmul.mubr.bf16.gmra.mxu0 %v125
  %v329 = vpop.f32.mrf.mxu0
  %v330 = vadd.f32 %v63, %v329
  %v331 = vpop.f32.mrf.mxu0
  %v332 = vpop.f32.mrf.mxu0
  %v333 = vadd.f32 %v63, %v332
  %v334 = vpop.f32.mrf.mxu0
  %335 = vmatprep.mubr.bf16.mxu0 %v241
  %336 = vmatmul.mubr.bf16.gmra.mxu0 %v127
  %v337 = vpop.f32.mrf.mxu0
  %v338 = vadd.f32 %v63, %v337
  %v339 = vpop.f32.mrf.mxu0
  %v340 = vpop.f32.mrf.mxu0
  %v341 = vadd.f32 %v63, %v340
  %v342 = vpop.f32.mrf.mxu0
  %343 = vdwg.mxu0
  %344 = vst [vmem:[%s3] sm:$0xff] %v282
  %345 = vst [vmem:[%s3 + $0x8] sm:$0xff] %v285
  %346 = vst [vmem:[%s3 + $0x10] sm:$0xff] %v290
  %347 = vst [vmem:[%s3 + $0x18] sm:$0xff] %v293
  %348 = vst [vmem:[%s3 + $0x20] sm:$0xff] %v298
  %349 = vst [vmem:[%s3 + $0x28] sm:$0xff] %v301
  %350 = vst [vmem:[%s3 + $0x30] sm:$0xff] %v306
  %351 = vst [vmem:[%s3 + $0x38] sm:$0xff] %v309
  %352 = vst [vmem:[%s3 + $0x40] sm:$0xff] %v314
  %353 = vst [vmem:[%s3 + $0x48] sm:$0xff] %v317
  %354 = vst [vmem:[%s3 + $0x50] sm:$0xff] %v322
  %355 = vst [vmem:[%s3 + $0x58] sm:$0xff] %v325
  %356 = vst [vmem:[%s3 + $0x60] sm:$0xff] %v330
  %357 = vst [vmem:[%s3 + $0x68] sm:$0xff] %v333
  %358 = vst [vmem:[%s3 + $0x70] sm:$0xff] %v338
  %359 = vst [vmem:[%s3 + $0x78] sm:$0xff] %v341
  // Predicated region
  $region14: #{apperance_model_style_forward.27} parent=0 // pred_check
    _
  $region15: #{apperance_model_style_forward.27} parent=0 // pred_check_branch
    %361 = sbr.rel (0) target = $region17
  $region16: #{apperance_model_style_forward.27} parent=0 // pred_region
    _
  $region17: #{apperance_model_style_forward.27} parent=0 // pred_fallthru
    _
  // Predicated region
  $region18: #{apperance_model_style_forward.27} parent=0 // pred_check
    _
  $region19: #{apperance_model_style_forward.27} parent=0 // pred_check_branch
    %363 = sbr.rel (0) target = $region21
  $region20: #{apperance_model_style_forward.27} parent=0 // pred_region
    _
  $region21: #{apperance_model_style_forward.27} parent=0 // pred_fallthru
    _

// kernel: apperance_model_style_forward.28
$region0: #{apperance_model_style_forward.28}
  #allocation0 [shape = 'u32[]', space=smem, size = 0x4, offset = 0x4, fixed_abs, tag = 'smem constant byte address 0x4 - core index']
  #allocation1 [shape = 'u32[144,128]{1,0:T(1,128)}', space=vmem, size = 0x12000, scoped, tag = 'internal scratch']
  %s0 = inlined_call_operand.vmem [shape: f32[2,64,4], index: 0, kind: input, shape index: {}]
  %s1 = inlined_call_operand.vmem [shape: f32[2,1,4], index: 1, kind: input, shape index: {}]
  %s2 = inlined_call_operand.vmem [shape: f32[2,1,4], index: 2, kind: input, shape index: {}]
  %s3 = inlined_call_operand.vmem [shape: f32[2,64,4], index: 3, kind: output, shape index: {}]
  %s4 = sld [smem:[#allocation0]]
  $region45: #{apperance_model_style_forward.28} parent=0
    _
  %s6 = ssub.s32 1, %s4
  %s7 = scalar_select 0, %s6, %s4
  loop: start=0, step=1, limit=4
  $region2: #{apperance_model_style_forward.28} parent=0 // loop_pre_header
    _
  $region3: #{apperance_model_style_forward.28} parent=0 // loop_header
    %s9 = sphi 0, %s13
    %p10 = scmp.ge.s32.totalorder %s9, 4
    %s19 = sphi 0, %s21
    %s22 = sphi 0, %s19
    %s23 = sphi 0, %s22
    %s39 = sphi 0, %s23
    %s45 = sphi 0, %s47
    %s48 = sphi 0, %s45
    %s49 = sphi 0, %s48
    %s65 = sphi 0, %s49
    %s71 = sphi 0, %s73
    %s74 = sphi 0, %s71
    %s75 = sphi 0, %s74
    %s91 = sphi 0, %s75
    %s97 = sphi 0, %s99
    %s100 = sphi 0, %s97
    %s101 = sphi 0, %s100
    %s117 = sphi 0, %s101
  $region4: #{apperance_model_style_forward.28} parent=0 // loop_header_branch
    %12 = sbr.rel (%p10) target = $region8
  $region5: #{apperance_model_style_forward.28} parent=0 // loop_body
    %s14 = ssub.s32 %s9, 1
    %s15 = ssub.s32 %s9, 2
    %s16 = sadd.s32 %s9, 1
    %s17 = ssub.s32 %s9, %s16
    %p18 = scmp.eq.s32.totalorder %s17, 0
    %s20 = sadd.s32 %s19, 1
    %s21 = scalar_select %p18, %s19, %s20
    %p24 = pneg %p18
    %p25 = scmp.eq.s32.totalorder %s9, 1
    %p26 = por %p24, %p25
    %p27 = scmp.ne.s32.totalorder %s19, %s22
    %p28 = scmp.eq.s32.totalorder %s9, 0
    %p29 = por %p27, %p28
    %p30 = scmp.ne.s32.totalorder %s19, %s22
    %p31 = scmp.eq.s32.totalorder %s14, 1
    %p32 = por %p30, %p31
    %p33 = scmp.ne.s32.totalorder %s22, %s23
    %p34 = scmp.eq.s32.totalorder %s14, 0
    %p35 = por %p33, %p34
    %p36 = scmp.ne.s32.totalorder %s22, %s23
    %p37 = scmp.eq.s32.totalorder %s15, 1
    %p38 = por %p36, %p37
    %p40 = scmp.ne.s32.totalorder %s23, %s39
    %p41 = scmp.eq.s32.totalorder %s15, 0
    %p42 = por %p40, %p41
    %s43 = ssub.s32 %s9, %s16
    %p44 = scmp.eq.s32.totalorder %s43, 0
    %s46 = sadd.s32 %s45, 1
    %s47 = scalar_select %p44, %s45, %s46
    %p50 = pneg %p44
    %p51 = scmp.eq.s32.totalorder %s9, 1
    %p52 = por %p50, %p51
    %p53 = scmp.ne.s32.totalorder %s45, %s48
    %p54 = scmp.eq.s32.totalorder %s9, 0
    %p55 = por %p53, %p54
    %p56 = scmp.ne.s32.totalorder %s45, %s48
    %p57 = scmp.eq.s32.totalorder %s14, 1
    %p58 = por %p56, %p57
    %p59 = scmp.ne.s32.totalorder %s48, %s49
    %p60 = scmp.eq.s32.totalorder %s14, 0
    %p61 = por %p59, %p60
    %p62 = scmp.ne.s32.totalorder %s48, %s49
    %p63 = scmp.eq.s32.totalorder %s15, 1
    %p64 = por %p62, %p63
    %p66 = scmp.ne.s32.totalorder %s49, %s65
    %p67 = scmp.eq.s32.totalorder %s15, 0
    %p68 = por %p66, %p67
    %s69 = ssub.s32 %s9, %s16
    %p70 = scmp.eq.s32.totalorder %s69, 0
    %s72 = sadd.s32 %s71, 1
    %s73 = scalar_select %p70, %s71, %s72
    %p76 = pneg %p70
    %p77 = scmp.eq.s32.totalorder %s9, 1
    %p78 = por %p76, %p77
    %p79 = scmp.ne.s32.totalorder %s71, %s74
    %p80 = scmp.eq.s32.totalorder %s9, 0
    %p81 = por %p79, %p80
    %p82 = scmp.ne.s32.totalorder %s71, %s74
    %p83 = scmp.eq.s32.totalorder %s14, 1
    %p84 = por %p82, %p83
    %p85 = scmp.ne.s32.totalorder %s74, %s75
    %p86 = scmp.eq.s32.totalorder %s14, 0
    %p87 = por %p85, %p86
    %p88 = scmp.ne.s32.totalorder %s74, %s75
    %p89 = scmp.eq.s32.totalorder %s15, 1
    %p90 = por %p88, %p89
    %p92 = scmp.ne.s32.totalorder %s75, %s91
    %p93 = scmp.eq.s32.totalorder %s15, 0
    %p94 = por %p92, %p93
    %s95 = ssub.s32 %s9, %s16
    %p96 = scmp.eq.s32.totalorder %s95, 0
    %s98 = sadd.s32 %s97, 1
    %s99 = scalar_select %p96, %s97, %s98
    %p102 = pneg %p96
    %p103 = scmp.eq.s32.totalorder %s9, 1
    %p104 = por %p102, %p103
    %p105 = scmp.ne.s32.totalorder %s97, %s100
    %p106 = scmp.eq.s32.totalorder %s9, 0
    %p107 = por %p105, %p106
    %p108 = scmp.ne.s32.totalorder %s97, %s100
    %p109 = scmp.eq.s32.totalorder %s14, 1
    %p110 = por %p108, %p109
    %p111 = scmp.ne.s32.totalorder %s100, %s101
    %p112 = scmp.eq.s32.totalorder %s14, 0
    %p113 = por %p111, %p112
    %p114 = scmp.ne.s32.totalorder %s100, %s101
    %p115 = scmp.eq.s32.totalorder %s15, 1
    %p116 = por %p114, %p115
    %p118 = scmp.ne.s32.totalorder %s101, %s117
    %p119 = scmp.eq.s32.totalorder %s15, 0
    %p120 = por %p118, %p119
    %p121 = scmp.le.s32.totalorder 1, %s9
    %p122 = scmp.lt.s32.totalorder %s9, 3
    %p123 = pnand %p121, %p122
    %p124 = pneg %p123
    // Predicated region
    $region9: #{apperance_model_style_forward.28} parent=5 // pred_check
      _
    $region10: #{apperance_model_style_forward.28} parent=5 // pred_check_branch
      %126 = sbr.rel (%p123) target = $region12
    $region11: #{apperance_model_style_forward.28} parent=5 // pred_region
      %s127 = ssub.s32 %s9, 1
    $region12: #{apperance_model_style_forward.28} parent=5 // pred_fallthru
      _
    %p128 = scmp.lt.s32.totalorder %s9, 2
    // Predicated region
    $region13: #{apperance_model_style_forward.28} parent=5 // pred_check
      %p129 = pneg %p128
    $region14: #{apperance_model_style_forward.28} parent=5 // pred_check_branch
      %131 = sbr.rel (%p129) target = $region16
    $region15: #{apperance_model_style_forward.28} parent=5 // pred_region
      // Predicated region
      $region17: #{apperance_model_style_forward.28} parent=15 // pred_check
        %p132 = pneg %p29
      $region18: #{apperance_model_style_forward.28} parent=15 // pred_check_branch
        %134 = sbr.rel (%p132) target = $region20
      $region19: #{apperance_model_style_forward.28} parent=15 // pred_region
        %p135 = scmp.lt.s32.totalorder %s9, 1
        %s136 = scalar_select %p135, %s9, 1
        %s137 = smul.addr %s136, 8
        %s138 = smul.addr %s137, 8
        %s139 = scalar_lea.vmem %s0, %s138
      $region20: #{apperance_model_style_forward.28} parent=15 // pred_fallthru
        _
      // Predicated region
      $region21: #{apperance_model_style_forward.28} parent=15 // pred_check
        %p140 = pneg %p55
      $region22: #{apperance_model_style_forward.28} parent=15 // pred_check_branch
        %142 = sbr.rel (%p140) target = $region24
      $region23: #{apperance_model_style_forward.28} parent=15 // pred_region
        %p143 = scmp.lt.s32.totalorder %s9, 1
        %s144 = scalar_select %p143, %s9, 1
        %s145 = scalar_lea.vmem %s1, %s144
      $region24: #{apperance_model_style_forward.28} parent=15 // pred_fallthru
        _
      // Predicated region
      $region25: #{apperance_model_style_forward.28} parent=15 // pred_check
        %p146 = pneg %p81
      $region26: #{apperance_model_style_forward.28} parent=15 // pred_check_branch
        %148 = sbr.rel (%p146) target = $region28
      $region27: #{apperance_model_style_forward.28} parent=15 // pred_region
        %p149 = scmp.lt.s32.totalorder %s9, 1
        %s150 = scalar_select %p149, %s9, 1
        %s151 = scalar_lea.vmem %s2, %s150
      $region28: #{apperance_model_style_forward.28} parent=15 // pred_fallthru
        _
    $region16: #{apperance_model_style_forward.28} parent=5 // pred_fallthru
      _
    %p152 = scmp.le.s32.totalorder 1, %s9
    %p153 = scmp.lt.s32.totalorder %s9, 3
    %p154 = pnand %p152, %p153
    %p155 = pneg %p154
    // Predicated region
    $region29: #{apperance_model_style_forward.28} parent=5 // pred_check
      _
    $region30: #{apperance_model_style_forward.28} parent=5 // pred_check_branch
      %157 = sbr.rel (%p154) target = $region32
    $region31: #{apperance_model_style_forward.28} parent=5 // pred_region
      %s158 = ssub.s32 %s9, 1
      %p159 = scmp.lt.s32.totalorder %s14, 1
      %s160 = scalar_select %p159, %s14, 1
      %s161 = smul.addr %s160, 8
      %s162 = smul.addr %s161, 8
      %s163 = scalar_lea.vmem %s0, %s162
      %p164 = pneg %p35
      %p165 = pneg %p32
      %p166 = scmp.lt.s32.totalorder %s14, 1
      %s167 = scalar_select %p166, %s14, 1
      %s168 = scalar_lea.vmem %s1, %s167
      %p169 = pneg %p61
      %p170 = pneg %p58
      %p171 = scmp.lt.s32.totalorder %s14, 1
      %s172 = scalar_select %p171, %s14, 1
      %s173 = scalar_lea.vmem %s2, %s172
      %p174 = pneg %p87
      %p175 = pneg %p84
      %p176 = pneg %p113
      %p177 = pneg %p110
      %p178 = scmp.lt.s32.totalorder %s14, 1
      %s179 = scalar_select %p178, %s14, 1
      %s180 = smul.addr %s179, 8
      %s181 = smul.addr %s180, 8
      %s182 = scalar_lea.vmem %s3, %s181
      %p183 = scmp.lt.s32.totalorder %s14, 1
      %s184 = scalar_select %p183, %s14, 1
      %s185 = smul.addr %s184, 8
      %s186 = smul.addr %s185, 8
      %s187 = scalar_lea.vmem %s0, %s186
      %p188 = scmp.lt.s32.totalorder %s14, 1
      %s189 = scalar_select %p188, %s14, 1
      %s190 = scalar_lea.vmem %s1, %s189
      %p191 = scmp.lt.s32.totalorder %s14, 1
      %s192 = scalar_select %p191, %s14, 1
      %s193 = scalar_lea.vmem %s2, %s192
      %p194 = scmp.lt.s32.totalorder %s14, 1
      %s195 = scalar_select %p194, %s14, 1
      %s196 = smul.addr %s195, 8
      %s197 = smul.addr %s196, 8
      %s198 = scalar_lea.vmem %s3, %s197
      %v199 = vld [vmem:[%s187] sm:$0xff]
      %v200 = vld [vmem:[%s187 + $0x8] sm:$0xff]
      %v201 = vld [vmem:[%s187 + $0x10] sm:$0xff]
      %v202 = vld [vmem:[%s187 + $0x18] sm:$0xff]
      %v203 = vld [vmem:[%s187 + $0x20] sm:$0xff]
      %v204 = vld [vmem:[%s187 + $0x28] sm:$0xff]
      %v205 = vld [vmem:[%s187 + $0x30] sm:$0xff]
      %v206 = vld [vmem:[%s187 + $0x38] sm:$0xff]
      %vm207 = vcmask 31744
      %v208 = vsel %vm207, %v199, 0.0
      %v209 = vsel %vm207, %v200, 0.0
      %v210 = vadd.f32 %v208, %v209
      %v211 = vsel %vm207, %v201, 0.0
      %v212 = vadd.f32 %v210, %v211
      %v213 = vsel %vm207, %v202, 0.0
      %v214 = vadd.f32 %v212, %v213
      %v215 = vsel %vm207, %v203, 0.0
      %v216 = vadd.f32 %v214, %v215
      %v217 = vsel %vm207, %v204, 0.0
      %v218 = vadd.f32 %v216, %v217
      %v219 = vsel %vm207, %v205, 0.0
      %v220 = vadd.f32 %v218, %v219
      %v221 = vsel %vm207, %v206, 0.0
      %v222 = vadd.f32 %v220, %v221
      %v223 = vrot.slane %v222, 4
      %v224 = vadd.f32 %v222, %v223
      %v225 = vrot.slane %v224, 2
      %v226 = vadd.f32 %v224, %v225
      %v227 = vrot.slane %v226, 1
      %v228 = vadd.f32 %v226, %v227
      %v229 = vrcp.pop 64.0
      %v230 = vmul.f32 %v228, %v229
      %v231 = vsub.f32 %v199, %v230
      %v232 = vsub.f32 %v200, %v230
      %v233 = vsub.f32 %v201, %v230
      %v234 = vsub.f32 %v202, %v230
      %v235 = vsub.f32 %v203, %v230
      %v236 = vsub.f32 %v204, %v230
      %v237 = vsub.f32 %v205, %v230
      %v238 = vsub.f32 %v206, %v230
      %v239 = vmul.f32 %v231, %v231
      %v240 = vmul.f32 %v232, %v232
      %v241 = vmul.f32 %v233, %v233
      %v242 = vmul.f32 %v234, %v234
      %v243 = vmul.f32 %v235, %v235
      %v244 = vmul.f32 %v236, %v236
      %v245 = vmul.f32 %v237, %v237
      %v246 = vmul.f32 %v238, %v238
      %v247 = vsel %vm207, %v239, 0.0
      %v248 = vsel %vm207, %v240, 0.0
      %v249 = vadd.f32 %v247, %v248
      %v250 = vsel %vm207, %v241, 0.0
      %v251 = vadd.f32 %v249, %v250
      %v252 = vsel %vm207, %v242, 0.0
      %v253 = vadd.f32 %v251, %v252
      %v254 = vsel %vm207, %v243, 0.0
      %v255 = vadd.f32 %v253, %v254
      %v256 = vsel %vm207, %v244, 0.0
      %v257 = vadd.f32 %v255, %v256
      %v258 = vsel %vm207, %v245, 0.0
      %v259 = vadd.f32 %v257, %v258
      %v260 = vsel %vm207, %v246, 0.0
      %v261 = vadd.f32 %v259, %v260
      %v262 = vrot.slane %v261, 4
      %v263 = vadd.f32 %v261, %v262
      %v264 = vrot.slane %v263, 2
      %v265 = vadd.f32 %v263, %v264
      %v266 = vrot.slane %v265, 1
      %v267 = vadd.f32 %v265, %v266
      %v268 = vmul.f32 %v267, %v229
      %v269 = vadd.f32 %v268, 1e-05
      %v270 = vrsqrt.pop %v269
      %v271 = vmul.f32 %v231, %v270
      %v272 = vmul.f32 %v232, %v270
      %v273 = vmul.f32 %v233, %v270
      %v274 = vmul.f32 %v234, %v270
      %v275 = vmul.f32 %v235, %v270
      %v276 = vmul.f32 %v236, %v270
      %v277 = vmul.f32 %v237, %v270
      %v278 = vmul.f32 %v238, %v270
      %v279 = vld [vmem:[%s190] sm:$0x1]
      %v281 = vlaneseq
      %v282 = vshrl.u32 %v281, 7
      %v283 = vsub.s32 0, %v282
      %v284 = vrot.slane %v279, %v283
      %v286 = vmul.f32 %v284, %v271
      %v287 = vmul.f32 %v284, %v272
      %v288 = vmul.f32 %v284, %v273
      %v289 = vmul.f32 %v284, %v274
      %v290 = vmul.f32 %v284, %v275
      %v291 = vmul.f32 %v284, %v276
      %v292 = vmul.f32 %v284, %v277
      %v293 = vmul.f32 %v284, %v278
      %v294 = vld [vmem:[%s193] sm:$0x1]
      %v296 = vlaneseq
      %v297 = vshrl.u32 %v296, 7
      %v298 = vsub.s32 0, %v297
      %v299 = vrot.slane %v294, %v298
      %v301 = vadd.f32 %v286, %v299
      %v302 = vadd.f32 %v287, %v299
      %v303 = vadd.f32 %v288, %v299
      %v304 = vadd.f32 %v289, %v299
      %v305 = vadd.f32 %v290, %v299
      %v306 = vadd.f32 %v291, %v299
      %v307 = vadd.f32 %v292, %v299
      %v308 = vadd.f32 %v293, %v299
      %vm309 = vcmp.ge.f32.partialorder %v301, 0.0
      %vm310 = vcmp.ge.f32.partialorder %v302, 0.0
      %vm311 = vcmp.ge.f32.partialorder %v303, 0.0
      %vm312 = vcmp.ge.f32.partialorder %v304, 0.0
      %vm313 = vcmp.ge.f32.partialorder %v305, 0.0
      %vm314 = vcmp.ge.f32.partialorder %v306, 0.0
      %vm315 = vcmp.ge.f32.partialorder %v307, 0.0
      %vm316 = vcmp.ge.f32.partialorder %v308, 0.0
      %v317 = vmul.f32 %v301, 0.2
      %v318 = vmul.f32 %v302, 0.2
      %v319 = vmul.f32 %v303, 0.2
      %v320 = vmul.f32 %v304, 0.2
      %v321 = vmul.f32 %v305, 0.2
      %v322 = vmul.f32 %v306, 0.2
      %v323 = vmul.f32 %v307, 0.2
      %v324 = vmul.f32 %v308, 0.2
      %v325 = vsel %vm309, %v301, %v317
      %v326 = vsel %vm310, %v302, %v318
      %v327 = vsel %vm311, %v303, %v319
      %v328 = vsel %vm312, %v304, %v320
      %v329 = vsel %vm313, %v305, %v321
      %v330 = vsel %vm314, %v306, %v322
      %v331 = vsel %vm315, %v307, %v323
      %v332 = vsel %vm316, %v308, %v324
      %333 = vst.msk [vmem:[%s198] sm:$0xff] %vm207, %v325
      %334 = vst.msk [vmem:[%s198 + $0x8] sm:$0xff] %vm207, %v326
      %335 = vst.msk [vmem:[%s198 + $0x10] sm:$0xff] %vm207, %v327
      %336 = vst.msk [vmem:[%s198 + $0x18] sm:$0xff] %vm207, %v328
      %337 = vst.msk [vmem:[%s198 + $0x20] sm:$0xff] %vm207, %v329
      %338 = vst.msk [vmem:[%s198 + $0x28] sm:$0xff] %vm207, %v330
      %339 = vst.msk [vmem:[%s198 + $0x30] sm:$0xff] %vm207, %v331
      %340 = vst.msk [vmem:[%s198 + $0x38] sm:$0xff] %vm207, %v332
      %p341 = scmp.lt.s32.totalorder %s14, 1
      %s342 = scalar_select %p341, %s14, 1
      %s343 = smul.addr %s342, 8
      %s344 = smul.addr %s343, 8
      %s345 = scalar_lea.vmem %s3, %s344
      // Predicated region
      $region33: #{apperance_model_style_forward.28} parent=31 // pred_check
        %p346 = pneg %p110
      $region34: #{apperance_model_style_forward.28} parent=31 // pred_check_branch
        %348 = sbr.rel (%p346) target = $region36
      $region35: #{apperance_model_style_forward.28} parent=31 // pred_region
        _
      $region36: #{apperance_model_style_forward.28} parent=31 // pred_fallthru
        _
    $region32: #{apperance_model_style_forward.28} parent=5 // pred_fallthru
      _
    %p349 = scmp.le.s32.totalorder 2, %s9
    // Predicated region
    $region37: #{apperance_model_style_forward.28} parent=5 // pred_check
      %p350 = pneg %p349
    $region38: #{apperance_model_style_forward.28} parent=5 // pred_check_branch
      %352 = sbr.rel (%p350) target = $region40
    $region39: #{apperance_model_style_forward.28} parent=5 // pred_region
      %s353 = ssub.s32 %s9, 2
      // Predicated region
      $region41: #{apperance_model_style_forward.28} parent=39 // pred_check
        %p354 = pneg %p116
      $region42: #{apperance_model_style_forward.28} parent=39 // pred_check_branch
        %356 = sbr.rel (%p354) target = $region44
      $region43: #{apperance_model_style_forward.28} parent=39 // pred_region
        %p357 = scmp.lt.s32.totalorder %s15, 1
        %s358 = scalar_select %p357, %s15, 1
        %s359 = smul.addr %s358, 8
        %s360 = smul.addr %s359, 8
        %s361 = scalar_lea.vmem %s3, %s360
      $region44: #{apperance_model_style_forward.28} parent=39 // pred_fallthru
        _
    $region40: #{apperance_model_style_forward.28} parent=5 // pred_fallthru
      _
  $region6: #{apperance_model_style_forward.28} parent=0 // loop_footer
    %s13 = sadd.s32 1, %s9
  $region7: #{apperance_model_style_forward.28} parent=0 // loop_footer_branch
    %8 = sbr.rel target = $region3
  $region8: #{apperance_model_style_forward.28} parent=0 // loop_exit
    _

// kernel: apperance_model_style_forward.29
$region0: #{apperance_model_style_forward.29}
  #allocation0 [shape = 'u32[]', space=smem, size = 0x4, offset = 0x4, fixed_abs, tag = 'smem constant byte address 0x4 - core index']
  #allocation1 [shape = 'u32[144,128]{1,0:T(1,128)}', space=vmem, size = 0x12000, scoped, tag = 'internal scratch']
  %s0 = inlined_call_operand.vmem [shape: bf16[1024,108], index: 0, kind: input, shape index: {}]
  %s1 = inlined_call_operand.vmem [shape: bf16[108,128], index: 1, kind: input, shape index: {}]
  %s2 = inlined_call_operand.vmem [shape: f32[1,128], index: 2, kind: input, shape index: {}]
  %s3 = inlined_call_operand.vmem [shape: f32[1024,128], index: 3, kind: output, shape index: {}]
  %s4 = sld [smem:[#allocation0]]
  $region45: #{apperance_model_style_forward.29} parent=0
    _
  %s6 = ssub.s32 1, %s4
  %s7 = scalar_select 0, %s6, %s4
  loop: start=0, step=1, limit=4
  $region2: #{apperance_model_style_forward.29} parent=0 // loop_pre_header
    _
  $region3: #{apperance_model_style_forward.29} parent=0 // loop_header
    %s9 = sphi 0, %s13
    %p10 = scmp.ge.s32.totalorder %s9, 4
    %s19 = sphi 0, %s21
    %s22 = sphi 0, %s19
    %s23 = sphi 0, %s22
    %s39 = sphi 0, %s23
    %s43 = sphi 0, %s43
    %s45 = sphi 0, %s43
    %s46 = sphi 0, %s45
    %s60 = sphi 0, %s46
    %s64 = sphi 0, %s64
    %s66 = sphi 0, %s64
    %s67 = sphi 0, %s66
    %s81 = sphi 0, %s67
    %s87 = sphi 0, %s89
    %s90 = sphi 0, %s87
    %s91 = sphi 0, %s90
    %s107 = sphi 0, %s91
  $region4: #{apperance_model_style_forward.29} parent=0 // loop_header_branch
    %12 = sbr.rel (%p10) target = $region8
  $region5: #{apperance_model_style_forward.29} parent=0 // loop_body
    %s14 = ssub.s32 %s9, 1
    %s15 = ssub.s32 %s9, 2
    %s16 = sadd.s32 %s9, 1
    %s17 = ssub.s32 %s9, %s16
    %p18 = scmp.eq.s32.totalorder %s17, 0
    %s20 = sadd.s32 %s19, 1
    %s21 = scalar_select %p18, %s19, %s20
    %p24 = pneg %p18
    %p25 = scmp.eq.s32.totalorder %s9, 1
    %p26 = por %p24, %p25
    %p27 = scmp.ne.s32.totalorder %s19, %s22
    %p28 = scmp.eq.s32.totalorder %s9, 0
    %p29 = por %p27, %p28
    %p30 = scmp.ne.s32.totalorder %s19, %s22
    %p31 = scmp.eq.s32.totalorder %s14, 1
    %p32 = por %p30, %p31
    %p33 = scmp.ne.s32.totalorder %s22, %s23
    %p34 = scmp.eq.s32.totalorder %s14, 0
    %p35 = por %p33, %p34
    %p36 = scmp.ne.s32.totalorder %s22, %s23
    %p37 = scmp.eq.s32.totalorder %s15, 1
    %p38 = por %p36, %p37
    %p40 = scmp.ne.s32.totalorder %s23, %s39
    %p41 = scmp.eq.s32.totalorder %s15, 0
    %p42 = por %p40, %p41
    %s44 = sadd.s32 %s43, 1
    %p47 = scmp.eq.s32.totalorder %s9, 1
    %p48 = scmp.ne.s32.totalorder %s43, %s45
    %p49 = scmp.eq.s32.totalorder %s9, 0
    %p50 = por %p48, %p49
    %p51 = scmp.ne.s32.totalorder %s43, %s45
    %p52 = scmp.eq.s32.totalorder %s14, 1
    %p53 = por %p51, %p52
    %p54 = scmp.ne.s32.totalorder %s45, %s46
    %p55 = scmp.eq.s32.totalorder %s14, 0
    %p56 = por %p54, %p55
    %p57 = scmp.ne.s32.totalorder %s45, %s46
    %p58 = scmp.eq.s32.totalorder %s15, 1
    %p59 = por %p57, %p58
    %p61 = scmp.ne.s32.totalorder %s46, %s60
    %p62 = scmp.eq.s32.totalorder %s15, 0
    %p63 = por %p61, %p62
    %s65 = sadd.s32 %s64, 1
    %p68 = scmp.eq.s32.totalorder %s9, 1
    %p69 = scmp.ne.s32.totalorder %s64, %s66
    %p70 = scmp.eq.s32.totalorder %s9, 0
    %p71 = por %p69, %p70
    %p72 = scmp.ne.s32.totalorder %s64, %s66
    %p73 = scmp.eq.s32.totalorder %s14, 1
    %p74 = por %p72, %p73
    %p75 = scmp.ne.s32.totalorder %s66, %s67
    %p76 = scmp.eq.s32.totalorder %s14, 0
    %p77 = por %p75, %p76
    %p78 = scmp.ne.s32.totalorder %s66, %s67
    %p79 = scmp.eq.s32.totalorder %s15, 1
    %p80 = por %p78, %p79
    %p82 = scmp.ne.s32.totalorder %s67, %s81
    %p83 = scmp.eq.s32.totalorder %s15, 0
    %p84 = por %p82, %p83
    %s85 = ssub.s32 %s9, %s16
    %p86 = scmp.eq.s32.totalorder %s85, 0
    %s88 = sadd.s32 %s87, 1
    %s89 = scalar_select %p86, %s87, %s88
    %p92 = pneg %p86
    %p93 = scmp.eq.s32.totalorder %s9, 1
    %p94 = por %p92, %p93
    %p95 = scmp.ne.s32.totalorder %s87, %s90
    %p96 = scmp.eq.s32.totalorder %s9, 0
    %p97 = por %p95, %p96
    %p98 = scmp.ne.s32.totalorder %s87, %s90
    %p99 = scmp.eq.s32.totalorder %s14, 1
    %p100 = por %p98, %p99
    %p101 = scmp.ne.s32.totalorder %s90, %s91
    %p102 = scmp.eq.s32.totalorder %s14, 0
    %p103 = por %p101, %p102
    %p104 = scmp.ne.s32.totalorder %s90, %s91
    %p105 = scmp.eq.s32.totalorder %s15, 1
    %p106 = por %p104, %p105
    %p108 = scmp.ne.s32.totalorder %s91, %s107
    %p109 = scmp.eq.s32.totalorder %s15, 0
    %p110 = por %p108, %p109
    %p111 = scmp.le.s32.totalorder 1, %s9
    %p112 = scmp.lt.s32.totalorder %s9, 3
    %p113 = pnand %p111, %p112
    %p114 = pneg %p113
    // Predicated region
    $region9: #{apperance_model_style_forward.29} parent=5 // pred_check
      _
    $region10: #{apperance_model_style_forward.29} parent=5 // pred_check_branch
      %116 = sbr.rel (%p113) target = $region12
    $region11: #{apperance_model_style_forward.29} parent=5 // pred_region
      %s117 = ssub.s32 %s9, 1
      // Predicated region
      $region13: #{apperance_model_style_forward.29} parent=11 // pred_check
        %p118 = pneg %p56
      $region14: #{apperance_model_style_forward.29} parent=11 // pred_check_branch
        %120 = sbr.rel (%p118) target = $region16
      $region15: #{apperance_model_style_forward.29} parent=11 // pred_region
        _
      $region16: #{apperance_model_style_forward.29} parent=11 // pred_fallthru
        _
      // Predicated region
      $region17: #{apperance_model_style_forward.29} parent=11 // pred_check
        %p121 = pneg %p77
      $region18: #{apperance_model_style_forward.29} parent=11 // pred_check_branch
        %123 = sbr.rel (%p121) target = $region20
      $region19: #{apperance_model_style_forward.29} parent=11 // pred_region
        _
      $region20: #{apperance_model_style_forward.29} parent=11 // pred_fallthru
        _
    $region12: #{apperance_model_style_forward.29} parent=5 // pred_fallthru
      _
    %p124 = scmp.lt.s32.totalorder %s9, 2
    // Predicated region
    $region21: #{apperance_model_style_forward.29} parent=5 // pred_check
      %p125 = pneg %p124
    $region22: #{apperance_model_style_forward.29} parent=5 // pred_check_branch
      %127 = sbr.rel (%p125) target = $region24
    $region23: #{apperance_model_style_forward.29} parent=5 // pred_region
      // Predicated region
      $region25: #{apperance_model_style_forward.29} parent=23 // pred_check
        %p128 = pneg %p29
      $region26: #{apperance_model_style_forward.29} parent=23 // pred_check_branch
        %130 = sbr.rel (%p128) target = $region28
      $region27: #{apperance_model_style_forward.29} parent=23 // pred_region
        %s131 = smul.u32 64, %s9
        %p132 = scmp.lt.s32.totalorder %s131, 127
        %s133 = scalar_select %p132, %s131, 127
        %s134 = smul.addr %s133, 4
        %s135 = scalar_lea.vmem %s0, %s134
        %s136 = smul.u32 64, %s9
      $region28: #{apperance_model_style_forward.29} parent=23 // pred_fallthru
        _
    $region24: #{apperance_model_style_forward.29} parent=5 // pred_fallthru
      _
    %p137 = scmp.le.s32.totalorder 1, %s9
    %p138 = scmp.lt.s32.totalorder %s9, 3
    %p139 = pnand %p137, %p138
    %p140 = pneg %p139
    // Predicated region
    $region29: #{apperance_model_style_forward.29} parent=5 // pred_check
      _
    $region30: #{apperance_model_style_forward.29} parent=5 // pred_check_branch
      %142 = sbr.rel (%p139) target = $region32
    $region31: #{apperance_model_style_forward.29} parent=5 // pred_region
      %s143 = ssub.s32 %s9, 1
      %s144 = smul.u32 64, %s14
      %p145 = scmp.lt.s32.totalorder %s144, 127
      %s146 = scalar_select %p145, %s144, 127
      %s147 = smul.addr %s146, 4
      %s148 = scalar_lea.vmem %s0, %s147
      %p149 = pneg %p35
      %p150 = pneg %p32
      %p151 = pneg %p56
      %p152 = pneg %p53
      %p153 = pneg %p77
      %p154 = pneg %p74
      %p155 = pneg %p103
      %p156 = pneg %p100
      %s157 = smul.u32 64, %s14
      %p158 = scmp.lt.s32.totalorder %s157, 127
      %s159 = scalar_select %p158, %s157, 127
      %s160 = smul.addr %s159, 8
      %s161 = scalar_lea.vmem %s3, %s160
      %s162 = smul.u32 64, %s14
      %p163 = scmp.lt.s32.totalorder %s162, 127
      %s164 = scalar_select %p163, %s162, 127
      %s165 = smul.addr %s164, 4
      %s166 = scalar_lea.vmem %s0, %s165
      %s167 = smul.u32 64, %s14
      %s168 = smul.u32 64, %s14
      %p169 = scmp.lt.s32.totalorder %s168, 127
      %s170 = scalar_select %p169, %s168, 127
      %s171 = smul.addr %s170, 8
      %s172 = scalar_lea.vmem %s3, %s171
      %s173 = smul.u32 64, %s14
      %v175 = vld [vmem:[%s166] sm:$0xf]
      %v176 = vld [vmem:[%s166 + $0x4] sm:$0xf]
      %v177 = vld [vmem:[%s166 + $0x8] sm:$0xf]
      %v178 = vld [vmem:[%s166 + $0xc] sm:$0xf]
      %v179 = vld [vmem:[%s166 + $0x10] sm:$0xf]
      %v180 = vld [vmem:[%s166 + $0x14] sm:$0xf]
      %v181 = vld [vmem:[%s166 + $0x18] sm:$0xf]
      %v182 = vld [vmem:[%s166 + $0x1c] sm:$0xf]
      %v183 = vld [vmem:[%s166 + $0x20] sm:$0xf]
      %v184 = vld [vmem:[%s166 + $0x24] sm:$0xf]
      %v185 = vld [vmem:[%s166 + $0x28] sm:$0xf]
      %v186 = vld [vmem:[%s166 + $0x2c] sm:$0xf]
      %v187 = vld [vmem:[%s166 + $0x30] sm:$0xf]
      %v188 = vld [vmem:[%s166 + $0x34] sm:$0xf]
      %v189 = vld [vmem:[%s166 + $0x38] sm:$0xf]
      %v190 = vld [vmem:[%s166 + $0x3c] sm:$0xf]
      %v191 = vld [vmem:[%s166 + $0x40] sm:$0xf]
      %v192 = vld [vmem:[%s166 + $0x44] sm:$0xf]
      %v193 = vld [vmem:[%s166 + $0x48] sm:$0xf]
      %v194 = vld [vmem:[%s166 + $0x4c] sm:$0xf]
      %v195 = vld [vmem:[%s166 + $0x50] sm:$0xf]
      %v196 = vld [vmem:[%s166 + $0x54] sm:$0xf]
      %v197 = vld [vmem:[%s166 + $0x58] sm:$0xf]
      %v198 = vld [vmem:[%s166 + $0x5c] sm:$0xf]
      %v199 = vld [vmem:[%s166 + $0x60] sm:$0xf]
      %v200 = vld [vmem:[%s166 + $0x64] sm:$0xf]
      %v201 = vld [vmem:[%s166 + $0x68] sm:$0xf]
      %v202 = vld [vmem:[%s166 + $0x6c] sm:$0xf]
      %v203 = vld [vmem:[%s166 + $0x70] sm:$0xf]
      %v204 = vld [vmem:[%s166 + $0x74] sm:$0xf]
      %v205 = vld [vmem:[%s166 + $0x78] sm:$0xf]
      %v206 = vld [vmem:[%s166 + $0x7c] sm:$0xf]
      %v207 = vld [vmem:[%s166 + $0x80] sm:$0xf]
      %v208 = vld [vmem:[%s166 + $0x84] sm:$0xf]
      %v209 = vld [vmem:[%s166 + $0x88] sm:$0xf]
      %v210 = vld [vmem:[%s166 + $0x8c] sm:$0xf]
      %v211 = vld [vmem:[%s166 + $0x90] sm:$0xf]
      %v212 = vld [vmem:[%s166 + $0x94] sm:$0xf]
      %v213 = vld [vmem:[%s166 + $0x98] sm:$0xf]
      %v214 = vld [vmem:[%s166 + $0x9c] sm:$0xf]
      %v215 = vld [vmem:[%s166 + $0xa0] sm:$0xf]
      %v216 = vld [vmem:[%s166 + $0xa4] sm:$0xf]
      %v217 = vld [vmem:[%s166 + $0xa8] sm:$0xf]
      %v218 = vld [vmem:[%s166 + $0xac] sm:$0xf]
      %v219 = vld [vmem:[%s166 + $0xb0] sm:$0xf]
      %v220 = vld [vmem:[%s166 + $0xb4] sm:$0xf]
      %v221 = vld [vmem:[%s166 + $0xb8] sm:$0xf]
      %v222 = vld [vmem:[%s166 + $0xbc] sm:$0xf]
      %v223 = vld [vmem:[%s166 + $0xc0] sm:$0xf]
      %v224 = vld [vmem:[%s166 + $0xc4] sm:$0xf]
      %v225 = vld [vmem:[%s166 + $0xc8] sm:$0xf]
      %v226 = vld [vmem:[%s166 + $0xcc] sm:$0xf]
      %v227 = vld [vmem:[%s166 + $0xd0] sm:$0xf]
      %v228 = vld [vmem:[%s166 + $0xd4] sm:$0xf]
      %v229 = vld [vmem:[%s166 + $0xd8] sm:$0xf]
      %v230 = vld [vmem:[%s166 + $0xdc] sm:$0xf]
      %v231 = vld [vmem:[%s166 + $0xe0] sm:$0xf]
      %v232 = vld [vmem:[%s166 + $0xe4] sm:$0xf]
      %v233 = vld [vmem:[%s166 + $0xe8] sm:$0xf]
      %v234 = vld [vmem:[%s166 + $0xec] sm:$0xf]
      %v235 = vld [vmem:[%s166 + $0xf0] sm:$0xf]
      %v236 = vld [vmem:[%s166 + $0xf4] sm:$0xf]
      %v237 = vld [vmem:[%s166 + $0xf8] sm:$0xf]
      %v238 = vld [vmem:[%s166 + $0xfc] sm:$0xf]
      %v239 = vld [vmem:[%s1] sm:$0xf]
      %v240 = vld [vmem:[%s1 + $0x4] sm:$0xf]
      %v241 = vld [vmem:[%s1 + $0x8] sm:$0xf]
      %v242 = vld [vmem:[%s1 + $0xc] sm:$0xf]
      %v243 = vld [vmem:[%s1 + $0x10] sm:$0xf]
      %v244 = vld [vmem:[%s1 + $0x14] sm:$0xf]
      %v245 = vld [vmem:[%s1 + $0x18] sm:$0xf]
      %v246 = vld [vmem:[%s1 + $0x1c] sm:$0xf]
      %v247 = vld [vmem:[%s1 + $0x20] sm:$0xf]
      %v248 = vld [vmem:[%s1 + $0x24] sm:$0xf]
      %v249 = vld [vmem:[%s1 + $0x28] sm:$0xf]
      %v250 = vld [vmem:[%s1 + $0x2c] sm:$0xf]
      %v251 = vld [vmem:[%s1 + $0x30] sm:$0xf]
      %v252 = vld [vmem:[%s1 + $0x34] sm:$0x3]
      %v253 = vld [vmem:[%s2] sm:$0x1]
      %v255 = vlaneseq
      %v256 = vshrl.u32 %v255, 7
      %v257 = vsub.s32 0, %v256
      %v258 = vrot.slane %v253, %v257
      %v324 = vunpack.c.l.b16 %v175
      %v325 = vunpack.c.l.b16 %v176
      %v326 = vunpack.c.l.b16 %v177
      %v327 = vunpack.c.l.b16 %v178
      %v328 = vunpack.c.l.b16 %v179
      %v329 = vunpack.c.l.b16 %v180
      %v330 = vunpack.c.l.b16 %v181
      %v331 = vunpack.c.l.b16 %v182
      %v332 = vunpack.c.l.b16 %v183
      %v333 = vunpack.c.l.b16 %v184
      %v334 = vunpack.c.l.b16 %v185
      %v335 = vunpack.c.l.b16 %v186
      %v336 = vunpack.c.l.b16 %v187
      %v337 = vunpack.c.l.b16 %v188
      %v338 = vunpack.c.l.b16 %v189
      %v339 = vunpack.c.l.b16 %v190
      %v340 = vunpack.c.l.b16 %v191
      %v341 = vunpack.c.l.b16 %v192
      %v342 = vunpack.c.l.b16 %v193
      %v343 = vunpack.c.l.b16 %v194
      %v344 = vunpack.c.l.b16 %v195
      %v345 = vunpack.c.l.b16 %v196
      %v346 = vunpack.c.l.b16 %v197
      %v347 = vunpack.c.l.b16 %v198
      %v348 = vunpack.c.l.b16 %v199
      %v349 = vunpack.c.l.b16 %v200
      %v350 = vunpack.c.l.b16 %v201
      %v351 = vunpack.c.l.b16 %v202
      %v352 = vunpack.c.l.b16 %v203
      %v353 = vunpack.c.l.b16 %v204
      %v354 = vunpack.c.l.b16 %v205
      %v355 = vunpack.c.l.b16 %v206
      %v356 = vunpack.c.l.b16 %v207
      %v357 = vunpack.c.l.b16 %v208
      %v358 = vunpack.c.l.b16 %v209
      %v359 = vunpack.c.l.b16 %v210
      %v360 = vunpack.c.l.b16 %v211
      %v361 = vunpack.c.l.b16 %v212
      %v362 = vunpack.c.l.b16 %v213
      %v363 = vunpack.c.l.b16 %v214
      %v364 = vunpack.c.l.b16 %v215
      %v365 = vunpack.c.l.b16 %v216
      %v366 = vunpack.c.l.b16 %v217
      %v367 = vunpack.c.l.b16 %v218
      %v368 = vunpack.c.l.b16 %v219
      %v369 = vunpack.c.l.b16 %v220
      %v370 = vunpack.c.l.b16 %v221
      %v371 = vunpack.c.l.b16 %v222
      %v372 = vunpack.c.l.b16 %v223
      %v373 = vunpack.c.l.b16 %v224
      %v374 = vunpack.c.l.b16 %v225
      %v375 = vunpack.c.l.b16 %v226
      %v376 = vunpack.c.l.b16 %v227
      %v377 = vunpack.c.l.b16 %v228
      %v378 = vunpack.c.l.b16 %v229
      %v379 = vunpack.c.l.b16 %v230
      %v380 = vunpack.c.l.b16 %v231
      %v381 = vunpack.c.l.b16 %v232
      %v382 = vunpack.c.l.b16 %v233
      %v383 = vunpack.c.l.b16 %v234
      %v384 = vunpack.c.l.b16 %v235
      %v385 = vunpack.c.l.b16 %v236
      %v386 = vunpack.c.l.b16 %v237
      %v387 = vunpack.c.l.b16 %v238
      %v388 = vpack.c.b16 %v325, %v324
      %v389 = vpack.c.b16 %v327, %v326
      %v390 = vpack.c.b16 %v329, %v328
      %v391 = vpack.c.b16 %v331, %v330
      %v392 = vpack.c.b16 %v333, %v332
      %v393 = vpack.c.b16 %v335, %v334
      %v394 = vpack.c.b16 %v337, %v336
      %v395 = vpack.c.b16 %v339, %v338
      %v396 = vpack.c.b16 %v341, %v340
      %v397 = vpack.c.b16 %v343, %v342
      %v398 = vpack.c.b16 %v345, %v344
      %v399 = vpack.c.b16 %v347, %v346
      %v400 = vpack.c.b16 %v349, %v348
      %v401 = vpack.c.b16 %v351, %v350
      %v402 = vpack.c.b16 %v353, %v352
      %v403 = vpack.c.b16 %v355, %v354
      %v404 = vpack.c.b16 %v357, %v356
      %v405 = vpack.c.b16 %v359, %v358
      %v406 = vpack.c.b16 %v361, %v360
      %v407 = vpack.c.b16 %v363, %v362
      %v408 = vpack.c.b16 %v365, %v364
      %v409 = vpack.c.b16 %v367, %v366
      %v410 = vpack.c.b16 %v369, %v368
      %v411 = vpack.c.b16 %v371, %v370
      %v412 = vpack.c.b16 %v373, %v372
      %v413 = vpack.c.b16 %v375, %v374
      %v414 = vpack.c.b16 %v377, %v376
      %v415 = vpack.c.b16 %v379, %v378
      %v416 = vpack.c.b16 %v381, %v380
      %v417 = vpack.c.b16 %v383, %v382
      %v418 = vpack.c.b16 %v385, %v384
      %v419 = vpack.c.b16 %v387, %v386
      %v434 = vunpack.c.l.b16 %v239
      %v435 = vunpack.c.l.b16 %v240
      %v436 = vunpack.c.l.b16 %v241
      %v437 = vunpack.c.l.b16 %v242
      %v438 = vunpack.c.l.b16 %v243
      %v439 = vunpack.c.l.b16 %v244
      %v440 = vunpack.c.l.b16 %v245
      %v441 = vunpack.c.l.b16 %v246
      %v442 = vunpack.c.l.b16 %v247
      %v443 = vunpack.c.l.b16 %v248
      %v444 = vunpack.c.l.b16 %v249
      %v445 = vunpack.c.l.b16 %v250
      %v446 = vunpack.c.l.b16 %v251
      %v447 = vunpack.c.l.b16 %v252
      %v448 = vpack.c.b16 %v435, %v434
      %v449 = vpack.c.b16 %v437, %v436
      %v450 = vpack.c.b16 %v439, %v438
      %v451 = vpack.c.b16 %v441, %v440
      %v452 = vpack.c.b16 %v443, %v442
      %v453 = vpack.c.b16 %v445, %v444
      %v454 = vpack.c.b16 %v447, %v446
      %vm461 = vcmask 883712
      %v463 = vsel %vm461, %v388, 0
      %v466 = vsel %vm461, %v389, 0
      %v469 = vsel %vm461, %v390, 0
      %v472 = vsel %vm461, %v391, 0
      %v475 = vsel %vm461, %v392, 0
      %v478 = vsel %vm461, %v393, 0
      %v481 = vsel %vm461, %v394, 0
      %v484 = vsel %vm461, %v395, 0
      %v487 = vsel %vm461, %v396, 0
      %v490 = vsel %vm461, %v397, 0
      %v493 = vsel %vm461, %v398, 0
      %v496 = vsel %vm461, %v399, 0
      %v499 = vsel %vm461, %v400, 0
      %v502 = vsel %vm461, %v401, 0
      %v505 = vsel %vm461, %v402, 0
      %v508 = vsel %vm461, %v403, 0
      %v511 = vsel %vm461, %v404, 0
      %v514 = vsel %vm461, %v405, 0
      %v517 = vsel %vm461, %v406, 0
      %v520 = vsel %vm461, %v407, 0
      %v523 = vsel %vm461, %v408, 0
      %v526 = vsel %vm461, %v409, 0
      %v529 = vsel %vm461, %v410, 0
      %v532 = vsel %vm461, %v411, 0
      %v535 = vsel %vm461, %v412, 0
      %v538 = vsel %vm461, %v413, 0
      %v541 = vsel %vm461, %v414, 0
      %v544 = vsel %vm461, %v415, 0
      %v547 = vsel %vm461, %v416, 0
      %v550 = vsel %vm461, %v417, 0
      %v553 = vsel %vm461, %v418, 0
      %v556 = vsel %vm461, %v419, 0
      %vm558 = vcmask 1045504
      %v560 = vsel %vm558, %v454, 0
      %562 = vmatprep.subr.bf16.mxu0 0
      %563 = vmatpush1.bf16.msra.mxu0 0
      %564 = vmatprep.subr.bf16.mxu0 0
      %565 = vmatpush1.bf16.msra.mxu0 %v560
      %566 = vmatprep.subr.bf16.mxu0 0
      %567 = vmatpush1.bf16.msra.mxu0 %v453
      %568 = vmatprep.subr.bf16.mxu0 0
      %569 = vmatpush1.bf16.msra.mxu0 %v452
      %570 = vmatprep.subr.bf16.mxu0 0
      %571 = vmatpush1.bf16.msra.mxu0 %v451
      %572 = vmatprep.subr.bf16.mxu0 0
      %573 = vmatpush1.bf16.msra.mxu0 %v450
      %574 = vmatprep.subr.bf16.mxu0 0
      %575 = vmatpush1.bf16.msra.mxu0 %v449
      %576 = vmatprep.subr.bf16.mxu0 0
      %577 = vmatpush1.bf16.msra.mxu0 %v448
      %578 = vmatprep.subr.bf16.mxu0 0
      %579 = vmatpush2.bf16.msra.mxu0 0
      %580 = vmatprep.subr.bf16.mxu0 0
      %581 = vmatpush2.bf16.msra.mxu0 0
      %582 = vmatprep.subr.bf16.mxu0 0
      %583 = vmatpush2.bf16.msra.mxu0 0
      %584 = vmatprep.subr.bf16.mxu0 0
      %585 = vmatpush2.bf16.msra.mxu0 0
      %586 = vmatprep.subr.bf16.mxu0 0
      %587 = vmatpush2.bf16.msra.mxu0 0
      %588 = vmatprep.subr.bf16.mxu0 0
      %589 = vmatpush2.bf16.msra.mxu0 0
      %590 = vmatprep.subr.bf16.mxu0 0
      %591 = vmatpush2.bf16.msra.mxu0 0
      %592 = vmatprep.subr.bf16.mxu0 0
      %593 = vmatpush2.bf16.msra.mxu0 0
      %594 = vmatprep.mubr.bf16.mxu0 0
      %595 = vmatmul.mubr.bf16.gmra.mxu0 %v463
      %v596 = vpop.f32.mrf.mxu0
      %v597 = vadd.f32 %v258, %v596
      %v598 = vpop.f32.mrf.mxu0
      %v599 = vpop.f32.mrf.mxu0
      %v600 = vadd.f32 %v258, %v599
      %v601 = vpop.f32.mrf.mxu0
      %602 = vmatprep.mubr.bf16.mxu0 0
      %603 = vmatmul.mubr.bf16.gmra.mxu0 %v466
      %v604 = vpop.f32.mrf.mxu0
      %v605 = vadd.f32 %v258, %v604
      %v606 = vpop.f32.mrf.mxu0
      %v607 = vpop.f32.mrf.mxu0
      %v608 = vadd.f32 %v258, %v607
      %v609 = vpop.f32.mrf.mxu0
      %610 = vmatprep.mubr.bf16.mxu0 0
      %611 = vmatmul.mubr.bf16.gmra.mxu0 %v469
      %v612 = vpop.f32.mrf.mxu0
      %v613 = vadd.f32 %v258, %v612
      %v614 = vpop.f32.mrf.mxu0
      %v615 = vpop.f32.mrf.mxu0
      %v616 = vadd.f32 %v258, %v615
      %v617 = vpop.f32.mrf.mxu0
      %618 = vmatprep.mubr.bf16.mxu0 0
      %619 = vmatmul.mubr.bf16.gmra.mxu0 %v472
      %v620 = vpop.f32.mrf.mxu0
      %v621 = vadd.f32 %v258, %v620
      %v622 = vpop.f32.mrf.mxu0
      %v623 = vpop.f32.mrf.mxu0
      %v624 = vadd.f32 %v258, %v623
      %v625 = vpop.f32.mrf.mxu0
      %626 = vmatprep.mubr.bf16.mxu0 0
      %627 = vmatmul.mubr.bf16.gmra.mxu0 %v475
      %v628 = vpop.f32.mrf.mxu0
      %v629 = vadd.f32 %v258, %v628
      %v630 = vpop.f32.mrf.mxu0
      %v631 = vpop.f32.mrf.mxu0
      %v632 = vadd.f32 %v258, %v631
      %v633 = vpop.f32.mrf.mxu0
      %634 = vmatprep.mubr.bf16.mxu0 0
      %635 = vmatmul.mubr.bf16.gmra.mxu0 %v478
      %v636 = vpop.f32.mrf.mxu0
      %v637 = vadd.f32 %v258, %v636
      %v638 = vpop.f32.mrf.mxu0
      %v639 = vpop.f32.mrf.mxu0
      %v640 = vadd.f32 %v258, %v639
      %v641 = vpop.f32.mrf.mxu0
      %642 = vmatprep.mubr.bf16.mxu0 0
      %643 = vmatmul.mubr.bf16.gmra.mxu0 %v481
      %v644 = vpop.f32.mrf.mxu0
      %v645 = vadd.f32 %v258, %v644
      %v646 = vpop.f32.mrf.mxu0
      %v647 = vpop.f32.mrf.mxu0
      %v648 = vadd.f32 %v258, %v647
      %v649 = vpop.f32.mrf.mxu0
      %650 = vmatprep.mubr.bf16.mxu0 0
      %651 = vmatmul.mubr.bf16.gmra.mxu0 %v484
      %v652 = vpop.f32.mrf.mxu0
      %v653 = vadd.f32 %v258, %v652
      %v654 = vpop.f32.mrf.mxu0
      %v655 = vpop.f32.mrf.mxu0
      %v656 = vadd.f32 %v258, %v655
      %v657 = vpop.f32.mrf.mxu0
      %658 = vmatprep.mubr.bf16.mxu0 0
      %659 = vmatmul.mubr.bf16.gmra.mxu0 %v487
      %v660 = vpop.f32.mrf.mxu0
      %v661 = vadd.f32 %v258, %v660
      %v662 = vpop.f32.mrf.mxu0
      %v663 = vpop.f32.mrf.mxu0
      %v664 = vadd.f32 %v258, %v663
      %v665 = vpop.f32.mrf.mxu0
      %666 = vmatprep.mubr.bf16.mxu0 0
      %667 = vmatmul.mubr.bf16.gmra.mxu0 %v490
      %v668 = vpop.f32.mrf.mxu0
      %v669 = vadd.f32 %v258, %v668
      %v670 = vpop.f32.mrf.mxu0
      %v671 = vpop.f32.mrf.mxu0
      %v672 = vadd.f32 %v258, %v671
      %v673 = vpop.f32.mrf.mxu0
      %674 = vmatprep.mubr.bf16.mxu0 0
      %675 = vmatmul.mubr.bf16.gmra.mxu0 %v493
      %v676 = vpop.f32.mrf.mxu0
      %v677 = vadd.f32 %v258, %v676
      %v678 = vpop.f32.mrf.mxu0
      %v679 = vpop.f32.mrf.mxu0
      %v680 = vadd.f32 %v258, %v679
      %v681 = vpop.f32.mrf.mxu0
      %682 = vmatprep.mubr.bf16.mxu0 0
      %683 = vmatmul.mubr.bf16.gmra.mxu0 %v496
      %v684 = vpop.f32.mrf.mxu0
      %v685 = vadd.f32 %v258, %v684
      %v686 = vpop.f32.mrf.mxu0
      %v687 = vpop.f32.mrf.mxu0
      %v688 = vadd.f32 %v258, %v687
      %v689 = vpop.f32.mrf.mxu0
      %690 = vmatprep.mubr.bf16.mxu0 0
      %691 = vmatmul.mubr.bf16.gmra.mxu0 %v499
      %v692 = vpop.f32.mrf.mxu0
      %v693 = vadd.f32 %v258, %v692
      %v694 = vpop.f32.mrf.mxu0
      %v695 = vpop.f32.mrf.mxu0
      %v696 = vadd.f32 %v258, %v695
      %v697 = vpop.f32.mrf.mxu0
      %698 = vmatprep.mubr.bf16.mxu0 0
      %699 = vmatmul.mubr.bf16.gmra.mxu0 %v502
      %v700 = vpop.f32.mrf.mxu0
      %v701 = vadd.f32 %v258, %v700
      %v702 = vpop.f32.mrf.mxu0
      %v703 = vpop.f32.mrf.mxu0
      %v704 = vadd.f32 %v258, %v703
      %v705 = vpop.f32.mrf.mxu0
      %706 = vmatprep.mubr.bf16.mxu0 0
      %707 = vmatmul.mubr.bf16.gmra.mxu0 %v505
      %v708 = vpop.f32.mrf.mxu0
      %v709 = vadd.f32 %v258, %v708
      %v710 = vpop.f32.mrf.mxu0
      %v711 = vpop.f32.mrf.mxu0
      %v712 = vadd.f32 %v258, %v711
      %v713 = vpop.f32.mrf.mxu0
      %714 = vmatprep.mubr.bf16.mxu0 0
      %715 = vmatmul.mubr.bf16.gmra.mxu0 %v508
      %v716 = vpop.f32.mrf.mxu0
      %v717 = vadd.f32 %v258, %v716
      %v718 = vpop.f32.mrf.mxu0
      %v719 = vpop.f32.mrf.mxu0
      %v720 = vadd.f32 %v258, %v719
      %v721 = vpop.f32.mrf.mxu0
      %722 = vmatprep.mubr.bf16.mxu0 0
      %723 = vmatmul.mubr.bf16.gmra.mxu0 %v511
      %v724 = vpop.f32.mrf.mxu0
      %v725 = vadd.f32 %v258, %v724
      %v726 = vpop.f32.mrf.mxu0
      %v727 = vpop.f32.mrf.mxu0
      %v728 = vadd.f32 %v258, %v727
      %v729 = vpop.f32.mrf.mxu0
      %730 = vmatprep.mubr.bf16.mxu0 0
      %731 = vmatmul.mubr.bf16.gmra.mxu0 %v514
      %v732 = vpop.f32.mrf.mxu0
      %v733 = vadd.f32 %v258, %v732
      %v734 = vpop.f32.mrf.mxu0
      %v735 = vpop.f32.mrf.mxu0
      %v736 = vadd.f32 %v258, %v735
      %v737 = vpop.f32.mrf.mxu0
      %738 = vmatprep.mubr.bf16.mxu0 0
      %739 = vmatmul.mubr.bf16.gmra.mxu0 %v517
      %v740 = vpop.f32.mrf.mxu0
      %v741 = vadd.f32 %v258, %v740
      %v742 = vpop.f32.mrf.mxu0
      %v743 = vpop.f32.mrf.mxu0
      %v744 = vadd.f32 %v258, %v743
      %v745 = vpop.f32.mrf.mxu0
      %746 = vmatprep.mubr.bf16.mxu0 0
      %747 = vmatmul.mubr.bf16.gmra.mxu0 %v520
      %v748 = vpop.f32.mrf.mxu0
      %v749 = vadd.f32 %v258, %v748
      %v750 = vpop.f32.mrf.mxu0
      %v751 = vpop.f32.mrf.mxu0
      %v752 = vadd.f32 %v258, %v751
      %v753 = vpop.f32.mrf.mxu0
      %754 = vmatprep.mubr.bf16.mxu0 0
      %755 = vmatmul.mubr.bf16.gmra.mxu0 %v523
      %v756 = vpop.f32.mrf.mxu0
      %v757 = vadd.f32 %v258, %v756
      %v758 = vpop.f32.mrf.mxu0
      %v759 = vpop.f32.mrf.mxu0
      %v760 = vadd.f32 %v258, %v759
      %v761 = vpop.f32.mrf.mxu0
      %762 = vmatprep.mubr.bf16.mxu0 0
      %763 = vmatmul.mubr.bf16.gmra.mxu0 %v526
      %v764 = vpop.f32.mrf.mxu0
      %v765 = vadd.f32 %v258, %v764
      %v766 = vpop.f32.mrf.mxu0
      %v767 = vpop.f32.mrf.mxu0
      %v768 = vadd.f32 %v258, %v767
      %v769 = vpop.f32.mrf.mxu0
      %770 = vmatprep.mubr.bf16.mxu0 0
      %771 = vmatmul.mubr.bf16.gmra.mxu0 %v529
      %v772 = vpop.f32.mrf.mxu0
      %v773 = vadd.f32 %v258, %v772
      %v774 = vpop.f32.mrf.mxu0
      %v775 = vpop.f32.mrf.mxu0
      %v776 = vadd.f32 %v258, %v775
      %v777 = vpop.f32.mrf.mxu0
      %778 = vmatprep.mubr.bf16.mxu0 0
      %779 = vmatmul.mubr.bf16.gmra.mxu0 %v532
      %v780 = vpop.f32.mrf.mxu0
      %v781 = vadd.f32 %v258, %v780
      %v782 = vpop.f32.mrf.mxu0
      %v783 = vpop.f32.mrf.mxu0
      %v784 = vadd.f32 %v258, %v783
      %v785 = vpop.f32.mrf.mxu0
      %786 = vmatprep.mubr.bf16.mxu0 0
      %787 = vmatmul.mubr.bf16.gmra.mxu0 %v535
      %v788 = vpop.f32.mrf.mxu0
      %v789 = vadd.f32 %v258, %v788
      %v790 = vpop.f32.mrf.mxu0
      %v791 = vpop.f32.mrf.mxu0
      %v792 = vadd.f32 %v258, %v791
      %v793 = vpop.f32.mrf.mxu0
      %794 = vmatprep.mubr.bf16.mxu0 0
      %795 = vmatmul.mubr.bf16.gmra.mxu0 %v538
      %v796 = vpop.f32.mrf.mxu0
      %v797 = vadd.f32 %v258, %v796
      %v798 = vpop.f32.mrf.mxu0
      %v799 = vpop.f32.mrf.mxu0
      %v800 = vadd.f32 %v258, %v799
      %v801 = vpop.f32.mrf.mxu0
      %802 = vmatprep.mubr.bf16.mxu0 0
      %803 = vmatmul.mubr.bf16.gmra.mxu0 %v541
      %v804 = vpop.f32.mrf.mxu0
      %v805 = vadd.f32 %v258, %v804
      %v806 = vpop.f32.mrf.mxu0
      %v807 = vpop.f32.mrf.mxu0
      %v808 = vadd.f32 %v258, %v807
      %v809 = vpop.f32.mrf.mxu0
      %810 = vmatprep.mubr.bf16.mxu0 0
      %811 = vmatmul.mubr.bf16.gmra.mxu0 %v544
      %v812 = vpop.f32.mrf.mxu0
      %v813 = vadd.f32 %v258, %v812
      %v814 = vpop.f32.mrf.mxu0
      %v815 = vpop.f32.mrf.mxu0
      %v816 = vadd.f32 %v258, %v815
      %v817 = vpop.f32.mrf.mxu0
      %818 = vmatprep.mubr.bf16.mxu0 0
      %819 = vmatmul.mubr.bf16.gmra.mxu0 %v547
      %v820 = vpop.f32.mrf.mxu0
      %v821 = vadd.f32 %v258, %v820
      %v822 = vpop.f32.mrf.mxu0
      %v823 = vpop.f32.mrf.mxu0
      %v824 = vadd.f32 %v258, %v823
      %v825 = vpop.f32.mrf.mxu0
      %826 = vmatprep.mubr.bf16.mxu0 0
      %827 = vmatmul.mubr.bf16.gmra.mxu0 %v550
      %v828 = vpop.f32.mrf.mxu0
      %v829 = vadd.f32 %v258, %v828
      %v830 = vpop.f32.mrf.mxu0
      %v831 = vpop.f32.mrf.mxu0
      %v832 = vadd.f32 %v258, %v831
      %v833 = vpop.f32.mrf.mxu0
      %834 = vmatprep.mubr.bf16.mxu0 0
      %835 = vmatmul.mubr.bf16.gmra.mxu0 %v553
      %v836 = vpop.f32.mrf.mxu0
      %v837 = vadd.f32 %v258, %v836
      %v838 = vpop.f32.mrf.mxu0
      %v839 = vpop.f32.mrf.mxu0
      %v840 = vadd.f32 %v258, %v839
      %v841 = vpop.f32.mrf.mxu0
      %842 = vmatprep.mubr.bf16.mxu0 0
      %843 = vmatmul.mubr.bf16.gmra.mxu0 %v556
      %v844 = vpop.f32.mrf.mxu0
      %v845 = vadd.f32 %v258, %v844
      %v846 = vpop.f32.mrf.mxu0
      %v847 = vpop.f32.mrf.mxu0
      %v848 = vadd.f32 %v258, %v847
      %v849 = vpop.f32.mrf.mxu0
      %850 = vdwg.mxu0
      %851 = vst [vmem:[%s172] sm:$0xff] %v597
      %852 = vst [vmem:[%s172 + $0x8] sm:$0xff] %v600
      %853 = vst [vmem:[%s172 + $0x10] sm:$0xff] %v605
      %854 = vst [vmem:[%s172 + $0x18] sm:$0xff] %v608
      %855 = vst [vmem:[%s172 + $0x20] sm:$0xff] %v613
      %856 = vst [vmem:[%s172 + $0x28] sm:$0xff] %v616
      %857 = vst [vmem:[%s172 + $0x30] sm:$0xff] %v621
      %858 = vst [vmem:[%s172 + $0x38] sm:$0xff] %v624
      %859 = vst [vmem:[%s172 + $0x40] sm:$0xff] %v629
      %860 = vst [vmem:[%s172 + $0x48] sm:$0xff] %v632
      %861 = vst [vmem:[%s172 + $0x50] sm:$0xff] %v637
      %862 = vst [vmem:[%s172 + $0x58] sm:$0xff] %v640
      %863 = vst [vmem:[%s172 + $0x60] sm:$0xff] %v645
      %864 = vst [vmem:[%s172 + $0x68] sm:$0xff] %v648
      %865 = vst [vmem:[%s172 + $0x70] sm:$0xff] %v653
      %866 = vst [vmem:[%s172 + $0x78] sm:$0xff] %v656
      %867 = vst [vmem:[%s172 + $0x80] sm:$0xff] %v661
      %868 = vst [vmem:[%s172 + $0x88] sm:$0xff] %v664
      %869 = vst [vmem:[%s172 + $0x90] sm:$0xff] %v669
      %870 = vst [vmem:[%s172 + $0x98] sm:$0xff] %v672
      %871 = vst [vmem:[%s172 + $0xa0] sm:$0xff] %v677
      %872 = vst [vmem:[%s172 + $0xa8] sm:$0xff] %v680
      %873 = vst [vmem:[%s172 + $0xb0] sm:$0xff] %v685
      %874 = vst [vmem:[%s172 + $0xb8] sm:$0xff] %v688
      %875 = vst [vmem:[%s172 + $0xc0] sm:$0xff] %v693
      %876 = vst [vmem:[%s172 + $0xc8] sm:$0xff] %v696
      %877 = vst [vmem:[%s172 + $0xd0] sm:$0xff] %v701
      %878 = vst [vmem:[%s172 + $0xd8] sm:$0xff] %v704
      %879 = vst [vmem:[%s172 + $0xe0] sm:$0xff] %v709
      %880 = vst [vmem:[%s172 + $0xe8] sm:$0xff] %v712
      %881 = vst [vmem:[%s172 + $0xf0] sm:$0xff] %v717
      %882 = vst [vmem:[%s172 + $0xf8] sm:$0xff] %v720
      %883 = vst [vmem:[%s172 + $0x100] sm:$0xff] %v725
      %884 = vst [vmem:[%s172 + $0x108] sm:$0xff] %v728
      %885 = vst [vmem:[%s172 + $0x110] sm:$0xff] %v733
      %886 = vst [vmem:[%s172 + $0x118] sm:$0xff] %v736
      %887 = vst [vmem:[%s172 + $0x120] sm:$0xff] %v741
      %888 = vst [vmem:[%s172 + $0x128] sm:$0xff] %v744
      %889 = vst [vmem:[%s172 + $0x130] sm:$0xff] %v749
      %890 = vst [vmem:[%s172 + $0x138] sm:$0xff] %v752
      %891 = vst [vmem:[%s172 + $0x140] sm:$0xff] %v757
      %892 = vst [vmem:[%s172 + $0x148] sm:$0xff] %v760
      %893 = vst [vmem:[%s172 + $0x150] sm:$0xff] %v765
      %894 = vst [vmem:[%s172 + $0x158] sm:$0xff] %v768
      %895 = vst [vmem:[%s172 + $0x160] sm:$0xff] %v773
      %896 = vst [vmem:[%s172 + $0x168] sm:$0xff] %v776
      %897 = vst [vmem:[%s172 + $0x170] sm:$0xff] %v781
      %898 = vst [vmem:[%s172 + $0x178] sm:$0xff] %v784
      %899 = vst [vmem:[%s172 + $0x180] sm:$0xff] %v789
      %900 = vst [vmem:[%s172 + $0x188] sm:$0xff] %v792
      %901 = vst [vmem:[%s172 + $0x190] sm:$0xff] %v797
      %902 = vst [vmem:[%s172 + $0x198] sm:$0xff] %v800
      %903 = vst [vmem:[%s172 + $0x1a0] sm:$0xff] %v805
      %904 = vst [vmem:[%s172 + $0x1a8] sm:$0xff] %v808
      %905 = vst [vmem:[%s172 + $0x1b0] sm:$0xff] %v813
      %906 = vst [vmem:[%s172 + $0x1b8] sm:$0xff] %v816
      %907 = vst [vmem:[%s172 + $0x1c0] sm:$0xff] %v821
      %908 = vst [vmem:[%s172 + $0x1c8] sm:$0xff] %v824
      %909 = vst [vmem:[%s172 + $0x1d0] sm:$0xff] %v829
      %910 = vst [vmem:[%s172 + $0x1d8] sm:$0xff] %v832
      %911 = vst [vmem:[%s172 + $0x1e0] sm:$0xff] %v837
      %912 = vst [vmem:[%s172 + $0x1e8] sm:$0xff] %v840
      %913 = vst [vmem:[%s172 + $0x1f0] sm:$0xff] %v845
      %914 = vst [vmem:[%s172 + $0x1f8] sm:$0xff] %v848
      %s915 = smul.u32 64, %s14
      %p916 = scmp.lt.s32.totalorder %s915, 127
      %s917 = scalar_select %p916, %s915, 127
      %s918 = smul.addr %s917, 8
      %s919 = scalar_lea.vmem %s3, %s918
      // Predicated region
      $region33: #{apperance_model_style_forward.29} parent=31 // pred_check
        %p920 = pneg %p100
      $region34: #{apperance_model_style_forward.29} parent=31 // pred_check_branch
        %922 = sbr.rel (%p920) target = $region36
      $region35: #{apperance_model_style_forward.29} parent=31 // pred_region
        %s923 = smul.u32 64, %s14
      $region36: #{apperance_model_style_forward.29} parent=31 // pred_fallthru
        _
    $region32: #{apperance_model_style_forward.29} parent=5 // pred_fallthru
      _
    %p924 = scmp.le.s32.totalorder 2, %s9
    // Predicated region
    $region37: #{apperance_model_style_forward.29} parent=5 // pred_check
      %p925 = pneg %p924
    $region38: #{apperance_model_style_forward.29} parent=5 // pred_check_branch
      %927 = sbr.rel (%p925) target = $region40
    $region39: #{apperance_model_style_forward.29} parent=5 // pred_region
      %s928 = ssub.s32 %s9, 2
      // Predicated region
      $region41: #{apperance_model_style_forward.29} parent=39 // pred_check
        %p929 = pneg %p106
      $region42: #{apperance_model_style_forward.29} parent=39 // pred_check_branch
        %931 = sbr.rel (%p929) target = $region44
      $region43: #{apperance_model_style_forward.29} parent=39 // pred_region
        %s932 = smul.u32 64, %s15
        %p933 = scmp.lt.s32.totalorder %s932, 127
        %s934 = scalar_select %p933, %s932, 127
        %s935 = smul.addr %s934, 8
        %s936 = scalar_lea.vmem %s3, %s935
      $region44: #{apperance_model_style_forward.29} parent=39 // pred_fallthru
        _
    $region40: #{apperance_model_style_forward.29} parent=5 // pred_fallthru
      _
  $region6: #{apperance_model_style_forward.29} parent=0 // loop_footer
    %s13 = sadd.s32 1, %s9
  $region7: #{apperance_model_style_forward.29} parent=0 // loop_footer_branch
    %8 = sbr.rel target = $region3
  $region8: #{apperance_model_style_forward.29} parent=0 // loop_exit
    _

// kernel: apperance_model_style_forward.30
$region0: #{apperance_model_style_forward.30}
  #allocation0 [shape = 'u32[]', space=smem, size = 0x4, offset = 0x4, fixed_abs, tag = 'smem constant byte address 0x4 - core index']
  #allocation1 [shape = 'u32[144,128]{1,0:T(1,128)}', space=vmem, size = 0x12000, scoped, tag = 'internal scratch']
  %s0 = inlined_call_operand.vmem [shape: f32[2,512,2], index: 0, kind: input, shape index: {}]
  %s1 = inlined_call_operand.vmem [shape: f32[2,1,2], index: 1, kind: input, shape index: {}]
  %s2 = inlined_call_operand.vmem [shape: f32[2,1,2], index: 2, kind: input, shape index: {}]
  %s3 = inlined_call_operand.vmem [shape: f32[2,512,2], index: 3, kind: output, shape index: {}]
  %s4 = sld [smem:[#allocation0]]
  $region45: #{apperance_model_style_forward.30} parent=0
    _
  %s6 = ssub.s32 1, %s4
  %s7 = scalar_select 0, %s6, %s4
  loop: start=0, step=1, limit=4
  $region2: #{apperance_model_style_forward.30} parent=0 // loop_pre_header
    _
  $region3: #{apperance_model_style_forward.30} parent=0 // loop_header
    %s9 = sphi 0, %s13
    %p10 = scmp.ge.s32.totalorder %s9, 4
    %s19 = sphi 0, %s21
    %s22 = sphi 0, %s19
    %s23 = sphi 0, %s22
    %s39 = sphi 0, %s23
    %s45 = sphi 0, %s47
    %s48 = sphi 0, %s45
    %s49 = sphi 0, %s48
    %s65 = sphi 0, %s49
    %s71 = sphi 0, %s73
    %s74 = sphi 0, %s71
    %s75 = sphi 0, %s74
    %s91 = sphi 0, %s75
    %s97 = sphi 0, %s99
    %s100 = sphi 0, %s97
    %s101 = sphi 0, %s100
    %s117 = sphi 0, %s101
  $region4: #{apperance_model_style_forward.30} parent=0 // loop_header_branch
    %12 = sbr.rel (%p10) target = $region8
  $region5: #{apperance_model_style_forward.30} parent=0 // loop_body
    %s14 = ssub.s32 %s9, 1
    %s15 = ssub.s32 %s9, 2
    %s16 = sadd.s32 %s9, 1
    %s17 = ssub.s32 %s9, %s16
    %p18 = scmp.eq.s32.totalorder %s17, 0
    %s20 = sadd.s32 %s19, 1
    %s21 = scalar_select %p18, %s19, %s20
    %p24 = pneg %p18
    %p25 = scmp.eq.s32.totalorder %s9, 1
    %p26 = por %p24, %p25
    %p27 = scmp.ne.s32.totalorder %s19, %s22
    %p28 = scmp.eq.s32.totalorder %s9, 0
    %p29 = por %p27, %p28
    %p30 = scmp.ne.s32.totalorder %s19, %s22
    %p31 = scmp.eq.s32.totalorder %s14, 1
    %p32 = por %p30, %p31
    %p33 = scmp.ne.s32.totalorder %s22, %s23
    %p34 = scmp.eq.s32.totalorder %s14, 0
    %p35 = por %p33, %p34
    %p36 = scmp.ne.s32.totalorder %s22, %s23
    %p37 = scmp.eq.s32.totalorder %s15, 1
    %p38 = por %p36, %p37
    %p40 = scmp.ne.s32.totalorder %s23, %s39
    %p41 = scmp.eq.s32.totalorder %s15, 0
    %p42 = por %p40, %p41
    %s43 = ssub.s32 %s9, %s16
    %p44 = scmp.eq.s32.totalorder %s43, 0
    %s46 = sadd.s32 %s45, 1
    %s47 = scalar_select %p44, %s45, %s46
    %p50 = pneg %p44
    %p51 = scmp.eq.s32.totalorder %s9, 1
    %p52 = por %p50, %p51
    %p53 = scmp.ne.s32.totalorder %s45, %s48
    %p54 = scmp.eq.s32.totalorder %s9, 0
    %p55 = por %p53, %p54
    %p56 = scmp.ne.s32.totalorder %s45, %s48
    %p57 = scmp.eq.s32.totalorder %s14, 1
    %p58 = por %p56, %p57
    %p59 = scmp.ne.s32.totalorder %s48, %s49
    %p60 = scmp.eq.s32.totalorder %s14, 0
    %p61 = por %p59, %p60
    %p62 = scmp.ne.s32.totalorder %s48, %s49
    %p63 = scmp.eq.s32.totalorder %s15, 1
    %p64 = por %p62, %p63
    %p66 = scmp.ne.s32.totalorder %s49, %s65
    %p67 = scmp.eq.s32.totalorder %s15, 0
    %p68 = por %p66, %p67
    %s69 = ssub.s32 %s9, %s16
    %p70 = scmp.eq.s32.totalorder %s69, 0
    %s72 = sadd.s32 %s71, 1
    %s73 = scalar_select %p70, %s71, %s72
    %p76 = pneg %p70
    %p77 = scmp.eq.s32.totalorder %s9, 1
    %p78 = por %p76, %p77
    %p79 = scmp.ne.s32.totalorder %s71, %s74
    %p80 = scmp.eq.s32.totalorder %s9, 0
    %p81 = por %p79, %p80
    %p82 = scmp.ne.s32.totalorder %s71, %s74
    %p83 = scmp.eq.s32.totalorder %s14, 1
    %p84 = por %p82, %p83
    %p85 = scmp.ne.s32.totalorder %s74, %s75
    %p86 = scmp.eq.s32.totalorder %s14, 0
    %p87 = por %p85, %p86
    %p88 = scmp.ne.s32.totalorder %s74, %s75
    %p89 = scmp.eq.s32.totalorder %s15, 1
    %p90 = por %p88, %p89
    %p92 = scmp.ne.s32.totalorder %s75, %s91
    %p93 = scmp.eq.s32.totalorder %s15, 0
    %p94 = por %p92, %p93
    %s95 = ssub.s32 %s9, %s16
    %p96 = scmp.eq.s32.totalorder %s95, 0
    %s98 = sadd.s32 %s97, 1
    %s99 = scalar_select %p96, %s97, %s98
    %p102 = pneg %p96
    %p103 = scmp.eq.s32.totalorder %s9, 1
    %p104 = por %p102, %p103
    %p105 = scmp.ne.s32.totalorder %s97, %s100
    %p106 = scmp.eq.s32.totalorder %s9, 0
    %p107 = por %p105, %p106
    %p108 = scmp.ne.s32.totalorder %s97, %s100
    %p109 = scmp.eq.s32.totalorder %s14, 1
    %p110 = por %p108, %p109
    %p111 = scmp.ne.s32.totalorder %s100, %s101
    %p112 = scmp.eq.s32.totalorder %s14, 0
    %p113 = por %p111, %p112
    %p114 = scmp.ne.s32.totalorder %s100, %s101
    %p115 = scmp.eq.s32.totalorder %s15, 1
    %p116 = por %p114, %p115
    %p118 = scmp.ne.s32.totalorder %s101, %s117
    %p119 = scmp.eq.s32.totalorder %s15, 0
    %p120 = por %p118, %p119
    %p121 = scmp.le.s32.totalorder 1, %s9
    %p122 = scmp.lt.s32.totalorder %s9, 3
    %p123 = pnand %p121, %p122
    %p124 = pneg %p123
    // Predicated region
    $region9: #{apperance_model_style_forward.30} parent=5 // pred_check
      _
    $region10: #{apperance_model_style_forward.30} parent=5 // pred_check_branch
      %126 = sbr.rel (%p123) target = $region12
    $region11: #{apperance_model_style_forward.30} parent=5 // pred_region
      %s127 = ssub.s32 %s9, 1
    $region12: #{apperance_model_style_forward.30} parent=5 // pred_fallthru
      _
    %p128 = scmp.lt.s32.totalorder %s9, 2
    // Predicated region
    $region13: #{apperance_model_style_forward.30} parent=5 // pred_check
      %p129 = pneg %p128
    $region14: #{apperance_model_style_forward.30} parent=5 // pred_check_branch
      %131 = sbr.rel (%p129) target = $region16
    $region15: #{apperance_model_style_forward.30} parent=5 // pred_region
      // Predicated region
      $region17: #{apperance_model_style_forward.30} parent=15 // pred_check
        %p132 = pneg %p29
      $region18: #{apperance_model_style_forward.30} parent=15 // pred_check_branch
        %134 = sbr.rel (%p132) target = $region20
      $region19: #{apperance_model_style_forward.30} parent=15 // pred_region
        %p135 = scmp.lt.s32.totalorder %s9, 1
        %s136 = scalar_select %p135, %s9, 1
        %s137 = smul.addr %s136, 64
        %s138 = smul.addr %s137, 8
        %s139 = scalar_lea.vmem %s0, %s138
      $region20: #{apperance_model_style_forward.30} parent=15 // pred_fallthru
        _
      // Predicated region
      $region21: #{apperance_model_style_forward.30} parent=15 // pred_check
        %p140 = pneg %p55
      $region22: #{apperance_model_style_forward.30} parent=15 // pred_check_branch
        %142 = sbr.rel (%p140) target = $region24
      $region23: #{apperance_model_style_forward.30} parent=15 // pred_region
        %p143 = scmp.lt.s32.totalorder %s9, 1
        %s144 = scalar_select %p143, %s9, 1
        %s145 = scalar_lea.vmem %s1, %s144
      $region24: #{apperance_model_style_forward.30} parent=15 // pred_fallthru
        _
      // Predicated region
      $region25: #{apperance_model_style_forward.30} parent=15 // pred_check
        %p146 = pneg %p81
      $region26: #{apperance_model_style_forward.30} parent=15 // pred_check_branch
        %148 = sbr.rel (%p146) target = $region28
      $region27: #{apperance_model_style_forward.30} parent=15 // pred_region
        %p149 = scmp.lt.s32.totalorder %s9, 1
        %s150 = scalar_select %p149, %s9, 1
        %s151 = scalar_lea.vmem %s2, %s150
      $region28: #{apperance_model_style_forward.30} parent=15 // pred_fallthru
        _
    $region16: #{apperance_model_style_forward.30} parent=5 // pred_fallthru
      _
    %p152 = scmp.le.s32.totalorder 1, %s9
    %p153 = scmp.lt.s32.totalorder %s9, 3
    %p154 = pnand %p152, %p153
    %p155 = pneg %p154
    // Predicated region
    $region29: #{apperance_model_style_forward.30} parent=5 // pred_check
      _
    $region30: #{apperance_model_style_forward.30} parent=5 // pred_check_branch
      %157 = sbr.rel (%p154) target = $region32
    $region31: #{apperance_model_style_forward.30} parent=5 // pred_region
      %s158 = ssub.s32 %s9, 1
      %p159 = scmp.lt.s32.totalorder %s14, 1
      %s160 = scalar_select %p159, %s14, 1
      %s161 = smul.addr %s160, 64
      %s162 = smul.addr %s161, 8
      %s163 = scalar_lea.vmem %s0, %s162
      %p164 = pneg %p35
      %p165 = pneg %p32
      %p166 = scmp.lt.s32.totalorder %s14, 1
      %s167 = scalar_select %p166, %s14, 1
      %s168 = scalar_lea.vmem %s1, %s167
      %p169 = pneg %p61
      %p170 = pneg %p58
      %p171 = scmp.lt.s32.totalorder %s14, 1
      %s172 = scalar_select %p171, %s14, 1
      %s173 = scalar_lea.vmem %s2, %s172
      %p174 = pneg %p87
      %p175 = pneg %p84
      %p176 = pneg %p113
      %p177 = pneg %p110
      %p178 = scmp.lt.s32.totalorder %s14, 1
      %s179 = scalar_select %p178, %s14, 1
      %s180 = smul.addr %s179, 64
      %s181 = smul.addr %s180, 8
      %s182 = scalar_lea.vmem %s3, %s181
      %p183 = scmp.lt.s32.totalorder %s14, 1
      %s184 = scalar_select %p183, %s14, 1
      %s185 = smul.addr %s184, 64
      %s186 = smul.addr %s185, 8
      %s187 = scalar_lea.vmem %s0, %s186
      %p188 = scmp.lt.s32.totalorder %s14, 1
      %s189 = scalar_select %p188, %s14, 1
      %s190 = scalar_lea.vmem %s1, %s189
      %p191 = scmp.lt.s32.totalorder %s14, 1
      %s192 = scalar_select %p191, %s14, 1
      %s193 = scalar_lea.vmem %s2, %s192
      %p194 = scmp.lt.s32.totalorder %s14, 1
      %s195 = scalar_select %p194, %s14, 1
      %s196 = smul.addr %s195, 64
      %s197 = smul.addr %s196, 8
      %s198 = scalar_lea.vmem %s3, %s197
      %v199 = vld [vmem:[%s187] sm:$0xff]
      %v200 = vld [vmem:[%s187 + $0x8] sm:$0xff]
      %v201 = vld [vmem:[%s187 + $0x10] sm:$0xff]
      %v202 = vld [vmem:[%s187 + $0x18] sm:$0xff]
      %v203 = vld [vmem:[%s187 + $0x20] sm:$0xff]
      %v204 = vld [vmem:[%s187 + $0x28] sm:$0xff]
      %v205 = vld [vmem:[%s187 + $0x30] sm:$0xff]
      %v206 = vld [vmem:[%s187 + $0x38] sm:$0xff]
      %v207 = vld [vmem:[%s187 + $0x40] sm:$0xff]
      %v208 = vld [vmem:[%s187 + $0x48] sm:$0xff]
      %v209 = vld [vmem:[%s187 + $0x50] sm:$0xff]
      %v210 = vld [vmem:[%s187 + $0x58] sm:$0xff]
      %v211 = vld [vmem:[%s187 + $0x60] sm:$0xff]
      %v212 = vld [vmem:[%s187 + $0x68] sm:$0xff]
      %v213 = vld [vmem:[%s187 + $0x70] sm:$0xff]
      %v214 = vld [vmem:[%s187 + $0x78] sm:$0xff]
      %v215 = vld [vmem:[%s187 + $0x80] sm:$0xff]
      %v216 = vld [vmem:[%s187 + $0x88] sm:$0xff]
      %v217 = vld [vmem:[%s187 + $0x90] sm:$0xff]
      %v218 = vld [vmem:[%s187 + $0x98] sm:$0xff]
      %v219 = vld [vmem:[%s187 + $0xa0] sm:$0xff]
      %v220 = vld [vmem:[%s187 + $0xa8] sm:$0xff]
      %v221 = vld [vmem:[%s187 + $0xb0] sm:$0xff]
      %v222 = vld [vmem:[%s187 + $0xb8] sm:$0xff]
      %v223 = vld [vmem:[%s187 + $0xc0] sm:$0xff]
      %v224 = vld [vmem:[%s187 + $0xc8] sm:$0xff]
      %v225 = vld [vmem:[%s187 + $0xd0] sm:$0xff]
      %v226 = vld [vmem:[%s187 + $0xd8] sm:$0xff]
      %v227 = vld [vmem:[%s187 + $0xe0] sm:$0xff]
      %v228 = vld [vmem:[%s187 + $0xe8] sm:$0xff]
      %v229 = vld [vmem:[%s187 + $0xf0] sm:$0xff]
      %v230 = vld [vmem:[%s187 + $0xf8] sm:$0xff]
      %v231 = vld [vmem:[%s187 + $0x100] sm:$0xff]
      %v232 = vld [vmem:[%s187 + $0x108] sm:$0xff]
      %v233 = vld [vmem:[%s187 + $0x110] sm:$0xff]
      %v234 = vld [vmem:[%s187 + $0x118] sm:$0xff]
      %v235 = vld [vmem:[%s187 + $0x120] sm:$0xff]
      %v236 = vld [vmem:[%s187 + $0x128] sm:$0xff]
      %v237 = vld [vmem:[%s187 + $0x130] sm:$0xff]
      %v238 = vld [vmem:[%s187 + $0x138] sm:$0xff]
      %v239 = vld [vmem:[%s187 + $0x140] sm:$0xff]
      %v240 = vld [vmem:[%s187 + $0x148] sm:$0xff]
      %v241 = vld [vmem:[%s187 + $0x150] sm:$0xff]
      %v242 = vld [vmem:[%s187 + $0x158] sm:$0xff]
      %v243 = vld [vmem:[%s187 + $0x160] sm:$0xff]
      %v244 = vld [vmem:[%s187 + $0x168] sm:$0xff]
      %v245 = vld [vmem:[%s187 + $0x170] sm:$0xff]
      %v246 = vld [vmem:[%s187 + $0x178] sm:$0xff]
      %v247 = vld [vmem:[%s187 + $0x180] sm:$0xff]
      %v248 = vld [vmem:[%s187 + $0x188] sm:$0xff]
      %v249 = vld [vmem:[%s187 + $0x190] sm:$0xff]
      %v250 = vld [vmem:[%s187 + $0x198] sm:$0xff]
      %v251 = vld [vmem:[%s187 + $0x1a0] sm:$0xff]
      %v252 = vld [vmem:[%s187 + $0x1a8] sm:$0xff]
      %v253 = vld [vmem:[%s187 + $0x1b0] sm:$0xff]
      %v254 = vld [vmem:[%s187 + $0x1b8] sm:$0xff]
      %v255 = vld [vmem:[%s187 + $0x1c0] sm:$0xff]
      %v256 = vld [vmem:[%s187 + $0x1c8] sm:$0xff]
      %v257 = vld [vmem:[%s187 + $0x1d0] sm:$0xff]
      %v258 = vld [vmem:[%s187 + $0x1d8] sm:$0xff]
      %v259 = vld [vmem:[%s187 + $0x1e0] sm:$0xff]
      %v260 = vld [vmem:[%s187 + $0x1e8] sm:$0xff]
      %v261 = vld [vmem:[%s187 + $0x1f0] sm:$0xff]
      %v262 = vld [vmem:[%s187 + $0x1f8] sm:$0xff]
      %vm263 = vcmask 15360
      %v264 = vsel %vm263, %v199, 0.0
      %v265 = vsel %vm263, %v200, 0.0
      %v266 = vadd.f32 %v264, %v265
      %v267 = vsel %vm263, %v201, 0.0
      %v268 = vadd.f32 %v266, %v267
      %v269 = vsel %vm263, %v202, 0.0
      %v270 = vadd.f32 %v268, %v269
      %v271 = vsel %vm263, %v203, 0.0
      %v272 = vadd.f32 %v270, %v271
      %v273 = vsel %vm263, %v204, 0.0
      %v274 = vadd.f32 %v272, %v273
      %v275 = vsel %vm263, %v205, 0.0
      %v276 = vadd.f32 %v274, %v275
      %v277 = vsel %vm263, %v206, 0.0
      %v278 = vadd.f32 %v276, %v277
      %v279 = vsel %vm263, %v207, 0.0
      %v280 = vadd.f32 %v278, %v279
      %v281 = vsel %vm263, %v208, 0.0
      %v282 = vadd.f32 %v280, %v281
      %v283 = vsel %vm263, %v209, 0.0
      %v284 = vadd.f32 %v282, %v283
      %v285 = vsel %vm263, %v210, 0.0
      %v286 = vadd.f32 %v284, %v285
      %v287 = vsel %vm263, %v211, 0.0
      %v288 = vadd.f32 %v286, %v287
      %v289 = vsel %vm263, %v212, 0.0
      %v290 = vadd.f32 %v288, %v289
      %v291 = vsel %vm263, %v213, 0.0
      %v292 = vadd.f32 %v290, %v291
      %v293 = vsel %vm263, %v214, 0.0
      %v294 = vadd.f32 %v292, %v293
      %v295 = vsel %vm263, %v215, 0.0
      %v296 = vadd.f32 %v294, %v295
      %v297 = vsel %vm263, %v216, 0.0
      %v298 = vadd.f32 %v296, %v297
      %v299 = vsel %vm263, %v217, 0.0
      %v300 = vadd.f32 %v298, %v299
      %v301 = vsel %vm263, %v218, 0.0
      %v302 = vadd.f32 %v300, %v301
      %v303 = vsel %vm263, %v219, 0.0
      %v304 = vadd.f32 %v302, %v303
      %v305 = vsel %vm263, %v220, 0.0
      %v306 = vadd.f32 %v304, %v305
      %v307 = vsel %vm263, %v221, 0.0
      %v308 = vadd.f32 %v306, %v307
      %v309 = vsel %vm263, %v222, 0.0
      %v310 = vadd.f32 %v308, %v309
      %v311 = vsel %vm263, %v223, 0.0
      %v312 = vadd.f32 %v310, %v311
      %v313 = vsel %vm263, %v224, 0.0
      %v314 = vadd.f32 %v312, %v313
      %v315 = vsel %vm263, %v225, 0.0
      %v316 = vadd.f32 %v314, %v315
      %v317 = vsel %vm263, %v226, 0.0
      %v318 = vadd.f32 %v316, %v317
      %v319 = vsel %vm263, %v227, 0.0
      %v320 = vadd.f32 %v318, %v319
      %v321 = vsel %vm263, %v228, 0.0
      %v322 = vadd.f32 %v320, %v321
      %v323 = vsel %vm263, %v229, 0.0
      %v324 = vadd.f32 %v322, %v323
      %v325 = vsel %vm263, %v230, 0.0
      %v326 = vadd.f32 %v324, %v325
      %v327 = vsel %vm263, %v231, 0.0
      %v328 = vadd.f32 %v326, %v327
      %v329 = vsel %vm263, %v232, 0.0
      %v330 = vadd.f32 %v328, %v329
      %v331 = vsel %vm263, %v233, 0.0
      %v332 = vadd.f32 %v330, %v331
      %v333 = vsel %vm263, %v234, 0.0
      %v334 = vadd.f32 %v332, %v333
      %v335 = vsel %vm263, %v235, 0.0
      %v336 = vadd.f32 %v334, %v335
      %v337 = vsel %vm263, %v236, 0.0
      %v338 = vadd.f32 %v336, %v337
      %v339 = vsel %vm263, %v237, 0.0
      %v340 = vadd.f32 %v338, %v339
      %v341 = vsel %vm263, %v238, 0.0
      %v342 = vadd.f32 %v340, %v341
      %v343 = vsel %vm263, %v239, 0.0
      %v344 = vadd.f32 %v342, %v343
      %v345 = vsel %vm263, %v240, 0.0
      %v346 = vadd.f32 %v344, %v345
      %v347 = vsel %vm263, %v241, 0.0
      %v348 = vadd.f32 %v346, %v347
      %v349 = vsel %vm263, %v242, 0.0
      %v350 = vadd.f32 %v348, %v349
      %v351 = vsel %vm263, %v243, 0.0
      %v352 = vadd.f32 %v350, %v351
      %v353 = vsel %vm263, %v244, 0.0
      %v354 = vadd.f32 %v352, %v353
      %v355 = vsel %vm263, %v245, 0.0
      %v356 = vadd.f32 %v354, %v355
      %v357 = vsel %vm263, %v246, 0.0
      %v358 = vadd.f32 %v356, %v357
      %v359 = vsel %vm263, %v247, 0.0
      %v360 = vadd.f32 %v358, %v359
      %v361 = vsel %vm263, %v248, 0.0
      %v362 = vadd.f32 %v360, %v361
      %v363 = vsel %vm263, %v249, 0.0
      %v364 = vadd.f32 %v362, %v363
      %v365 = vsel %vm263, %v250, 0.0
      %v366 = vadd.f32 %v364, %v365
      %v367 = vsel %vm263, %v251, 0.0
      %v368 = vadd.f32 %v366, %v367
      %v369 = vsel %vm263, %v252, 0.0
      %v370 = vadd.f32 %v368, %v369
      %v371 = vsel %vm263, %v253, 0.0
      %v372 = vadd.f32 %v370, %v371
      %v373 = vsel %vm263, %v254, 0.0
      %v374 = vadd.f32 %v372, %v373
      %v375 = vsel %vm263, %v255, 0.0
      %v376 = vadd.f32 %v374, %v375
      %v377 = vsel %vm263, %v256, 0.0
      %v378 = vadd.f32 %v376, %v377
      %v379 = vsel %vm263, %v257, 0.0
      %v380 = vadd.f32 %v378, %v379
      %v381 = vsel %vm263, %v258, 0.0
      %v382 = vadd.f32 %v380, %v381
      %v383 = vsel %vm263, %v259, 0.0
      %v384 = vadd.f32 %v382, %v383
      %v385 = vsel %vm263, %v260, 0.0
      %v386 = vadd.f32 %v384, %v385
      %v387 = vsel %vm263, %v261, 0.0
      %v388 = vadd.f32 %v386, %v387
      %v389 = vsel %vm263, %v262, 0.0
      %v390 = vadd.f32 %v388, %v389
      %v391 = vrot.slane %v390, 4
      %v392 = vadd.f32 %v390, %v391
      %v393 = vrot.slane %v392, 2
      %v394 = vadd.f32 %v392, %v393
      %v395 = vrot.slane %v394, 1
      %v396 = vadd.f32 %v394, %v395
      %v397 = vrcp.pop 512.0
      %v398 = vmul.f32 %v396, %v397
      %v399 = vsub.f32 %v199, %v398
      %v400 = vsub.f32 %v200, %v398
      %v401 = vsub.f32 %v201, %v398
      %v402 = vsub.f32 %v202, %v398
      %v403 = vsub.f32 %v203, %v398
      %v404 = vsub.f32 %v204, %v398
      %v405 = vsub.f32 %v205, %v398
      %v406 = vsub.f32 %v206, %v398
      %v407 = vsub.f32 %v207, %v398
      %v408 = vsub.f32 %v208, %v398
      %v409 = vsub.f32 %v209, %v398
      %v410 = vsub.f32 %v210, %v398
      %v411 = vsub.f32 %v211, %v398
      %v412 = vsub.f32 %v212, %v398
      %v413 = vsub.f32 %v213, %v398
      %v414 = vsub.f32 %v214, %v398
      %v415 = vsub.f32 %v215, %v398
      %v416 = vsub.f32 %v216, %v398
      %v417 = vsub.f32 %v217, %v398
      %v418 = vsub.f32 %v218, %v398
      %v419 = vsub.f32 %v219, %v398
      %v420 = vsub.f32 %v220, %v398
      %v421 = vsub.f32 %v221, %v398
      %v422 = vsub.f32 %v222, %v398
      %v423 = vsub.f32 %v223, %v398
      %v424 = vsub.f32 %v224, %v398
      %v425 = vsub.f32 %v225, %v398
      %v426 = vsub.f32 %v226, %v398
      %v427 = vsub.f32 %v227, %v398
      %v428 = vsub.f32 %v228, %v398
      %v429 = vsub.f32 %v229, %v398
      %v430 = vsub.f32 %v230, %v398
      %v431 = vsub.f32 %v231, %v398
      %v432 = vsub.f32 %v232, %v398
      %v433 = vsub.f32 %v233, %v398
      %v434 = vsub.f32 %v234, %v398
      %v435 = vsub.f32 %v235, %v398
      %v436 = vsub.f32 %v236, %v398
      %v437 = vsub.f32 %v237, %v398
      %v438 = vsub.f32 %v238, %v398
      %v439 = vsub.f32 %v239, %v398
      %v440 = vsub.f32 %v240, %v398
      %v441 = vsub.f32 %v241, %v398
      %v442 = vsub.f32 %v242, %v398
      %v443 = vsub.f32 %v243, %v398
      %v444 = vsub.f32 %v244, %v398
      %v445 = vsub.f32 %v245, %v398
      %v446 = vsub.f32 %v246, %v398
      %v447 = vsub.f32 %v247, %v398
      %v448 = vsub.f32 %v248, %v398
      %v449 = vsub.f32 %v249, %v398
      %v450 = vsub.f32 %v250, %v398
      %v451 = vsub.f32 %v251, %v398
      %v452 = vsub.f32 %v252, %v398
      %v453 = vsub.f32 %v253, %v398
      %v454 = vsub.f32 %v254, %v398
      %v455 = vsub.f32 %v255, %v398
      %v456 = vsub.f32 %v256, %v398
      %v457 = vsub.f32 %v257, %v398
      %v458 = vsub.f32 %v258, %v398
      %v459 = vsub.f32 %v259, %v398
      %v460 = vsub.f32 %v260, %v398
      %v461 = vsub.f32 %v261, %v398
      %v462 = vsub.f32 %v262, %v398
      %v463 = vmul.f32 %v399, %v399
      %v464 = vmul.f32 %v400, %v400
      %v465 = vmul.f32 %v401, %v401
      %v466 = vmul.f32 %v402, %v402
      %v467 = vmul.f32 %v403, %v403
      %v468 = vmul.f32 %v404, %v404
      %v469 = vmul.f32 %v405, %v405
      %v470 = vmul.f32 %v406, %v406
      %v471 = vmul.f32 %v407, %v407
      %v472 = vmul.f32 %v408, %v408
      %v473 = vmul.f32 %v409, %v409
      %v474 = vmul.f32 %v410, %v410
      %v475 = vmul.f32 %v411, %v411
      %v476 = vmul.f32 %v412, %v412
      %v477 = vmul.f32 %v413, %v413
      %v478 = vmul.f32 %v414, %v414
      %v479 = vmul.f32 %v415, %v415
      %v480 = vmul.f32 %v416, %v416
      %v481 = vmul.f32 %v417, %v417
      %v482 = vmul.f32 %v418, %v418
      %v483 = vmul.f32 %v419, %v419
      %v484 = vmul.f32 %v420, %v420
      %v485 = vmul.f32 %v421, %v421
      %v486 = vmul.f32 %v422, %v422
      %v487 = vmul.f32 %v423, %v423
      %v488 = vmul.f32 %v424, %v424
      %v489 = vmul.f32 %v425, %v425
      %v490 = vmul.f32 %v426, %v426
      %v491 = vmul.f32 %v427, %v427
      %v492 = vmul.f32 %v428, %v428
      %v493 = vmul.f32 %v429, %v429
      %v494 = vmul.f32 %v430, %v430
      %v495 = vmul.f32 %v431, %v431
      %v496 = vmul.f32 %v432, %v432
      %v497 = vmul.f32 %v433, %v433
      %v498 = vmul.f32 %v434, %v434
      %v499 = vmul.f32 %v435, %v435
      %v500 = vmul.f32 %v436, %v436
      %v501 = vmul.f32 %v437, %v437
      %v502 = vmul.f32 %v438, %v438
      %v503 = vmul.f32 %v439, %v439
      %v504 = vmul.f32 %v440, %v440
      %v505 = vmul.f32 %v441, %v441
      %v506 = vmul.f32 %v442, %v442
      %v507 = vmul.f32 %v443, %v443
      %v508 = vmul.f32 %v444, %v444
      %v509 = vmul.f32 %v445, %v445
      %v510 = vmul.f32 %v446, %v446
      %v511 = vmul.f32 %v447, %v447
      %v512 = vmul.f32 %v448, %v448
      %v513 = vmul.f32 %v449, %v449
      %v514 = vmul.f32 %v450, %v450
      %v515 = vmul.f32 %v451, %v451
      %v516 = vmul.f32 %v452, %v452
      %v517 = vmul.f32 %v453, %v453
      %v518 = vmul.f32 %v454, %v454
      %v519 = vmul.f32 %v455, %v455
      %v520 = vmul.f32 %v456, %v456
      %v521 = vmul.f32 %v457, %v457
      %v522 = vmul.f32 %v458, %v458
      %v523 = vmul.f32 %v459, %v459
      %v524 = vmul.f32 %v460, %v460
      %v525 = vmul.f32 %v461, %v461
      %v526 = vmul.f32 %v462, %v462
      %v527 = vsel %vm263, %v463, 0.0
      %v528 = vsel %vm263, %v464, 0.0
      %v529 = vadd.f32 %v527, %v528
      %v530 = vsel %vm263, %v465, 0.0
      %v531 = vadd.f32 %v529, %v530
      %v532 = vsel %vm263, %v466, 0.0
      %v533 = vadd.f32 %v531, %v532
      %v534 = vsel %vm263, %v467, 0.0
      %v535 = vadd.f32 %v533, %v534
      %v536 = vsel %vm263, %v468, 0.0
      %v537 = vadd.f32 %v535, %v536
      %v538 = vsel %vm263, %v469, 0.0
      %v539 = vadd.f32 %v537, %v538
      %v540 = vsel %vm263, %v470, 0.0
      %v541 = vadd.f32 %v539, %v540
      %v542 = vsel %vm263, %v471, 0.0
      %v543 = vadd.f32 %v541, %v542
      %v544 = vsel %vm263, %v472, 0.0
      %v545 = vadd.f32 %v543, %v544
      %v546 = vsel %vm263, %v473, 0.0
      %v547 = vadd.f32 %v545, %v546
      %v548 = vsel %vm263, %v474, 0.0
      %v549 = vadd.f32 %v547, %v548
      %v550 = vsel %vm263, %v475, 0.0
      %v551 = vadd.f32 %v549, %v550
      %v552 = vsel %vm263, %v476, 0.0
      %v553 = vadd.f32 %v551, %v552
      %v554 = vsel %vm263, %v477, 0.0
      %v555 = vadd.f32 %v553, %v554
      %v556 = vsel %vm263, %v478, 0.0
      %v557 = vadd.f32 %v555, %v556
      %v558 = vsel %vm263, %v479, 0.0
      %v559 = vadd.f32 %v557, %v558
      %v560 = vsel %vm263, %v480, 0.0
      %v561 = vadd.f32 %v559, %v560
      %v562 = vsel %vm263, %v481, 0.0
      %v563 = vadd.f32 %v561, %v562
      %v564 = vsel %vm263, %v482, 0.0
      %v565 = vadd.f32 %v563, %v564
      %v566 = vsel %vm263, %v483, 0.0
      %v567 = vadd.f32 %v565, %v566
      %v568 = vsel %vm263, %v484, 0.0
      %v569 = vadd.f32 %v567, %v568
      %v570 = vsel %vm263, %v485, 0.0
      %v571 = vadd.f32 %v569, %v570
      %v572 = vsel %vm263, %v486, 0.0
      %v573 = vadd.f32 %v571, %v572
      %v574 = vsel %vm263, %v487, 0.0
      %v575 = vadd.f32 %v573, %v574
      %v576 = vsel %vm263, %v488, 0.0
      %v577 = vadd.f32 %v575, %v576
      %v578 = vsel %vm263, %v489, 0.0
      %v579 = vadd.f32 %v577, %v578
      %v580 = vsel %vm263, %v490, 0.0
      %v581 = vadd.f32 %v579, %v580
      %v582 = vsel %vm263, %v491, 0.0
      %v583 = vadd.f32 %v581, %v582
      %v584 = vsel %vm263, %v492, 0.0
      %v585 = vadd.f32 %v583, %v584
      %v586 = vsel %vm263, %v493, 0.0
      %v587 = vadd.f32 %v585, %v586
      %v588 = vsel %vm263, %v494, 0.0
      %v589 = vadd.f32 %v587, %v588
      %v590 = vsel %vm263, %v495, 0.0
      %v591 = vadd.f32 %v589, %v590
      %v592 = vsel %vm263, %v496, 0.0
      %v593 = vadd.f32 %v591, %v592
      %v594 = vsel %vm263, %v497, 0.0
      %v595 = vadd.f32 %v593, %v594
      %v596 = vsel %vm263, %v498, 0.0
      %v597 = vadd.f32 %v595, %v596
      %v598 = vsel %vm263, %v499, 0.0
      %v599 = vadd.f32 %v597, %v598
      %v600 = vsel %vm263, %v500, 0.0
      %v601 = vadd.f32 %v599, %v600
      %v602 = vsel %vm263, %v501, 0.0
      %v603 = vadd.f32 %v601, %v602
      %v604 = vsel %vm263, %v502, 0.0
      %v605 = vadd.f32 %v603, %v604
      %v606 = vsel %vm263, %v503, 0.0
      %v607 = vadd.f32 %v605, %v606
      %v608 = vsel %vm263, %v504, 0.0
      %v609 = vadd.f32 %v607, %v608
      %v610 = vsel %vm263, %v505, 0.0
      %v611 = vadd.f32 %v609, %v610
      %v612 = vsel %vm263, %v506, 0.0
      %v613 = vadd.f32 %v611, %v612
      %v614 = vsel %vm263, %v507, 0.0
      %v615 = vadd.f32 %v613, %v614
      %v616 = vsel %vm263, %v508, 0.0
      %v617 = vadd.f32 %v615, %v616
      %v618 = vsel %vm263, %v509, 0.0
      %v619 = vadd.f32 %v617, %v618
      %v620 = vsel %vm263, %v510, 0.0
      %v621 = vadd.f32 %v619, %v620
      %v622 = vsel %vm263, %v511, 0.0
      %v623 = vadd.f32 %v621, %v622
      %v624 = vsel %vm263, %v512, 0.0
      %v625 = vadd.f32 %v623, %v624
      %v626 = vsel %vm263, %v513, 0.0
      %v627 = vadd.f32 %v625, %v626
      %v628 = vsel %vm263, %v514, 0.0
      %v629 = vadd.f32 %v627, %v628
      %v630 = vsel %vm263, %v515, 0.0
      %v631 = vadd.f32 %v629, %v630
      %v632 = vsel %vm263, %v516, 0.0
      %v633 = vadd.f32 %v631, %v632
      %v634 = vsel %vm263, %v517, 0.0
      %v635 = vadd.f32 %v633, %v634
      %v636 = vsel %vm263, %v518, 0.0
      %v637 = vadd.f32 %v635, %v636
      %v638 = vsel %vm263, %v519, 0.0
      %v639 = vadd.f32 %v637, %v638
      %v640 = vsel %vm263, %v520, 0.0
      %v641 = vadd.f32 %v639, %v640
      %v642 = vsel %vm263, %v521, 0.0
      %v643 = vadd.f32 %v641, %v642
      %v644 = vsel %vm263, %v522, 0.0
      %v645 = vadd.f32 %v643, %v644
      %v646 = vsel %vm263, %v523, 0.0
      %v647 = vadd.f32 %v645, %v646
      %v648 = vsel %vm263, %v524, 0.0
      %v649 = vadd.f32 %v647, %v648
      %v650 = vsel %vm263, %v525, 0.0
      %v651 = vadd.f32 %v649, %v650
      %v652 = vsel %vm263, %v526, 0.0
      %v653 = vadd.f32 %v651, %v652
      %v654 = vrot.slane %v653, 4
      %v655 = vadd.f32 %v653, %v654
      %v656 = vrot.slane %v655, 2
      %v657 = vadd.f32 %v655, %v656
      %v658 = vrot.slane %v657, 1
      %v659 = vadd.f32 %v657, %v658
      %v660 = vmul.f32 %v659, %v397
      %v661 = vadd.f32 %v660, 1e-05
      %v662 = vrsqrt.pop %v661
      %v663 = vmul.f32 %v399, %v662
      %v664 = vmul.f32 %v400, %v662
      %v665 = vmul.f32 %v401, %v662
      %v666 = vmul.f32 %v402, %v662
      %v667 = vmul.f32 %v403, %v662
      %v668 = vmul.f32 %v404, %v662
      %v669 = vmul.f32 %v405, %v662
      %v670 = vmul.f32 %v406, %v662
      %v671 = vmul.f32 %v407, %v662
      %v672 = vmul.f32 %v408, %v662
      %v673 = vmul.f32 %v409, %v662
      %v674 = vmul.f32 %v410, %v662
      %v675 = vmul.f32 %v411, %v662
      %v676 = vmul.f32 %v412, %v662
      %v677 = vmul.f32 %v413, %v662
      %v678 = vmul.f32 %v414, %v662
      %v679 = vmul.f32 %v415, %v662
      %v680 = vmul.f32 %v416, %v662
      %v681 = vmul.f32 %v417, %v662
      %v682 = vmul.f32 %v418, %v662
      %v683 = vmul.f32 %v419, %v662
      %v684 = vmul.f32 %v420, %v662
      %v685 = vmul.f32 %v421, %v662
      %v686 = vmul.f32 %v422, %v662
      %v687 = vmul.f32 %v423, %v662
      %v688 = vmul.f32 %v424, %v662
      %v689 = vmul.f32 %v425, %v662
      %v690 = vmul.f32 %v426, %v662
      %v691 = vmul.f32 %v427, %v662
      %v692 = vmul.f32 %v428, %v662
      %v693 = vmul.f32 %v429, %v662
      %v694 = vmul.f32 %v430, %v662
      %v695 = vmul.f32 %v431, %v662
      %v696 = vmul.f32 %v432, %v662
      %v697 = vmul.f32 %v433, %v662
      %v698 = vmul.f32 %v434, %v662
      %v699 = vmul.f32 %v435, %v662
      %v700 = vmul.f32 %v436, %v662
      %v701 = vmul.f32 %v437, %v662
      %v702 = vmul.f32 %v438, %v662
      %v703 = vmul.f32 %v439, %v662
      %v704 = vmul.f32 %v440, %v662
      %v705 = vmul.f32 %v441, %v662
      %v706 = vmul.f32 %v442, %v662
      %v707 = vmul.f32 %v443, %v662
      %v708 = vmul.f32 %v444, %v662
      %v709 = vmul.f32 %v445, %v662
      %v710 = vmul.f32 %v446, %v662
      %v711 = vmul.f32 %v447, %v662
      %v712 = vmul.f32 %v448, %v662
      %v713 = vmul.f32 %v449, %v662
      %v714 = vmul.f32 %v450, %v662
      %v715 = vmul.f32 %v451, %v662
      %v716 = vmul.f32 %v452, %v662
      %v717 = vmul.f32 %v453, %v662
      %v718 = vmul.f32 %v454, %v662
      %v719 = vmul.f32 %v455, %v662
      %v720 = vmul.f32 %v456, %v662
      %v721 = vmul.f32 %v457, %v662
      %v722 = vmul.f32 %v458, %v662
      %v723 = vmul.f32 %v459, %v662
      %v724 = vmul.f32 %v460, %v662
      %v725 = vmul.f32 %v461, %v662
      %v726 = vmul.f32 %v462, %v662
      %v727 = vld [vmem:[%s190] sm:$0x1]
      %v729 = vlaneseq
      %v730 = vshrl.u32 %v729, 7
      %v731 = vsub.s32 0, %v730
      %v732 = vrot.slane %v727, %v731
      %v734 = vmul.f32 %v732, %v663
      %v735 = vmul.f32 %v732, %v664
      %v736 = vmul.f32 %v732, %v665
      %v737 = vmul.f32 %v732, %v666
      %v738 = vmul.f32 %v732, %v667
      %v739 = vmul.f32 %v732, %v668
      %v740 = vmul.f32 %v732, %v669
      %v741 = vmul.f32 %v732, %v670
      %v742 = vmul.f32 %v732, %v671
      %v743 = vmul.f32 %v732, %v672
      %v744 = vmul.f32 %v732, %v673
      %v745 = vmul.f32 %v732, %v674
      %v746 = vmul.f32 %v732, %v675
      %v747 = vmul.f32 %v732, %v676
      %v748 = vmul.f32 %v732, %v677
      %v749 = vmul.f32 %v732, %v678
      %v750 = vmul.f32 %v732, %v679
      %v751 = vmul.f32 %v732, %v680
      %v752 = vmul.f32 %v732, %v681
      %v753 = vmul.f32 %v732, %v682
      %v754 = vmul.f32 %v732, %v683
      %v755 = vmul.f32 %v732, %v684
      %v756 = vmul.f32 %v732, %v685
      %v757 = vmul.f32 %v732, %v686
      %v758 = vmul.f32 %v732, %v687
      %v759 = vmul.f32 %v732, %v688
      %v760 = vmul.f32 %v732, %v689
      %v761 = vmul.f32 %v732, %v690
      %v762 = vmul.f32 %v732, %v691
      %v763 = vmul.f32 %v732, %v692
      %v764 = vmul.f32 %v732, %v693
      %v765 = vmul.f32 %v732, %v694
      %v766 = vmul.f32 %v732, %v695
      %v767 = vmul.f32 %v732, %v696
      %v768 = vmul.f32 %v732, %v697
      %v769 = vmul.f32 %v732, %v698
      %v770 = vmul.f32 %v732, %v699
      %v771 = vmul.f32 %v732, %v700
      %v772 = vmul.f32 %v732, %v701
      %v773 = vmul.f32 %v732, %v702
      %v774 = vmul.f32 %v732, %v703
      %v775 = vmul.f32 %v732, %v704
      %v776 = vmul.f32 %v732, %v705
      %v777 = vmul.f32 %v732, %v706
      %v778 = vmul.f32 %v732, %v707
      %v779 = vmul.f32 %v732, %v708
      %v780 = vmul.f32 %v732, %v709
      %v781 = vmul.f32 %v732, %v710
      %v782 = vmul.f32 %v732, %v711
      %v783 = vmul.f32 %v732, %v712
      %v784 = vmul.f32 %v732, %v713
      %v785 = vmul.f32 %v732, %v714
      %v786 = vmul.f32 %v732, %v715
      %v787 = vmul.f32 %v732, %v716
      %v788 = vmul.f32 %v732, %v717
      %v789 = vmul.f32 %v732, %v718
      %v790 = vmul.f32 %v732, %v719
      %v791 = vmul.f32 %v732, %v720
      %v792 = vmul.f32 %v732, %v721
      %v793 = vmul.f32 %v732, %v722
      %v794 = vmul.f32 %v732, %v723
      %v795 = vmul.f32 %v732, %v724
      %v796 = vmul.f32 %v732, %v725
      %v797 = vmul.f32 %v732, %v726
      %v798 = vld [vmem:[%s193] sm:$0x1]
      %v800 = vlaneseq
      %v801 = vshrl.u32 %v800, 7
      %v802 = vsub.s32 0, %v801
      %v803 = vrot.slane %v798, %v802
      %v805 = vadd.f32 %v734, %v803
      %v806 = vadd.f32 %v735, %v803
      %v807 = vadd.f32 %v736, %v803
      %v808 = vadd.f32 %v737, %v803
      %v809 = vadd.f32 %v738, %v803
      %v810 = vadd.f32 %v739, %v803
      %v811 = vadd.f32 %v740, %v803
      %v812 = vadd.f32 %v741, %v803
      %v813 = vadd.f32 %v742, %v803
      %v814 = vadd.f32 %v743, %v803
      %v815 = vadd.f32 %v744, %v803
      %v816 = vadd.f32 %v745, %v803
      %v817 = vadd.f32 %v746, %v803
      %v818 = vadd.f32 %v747, %v803
      %v819 = vadd.f32 %v748, %v803
      %v820 = vadd.f32 %v749, %v803
      %v821 = vadd.f32 %v750, %v803
      %v822 = vadd.f32 %v751, %v803
      %v823 = vadd.f32 %v752, %v803
      %v824 = vadd.f32 %v753, %v803
      %v825 = vadd.f32 %v754, %v803
      %v826 = vadd.f32 %v755, %v803
      %v827 = vadd.f32 %v756, %v803
      %v828 = vadd.f32 %v757, %v803
      %v829 = vadd.f32 %v758, %v803
      %v830 = vadd.f32 %v759, %v803
      %v831 = vadd.f32 %v760, %v803
      %v832 = vadd.f32 %v761, %v803
      %v833 = vadd.f32 %v762, %v803
      %v834 = vadd.f32 %v763, %v803
      %v835 = vadd.f32 %v764, %v803
      %v836 = vadd.f32 %v765, %v803
      %v837 = vadd.f32 %v766, %v803
      %v838 = vadd.f32 %v767, %v803
      %v839 = vadd.f32 %v768, %v803
      %v840 = vadd.f32 %v769, %v803
      %v841 = vadd.f32 %v770, %v803
      %v842 = vadd.f32 %v771, %v803
      %v843 = vadd.f32 %v772, %v803
      %v844 = vadd.f32 %v773, %v803
      %v845 = vadd.f32 %v774, %v803
      %v846 = vadd.f32 %v775, %v803
      %v847 = vadd.f32 %v776, %v803
      %v848 = vadd.f32 %v777, %v803
      %v849 = vadd.f32 %v778, %v803
      %v850 = vadd.f32 %v779, %v803
      %v851 = vadd.f32 %v780, %v803
      %v852 = vadd.f32 %v781, %v803
      %v853 = vadd.f32 %v782, %v803
      %v854 = vadd.f32 %v783, %v803
      %v855 = vadd.f32 %v784, %v803
      %v856 = vadd.f32 %v785, %v803
      %v857 = vadd.f32 %v786, %v803
      %v858 = vadd.f32 %v787, %v803
      %v859 = vadd.f32 %v788, %v803
      %v860 = vadd.f32 %v789, %v803
      %v861 = vadd.f32 %v790, %v803
      %v862 = vadd.f32 %v791, %v803
      %v863 = vadd.f32 %v792, %v803
      %v864 = vadd.f32 %v793, %v803
      %v865 = vadd.f32 %v794, %v803
      %v866 = vadd.f32 %v795, %v803
      %v867 = vadd.f32 %v796, %v803
      %v868 = vadd.f32 %v797, %v803
      %vm869 = vcmp.ge.f32.partialorder %v805, 0.0
      %vm870 = vcmp.ge.f32.partialorder %v806, 0.0
      %vm871 = vcmp.ge.f32.partialorder %v807, 0.0
      %vm872 = vcmp.ge.f32.partialorder %v808, 0.0
      %vm873 = vcmp.ge.f32.partialorder %v809, 0.0
      %vm874 = vcmp.ge.f32.partialorder %v810, 0.0
      %vm875 = vcmp.ge.f32.partialorder %v811, 0.0
      %vm876 = vcmp.ge.f32.partialorder %v812, 0.0
      %vm877 = vcmp.ge.f32.partialorder %v813, 0.0
      %vm878 = vcmp.ge.f32.partialorder %v814, 0.0
      %vm879 = vcmp.ge.f32.partialorder %v815, 0.0
      %vm880 = vcmp.ge.f32.partialorder %v816, 0.0
      %vm881 = vcmp.ge.f32.partialorder %v817, 0.0
      %vm882 = vcmp.ge.f32.partialorder %v818, 0.0
      %vm883 = vcmp.ge.f32.partialorder %v819, 0.0
      %vm884 = vcmp.ge.f32.partialorder %v820, 0.0
      %vm885 = vcmp.ge.f32.partialorder %v821, 0.0
      %vm886 = vcmp.ge.f32.partialorder %v822, 0.0
      %vm887 = vcmp.ge.f32.partialorder %v823, 0.0
      %vm888 = vcmp.ge.f32.partialorder %v824, 0.0
      %vm889 = vcmp.ge.f32.partialorder %v825, 0.0
      %vm890 = vcmp.ge.f32.partialorder %v826, 0.0
      %vm891 = vcmp.ge.f32.partialorder %v827, 0.0
      %vm892 = vcmp.ge.f32.partialorder %v828, 0.0
      %vm893 = vcmp.ge.f32.partialorder %v829, 0.0
      %vm894 = vcmp.ge.f32.partialorder %v830, 0.0
      %vm895 = vcmp.ge.f32.partialorder %v831, 0.0
      %vm896 = vcmp.ge.f32.partialorder %v832, 0.0
      %vm897 = vcmp.ge.f32.partialorder %v833, 0.0
      %vm898 = vcmp.ge.f32.partialorder %v834, 0.0
      %vm899 = vcmp.ge.f32.partialorder %v835, 0.0
      %vm900 = vcmp.ge.f32.partialorder %v836, 0.0
      %vm901 = vcmp.ge.f32.partialorder %v837, 0.0
      %vm902 = vcmp.ge.f32.partialorder %v838, 0.0
      %vm903 = vcmp.ge.f32.partialorder %v839, 0.0
      %vm904 = vcmp.ge.f32.partialorder %v840, 0.0
      %vm905 = vcmp.ge.f32.partialorder %v841, 0.0
      %vm906 = vcmp.ge.f32.partialorder %v842, 0.0
      %vm907 = vcmp.ge.f32.partialorder %v843, 0.0
      %vm908 = vcmp.ge.f32.partialorder %v844, 0.0
      %vm909 = vcmp.ge.f32.partialorder %v845, 0.0
      %vm910 = vcmp.ge.f32.partialorder %v846, 0.0
      %vm911 = vcmp.ge.f32.partialorder %v847, 0.0
      %vm912 = vcmp.ge.f32.partialorder %v848, 0.0
      %vm913 = vcmp.ge.f32.partialorder %v849, 0.0
      %vm914 = vcmp.ge.f32.partialorder %v850, 0.0
      %vm915 = vcmp.ge.f32.partialorder %v851, 0.0
      %vm916 = vcmp.ge.f32.partialorder %v852, 0.0
      %vm917 = vcmp.ge.f32.partialorder %v853, 0.0
      %vm918 = vcmp.ge.f32.partialorder %v854, 0.0
      %vm919 = vcmp.ge.f32.partialorder %v855, 0.0
      %vm920 = vcmp.ge.f32.partialorder %v856, 0.0
      %vm921 = vcmp.ge.f32.partialorder %v857, 0.0
      %vm922 = vcmp.ge.f32.partialorder %v858, 0.0
      %vm923 = vcmp.ge.f32.partialorder %v859, 0.0
      %vm924 = vcmp.ge.f32.partialorder %v860, 0.0
      %vm925 = vcmp.ge.f32.partialorder %v861, 0.0
      %vm926 = vcmp.ge.f32.partialorder %v862, 0.0
      %vm927 = vcmp.ge.f32.partialorder %v863, 0.0
      %vm928 = vcmp.ge.f32.partialorder %v864, 0.0
      %vm929 = vcmp.ge.f32.partialorder %v865, 0.0
      %vm930 = vcmp.ge.f32.partialorder %v866, 0.0
      %vm931 = vcmp.ge.f32.partialorder %v867, 0.0
      %vm932 = vcmp.ge.f32.partialorder %v868, 0.0
      %v933 = vmul.f32 %v805, 0.2
      %v934 = vmul.f32 %v806, 0.2
      %v935 = vmul.f32 %v807, 0.2
      %v936 = vmul.f32 %v808, 0.2
      %v937 = vmul.f32 %v809, 0.2
      %v938 = vmul.f32 %v810, 0.2
      %v939 = vmul.f32 %v811, 0.2
      %v940 = vmul.f32 %v812, 0.2
      %v941 = vmul.f32 %v813, 0.2
      %v942 = vmul.f32 %v814, 0.2
      %v943 = vmul.f32 %v815, 0.2
      %v944 = vmul.f32 %v816, 0.2
      %v945 = vmul.f32 %v817, 0.2
      %v946 = vmul.f32 %v818, 0.2
      %v947 = vmul.f32 %v819, 0.2
      %v948 = vmul.f32 %v820, 0.2
      %v949 = vmul.f32 %v821, 0.2
      %v950 = vmul.f32 %v822, 0.2
      %v951 = vmul.f32 %v823, 0.2
      %v952 = vmul.f32 %v824, 0.2
      %v953 = vmul.f32 %v825, 0.2
      %v954 = vmul.f32 %v826, 0.2
      %v955 = vmul.f32 %v827, 0.2
      %v956 = vmul.f32 %v828, 0.2
      %v957 = vmul.f32 %v829, 0.2
      %v958 = vmul.f32 %v830, 0.2
      %v959 = vmul.f32 %v831, 0.2
      %v960 = vmul.f32 %v832, 0.2
      %v961 = vmul.f32 %v833, 0.2
      %v962 = vmul.f32 %v834, 0.2
      %v963 = vmul.f32 %v835, 0.2
      %v964 = vmul.f32 %v836, 0.2
      %v965 = vmul.f32 %v837, 0.2
      %v966 = vmul.f32 %v838, 0.2
      %v967 = vmul.f32 %v839, 0.2
      %v968 = vmul.f32 %v840, 0.2
      %v969 = vmul.f32 %v841, 0.2
      %v970 = vmul.f32 %v842, 0.2
      %v971 = vmul.f32 %v843, 0.2
      %v972 = vmul.f32 %v844, 0.2
      %v973 = vmul.f32 %v845, 0.2
      %v974 = vmul.f32 %v846, 0.2
      %v975 = vmul.f32 %v847, 0.2
      %v976 = vmul.f32 %v848, 0.2
      %v977 = vmul.f32 %v849, 0.2
      %v978 = vmul.f32 %v850, 0.2
      %v979 = vmul.f32 %v851, 0.2
      %v980 = vmul.f32 %v852, 0.2
      %v981 = vmul.f32 %v853, 0.2
      %v982 = vmul.f32 %v854, 0.2
      %v983 = vmul.f32 %v855, 0.2
      %v984 = vmul.f32 %v856, 0.2
      %v985 = vmul.f32 %v857, 0.2
      %v986 = vmul.f32 %v858, 0.2
      %v987 = vmul.f32 %v859, 0.2
      %v988 = vmul.f32 %v860, 0.2
      %v989 = vmul.f32 %v861, 0.2
      %v990 = vmul.f32 %v862, 0.2
      %v991 = vmul.f32 %v863, 0.2
      %v992 = vmul.f32 %v864, 0.2
      %v993 = vmul.f32 %v865, 0.2
      %v994 = vmul.f32 %v866, 0.2
      %v995 = vmul.f32 %v867, 0.2
      %v996 = vmul.f32 %v868, 0.2
      %v997 = vsel %vm869, %v805, %v933
      %v998 = vsel %vm870, %v806, %v934
      %v999 = vsel %vm871, %v807, %v935
      %v1000 = vsel %vm872, %v808, %v936
      %v1001 = vsel %vm873, %v809, %v937
      %v1002 = vsel %vm874, %v810, %v938
      %v1003 = vsel %vm875, %v811, %v939
      %v1004 = vsel %vm876, %v812, %v940
      %v1005 = vsel %vm877, %v813, %v941
      %v1006 = vsel %vm878, %v814, %v942
      %v1007 = vsel %vm879, %v815, %v943
      %v1008 = vsel %vm880, %v816, %v944
      %v1009 = vsel %vm881, %v817, %v945
      %v1010 = vsel %vm882, %v818, %v946
      %v1011 = vsel %vm883, %v819, %v947
      %v1012 = vsel %vm884, %v820, %v948
      %v1013 = vsel %vm885, %v821, %v949
      %v1014 = vsel %vm886, %v822, %v950
      %v1015 = vsel %vm887, %v823, %v951
      %v1016 = vsel %vm888, %v824, %v952
      %v1017 = vsel %vm889, %v825, %v953
      %v1018 = vsel %vm890, %v826, %v954
      %v1019 = vsel %vm891, %v827, %v955
      %v1020 = vsel %vm892, %v828, %v956
      %v1021 = vsel %vm893, %v829, %v957
      %v1022 = vsel %vm894, %v830, %v958
      %v1023 = vsel %vm895, %v831, %v959
      %v1024 = vsel %vm896, %v832, %v960
      %v1025 = vsel %vm897, %v833, %v961
      %v1026 = vsel %vm898, %v834, %v962
      %v1027 = vsel %vm899, %v835, %v963
      %v1028 = vsel %vm900, %v836, %v964
      %v1029 = vsel %vm901, %v837, %v965
      %v1030 = vsel %vm902, %v838, %v966
      %v1031 = vsel %vm903, %v839, %v967
      %v1032 = vsel %vm904, %v840, %v968
      %v1033 = vsel %vm905, %v841, %v969
      %v1034 = vsel %vm906, %v842, %v970
      %v1035 = vsel %vm907, %v843, %v971
      %v1036 = vsel %vm908, %v844, %v972
      %v1037 = vsel %vm909, %v845, %v973
      %v1038 = vsel %vm910, %v846, %v974
      %v1039 = vsel %vm911, %v847, %v975
      %v1040 = vsel %vm912, %v848, %v976
      %v1041 = vsel %vm913, %v849, %v977
      %v1042 = vsel %vm914, %v850, %v978
      %v1043 = vsel %vm915, %v851, %v979
      %v1044 = vsel %vm916, %v852, %v980
      %v1045 = vsel %vm917, %v853, %v981
      %v1046 = vsel %vm918, %v854, %v982
      %v1047 = vsel %vm919, %v855, %v983
      %v1048 = vsel %vm920, %v856, %v984
      %v1049 = vsel %vm921, %v857, %v985
      %v1050 = vsel %vm922, %v858, %v986
      %v1051 = vsel %vm923, %v859, %v987
      %v1052 = vsel %vm924, %v860, %v988
      %v1053 = vsel %vm925, %v861, %v989
      %v1054 = vsel %vm926, %v862, %v990
      %v1055 = vsel %vm927, %v863, %v991
      %v1056 = vsel %vm928, %v864, %v992
      %v1057 = vsel %vm929, %v865, %v993
      %v1058 = vsel %vm930, %v866, %v994
      %v1059 = vsel %vm931, %v867, %v995
      %v1060 = vsel %vm932, %v868, %v996
      %1061 = vst.msk [vmem:[%s198] sm:$0xff] %vm263, %v997
      %1062 = vst.msk [vmem:[%s198 + $0x8] sm:$0xff] %vm263, %v998
      %1063 = vst.msk [vmem:[%s198 + $0x10] sm:$0xff] %vm263, %v999
      %1064 = vst.msk [vmem:[%s198 + $0x18] sm:$0xff] %vm263, %v1000
      %1065 = vst.msk [vmem:[%s198 + $0x20] sm:$0xff] %vm263, %v1001
      %1066 = vst.msk [vmem:[%s198 + $0x28] sm:$0xff] %vm263, %v1002
      %1067 = vst.msk [vmem:[%s198 + $0x30] sm:$0xff] %vm263, %v1003
      %1068 = vst.msk [vmem:[%s198 + $0x38] sm:$0xff] %vm263, %v1004
      %1069 = vst.msk [vmem:[%s198 + $0x40] sm:$0xff] %vm263, %v1005
      %1070 = vst.msk [vmem:[%s198 + $0x48] sm:$0xff] %vm263, %v1006
      %1071 = vst.msk [vmem:[%s198 + $0x50] sm:$0xff] %vm263, %v1007
      %1072 = vst.msk [vmem:[%s198 + $0x58] sm:$0xff] %vm263, %v1008
      %1073 = vst.msk [vmem:[%s198 + $0x60] sm:$0xff] %vm263, %v1009
      %1074 = vst.msk [vmem:[%s198 + $0x68] sm:$0xff] %vm263, %v1010
      %1075 = vst.msk [vmem:[%s198 + $0x70] sm:$0xff] %vm263, %v1011
      %1076 = vst.msk [vmem:[%s198 + $0x78] sm:$0xff] %vm263, %v1012
      %1077 = vst.msk [vmem:[%s198 + $0x80] sm:$0xff] %vm263, %v1013
      %1078 = vst.msk [vmem:[%s198 + $0x88] sm:$0xff] %vm263, %v1014
      %1079 = vst.msk [vmem:[%s198 + $0x90] sm:$0xff] %vm263, %v1015
      %1080 = vst.msk [vmem:[%s198 + $0x98] sm:$0xff] %vm263, %v1016
      %1081 = vst.msk [vmem:[%s198 + $0xa0] sm:$0xff] %vm263, %v1017
      %1082 = vst.msk [vmem:[%s198 + $0xa8] sm:$0xff] %vm263, %v1018
      %1083 = vst.msk [vmem:[%s198 + $0xb0] sm:$0xff] %vm263, %v1019
      %1084 = vst.msk [vmem:[%s198 + $0xb8] sm:$0xff] %vm263, %v1020
      %1085 = vst.msk [vmem:[%s198 + $0xc0] sm:$0xff] %vm263, %v1021
      %1086 = vst.msk [vmem:[%s198 + $0xc8] sm:$0xff] %vm263, %v1022
      %1087 = vst.msk [vmem:[%s198 + $0xd0] sm:$0xff] %vm263, %v1023
      %1088 = vst.msk [vmem:[%s198 + $0xd8] sm:$0xff] %vm263, %v1024
      %1089 = vst.msk [vmem:[%s198 + $0xe0] sm:$0xff] %vm263, %v1025
      %1090 = vst.msk [vmem:[%s198 + $0xe8] sm:$0xff] %vm263, %v1026
      %1091 = vst.msk [vmem:[%s198 + $0xf0] sm:$0xff] %vm263, %v1027
      %1092 = vst.msk [vmem:[%s198 + $0xf8] sm:$0xff] %vm263, %v1028
      %1093 = vst.msk [vmem:[%s198 + $0x100] sm:$0xff] %vm263, %v1029
      %1094 = vst.msk [vmem:[%s198 + $0x108] sm:$0xff] %vm263, %v1030
      %1095 = vst.msk [vmem:[%s198 + $0x110] sm:$0xff] %vm263, %v1031
      %1096 = vst.msk [vmem:[%s198 + $0x118] sm:$0xff] %vm263, %v1032
      %1097 = vst.msk [vmem:[%s198 + $0x120] sm:$0xff] %vm263, %v1033
      %1098 = vst.msk [vmem:[%s198 + $0x128] sm:$0xff] %vm263, %v1034
      %1099 = vst.msk [vmem:[%s198 + $0x130] sm:$0xff] %vm263, %v1035
      %1100 = vst.msk [vmem:[%s198 + $0x138] sm:$0xff] %vm263, %v1036
      %1101 = vst.msk [vmem:[%s198 + $0x140] sm:$0xff] %vm263, %v1037
      %1102 = vst.msk [vmem:[%s198 + $0x148] sm:$0xff] %vm263, %v1038
      %1103 = vst.msk [vmem:[%s198 + $0x150] sm:$0xff] %vm263, %v1039
      %1104 = vst.msk [vmem:[%s198 + $0x158] sm:$0xff] %vm263, %v1040
      %1105 = vst.msk [vmem:[%s198 + $0x160] sm:$0xff] %vm263, %v1041
      %1106 = vst.msk [vmem:[%s198 + $0x168] sm:$0xff] %vm263, %v1042
      %1107 = vst.msk [vmem:[%s198 + $0x170] sm:$0xff] %vm263, %v1043
      %1108 = vst.msk [vmem:[%s198 + $0x178] sm:$0xff] %vm263, %v1044
      %1109 = vst.msk [vmem:[%s198 + $0x180] sm:$0xff] %vm263, %v1045
      %1110 = vst.msk [vmem:[%s198 + $0x188] sm:$0xff] %vm263, %v1046
      %1111 = vst.msk [vmem:[%s198 + $0x190] sm:$0xff] %vm263, %v1047
      %1112 = vst.msk [vmem:[%s198 + $0x198] sm:$0xff] %vm263, %v1048
      %1113 = vst.msk [vmem:[%s198 + $0x1a0] sm:$0xff] %vm263, %v1049
      %1114 = vst.msk [vmem:[%s198 + $0x1a8] sm:$0xff] %vm263, %v1050
      %1115 = vst.msk [vmem:[%s198 + $0x1b0] sm:$0xff] %vm263, %v1051
      %1116 = vst.msk [vmem:[%s198 + $0x1b8] sm:$0xff] %vm263, %v1052
      %1117 = vst.msk [vmem:[%s198 + $0x1c0] sm:$0xff] %vm263, %v1053
      %1118 = vst.msk [vmem:[%s198 + $0x1c8] sm:$0xff] %vm263, %v1054
      %1119 = vst.msk [vmem:[%s198 + $0x1d0] sm:$0xff] %vm263, %v1055
      %1120 = vst.msk [vmem:[%s198 + $0x1d8] sm:$0xff] %vm263, %v1056
      %1121 = vst.msk [vmem:[%s198 + $0x1e0] sm:$0xff] %vm263, %v1057
      %1122 = vst.msk [vmem:[%s198 + $0x1e8] sm:$0xff] %vm263, %v1058
      %1123 = vst.msk [vmem:[%s198 + $0x1f0] sm:$0xff] %vm263, %v1059
      %1124 = vst.msk [vmem:[%s198 + $0x1f8] sm:$0xff] %vm263, %v1060
      %p1125 = scmp.lt.s32.totalorder %s14, 1
      %s1126 = scalar_select %p1125, %s14, 1
      %s1127 = smul.addr %s1126, 64
      %s1128 = smul.addr %s1127, 8
      %s1129 = scalar_lea.vmem %s3, %s1128
      // Predicated region
      $region33: #{apperance_model_style_forward.30} parent=31 // pred_check
        %p1130 = pneg %p110
      $region34: #{apperance_model_style_forward.30} parent=31 // pred_check_branch
        %1132 = sbr.rel (%p1130) target = $region36
      $region35: #{apperance_model_style_forward.30} parent=31 // pred_region
        _
      $region36: #{apperance_model_style_forward.30} parent=31 // pred_fallthru
        _
    $region32: #{apperance_model_style_forward.30} parent=5 // pred_fallthru
      _
    %p1133 = scmp.le.s32.totalorder 2, %s9
    // Predicated region
    $region37: #{apperance_model_style_forward.30} parent=5 // pred_check
      %p1134 = pneg %p1133
    $region38: #{apperance_model_style_forward.30} parent=5 // pred_check_branch
      %1136 = sbr.rel (%p1134) target = $region40
    $region39: #{apperance_model_style_forward.30} parent=5 // pred_region
      %s1137 = ssub.s32 %s9, 2
      // Predicated region
      $region41: #{apperance_model_style_forward.30} parent=39 // pred_check
        %p1138 = pneg %p116
      $region42: #{apperance_model_style_forward.30} parent=39 // pred_check_branch
        %1140 = sbr.rel (%p1138) target = $region44
      $region43: #{apperance_model_style_forward.30} parent=39 // pred_region
        %p1141 = scmp.lt.s32.totalorder %s15, 1
        %s1142 = scalar_select %p1141, %s15, 1
        %s1143 = smul.addr %s1142, 64
        %s1144 = smul.addr %s1143, 8
        %s1145 = scalar_lea.vmem %s3, %s1144
      $region44: #{apperance_model_style_forward.30} parent=39 // pred_fallthru
        _
    $region40: #{apperance_model_style_forward.30} parent=5 // pred_fallthru
      _
  $region6: #{apperance_model_style_forward.30} parent=0 // loop_footer
    %s13 = sadd.s32 1, %s9
  $region7: #{apperance_model_style_forward.30} parent=0 // loop_footer_branch
    %8 = sbr.rel target = $region3
  $region8: #{apperance_model_style_forward.30} parent=0 // loop_exit
    _

// kernel: apperance_model_style_forward.31
$region0: #{apperance_model_style_forward.31}
  #allocation0 [shape = 'u32[]', space=smem, size = 0x4, offset = 0x4, fixed_abs, tag = 'smem constant byte address 0x4 - core index']
  #allocation1 [shape = 'u32[144,128]{1,0:T(1,128)}', space=vmem, size = 0x12000, scoped, tag = 'internal scratch']
  %s0 = inlined_call_operand.vmem [shape: bf16[1024,54], index: 0, kind: input, shape index: {}]
  %s1 = inlined_call_operand.vmem [shape: bf16[54,128], index: 1, kind: input, shape index: {}]
  %s2 = inlined_call_operand.vmem [shape: f32[1,128], index: 2, kind: input, shape index: {}]
  %s3 = inlined_call_operand.vmem [shape: f32[1024,128], index: 3, kind: input, shape index: {}]
  %s4 = inlined_call_operand.vmem [shape: f32[1024,128], index: 4, kind: output, shape index: {}]
  %s5 = sld [smem:[#allocation0]]
  $region49: #{apperance_model_style_forward.31} parent=0
    _
  %s7 = ssub.s32 1, %s5
  %s8 = scalar_select 0, %s7, %s5
  loop: start=0, step=1, limit=4
  $region2: #{apperance_model_style_forward.31} parent=0 // loop_pre_header
    _
  $region3: #{apperance_model_style_forward.31} parent=0 // loop_header
    %s10 = sphi 0, %s14
    %p11 = scmp.ge.s32.totalorder %s10, 4
    %s20 = sphi 0, %s22
    %s23 = sphi 0, %s20
    %s24 = sphi 0, %s23
    %s40 = sphi 0, %s24
    %s44 = sphi 0, %s44
    %s46 = sphi 0, %s44
    %s47 = sphi 0, %s46
    %s61 = sphi 0, %s47
    %s65 = sphi 0, %s65
    %s67 = sphi 0, %s65
    %s68 = sphi 0, %s67
    %s82 = sphi 0, %s68
    %s88 = sphi 0, %s90
    %s91 = sphi 0, %s88
    %s92 = sphi 0, %s91
    %s108 = sphi 0, %s92
    %s114 = sphi 0, %s116
    %s117 = sphi 0, %s114
    %s118 = sphi 0, %s117
    %s134 = sphi 0, %s118
  $region4: #{apperance_model_style_forward.31} parent=0 // loop_header_branch
    %13 = sbr.rel (%p11) target = $region8
  $region5: #{apperance_model_style_forward.31} parent=0 // loop_body
    %s15 = ssub.s32 %s10, 1
    %s16 = ssub.s32 %s10, 2
    %s17 = sadd.s32 %s10, 1
    %s18 = ssub.s32 %s10, %s17
    %p19 = scmp.eq.s32.totalorder %s18, 0
    %s21 = sadd.s32 %s20, 1
    %s22 = scalar_select %p19, %s20, %s21
    %p25 = pneg %p19
    %p26 = scmp.eq.s32.totalorder %s10, 1
    %p27 = por %p25, %p26
    %p28 = scmp.ne.s32.totalorder %s20, %s23
    %p29 = scmp.eq.s32.totalorder %s10, 0
    %p30 = por %p28, %p29
    %p31 = scmp.ne.s32.totalorder %s20, %s23
    %p32 = scmp.eq.s32.totalorder %s15, 1
    %p33 = por %p31, %p32
    %p34 = scmp.ne.s32.totalorder %s23, %s24
    %p35 = scmp.eq.s32.totalorder %s15, 0
    %p36 = por %p34, %p35
    %p37 = scmp.ne.s32.totalorder %s23, %s24
    %p38 = scmp.eq.s32.totalorder %s16, 1
    %p39 = por %p37, %p38
    %p41 = scmp.ne.s32.totalorder %s24, %s40
    %p42 = scmp.eq.s32.totalorder %s16, 0
    %p43 = por %p41, %p42
    %s45 = sadd.s32 %s44, 1
    %p48 = scmp.eq.s32.totalorder %s10, 1
    %p49 = scmp.ne.s32.totalorder %s44, %s46
    %p50 = scmp.eq.s32.totalorder %s10, 0
    %p51 = por %p49, %p50
    %p52 = scmp.ne.s32.totalorder %s44, %s46
    %p53 = scmp.eq.s32.totalorder %s15, 1
    %p54 = por %p52, %p53
    %p55 = scmp.ne.s32.totalorder %s46, %s47
    %p56 = scmp.eq.s32.totalorder %s15, 0
    %p57 = por %p55, %p56
    %p58 = scmp.ne.s32.totalorder %s46, %s47
    %p59 = scmp.eq.s32.totalorder %s16, 1
    %p60 = por %p58, %p59
    %p62 = scmp.ne.s32.totalorder %s47, %s61
    %p63 = scmp.eq.s32.totalorder %s16, 0
    %p64 = por %p62, %p63
    %s66 = sadd.s32 %s65, 1
    %p69 = scmp.eq.s32.totalorder %s10, 1
    %p70 = scmp.ne.s32.totalorder %s65, %s67
    %p71 = scmp.eq.s32.totalorder %s10, 0
    %p72 = por %p70, %p71
    %p73 = scmp.ne.s32.totalorder %s65, %s67
    %p74 = scmp.eq.s32.totalorder %s15, 1
    %p75 = por %p73, %p74
    %p76 = scmp.ne.s32.totalorder %s67, %s68
    %p77 = scmp.eq.s32.totalorder %s15, 0
    %p78 = por %p76, %p77
    %p79 = scmp.ne.s32.totalorder %s67, %s68
    %p80 = scmp.eq.s32.totalorder %s16, 1
    %p81 = por %p79, %p80
    %p83 = scmp.ne.s32.totalorder %s68, %s82
    %p84 = scmp.eq.s32.totalorder %s16, 0
    %p85 = por %p83, %p84
    %s86 = ssub.s32 %s10, %s17
    %p87 = scmp.eq.s32.totalorder %s86, 0
    %s89 = sadd.s32 %s88, 1
    %s90 = scalar_select %p87, %s88, %s89
    %p93 = pneg %p87
    %p94 = scmp.eq.s32.totalorder %s10, 1
    %p95 = por %p93, %p94
    %p96 = scmp.ne.s32.totalorder %s88, %s91
    %p97 = scmp.eq.s32.totalorder %s10, 0
    %p98 = por %p96, %p97
    %p99 = scmp.ne.s32.totalorder %s88, %s91
    %p100 = scmp.eq.s32.totalorder %s15, 1
    %p101 = por %p99, %p100
    %p102 = scmp.ne.s32.totalorder %s91, %s92
    %p103 = scmp.eq.s32.totalorder %s15, 0
    %p104 = por %p102, %p103
    %p105 = scmp.ne.s32.totalorder %s91, %s92
    %p106 = scmp.eq.s32.totalorder %s16, 1
    %p107 = por %p105, %p106
    %p109 = scmp.ne.s32.totalorder %s92, %s108
    %p110 = scmp.eq.s32.totalorder %s16, 0
    %p111 = por %p109, %p110
    %s112 = ssub.s32 %s10, %s17
    %p113 = scmp.eq.s32.totalorder %s112, 0
    %s115 = sadd.s32 %s114, 1
    %s116 = scalar_select %p113, %s114, %s115
    %p119 = pneg %p113
    %p120 = scmp.eq.s32.totalorder %s10, 1
    %p121 = por %p119, %p120
    %p122 = scmp.ne.s32.totalorder %s114, %s117
    %p123 = scmp.eq.s32.totalorder %s10, 0
    %p124 = por %p122, %p123
    %p125 = scmp.ne.s32.totalorder %s114, %s117
    %p126 = scmp.eq.s32.totalorder %s15, 1
    %p127 = por %p125, %p126
    %p128 = scmp.ne.s32.totalorder %s117, %s118
    %p129 = scmp.eq.s32.totalorder %s15, 0
    %p130 = por %p128, %p129
    %p131 = scmp.ne.s32.totalorder %s117, %s118
    %p132 = scmp.eq.s32.totalorder %s16, 1
    %p133 = por %p131, %p132
    %p135 = scmp.ne.s32.totalorder %s118, %s134
    %p136 = scmp.eq.s32.totalorder %s16, 0
    %p137 = por %p135, %p136
    %p138 = scmp.le.s32.totalorder 1, %s10
    %p139 = scmp.lt.s32.totalorder %s10, 3
    %p140 = pnand %p138, %p139
    %p141 = pneg %p140
    // Predicated region
    $region9: #{apperance_model_style_forward.31} parent=5 // pred_check
      _
    $region10: #{apperance_model_style_forward.31} parent=5 // pred_check_branch
      %143 = sbr.rel (%p140) target = $region12
    $region11: #{apperance_model_style_forward.31} parent=5 // pred_region
      %s144 = ssub.s32 %s10, 1
      // Predicated region
      $region13: #{apperance_model_style_forward.31} parent=11 // pred_check
        %p145 = pneg %p57
      $region14: #{apperance_model_style_forward.31} parent=11 // pred_check_branch
        %147 = sbr.rel (%p145) target = $region16
      $region15: #{apperance_model_style_forward.31} parent=11 // pred_region
        _
      $region16: #{apperance_model_style_forward.31} parent=11 // pred_fallthru
        _
      // Predicated region
      $region17: #{apperance_model_style_forward.31} parent=11 // pred_check
        %p148 = pneg %p78
      $region18: #{apperance_model_style_forward.31} parent=11 // pred_check_branch
        %150 = sbr.rel (%p148) target = $region20
      $region19: #{apperance_model_style_forward.31} parent=11 // pred_region
        _
      $region20: #{apperance_model_style_forward.31} parent=11 // pred_fallthru
        _
    $region12: #{apperance_model_style_forward.31} parent=5 // pred_fallthru
      _
    %p151 = scmp.lt.s32.totalorder %s10, 2
    // Predicated region
    $region21: #{apperance_model_style_forward.31} parent=5 // pred_check
      %p152 = pneg %p151
    $region22: #{apperance_model_style_forward.31} parent=5 // pred_check_branch
      %154 = sbr.rel (%p152) target = $region24
    $region23: #{apperance_model_style_forward.31} parent=5 // pred_region
      // Predicated region
      $region25: #{apperance_model_style_forward.31} parent=23 // pred_check
        %p155 = pneg %p30
      $region26: #{apperance_model_style_forward.31} parent=23 // pred_check_branch
        %157 = sbr.rel (%p155) target = $region28
      $region27: #{apperance_model_style_forward.31} parent=23 // pred_region
        %s158 = smul.u32 64, %s10
        %p159 = scmp.lt.s32.totalorder %s158, 127
        %s160 = scalar_select %p159, %s158, 127
        %s161 = smul.addr %s160, 4
        %s162 = scalar_lea.vmem %s0, %s161
        %s163 = smul.u32 64, %s10
      $region28: #{apperance_model_style_forward.31} parent=23 // pred_fallthru
        _
      // Predicated region
      $region29: #{apperance_model_style_forward.31} parent=23 // pred_check
        %p164 = pneg %p98
      $region30: #{apperance_model_style_forward.31} parent=23 // pred_check_branch
        %166 = sbr.rel (%p164) target = $region32
      $region31: #{apperance_model_style_forward.31} parent=23 // pred_region
        %s167 = smul.u32 64, %s10
        %p168 = scmp.lt.s32.totalorder %s167, 127
        %s169 = scalar_select %p168, %s167, 127
        %s170 = smul.addr %s169, 8
        %s171 = scalar_lea.vmem %s3, %s170
        %s172 = smul.u32 64, %s10
      $region32: #{apperance_model_style_forward.31} parent=23 // pred_fallthru
        _
    $region24: #{apperance_model_style_forward.31} parent=5 // pred_fallthru
      _
    %p173 = scmp.le.s32.totalorder 1, %s10
    %p174 = scmp.lt.s32.totalorder %s10, 3
    %p175 = pnand %p173, %p174
    %p176 = pneg %p175
    // Predicated region
    $region33: #{apperance_model_style_forward.31} parent=5 // pred_check
      _
    $region34: #{apperance_model_style_forward.31} parent=5 // pred_check_branch
      %178 = sbr.rel (%p175) target = $region36
    $region35: #{apperance_model_style_forward.31} parent=5 // pred_region
      %s179 = ssub.s32 %s10, 1
      %s180 = smul.u32 64, %s15
      %p181 = scmp.lt.s32.totalorder %s180, 127
      %s182 = scalar_select %p181, %s180, 127
      %s183 = smul.addr %s182, 4
      %s184 = scalar_lea.vmem %s0, %s183
      %p185 = pneg %p36
      %p186 = pneg %p33
      %p187 = pneg %p57
      %p188 = pneg %p54
      %p189 = pneg %p78
      %p190 = pneg %p75
      %s191 = smul.u32 64, %s15
      %p192 = scmp.lt.s32.totalorder %s191, 127
      %s193 = scalar_select %p192, %s191, 127
      %s194 = smul.addr %s193, 8
      %s195 = scalar_lea.vmem %s3, %s194
      %p196 = pneg %p104
      %p197 = pneg %p101
      %p198 = pneg %p130
      %p199 = pneg %p127
      %s200 = smul.u32 64, %s15
      %p201 = scmp.lt.s32.totalorder %s200, 127
      %s202 = scalar_select %p201, %s200, 127
      %s203 = smul.addr %s202, 8
      %s204 = scalar_lea.vmem %s4, %s203
      %s205 = smul.u32 64, %s15
      %p206 = scmp.lt.s32.totalorder %s205, 127
      %s207 = scalar_select %p206, %s205, 127
      %s208 = smul.addr %s207, 4
      %s209 = scalar_lea.vmem %s0, %s208
      %s210 = smul.u32 64, %s15
      %s211 = smul.u32 64, %s15
      %p212 = scmp.lt.s32.totalorder %s211, 127
      %s213 = scalar_select %p212, %s211, 127
      %s214 = smul.addr %s213, 8
      %s215 = scalar_lea.vmem %s3, %s214
      %s216 = smul.u32 64, %s15
      %s217 = smul.u32 64, %s15
      %p218 = scmp.lt.s32.totalorder %s217, 127
      %s219 = scalar_select %p218, %s217, 127
      %s220 = smul.addr %s219, 8
      %s221 = scalar_lea.vmem %s4, %s220
      %s222 = smul.u32 64, %s15
      %v224 = vld [vmem:[%s209] sm:$0xf]
      %v225 = vld [vmem:[%s209 + $0x4] sm:$0xf]
      %v226 = vld [vmem:[%s209 + $0x8] sm:$0xf]
      %v227 = vld [vmem:[%s209 + $0xc] sm:$0xf]
      %v228 = vld [vmem:[%s209 + $0x10] sm:$0xf]
      %v229 = vld [vmem:[%s209 + $0x14] sm:$0xf]
      %v230 = vld [vmem:[%s209 + $0x18] sm:$0xf]
      %v231 = vld [vmem:[%s209 + $0x1c] sm:$0xf]
      %v232 = vld [vmem:[%s209 + $0x20] sm:$0xf]
      %v233 = vld [vmem:[%s209 + $0x24] sm:$0xf]
      %v234 = vld [vmem:[%s209 + $0x28] sm:$0xf]
      %v235 = vld [vmem:[%s209 + $0x2c] sm:$0xf]
      %v236 = vld [vmem:[%s209 + $0x30] sm:$0xf]
      %v237 = vld [vmem:[%s209 + $0x34] sm:$0xf]
      %v238 = vld [vmem:[%s209 + $0x38] sm:$0xf]
      %v239 = vld [vmem:[%s209 + $0x3c] sm:$0xf]
      %v240 = vld [vmem:[%s209 + $0x40] sm:$0xf]
      %v241 = vld [vmem:[%s209 + $0x44] sm:$0xf]
      %v242 = vld [vmem:[%s209 + $0x48] sm:$0xf]
      %v243 = vld [vmem:[%s209 + $0x4c] sm:$0xf]
      %v244 = vld [vmem:[%s209 + $0x50] sm:$0xf]
      %v245 = vld [vmem:[%s209 + $0x54] sm:$0xf]
      %v246 = vld [vmem:[%s209 + $0x58] sm:$0xf]
      %v247 = vld [vmem:[%s209 + $0x5c] sm:$0xf]
      %v248 = vld [vmem:[%s209 + $0x60] sm:$0xf]
      %v249 = vld [vmem:[%s209 + $0x64] sm:$0xf]
      %v250 = vld [vmem:[%s209 + $0x68] sm:$0xf]
      %v251 = vld [vmem:[%s209 + $0x6c] sm:$0xf]
      %v252 = vld [vmem:[%s209 + $0x70] sm:$0xf]
      %v253 = vld [vmem:[%s209 + $0x74] sm:$0xf]
      %v254 = vld [vmem:[%s209 + $0x78] sm:$0xf]
      %v255 = vld [vmem:[%s209 + $0x7c] sm:$0xf]
      %v256 = vld [vmem:[%s209 + $0x80] sm:$0xf]
      %v257 = vld [vmem:[%s209 + $0x84] sm:$0xf]
      %v258 = vld [vmem:[%s209 + $0x88] sm:$0xf]
      %v259 = vld [vmem:[%s209 + $0x8c] sm:$0xf]
      %v260 = vld [vmem:[%s209 + $0x90] sm:$0xf]
      %v261 = vld [vmem:[%s209 + $0x94] sm:$0xf]
      %v262 = vld [vmem:[%s209 + $0x98] sm:$0xf]
      %v263 = vld [vmem:[%s209 + $0x9c] sm:$0xf]
      %v264 = vld [vmem:[%s209 + $0xa0] sm:$0xf]
      %v265 = vld [vmem:[%s209 + $0xa4] sm:$0xf]
      %v266 = vld [vmem:[%s209 + $0xa8] sm:$0xf]
      %v267 = vld [vmem:[%s209 + $0xac] sm:$0xf]
      %v268 = vld [vmem:[%s209 + $0xb0] sm:$0xf]
      %v269 = vld [vmem:[%s209 + $0xb4] sm:$0xf]
      %v270 = vld [vmem:[%s209 + $0xb8] sm:$0xf]
      %v271 = vld [vmem:[%s209 + $0xbc] sm:$0xf]
      %v272 = vld [vmem:[%s209 + $0xc0] sm:$0xf]
      %v273 = vld [vmem:[%s209 + $0xc4] sm:$0xf]
      %v274 = vld [vmem:[%s209 + $0xc8] sm:$0xf]
      %v275 = vld [vmem:[%s209 + $0xcc] sm:$0xf]
      %v276 = vld [vmem:[%s209 + $0xd0] sm:$0xf]
      %v277 = vld [vmem:[%s209 + $0xd4] sm:$0xf]
      %v278 = vld [vmem:[%s209 + $0xd8] sm:$0xf]
      %v279 = vld [vmem:[%s209 + $0xdc] sm:$0xf]
      %v280 = vld [vmem:[%s209 + $0xe0] sm:$0xf]
      %v281 = vld [vmem:[%s209 + $0xe4] sm:$0xf]
      %v282 = vld [vmem:[%s209 + $0xe8] sm:$0xf]
      %v283 = vld [vmem:[%s209 + $0xec] sm:$0xf]
      %v284 = vld [vmem:[%s209 + $0xf0] sm:$0xf]
      %v285 = vld [vmem:[%s209 + $0xf4] sm:$0xf]
      %v286 = vld [vmem:[%s209 + $0xf8] sm:$0xf]
      %v287 = vld [vmem:[%s209 + $0xfc] sm:$0xf]
      %v288 = vld [vmem:[%s1] sm:$0xf]
      %v289 = vld [vmem:[%s1 + $0x4] sm:$0xf]
      %v290 = vld [vmem:[%s1 + $0x8] sm:$0xf]
      %v291 = vld [vmem:[%s1 + $0xc] sm:$0xf]
      %v292 = vld [vmem:[%s1 + $0x10] sm:$0xf]
      %v293 = vld [vmem:[%s1 + $0x14] sm:$0xf]
      %v294 = vld [vmem:[%s1 + $0x18] sm:$0x7]
      %v295 = vld [vmem:[%s2] sm:$0x1]
      %v297 = vlaneseq
      %v298 = vshrl.u32 %v297, 7
      %v299 = vsub.s32 0, %v298
      %v300 = vrot.slane %v295, %v299
      %v366 = vunpack.c.l.b16 %v224
      %v367 = vunpack.c.l.b16 %v225
      %v368 = vunpack.c.l.b16 %v226
      %v369 = vunpack.c.l.b16 %v227
      %v370 = vunpack.c.l.b16 %v228
      %v371 = vunpack.c.l.b16 %v229
      %v372 = vunpack.c.l.b16 %v230
      %v373 = vunpack.c.l.b16 %v231
      %v374 = vunpack.c.l.b16 %v232
      %v375 = vunpack.c.l.b16 %v233
      %v376 = vunpack.c.l.b16 %v234
      %v377 = vunpack.c.l.b16 %v235
      %v378 = vunpack.c.l.b16 %v236
      %v379 = vunpack.c.l.b16 %v237
      %v380 = vunpack.c.l.b16 %v238
      %v381 = vunpack.c.l.b16 %v239
      %v382 = vunpack.c.l.b16 %v240
      %v383 = vunpack.c.l.b16 %v241
      %v384 = vunpack.c.l.b16 %v242
      %v385 = vunpack.c.l.b16 %v243
      %v386 = vunpack.c.l.b16 %v244
      %v387 = vunpack.c.l.b16 %v245
      %v388 = vunpack.c.l.b16 %v246
      %v389 = vunpack.c.l.b16 %v247
      %v390 = vunpack.c.l.b16 %v248
      %v391 = vunpack.c.l.b16 %v249
      %v392 = vunpack.c.l.b16 %v250
      %v393 = vunpack.c.l.b16 %v251
      %v394 = vunpack.c.l.b16 %v252
      %v395 = vunpack.c.l.b16 %v253
      %v396 = vunpack.c.l.b16 %v254
      %v397 = vunpack.c.l.b16 %v255
      %v398 = vunpack.c.l.b16 %v256
      %v399 = vunpack.c.l.b16 %v257
      %v400 = vunpack.c.l.b16 %v258
      %v401 = vunpack.c.l.b16 %v259
      %v402 = vunpack.c.l.b16 %v260
      %v403 = vunpack.c.l.b16 %v261
      %v404 = vunpack.c.l.b16 %v262
      %v405 = vunpack.c.l.b16 %v263
      %v406 = vunpack.c.l.b16 %v264
      %v407 = vunpack.c.l.b16 %v265
      %v408 = vunpack.c.l.b16 %v266
      %v409 = vunpack.c.l.b16 %v267
      %v410 = vunpack.c.l.b16 %v268
      %v411 = vunpack.c.l.b16 %v269
      %v412 = vunpack.c.l.b16 %v270
      %v413 = vunpack.c.l.b16 %v271
      %v414 = vunpack.c.l.b16 %v272
      %v415 = vunpack.c.l.b16 %v273
      %v416 = vunpack.c.l.b16 %v274
      %v417 = vunpack.c.l.b16 %v275
      %v418 = vunpack.c.l.b16 %v276
      %v419 = vunpack.c.l.b16 %v277
      %v420 = vunpack.c.l.b16 %v278
      %v421 = vunpack.c.l.b16 %v279
      %v422 = vunpack.c.l.b16 %v280
      %v423 = vunpack.c.l.b16 %v281
      %v424 = vunpack.c.l.b16 %v282
      %v425 = vunpack.c.l.b16 %v283
      %v426 = vunpack.c.l.b16 %v284
      %v427 = vunpack.c.l.b16 %v285
      %v428 = vunpack.c.l.b16 %v286
      %v429 = vunpack.c.l.b16 %v287
      %v430 = vpack.c.b16 %v367, %v366
      %v431 = vpack.c.b16 %v369, %v368
      %v432 = vpack.c.b16 %v371, %v370
      %v433 = vpack.c.b16 %v373, %v372
      %v434 = vpack.c.b16 %v375, %v374
      %v435 = vpack.c.b16 %v377, %v376
      %v436 = vpack.c.b16 %v379, %v378
      %v437 = vpack.c.b16 %v381, %v380
      %v438 = vpack.c.b16 %v383, %v382
      %v439 = vpack.c.b16 %v385, %v384
      %v440 = vpack.c.b16 %v387, %v386
      %v441 = vpack.c.b16 %v389, %v388
      %v442 = vpack.c.b16 %v391, %v390
      %v443 = vpack.c.b16 %v393, %v392
      %v444 = vpack.c.b16 %v395, %v394
      %v445 = vpack.c.b16 %v397, %v396
      %v446 = vpack.c.b16 %v399, %v398
      %v447 = vpack.c.b16 %v401, %v400
      %v448 = vpack.c.b16 %v403, %v402
      %v449 = vpack.c.b16 %v405, %v404
      %v450 = vpack.c.b16 %v407, %v406
      %v451 = vpack.c.b16 %v409, %v408
      %v452 = vpack.c.b16 %v411, %v410
      %v453 = vpack.c.b16 %v413, %v412
      %v454 = vpack.c.b16 %v415, %v414
      %v455 = vpack.c.b16 %v417, %v416
      %v456 = vpack.c.b16 %v419, %v418
      %v457 = vpack.c.b16 %v421, %v420
      %v458 = vpack.c.b16 %v423, %v422
      %v459 = vpack.c.b16 %v425, %v424
      %v460 = vpack.c.b16 %v427, %v426
      %v461 = vpack.c.b16 %v429, %v428
      %v469 = vunpack.c.l.b16 %v288
      %v470 = vunpack.c.l.b16 %v289
      %v471 = vunpack.c.l.b16 %v290
      %v472 = vunpack.c.l.b16 %v291
      %v473 = vunpack.c.l.b16 %v292
      %v474 = vunpack.c.l.b16 %v293
      %v475 = vunpack.c.l.b16 %v294
      %v476 = vpack.c.b16 %v470, %v469
      %v477 = vpack.c.b16 %v472, %v471
      %v478 = vpack.c.b16 %v474, %v473
      %v479 = vpack.c.b16 %v475, %v475
      %vm483 = vcmask 441344
      %v485 = vsel %vm483, %v430, 0
      %v488 = vsel %vm483, %v431, 0
      %v491 = vsel %vm483, %v432, 0
      %v494 = vsel %vm483, %v433, 0
      %v497 = vsel %vm483, %v434, 0
      %v500 = vsel %vm483, %v435, 0
      %v503 = vsel %vm483, %v436, 0
      %v506 = vsel %vm483, %v437, 0
      %v509 = vsel %vm483, %v438, 0
      %v512 = vsel %vm483, %v439, 0
      %v515 = vsel %vm483, %v440, 0
      %v518 = vsel %vm483, %v441, 0
      %v521 = vsel %vm483, %v442, 0
      %v524 = vsel %vm483, %v443, 0
      %v527 = vsel %vm483, %v444, 0
      %v530 = vsel %vm483, %v445, 0
      %v533 = vsel %vm483, %v446, 0
      %v536 = vsel %vm483, %v447, 0
      %v539 = vsel %vm483, %v448, 0
      %v542 = vsel %vm483, %v449, 0
      %v545 = vsel %vm483, %v450, 0
      %v548 = vsel %vm483, %v451, 0
      %v551 = vsel %vm483, %v452, 0
      %v554 = vsel %vm483, %v453, 0
      %v557 = vsel %vm483, %v454, 0
      %v560 = vsel %vm483, %v455, 0
      %v563 = vsel %vm483, %v456, 0
      %v566 = vsel %vm483, %v457, 0
      %v569 = vsel %vm483, %v458, 0
      %v572 = vsel %vm483, %v459, 0
      %v575 = vsel %vm483, %v460, 0
      %v578 = vsel %vm483, %v461, 0
      %vm580 = vcmask 1042432
      %v582 = vsel %vm580, %v479, 0
      %584 = vmatprep.subr.bf16.mxu0 0
      %585 = vmatpush1.bf16.msra.mxu0 0
      %586 = vmatprep.subr.bf16.mxu0 0
      %587 = vmatpush1.bf16.msra.mxu0 0
      %588 = vmatprep.subr.bf16.mxu0 0
      %589 = vmatpush1.bf16.msra.mxu0 0
      %590 = vmatprep.subr.bf16.mxu0 0
      %591 = vmatpush1.bf16.msra.mxu0 0
      %592 = vmatprep.subr.bf16.mxu0 0
      %593 = vmatpush1.bf16.msra.mxu0 %v582
      %594 = vmatprep.subr.bf16.mxu0 0
      %595 = vmatpush1.bf16.msra.mxu0 %v478
      %596 = vmatprep.subr.bf16.mxu0 0
      %597 = vmatpush1.bf16.msra.mxu0 %v477
      %598 = vmatprep.subr.bf16.mxu0 0
      %599 = vmatpush1.bf16.msra.mxu0 %v476
      %600 = vmatprep.subr.bf16.mxu0 0
      %601 = vmatpush2.bf16.msra.mxu0 0
      %602 = vmatprep.subr.bf16.mxu0 0
      %603 = vmatpush2.bf16.msra.mxu0 0
      %604 = vmatprep.subr.bf16.mxu0 0
      %605 = vmatpush2.bf16.msra.mxu0 0
      %606 = vmatprep.subr.bf16.mxu0 0
      %607 = vmatpush2.bf16.msra.mxu0 0
      %608 = vmatprep.subr.bf16.mxu0 0
      %609 = vmatpush2.bf16.msra.mxu0 0
      %610 = vmatprep.subr.bf16.mxu0 0
      %611 = vmatpush2.bf16.msra.mxu0 0
      %612 = vmatprep.subr.bf16.mxu0 0
      %613 = vmatpush2.bf16.msra.mxu0 0
      %614 = vmatprep.subr.bf16.mxu0 0
      %615 = vmatpush2.bf16.msra.mxu0 0
      %616 = vmatprep.mubr.bf16.mxu0 0
      %617 = vmatmul.mubr.bf16.gmra.mxu0 %v485
      %v618 = vpop.f32.mrf.mxu0
      %v619 = vadd.f32 %v300, %v618
      %v620 = vpop.f32.mrf.mxu0
      %v621 = vpop.f32.mrf.mxu0
      %v622 = vadd.f32 %v300, %v621
      %v623 = vpop.f32.mrf.mxu0
      %624 = vmatprep.mubr.bf16.mxu0 0
      %625 = vmatmul.mubr.bf16.gmra.mxu0 %v488
      %v626 = vpop.f32.mrf.mxu0
      %v627 = vadd.f32 %v300, %v626
      %v628 = vpop.f32.mrf.mxu0
      %v629 = vpop.f32.mrf.mxu0
      %v630 = vadd.f32 %v300, %v629
      %v631 = vpop.f32.mrf.mxu0
      %632 = vmatprep.mubr.bf16.mxu0 0
      %633 = vmatmul.mubr.bf16.gmra.mxu0 %v491
      %v634 = vpop.f32.mrf.mxu0
      %v635 = vadd.f32 %v300, %v634
      %v636 = vpop.f32.mrf.mxu0
      %v637 = vpop.f32.mrf.mxu0
      %v638 = vadd.f32 %v300, %v637
      %v639 = vpop.f32.mrf.mxu0
      %640 = vmatprep.mubr.bf16.mxu0 0
      %641 = vmatmul.mubr.bf16.gmra.mxu0 %v494
      %v642 = vpop.f32.mrf.mxu0
      %v643 = vadd.f32 %v300, %v642
      %v644 = vpop.f32.mrf.mxu0
      %v645 = vpop.f32.mrf.mxu0
      %v646 = vadd.f32 %v300, %v645
      %v647 = vpop.f32.mrf.mxu0
      %648 = vmatprep.mubr.bf16.mxu0 0
      %649 = vmatmul.mubr.bf16.gmra.mxu0 %v497
      %v650 = vpop.f32.mrf.mxu0
      %v651 = vadd.f32 %v300, %v650
      %v652 = vpop.f32.mrf.mxu0
      %v653 = vpop.f32.mrf.mxu0
      %v654 = vadd.f32 %v300, %v653
      %v655 = vpop.f32.mrf.mxu0
      %656 = vmatprep.mubr.bf16.mxu0 0
      %657 = vmatmul.mubr.bf16.gmra.mxu0 %v500
      %v658 = vpop.f32.mrf.mxu0
      %v659 = vadd.f32 %v300, %v658
      %v660 = vpop.f32.mrf.mxu0
      %v661 = vpop.f32.mrf.mxu0
      %v662 = vadd.f32 %v300, %v661
      %v663 = vpop.f32.mrf.mxu0
      %664 = vmatprep.mubr.bf16.mxu0 0
      %665 = vmatmul.mubr.bf16.gmra.mxu0 %v503
      %v666 = vpop.f32.mrf.mxu0
      %v667 = vadd.f32 %v300, %v666
      %v668 = vpop.f32.mrf.mxu0
      %v669 = vpop.f32.mrf.mxu0
      %v670 = vadd.f32 %v300, %v669
      %v671 = vpop.f32.mrf.mxu0
      %672 = vmatprep.mubr.bf16.mxu0 0
      %673 = vmatmul.mubr.bf16.gmra.mxu0 %v506
      %v674 = vpop.f32.mrf.mxu0
      %v675 = vadd.f32 %v300, %v674
      %v676 = vpop.f32.mrf.mxu0
      %v677 = vpop.f32.mrf.mxu0
      %v678 = vadd.f32 %v300, %v677
      %v679 = vpop.f32.mrf.mxu0
      %680 = vmatprep.mubr.bf16.mxu0 0
      %681 = vmatmul.mubr.bf16.gmra.mxu0 %v509
      %v682 = vpop.f32.mrf.mxu0
      %v683 = vadd.f32 %v300, %v682
      %v684 = vpop.f32.mrf.mxu0
      %v685 = vpop.f32.mrf.mxu0
      %v686 = vadd.f32 %v300, %v685
      %v687 = vpop.f32.mrf.mxu0
      %688 = vmatprep.mubr.bf16.mxu0 0
      %689 = vmatmul.mubr.bf16.gmra.mxu0 %v512
      %v690 = vpop.f32.mrf.mxu0
      %v691 = vadd.f32 %v300, %v690
      %v692 = vpop.f32.mrf.mxu0
      %v693 = vpop.f32.mrf.mxu0
      %v694 = vadd.f32 %v300, %v693
      %v695 = vpop.f32.mrf.mxu0
      %696 = vmatprep.mubr.bf16.mxu0 0
      %697 = vmatmul.mubr.bf16.gmra.mxu0 %v515
      %v698 = vpop.f32.mrf.mxu0
      %v699 = vadd.f32 %v300, %v698
      %v700 = vpop.f32.mrf.mxu0
      %v701 = vpop.f32.mrf.mxu0
      %v702 = vadd.f32 %v300, %v701
      %v703 = vpop.f32.mrf.mxu0
      %704 = vmatprep.mubr.bf16.mxu0 0
      %705 = vmatmul.mubr.bf16.gmra.mxu0 %v518
      %v706 = vpop.f32.mrf.mxu0
      %v707 = vadd.f32 %v300, %v706
      %v708 = vpop.f32.mrf.mxu0
      %v709 = vpop.f32.mrf.mxu0
      %v710 = vadd.f32 %v300, %v709
      %v711 = vpop.f32.mrf.mxu0
      %712 = vmatprep.mubr.bf16.mxu0 0
      %713 = vmatmul.mubr.bf16.gmra.mxu0 %v521
      %v714 = vpop.f32.mrf.mxu0
      %v715 = vadd.f32 %v300, %v714
      %v716 = vpop.f32.mrf.mxu0
      %v717 = vpop.f32.mrf.mxu0
      %v718 = vadd.f32 %v300, %v717
      %v719 = vpop.f32.mrf.mxu0
      %720 = vmatprep.mubr.bf16.mxu0 0
      %721 = vmatmul.mubr.bf16.gmra.mxu0 %v524
      %v722 = vpop.f32.mrf.mxu0
      %v723 = vadd.f32 %v300, %v722
      %v724 = vpop.f32.mrf.mxu0
      %v725 = vpop.f32.mrf.mxu0
      %v726 = vadd.f32 %v300, %v725
      %v727 = vpop.f32.mrf.mxu0
      %728 = vmatprep.mubr.bf16.mxu0 0
      %729 = vmatmul.mubr.bf16.gmra.mxu0 %v527
      %v730 = vpop.f32.mrf.mxu0
      %v731 = vadd.f32 %v300, %v730
      %v732 = vpop.f32.mrf.mxu0
      %v733 = vpop.f32.mrf.mxu0
      %v734 = vadd.f32 %v300, %v733
      %v735 = vpop.f32.mrf.mxu0
      %736 = vmatprep.mubr.bf16.mxu0 0
      %737 = vmatmul.mubr.bf16.gmra.mxu0 %v530
      %v738 = vpop.f32.mrf.mxu0
      %v739 = vadd.f32 %v300, %v738
      %v740 = vpop.f32.mrf.mxu0
      %v741 = vpop.f32.mrf.mxu0
      %v742 = vadd.f32 %v300, %v741
      %v743 = vpop.f32.mrf.mxu0
      %744 = vmatprep.mubr.bf16.mxu0 0
      %745 = vmatmul.mubr.bf16.gmra.mxu0 %v533
      %v746 = vpop.f32.mrf.mxu0
      %v747 = vadd.f32 %v300, %v746
      %v748 = vpop.f32.mrf.mxu0
      %v749 = vpop.f32.mrf.mxu0
      %v750 = vadd.f32 %v300, %v749
      %v751 = vpop.f32.mrf.mxu0
      %752 = vmatprep.mubr.bf16.mxu0 0
      %753 = vmatmul.mubr.bf16.gmra.mxu0 %v536
      %v754 = vpop.f32.mrf.mxu0
      %v755 = vadd.f32 %v300, %v754
      %v756 = vpop.f32.mrf.mxu0
      %v757 = vpop.f32.mrf.mxu0
      %v758 = vadd.f32 %v300, %v757
      %v759 = vpop.f32.mrf.mxu0
      %760 = vmatprep.mubr.bf16.mxu0 0
      %761 = vmatmul.mubr.bf16.gmra.mxu0 %v539
      %v762 = vpop.f32.mrf.mxu0
      %v763 = vadd.f32 %v300, %v762
      %v764 = vpop.f32.mrf.mxu0
      %v765 = vpop.f32.mrf.mxu0
      %v766 = vadd.f32 %v300, %v765
      %v767 = vpop.f32.mrf.mxu0
      %768 = vmatprep.mubr.bf16.mxu0 0
      %769 = vmatmul.mubr.bf16.gmra.mxu0 %v542
      %v770 = vpop.f32.mrf.mxu0
      %v771 = vadd.f32 %v300, %v770
      %v772 = vpop.f32.mrf.mxu0
      %v773 = vpop.f32.mrf.mxu0
      %v774 = vadd.f32 %v300, %v773
      %v775 = vpop.f32.mrf.mxu0
      %776 = vmatprep.mubr.bf16.mxu0 0
      %777 = vmatmul.mubr.bf16.gmra.mxu0 %v545
      %v778 = vpop.f32.mrf.mxu0
      %v779 = vadd.f32 %v300, %v778
      %v780 = vpop.f32.mrf.mxu0
      %v781 = vpop.f32.mrf.mxu0
      %v782 = vadd.f32 %v300, %v781
      %v783 = vpop.f32.mrf.mxu0
      %784 = vmatprep.mubr.bf16.mxu0 0
      %785 = vmatmul.mubr.bf16.gmra.mxu0 %v548
      %v786 = vpop.f32.mrf.mxu0
      %v787 = vadd.f32 %v300, %v786
      %v788 = vpop.f32.mrf.mxu0
      %v789 = vpop.f32.mrf.mxu0
      %v790 = vadd.f32 %v300, %v789
      %v791 = vpop.f32.mrf.mxu0
      %792 = vmatprep.mubr.bf16.mxu0 0
      %793 = vmatmul.mubr.bf16.gmra.mxu0 %v551
      %v794 = vpop.f32.mrf.mxu0
      %v795 = vadd.f32 %v300, %v794
      %v796 = vpop.f32.mrf.mxu0
      %v797 = vpop.f32.mrf.mxu0
      %v798 = vadd.f32 %v300, %v797
      %v799 = vpop.f32.mrf.mxu0
      %800 = vmatprep.mubr.bf16.mxu0 0
      %801 = vmatmul.mubr.bf16.gmra.mxu0 %v554
      %v802 = vpop.f32.mrf.mxu0
      %v803 = vadd.f32 %v300, %v802
      %v804 = vpop.f32.mrf.mxu0
      %v805 = vpop.f32.mrf.mxu0
      %v806 = vadd.f32 %v300, %v805
      %v807 = vpop.f32.mrf.mxu0
      %808 = vmatprep.mubr.bf16.mxu0 0
      %809 = vmatmul.mubr.bf16.gmra.mxu0 %v557
      %v810 = vpop.f32.mrf.mxu0
      %v811 = vadd.f32 %v300, %v810
      %v812 = vpop.f32.mrf.mxu0
      %v813 = vpop.f32.mrf.mxu0
      %v814 = vadd.f32 %v300, %v813
      %v815 = vpop.f32.mrf.mxu0
      %816 = vmatprep.mubr.bf16.mxu0 0
      %817 = vmatmul.mubr.bf16.gmra.mxu0 %v560
      %v818 = vpop.f32.mrf.mxu0
      %v819 = vadd.f32 %v300, %v818
      %v820 = vpop.f32.mrf.mxu0
      %v821 = vpop.f32.mrf.mxu0
      %v822 = vadd.f32 %v300, %v821
      %v823 = vpop.f32.mrf.mxu0
      %824 = vmatprep.mubr.bf16.mxu0 0
      %825 = vmatmul.mubr.bf16.gmra.mxu0 %v563
      %v826 = vpop.f32.mrf.mxu0
      %v827 = vadd.f32 %v300, %v826
      %v828 = vpop.f32.mrf.mxu0
      %v829 = vpop.f32.mrf.mxu0
      %v830 = vadd.f32 %v300, %v829
      %v831 = vpop.f32.mrf.mxu0
      %832 = vmatprep.mubr.bf16.mxu0 0
      %833 = vmatmul.mubr.bf16.gmra.mxu0 %v566
      %v834 = vpop.f32.mrf.mxu0
      %v835 = vadd.f32 %v300, %v834
      %v836 = vpop.f32.mrf.mxu0
      %v837 = vpop.f32.mrf.mxu0
      %v838 = vadd.f32 %v300, %v837
      %v839 = vpop.f32.mrf.mxu0
      %840 = vmatprep.mubr.bf16.mxu0 0
      %841 = vmatmul.mubr.bf16.gmra.mxu0 %v569
      %v842 = vpop.f32.mrf.mxu0
      %v843 = vadd.f32 %v300, %v842
      %v844 = vpop.f32.mrf.mxu0
      %v845 = vpop.f32.mrf.mxu0
      %v846 = vadd.f32 %v300, %v845
      %v847 = vpop.f32.mrf.mxu0
      %848 = vmatprep.mubr.bf16.mxu0 0
      %849 = vmatmul.mubr.bf16.gmra.mxu0 %v572
      %v850 = vpop.f32.mrf.mxu0
      %v851 = vadd.f32 %v300, %v850
      %v852 = vpop.f32.mrf.mxu0
      %v853 = vpop.f32.mrf.mxu0
      %v854 = vadd.f32 %v300, %v853
      %v855 = vpop.f32.mrf.mxu0
      %856 = vmatprep.mubr.bf16.mxu0 0
      %857 = vmatmul.mubr.bf16.gmra.mxu0 %v575
      %v858 = vpop.f32.mrf.mxu0
      %v859 = vadd.f32 %v300, %v858
      %v860 = vpop.f32.mrf.mxu0
      %v861 = vpop.f32.mrf.mxu0
      %v862 = vadd.f32 %v300, %v861
      %v863 = vpop.f32.mrf.mxu0
      %864 = vmatprep.mubr.bf16.mxu0 0
      %865 = vmatmul.mubr.bf16.gmra.mxu0 %v578
      %v866 = vpop.f32.mrf.mxu0
      %v867 = vadd.f32 %v300, %v866
      %v868 = vpop.f32.mrf.mxu0
      %v869 = vpop.f32.mrf.mxu0
      %v870 = vadd.f32 %v300, %v869
      %v871 = vpop.f32.mrf.mxu0
      %872 = vdwg.mxu0
      %v873 = vld [vmem:[%s215] sm:$0xff]
      %v874 = vld [vmem:[%s215 + $0x8] sm:$0xff]
      %v875 = vld [vmem:[%s215 + $0x10] sm:$0xff]
      %v876 = vld [vmem:[%s215 + $0x18] sm:$0xff]
      %v877 = vld [vmem:[%s215 + $0x20] sm:$0xff]
      %v878 = vld [vmem:[%s215 + $0x28] sm:$0xff]
      %v879 = vld [vmem:[%s215 + $0x30] sm:$0xff]
      %v880 = vld [vmem:[%s215 + $0x38] sm:$0xff]
      %v881 = vld [vmem:[%s215 + $0x40] sm:$0xff]
      %v882 = vld [vmem:[%s215 + $0x48] sm:$0xff]
      %v883 = vld [vmem:[%s215 + $0x50] sm:$0xff]
      %v884 = vld [vmem:[%s215 + $0x58] sm:$0xff]
      %v885 = vld [vmem:[%s215 + $0x60] sm:$0xff]
      %v886 = vld [vmem:[%s215 + $0x68] sm:$0xff]
      %v887 = vld [vmem:[%s215 + $0x70] sm:$0xff]
      %v888 = vld [vmem:[%s215 + $0x78] sm:$0xff]
      %v889 = vld [vmem:[%s215 + $0x80] sm:$0xff]
      %v890 = vld [vmem:[%s215 + $0x88] sm:$0xff]
      %v891 = vld [vmem:[%s215 + $0x90] sm:$0xff]
      %v892 = vld [vmem:[%s215 + $0x98] sm:$0xff]
      %v893 = vld [vmem:[%s215 + $0xa0] sm:$0xff]
      %v894 = vld [vmem:[%s215 + $0xa8] sm:$0xff]
      %v895 = vld [vmem:[%s215 + $0xb0] sm:$0xff]
      %v896 = vld [vmem:[%s215 + $0xb8] sm:$0xff]
      %v897 = vld [vmem:[%s215 + $0xc0] sm:$0xff]
      %v898 = vld [vmem:[%s215 + $0xc8] sm:$0xff]
      %v899 = vld [vmem:[%s215 + $0xd0] sm:$0xff]
      %v900 = vld [vmem:[%s215 + $0xd8] sm:$0xff]
      %v901 = vld [vmem:[%s215 + $0xe0] sm:$0xff]
      %v902 = vld [vmem:[%s215 + $0xe8] sm:$0xff]
      %v903 = vld [vmem:[%s215 + $0xf0] sm:$0xff]
      %v904 = vld [vmem:[%s215 + $0xf8] sm:$0xff]
      %v905 = vld [vmem:[%s215 + $0x100] sm:$0xff]
      %v906 = vld [vmem:[%s215 + $0x108] sm:$0xff]
      %v907 = vld [vmem:[%s215 + $0x110] sm:$0xff]
      %v908 = vld [vmem:[%s215 + $0x118] sm:$0xff]
      %v909 = vld [vmem:[%s215 + $0x120] sm:$0xff]
      %v910 = vld [vmem:[%s215 + $0x128] sm:$0xff]
      %v911 = vld [vmem:[%s215 + $0x130] sm:$0xff]
      %v912 = vld [vmem:[%s215 + $0x138] sm:$0xff]
      %v913 = vld [vmem:[%s215 + $0x140] sm:$0xff]
      %v914 = vld [vmem:[%s215 + $0x148] sm:$0xff]
      %v915 = vld [vmem:[%s215 + $0x150] sm:$0xff]
      %v916 = vld [vmem:[%s215 + $0x158] sm:$0xff]
      %v917 = vld [vmem:[%s215 + $0x160] sm:$0xff]
      %v918 = vld [vmem:[%s215 + $0x168] sm:$0xff]
      %v919 = vld [vmem:[%s215 + $0x170] sm:$0xff]
      %v920 = vld [vmem:[%s215 + $0x178] sm:$0xff]
      %v921 = vld [vmem:[%s215 + $0x180] sm:$0xff]
      %v922 = vld [vmem:[%s215 + $0x188] sm:$0xff]
      %v923 = vld [vmem:[%s215 + $0x190] sm:$0xff]
      %v924 = vld [vmem:[%s215 + $0x198] sm:$0xff]
      %v925 = vld [vmem:[%s215 + $0x1a0] sm:$0xff]
      %v926 = vld [vmem:[%s215 + $0x1a8] sm:$0xff]
      %v927 = vld [vmem:[%s215 + $0x1b0] sm:$0xff]
      %v928 = vld [vmem:[%s215 + $0x1b8] sm:$0xff]
      %v929 = vld [vmem:[%s215 + $0x1c0] sm:$0xff]
      %v930 = vld [vmem:[%s215 + $0x1c8] sm:$0xff]
      %v931 = vld [vmem:[%s215 + $0x1d0] sm:$0xff]
      %v932 = vld [vmem:[%s215 + $0x1d8] sm:$0xff]
      %v933 = vld [vmem:[%s215 + $0x1e0] sm:$0xff]
      %v934 = vld [vmem:[%s215 + $0x1e8] sm:$0xff]
      %v935 = vld [vmem:[%s215 + $0x1f0] sm:$0xff]
      %v936 = vld [vmem:[%s215 + $0x1f8] sm:$0xff]
      %v937 = vmul.f32 %v619, 0.1
      %v938 = vmul.f32 %v622, 0.1
      %v939 = vmul.f32 %v627, 0.1
      %v940 = vmul.f32 %v630, 0.1
      %v941 = vmul.f32 %v635, 0.1
      %v942 = vmul.f32 %v638, 0.1
      %v943 = vmul.f32 %v643, 0.1
      %v944 = vmul.f32 %v646, 0.1
      %v945 = vmul.f32 %v651, 0.1
      %v946 = vmul.f32 %v654, 0.1
      %v947 = vmul.f32 %v659, 0.1
      %v948 = vmul.f32 %v662, 0.1
      %v949 = vmul.f32 %v667, 0.1
      %v950 = vmul.f32 %v670, 0.1
      %v951 = vmul.f32 %v675, 0.1
      %v952 = vmul.f32 %v678, 0.1
      %v953 = vmul.f32 %v683, 0.1
      %v954 = vmul.f32 %v686, 0.1
      %v955 = vmul.f32 %v691, 0.1
      %v956 = vmul.f32 %v694, 0.1
      %v957 = vmul.f32 %v699, 0.1
      %v958 = vmul.f32 %v702, 0.1
      %v959 = vmul.f32 %v707, 0.1
      %v960 = vmul.f32 %v710, 0.1
      %v961 = vmul.f32 %v715, 0.1
      %v962 = vmul.f32 %v718, 0.1
      %v963 = vmul.f32 %v723, 0.1
      %v964 = vmul.f32 %v726, 0.1
      %v965 = vmul.f32 %v731, 0.1
      %v966 = vmul.f32 %v734, 0.1
      %v967 = vmul.f32 %v739, 0.1
      %v968 = vmul.f32 %v742, 0.1
      %v969 = vmul.f32 %v747, 0.1
      %v970 = vmul.f32 %v750, 0.1
      %v971 = vmul.f32 %v755, 0.1
      %v972 = vmul.f32 %v758, 0.1
      %v973 = vmul.f32 %v763, 0.1
      %v974 = vmul.f32 %v766, 0.1
      %v975 = vmul.f32 %v771, 0.1
      %v976 = vmul.f32 %v774, 0.1
      %v977 = vmul.f32 %v779, 0.1
      %v978 = vmul.f32 %v782, 0.1
      %v979 = vmul.f32 %v787, 0.1
      %v980 = vmul.f32 %v790, 0.1
      %v981 = vmul.f32 %v795, 0.1
      %v982 = vmul.f32 %v798, 0.1
      %v983 = vmul.f32 %v803, 0.1
      %v984 = vmul.f32 %v806, 0.1
      %v985 = vmul.f32 %v811, 0.1
      %v986 = vmul.f32 %v814, 0.1
      %v987 = vmul.f32 %v819, 0.1
      %v988 = vmul.f32 %v822, 0.1
      %v989 = vmul.f32 %v827, 0.1
      %v990 = vmul.f32 %v830, 0.1
      %v991 = vmul.f32 %v835, 0.1
      %v992 = vmul.f32 %v838, 0.1
      %v993 = vmul.f32 %v843, 0.1
      %v994 = vmul.f32 %v846, 0.1
      %v995 = vmul.f32 %v851, 0.1
      %v996 = vmul.f32 %v854, 0.1
      %v997 = vmul.f32 %v859, 0.1
      %v998 = vmul.f32 %v862, 0.1
      %v999 = vmul.f32 %v867, 0.1
      %v1000 = vmul.f32 %v870, 0.1
      %v1001 = vadd.f32 %v873, %v937
      %v1002 = vadd.f32 %v874, %v938
      %v1003 = vadd.f32 %v875, %v939
      %v1004 = vadd.f32 %v876, %v940
      %v1005 = vadd.f32 %v877, %v941
      %v1006 = vadd.f32 %v878, %v942
      %v1007 = vadd.f32 %v879, %v943
      %v1008 = vadd.f32 %v880, %v944
      %v1009 = vadd.f32 %v881, %v945
      %v1010 = vadd.f32 %v882, %v946
      %v1011 = vadd.f32 %v883, %v947
      %v1012 = vadd.f32 %v884, %v948
      %v1013 = vadd.f32 %v885, %v949
      %v1014 = vadd.f32 %v886, %v950
      %v1015 = vadd.f32 %v887, %v951
      %v1016 = vadd.f32 %v888, %v952
      %v1017 = vadd.f32 %v889, %v953
      %v1018 = vadd.f32 %v890, %v954
      %v1019 = vadd.f32 %v891, %v955
      %v1020 = vadd.f32 %v892, %v956
      %v1021 = vadd.f32 %v893, %v957
      %v1022 = vadd.f32 %v894, %v958
      %v1023 = vadd.f32 %v895, %v959
      %v1024 = vadd.f32 %v896, %v960
      %v1025 = vadd.f32 %v897, %v961
      %v1026 = vadd.f32 %v898, %v962
      %v1027 = vadd.f32 %v899, %v963
      %v1028 = vadd.f32 %v900, %v964
      %v1029 = vadd.f32 %v901, %v965
      %v1030 = vadd.f32 %v902, %v966
      %v1031 = vadd.f32 %v903, %v967
      %v1032 = vadd.f32 %v904, %v968
      %v1033 = vadd.f32 %v905, %v969
      %v1034 = vadd.f32 %v906, %v970
      %v1035 = vadd.f32 %v907, %v971
      %v1036 = vadd.f32 %v908, %v972
      %v1037 = vadd.f32 %v909, %v973
      %v1038 = vadd.f32 %v910, %v974
      %v1039 = vadd.f32 %v911, %v975
      %v1040 = vadd.f32 %v912, %v976
      %v1041 = vadd.f32 %v913, %v977
      %v1042 = vadd.f32 %v914, %v978
      %v1043 = vadd.f32 %v915, %v979
      %v1044 = vadd.f32 %v916, %v980
      %v1045 = vadd.f32 %v917, %v981
      %v1046 = vadd.f32 %v918, %v982
      %v1047 = vadd.f32 %v919, %v983
      %v1048 = vadd.f32 %v920, %v984
      %v1049 = vadd.f32 %v921, %v985
      %v1050 = vadd.f32 %v922, %v986
      %v1051 = vadd.f32 %v923, %v987
      %v1052 = vadd.f32 %v924, %v988
      %v1053 = vadd.f32 %v925, %v989
      %v1054 = vadd.f32 %v926, %v990
      %v1055 = vadd.f32 %v927, %v991
      %v1056 = vadd.f32 %v928, %v992
      %v1057 = vadd.f32 %v929, %v993
      %v1058 = vadd.f32 %v930, %v994
      %v1059 = vadd.f32 %v931, %v995
      %v1060 = vadd.f32 %v932, %v996
      %v1061 = vadd.f32 %v933, %v997
      %v1062 = vadd.f32 %v934, %v998
      %v1063 = vadd.f32 %v935, %v999
      %v1064 = vadd.f32 %v936, %v1000
      %1065 = vst [vmem:[%s221] sm:$0xff] %v1001
      %1066 = vst [vmem:[%s221 + $0x8] sm:$0xff] %v1002
      %1067 = vst [vmem:[%s221 + $0x10] sm:$0xff] %v1003
      %1068 = vst [vmem:[%s221 + $0x18] sm:$0xff] %v1004
      %1069 = vst [vmem:[%s221 + $0x20] sm:$0xff] %v1005
      %1070 = vst [vmem:[%s221 + $0x28] sm:$0xff] %v1006
      %1071 = vst [vmem:[%s221 + $0x30] sm:$0xff] %v1007
      %1072 = vst [vmem:[%s221 + $0x38] sm:$0xff] %v1008
      %1073 = vst [vmem:[%s221 + $0x40] sm:$0xff] %v1009
      %1074 = vst [vmem:[%s221 + $0x48] sm:$0xff] %v1010
      %1075 = vst [vmem:[%s221 + $0x50] sm:$0xff] %v1011
      %1076 = vst [vmem:[%s221 + $0x58] sm:$0xff] %v1012
      %1077 = vst [vmem:[%s221 + $0x60] sm:$0xff] %v1013
      %1078 = vst [vmem:[%s221 + $0x68] sm:$0xff] %v1014
      %1079 = vst [vmem:[%s221 + $0x70] sm:$0xff] %v1015
      %1080 = vst [vmem:[%s221 + $0x78] sm:$0xff] %v1016
      %1081 = vst [vmem:[%s221 + $0x80] sm:$0xff] %v1017
      %1082 = vst [vmem:[%s221 + $0x88] sm:$0xff] %v1018
      %1083 = vst [vmem:[%s221 + $0x90] sm:$0xff] %v1019
      %1084 = vst [vmem:[%s221 + $0x98] sm:$0xff] %v1020
      %1085 = vst [vmem:[%s221 + $0xa0] sm:$0xff] %v1021
      %1086 = vst [vmem:[%s221 + $0xa8] sm:$0xff] %v1022
      %1087 = vst [vmem:[%s221 + $0xb0] sm:$0xff] %v1023
      %1088 = vst [vmem:[%s221 + $0xb8] sm:$0xff] %v1024
      %1089 = vst [vmem:[%s221 + $0xc0] sm:$0xff] %v1025
      %1090 = vst [vmem:[%s221 + $0xc8] sm:$0xff] %v1026
      %1091 = vst [vmem:[%s221 + $0xd0] sm:$0xff] %v1027
      %1092 = vst [vmem:[%s221 + $0xd8] sm:$0xff] %v1028
      %1093 = vst [vmem:[%s221 + $0xe0] sm:$0xff] %v1029
      %1094 = vst [vmem:[%s221 + $0xe8] sm:$0xff] %v1030
      %1095 = vst [vmem:[%s221 + $0xf0] sm:$0xff] %v1031
      %1096 = vst [vmem:[%s221 + $0xf8] sm:$0xff] %v1032
      %1097 = vst [vmem:[%s221 + $0x100] sm:$0xff] %v1033
      %1098 = vst [vmem:[%s221 + $0x108] sm:$0xff] %v1034
      %1099 = vst [vmem:[%s221 + $0x110] sm:$0xff] %v1035
      %1100 = vst [vmem:[%s221 + $0x118] sm:$0xff] %v1036
      %1101 = vst [vmem:[%s221 + $0x120] sm:$0xff] %v1037
      %1102 = vst [vmem:[%s221 + $0x128] sm:$0xff] %v1038
      %1103 = vst [vmem:[%s221 + $0x130] sm:$0xff] %v1039
      %1104 = vst [vmem:[%s221 + $0x138] sm:$0xff] %v1040
      %1105 = vst [vmem:[%s221 + $0x140] sm:$0xff] %v1041
      %1106 = vst [vmem:[%s221 + $0x148] sm:$0xff] %v1042
      %1107 = vst [vmem:[%s221 + $0x150] sm:$0xff] %v1043
      %1108 = vst [vmem:[%s221 + $0x158] sm:$0xff] %v1044
      %1109 = vst [vmem:[%s221 + $0x160] sm:$0xff] %v1045
      %1110 = vst [vmem:[%s221 + $0x168] sm:$0xff] %v1046
      %1111 = vst [vmem:[%s221 + $0x170] sm:$0xff] %v1047
      %1112 = vst [vmem:[%s221 + $0x178] sm:$0xff] %v1048
      %1113 = vst [vmem:[%s221 + $0x180] sm:$0xff] %v1049
      %1114 = vst [vmem:[%s221 + $0x188] sm:$0xff] %v1050
      %1115 = vst [vmem:[%s221 + $0x190] sm:$0xff] %v1051
      %1116 = vst [vmem:[%s221 + $0x198] sm:$0xff] %v1052
      %1117 = vst [vmem:[%s221 + $0x1a0] sm:$0xff] %v1053
      %1118 = vst [vmem:[%s221 + $0x1a8] sm:$0xff] %v1054
      %1119 = vst [vmem:[%s221 + $0x1b0] sm:$0xff] %v1055
      %1120 = vst [vmem:[%s221 + $0x1b8] sm:$0xff] %v1056
      %1121 = vst [vmem:[%s221 + $0x1c0] sm:$0xff] %v1057
      %1122 = vst [vmem:[%s221 + $0x1c8] sm:$0xff] %v1058
      %1123 = vst [vmem:[%s221 + $0x1d0] sm:$0xff] %v1059
      %1124 = vst [vmem:[%s221 + $0x1d8] sm:$0xff] %v1060
      %1125 = vst [vmem:[%s221 + $0x1e0] sm:$0xff] %v1061
      %1126 = vst [vmem:[%s221 + $0x1e8] sm:$0xff] %v1062
      %1127 = vst [vmem:[%s221 + $0x1f0] sm:$0xff] %v1063
      %1128 = vst [vmem:[%s221 + $0x1f8] sm:$0xff] %v1064
      %s1129 = smul.u32 64, %s15
      %p1130 = scmp.lt.s32.totalorder %s1129, 127
      %s1131 = scalar_select %p1130, %s1129, 127
      %s1132 = smul.addr %s1131, 8
      %s1133 = scalar_lea.vmem %s4, %s1132
      // Predicated region
      $region37: #{apperance_model_style_forward.31} parent=35 // pred_check
        %p1134 = pneg %p127
      $region38: #{apperance_model_style_forward.31} parent=35 // pred_check_branch
        %1136 = sbr.rel (%p1134) target = $region40
      $region39: #{apperance_model_style_forward.31} parent=35 // pred_region
        %s1137 = smul.u32 64, %s15
      $region40: #{apperance_model_style_forward.31} parent=35 // pred_fallthru
        _
    $region36: #{apperance_model_style_forward.31} parent=5 // pred_fallthru
      _
    %p1138 = scmp.le.s32.totalorder 2, %s10
    // Predicated region
    $region41: #{apperance_model_style_forward.31} parent=5 // pred_check
      %p1139 = pneg %p1138
    $region42: #{apperance_model_style_forward.31} parent=5 // pred_check_branch
      %1141 = sbr.rel (%p1139) target = $region44
    $region43: #{apperance_model_style_forward.31} parent=5 // pred_region
      %s1142 = ssub.s32 %s10, 2
      // Predicated region
      $region45: #{apperance_model_style_forward.31} parent=43 // pred_check
        %p1143 = pneg %p133
      $region46: #{apperance_model_style_forward.31} parent=43 // pred_check_branch
        %1145 = sbr.rel (%p1143) target = $region48
      $region47: #{apperance_model_style_forward.31} parent=43 // pred_region
        %s1146 = smul.u32 64, %s16
        %p1147 = scmp.lt.s32.totalorder %s1146, 127
        %s1148 = scalar_select %p1147, %s1146, 127
        %s1149 = smul.addr %s1148, 8
        %s1150 = scalar_lea.vmem %s4, %s1149
      $region48: #{apperance_model_style_forward.31} parent=43 // pred_fallthru
        _
    $region44: #{apperance_model_style_forward.31} parent=5 // pred_fallthru
      _
  $region6: #{apperance_model_style_forward.31} parent=0 // loop_footer
    %s14 = sadd.s32 1, %s10
  $region7: #{apperance_model_style_forward.31} parent=0 // loop_footer_branch
    %9 = sbr.rel target = $region3
  $region8: #{apperance_model_style_forward.31} parent=0 // loop_exit
    _

</llo_original>
